<compile_context>
chip_gen: v6e
topology: v6e:2x2x1
jax: 0.10.0
libtpu: 0.0.40
codegen_flags: <defaults>
</compile_context>

<pallas_src>
import numpy as np
import jax
import jax.numpy as jnp
from jax import lax
from jax.experimental import pallas as pl
from jax.experimental.pallas import tpu as pltpu

NUM_CLASSES = 10

# Spatial geometry is fixed by the Linear(7*7*16, num_classes) layer.
H1 = W1 = 28
HW1 = H1 * W1            # 784
H2 = W2 = 14
HW2 = H2 * W2            # 196
H3 = W3 = 7
HW3 = H3 * W3            # 49
C1, C2 = 8, 16           # conv output channels
G = 8                    # images per conv1 group (one sublane tile)

PAD1 = W1 + 1            # 29  (row-flat zero padding, layer 1)
PAD2 = W2 + 1            # 15
FLAT1 = HW1 + 2 * PAD1   # 842
FLAT2 = HW2 + 2 * PAD2   # 226

# Truncated widths for the shift-max / pool-selection matmuls (largest flat
# index any selected 2x2 corner can ever touch).
HM1 = HW1 - 1            # 783
K1 = HM1 - W1            # 755
HM2 = HW2 - 1            # 195
K2 = HM2 - W2            # 181


# --------------------------------------------------------------------------
# Kernel 1: fused conv1 + relu/energy + pool1 + conv2 + relu/energy + pool2
#           for a block of B images per grid step.
# --------------------------------------------------------------------------
def _conv_stack_kernel(x_ref, w1bd_ref, b1g_ref, w2m_ref, b2c_ref,
                       p1sel_ref, p2sel_ref,
                       m1l_ref, m1r_ref, m2l_ref, m2r_ref,
                       e1_ref, e2_ref, feat_ref,
                       xf1_s, im1_s, xf2_s, im2_s):
    B = x_ref.shape[0]

    def im2col_taps(src_ref, row0, rows, width, hw, ml, mr, im_s):
        # Build the (9*rows, hw) im2col block for the `rows` images/channels
        # living at sublanes [row0, row0+rows) of the padded row-flat src_ref.
        # Every tap store is a dense (rows, hw) store; dx boundary columns are
        # zeroed with precomputed (1, hw) masks (exactly reproduces padding=1).
        for dy in range(3):
            for dx in range(3):
                t = dy * 3 + dx
                s = dy * width + dx
                tap = src_ref[row0:row0 + rows, s:s + hw]
                if dx == 0:
                    tap = tap * ml
                elif dx == 2:
                    tap = tap * mr
                im_s[t * rows:(t + 1) * rows, :] = tap

    def pool_halves(e_ref, width, hm, k):
        # 2x2/stride-2 max in flat index space on non-negative energies:
        # +1 merges horizontal pairs, +width vertical pairs.  Only the
        # even-(h, w) corner columns (< k) are selected by the matmul after.
        hmax = jnp.maximum(e_ref[:, 0:hm], e_ref[:, 1:hm + 1])
        return jnp.maximum(hmax[:, 0:k], hmax[:, width:width + k])

    # ---- layer 1: conv(1 -> 8), 8 images per block-diagonal MXU matmul ----
    # Zero only the pad columns; the interior is rewritten every step.
    xf1_s[:, 0:PAD1] = jnp.zeros((B, PAD1), jnp.float32)
    xf1_s[:, PAD1 + HW1:FLAT1] = jnp.zeros((B, PAD1), jnp.float32)
    xf1_s[:, PAD1:PAD1 + HW1] = x_ref[...]

    m1l = m1l_ref[...]
    m1r = m1r_ref[...]
    for g in range(B // G):
        im2col_taps(xf1_s, g * G, G, W1, HW1, m1l, m1r, im1_s)
        # (64, 72) block-diagonal weights @ (72, 784): conv1 for 8 images at
        # once, rows ordered (image, channel) -> b-major energy layout.
        out1 = jnp.dot(w1bd_ref[...], im1_s[...],
                       preferred_element_type=jnp.float32) + b1g_ref[...]
        relu1 = jnp.maximum(out1, 0.0)
        # energy = out1 * relu(out1) == relu(out1)^2
        e1_ref[g * G * C1:(g + 1) * G * C1, :] = relu1 * relu1

    # ---- pool1 on the energies already in the e1 output block ----
    # relu^2 is monotone in relu, so max-pool the energy then sqrt.
    vmax1 = pool_halves(e1_ref, W1, HM1, K1)                       # (B*8, 755)
    pooled1 = jnp.sqrt(
        jnp.dot(vmax1, p1sel_ref[...], preferred_element_type=jnp.float32))

    # ---- layer 2: conv(8 -> 16), one image per MXU matmul ----
    xf2_s[:, 0:PAD2] = jnp.zeros((B * C1, PAD2), jnp.float32)
    xf2_s[:, PAD2 + HW2:FLAT2] = jnp.zeros((B * C1, PAD2), jnp.float32)
    xf2_s[:, PAD2:PAD2 + HW2] = pooled1                            # (B*8, 196)

    m2l = m2l_ref[...]
    m2r = m2r_ref[...]
    for b in range(B):
        im2col_taps(xf2_s, b * C1, C1, W2, HW2, m2l, m2r, im2_s)
        out2 = jnp.dot(w2m_ref[...], im2_s[...],
                       preferred_element_type=jnp.float32) + b2c_ref[...]
        relu2 = jnp.maximum(out2, 0.0)
        e2_ref[b * C2:(b + 1) * C2, :] = relu2 * relu2

    # ---- pool2 -> pooled relu2 features, (B*16, 49), b-major rows ----
    vmax2 = pool_halves(e2_ref, W2, HM2, K2)                       # (B*16, 181)
    feat_ref[...] = jnp.sqrt(
        jnp.dot(vmax2, p2sel_ref[...], preferred_element_type=jnp.float32))


# --------------------------------------------------------------------------
# Kernel 2: Linear (MXU matmul) + bias + softmax, gridded over row blocks.
# --------------------------------------------------------------------------
def _linear_softmax_kernel(x_ref, w_ref, b_ref, logits_ref, probas_ref):
    logits = jnp.dot(x_ref[...], w_ref[...],
                     preferred_element_type=jnp.float32) + b_ref[...]
    logits_ref[...] = logits
    m = jnp.max(logits, axis=1, keepdims=True)
    e = jnp.exp(logits - m)
    probas_ref[...] = e / jnp.sum(e, axis=1, keepdims=True)   # exact softmax


def _linear_softmax(feats, wlt, blr, tb):
    n_pad = feats.shape[0]
    return pl.pallas_call(
        _linear_softmax_kernel,
        grid=(n_pad // tb,),
        out_shape=(jax.ShapeDtypeStruct((n_pad, NUM_CLASSES), jnp.float32),
                   jax.ShapeDtypeStruct((n_pad, NUM_CLASSES), jnp.float32)),
        in_specs=[pl.BlockSpec((tb, C2 * HW3), lambda i: (i, 0)),
                  pl.BlockSpec((C2 * HW3, NUM_CLASSES), lambda i: (0, 0)),
                  pl.BlockSpec((1, NUM_CLASSES), lambda i: (0, 0))],
        out_specs=(pl.BlockSpec((tb, NUM_CLASSES), lambda i: (i, 0)),
                   pl.BlockSpec((tb, NUM_CLASSES), lambda i: (i, 0))),
        compiler_params=pltpu.CompilerParams(
            dimension_semantics=("parallel",),
            vmem_limit_bytes=24 << 20),
    )(feats, wlt, blr)


# --------------------------------------------------------------------------
# Host-side glue: constants, block sizing, free reshapes.
# --------------------------------------------------------------------------
def _round_up(x, m):
    return (x + m - 1) // m * m


def _pool_select(width, out_w, k_rows):
    # 0/1 matrix (k_rows, out_w*out_w) selecting the top-left corner of each
    # 2x2 block of a `width`-wide image, in flat (h*width + w) coordinates.
    o = np.arange(k_rows)[:, None]
    hh, ww = np.meshgrid(np.arange(out_w), np.arange(out_w), indexing="ij")
    corners = (2 * hh * width + 2 * ww).reshape(-1)[None, :]
    return jnp.asarray((o == corners).astype(np.float32))


def _col_masks(width, hw):
    # Output-coordinate masks for the dx==0 / dx==2 taps (left/right borders).
    c = np.arange(hw) % width
    left = (c != 0).astype(np.float32)[None, :]
    right = (c != width - 1).astype(np.float32)[None, :]
    return jnp.asarray(left), jnp.asarray(right)


def _vmem_bytes_estimate(B):
    blocks = B * HW1 + B * C1 * HW1 + B * C2 * HW2 + B * C2 * HW3
    scratch = B * FLAT1 + 9 * G * HW1 + B * C1 * FLAT2 + 9 * C1 * HW2
    consts = (G * C1 * 9 * G + G * C1 + C2 * 9 * C1 + C2
              + K1 * HW2 + K2 * HW3 + 2 * HW1 + 2 * HW2)
    # in/out blocks are double-buffered by the pipeline; slack for temporaries.
    return 4 * (2 * blocks + scratch + 2 * consts) + (6 << 20)


def _choose_block(n, requested):
    b = max(G, _round_up(min(requested, max(n, 1)), G))
    # Keep the per-step footprint comfortably inside v7x's 64 MiB VMEM.
    while b > G and _vmem_bytes_estimate(b) > (40 << 20):
        b -= G
    return b


def _prep_params(params):
    w1, b1, w2, b2, wl, bl = params
    w1m = jnp.asarray(w1, jnp.float32).reshape(C1, 9)             # [c, dy*3+dx]
    # Block-diagonal conv1 weights: rows (image j, channel c), cols (tap t,
    # image j'), nonzero iff j == j'.
    eye = jnp.eye(G, dtype=jnp.float32)
    w1bd = (eye[:, None, None, :] * w1m[None, :, :, None]).reshape(G * C1, 9 * G)
    b1g = jnp.tile(jnp.asarray(b1, jnp.float32), (G,)).reshape(G * C1, 1)
    # torch (Cout, Cin, kh, kw) -> (Cout, (kh*kw)*Cin), matching im2col rows.
    w2m = jnp.transpose(jnp.asarray(w2, jnp.float32), (0, 2, 3, 1)).reshape(C2, 9 * C1)
    b2c = jnp.asarray(b2, jnp.float32).reshape(C2, 1)
    wlt = jnp.asarray(wl, jnp.float32).T                           # (784, 10)
    blr = jnp.asarray(bl, jnp.float32).reshape(1, NUM_CLASSES)
    return w1bd, b1g, w2m, b2c, wlt, blr


def convnet_forward(x_nchw, params, *, block_images=32):
    w1bd, b1g, w2m, b2c, wlt, blr = _prep_params(params)
    n = x_nchw.shape[0]
    B = _choose_block(n, block_images)
    n_pad = _round_up(n, B)

    x = jnp.asarray(x_nchw, jnp.float32).reshape(n, HW1)           # free reshape
    if n_pad != n:
        x = jnp.pad(x, ((0, n_pad - n), (0, 0)))

    p1sel = _pool_select(W1, H2, K1)                               # (755, 196)
    p2sel = _pool_select(W2, H3, K2)                               # (181, 49)
    m1l, m1r = _col_masks(W1, HW1)
    m2l, m2r = _col_masks(W2, HW2)

    vmem_limit = int(min(max(_vmem_bytes_estimate(B), 24 << 20), 56 << 20))

    e1, e2, feats = pl.pallas_call(
        _conv_stack_kernel,
        grid=(n_pad // B,),
        out_shape=(
            jax.ShapeDtypeStruct((n_pad * C1, HW1), jnp.float32),   # energy 1
            jax.ShapeDtypeStruct((n_pad * C2, HW2), jnp.float32),   # energy 2
            jax.ShapeDtypeStruct((n_pad * C2, HW3), jnp.float32),   # pooled feats
        ),
        in_specs=[
            pl.BlockSpec((B, HW1), lambda i: (i, 0)),               # images
            pl.BlockSpec((G * C1, 9 * G), lambda i: (0, 0)),        # conv1 blkdiag
            pl.BlockSpec((G * C1, 1), lambda i: (0, 0)),            # conv1 bias
            pl.BlockSpec((C2, 9 * C1), lambda i: (0, 0)),           # conv2 weights
            pl.BlockSpec((C2, 1), lambda i: (0, 0)),                # conv2 bias
            pl.BlockSpec((K1, HW2), lambda i: (0, 0)),              # pool1 select
            pl.BlockSpec((K2, HW3), lambda i: (0, 0)),              # pool2 select
            pl.BlockSpec((1, HW1), lambda i: (0, 0)),               # dx==0 mask L1
            pl.BlockSpec((1, HW1), lambda i: (0, 0)),               # dx==2 mask L1
            pl.BlockSpec((1, HW2), lambda i: (0, 0)),               # dx==0 mask L2
            pl.BlockSpec((1, HW2), lambda i: (0, 0)),               # dx==2 mask L2
        ],
        out_specs=(
            pl.BlockSpec((B * C1, HW1), lambda i: (i, 0)),
            pl.BlockSpec((B * C2, HW2), lambda i: (i, 0)),
            pl.BlockSpec((B * C2, HW3), lambda i: (i, 0)),
        ),
        scratch_shapes=[
            pltpu.VMEM((B, FLAT1), jnp.float32),        # padded flat images
            pltpu.VMEM((9 * G, HW1), jnp.float32),      # conv1 octet im2col
            pltpu.VMEM((B * C1, FLAT2), jnp.float32),   # padded flat pool1
            pltpu.VMEM((9 * C1, HW2), jnp.float32),     # conv2 im2col
        ],
        compiler_params=pltpu.CompilerParams(
            dimension_semantics=("parallel",),          # shards across TCs
            vmem_limit_bytes=vmem_limit),
    )(x, w1bd, b1g, w2m, b2c, p1sel, p2sel, m1l, m1r, m2l, m2r)

    # (n_pad*16, 49) -> (n_pad, 784) is a free row-major reshape and gives the
    # exact PyTorch out.view(-1, 7*7*16) ordering (c*49 + h*7 + w).
    logits_p, probas_p = _linear_softmax(feats.reshape(n_pad, C2 * HW3),
                                         wlt, blr, B)

    logits = logits_p[:n]
    probas = probas_p[:n]
    e1 = e1[:n * C1].reshape(n, C1, H1, W1)
    e2 = e2[:n * C2].reshape(n, C2, H2, W2)
    return logits, probas, e1, e2


# --------------------------------------------------------------------------
# Pure-JAX reference (for the correctness check).
# --------------------------------------------------------------------------
def ref_forward(x, params):
    w1, b1, w2, b2, wl, bl = params
    n = x.shape[0]
    dn = ('NCHW', 'OIHW', 'NCHW')
    o1 = lax.conv_general_dilated(x, w1, (1, 1), ((1, 1), (1, 1)),
                                  dimension_numbers=dn) + b1.reshape(1, -1, 1, 1)
    r1 = jnp.maximum(o1, 0.0)
    e1 = o1 * r1
    p1 = r1.reshape(n, C1, H2, 2, W2, 2).max(axis=(3, 5))
    o2 = lax.conv_general_dilated(p1, w2, (1, 1), ((1, 1), (1, 1)),
                                  dimension_numbers=dn) + b2.reshape(1, -1, 1, 1)
    r2 = jnp.maximum(o2, 0.0)
    e2 = o2 * r2
    p2 = r2.reshape(n, C2, H3, 2, W3, 2).max(axis=(3, 5))
    logits = p2.reshape(n, C2 * HW3) @ wl.T + bl
    probas = jax.nn.softmax(logits, axis=1)
    return logits, probas, e1, e2


if __name__ == "__main__":
    key = jax.random.PRNGKey(0)
    k1, k2, k3, k4, k5, kx = jax.random.split(key, 6)

    # Weights ~ N(0, 0.1) like the module init; biases made non-zero so the
    # bias path is actually exercised (the module init would zero them).
    w1 = 0.1 * jax.random.normal(k1, (C1, 1, 3, 3), jnp.float32)
    b1 = 0.05 * jax.random.normal(k4, (C1,), jnp.float32)
    w2 = 0.1 * jax.random.normal(k2, (C2, C1, 3, 3), jnp.float32)
    b2 = 0.05 * jax.random.normal(k5, (C2,), jnp.float32)
    wl = 0.1 * jax.random.normal(k3, (NUM_CLASSES, C2 * HW3), jnp.float32)
    bl = jnp.zeros((NUM_CLASSES,), jnp.float32)
    params = (w1, b1, w2, b2, wl, bl)

    # Input: NCHW like PyTorch; the Linear layer forces 1x28x28 spatial size.
    # batch=10 with block_images=8 exercises batch padding and a 2-step grid.
    x = jax.random.normal(kx, (10, 1, H1, W1), jnp.float32)

    fwd = jax.jit(convnet_forward, static_argnames=("block_images",))
    outs = jax.block_until_ready(fwd(x, params, block_images=8))

    ref = ref_forward(x, params)
    names = ("logits", "probas", "energy1", "energy2")
    for name, got, want in zip(names, outs, ref):
        np.testing.assert_allclose(np.asarray(got), np.asarray(want),
                                   rtol=1e-3, atol=1e-3, err_msg=name)

    print("KERNEL_OK")
</pallas_src>

<mosaic_0001>
module attributes {stable_mosaic.version = 11 : i64} {
  func.func @_linear_softmax_kernel(%arg0: i32, %arg1: memref<8x784xf32, #tpu.memory_space<vmem>>, %arg2: memref<784x10xf32, #tpu.memory_space<vmem>>, %arg3: memref<1x10xf32, #tpu.memory_space<vmem>>, %arg4: memref<8x10xf32, #tpu.memory_space<vmem>>, %arg5: memref<8x10xf32, #tpu.memory_space<vmem>>) attributes {dimension_semantics = [#tpu.dimension_semantics<parallel>], iteration_bounds = array<i64: 2>, scalar_prefetch = 0 : i64, scratch_operands = 0 : i64, tpu.core_type = #tpu.core_type<tc>, window_params = [{transform_indices = @transform_0, window_bounds = array<i64: 8, 784>}, {pipeline_mode = #tpu.pipeline_mode<synchronous>, transform_indices = @transform_1, window_bounds = array<i64: 784, 10>}, {pipeline_mode = #tpu.pipeline_mode<synchronous>, transform_indices = @transform_2, window_bounds = array<i64: 1, 10>}, {transform_indices = @transform_3, window_bounds = array<i64: 8, 10>}, {transform_indices = @transform_4, window_bounds = array<i64: 8, 10>}]} {
    %c0 = arith.constant 0 : index
    %c0_0 = arith.constant 0 : index
    %0 = vector.load %arg1[%c0, %c0_0] : memref<8x784xf32, #tpu.memory_space<vmem>>, vector<8x784xf32>
    %c0_1 = arith.constant 0 : index
    %c0_2 = arith.constant 0 : index
    %1 = vector.load %arg2[%c0_1, %c0_2] : memref<784x10xf32, #tpu.memory_space<vmem>>, vector<784x10xf32>
    %cst = arith.constant dense<0.000000e+00> : vector<8x10xf32>
    %2 = tpu.matmul %0, %1, %cst {dimension_numbers = #tpu.dot_dimension_numbers<[1], [0], [0], [1], [0, 0, 1, 1], [], []>} : vector<8x784xf32>, vector<784x10xf32>, vector<8x10xf32> -> vector<8x10xf32>
    %c0_3 = arith.constant 0 : index
    %c0_4 = arith.constant 0 : index
    %3 = vector.load %arg3[%c0_3, %c0_4] : memref<1x10xf32, #tpu.memory_space<vmem>>, vector<1x10xf32>
    %4 = vector.broadcast %3 : vector<1x10xf32> to vector<8x10xf32>
    %5 = arith.addf %2, %4 : vector<8x10xf32>
    %c0_5 = arith.constant 0 : index
    %c0_6 = arith.constant 0 : index
    %6 = vector.load %arg4[%c0_5, %c0_6] : memref<8x10xf32, #tpu.memory_space<vmem>>, vector<8x10xf32>
    tpu.vector_store %arg4[%c0_5, %c0_6], %5 {strides = array<i32>} : memref<8x10xf32, #tpu.memory_space<vmem>>, vector<8x10xf32>,
    %cst_7 = arith.constant dense<0xFF800000> : vector<8xf32>
    %7 = vector.multi_reduction <maximumf>, %5, %cst_7 [1] : vector<8x10xf32> to vector<8xf32>
    %8 = vector.shape_cast %7 : vector<8xf32> to vector<8x1xf32>
    %9 = vector.broadcast %8 : vector<8x1xf32> to vector<8x10xf32>
    %10 = arith.subf %5, %9 : vector<8x10xf32>
    %11 = math.exp %10 : vector<8x10xf32>
    %cst_8 = arith.constant dense<0.000000e+00> : vector<8xf32>
    %12 = vector.multi_reduction <add>, %11, %cst_8 [1] : vector<8x10xf32> to vector<8xf32>
    %13 = vector.shape_cast %12 : vector<8xf32> to vector<8x1xf32>
    %14 = vector.broadcast %13 : vector<8x1xf32> to vector<8x10xf32>
    %15 = arith.divf %11, %14 : vector<8x10xf32>
    %c0_9 = arith.constant 0 : index
    %c0_10 = arith.constant 0 : index
    %16 = vector.load %arg5[%c0_9, %c0_10] : memref<8x10xf32, #tpu.memory_space<vmem>>, vector<8x10xf32>
    tpu.vector_store %arg5[%c0_9, %c0_10], %15 {strides = array<i32>} : memref<8x10xf32, #tpu.memory_space<vmem>>, vector<8x10xf32>,
    return
  }
  func.func @transform_0(%arg0: i32) -> (i32, i32) {
    %c0_i32 = arith.constant 0 : i32
    %c0_i32_0 = arith.constant 0 : i32
    return %arg0, %c0_i32 : i32, i32
  }
  func.func @transform_1(%arg0: i32) -> (i32, i32) {
    %c0_i32 = arith.constant 0 : i32
    %c0_i32_0 = arith.constant 0 : i32
    %c0_i32_1 = arith.constant 0 : i32
    return %c0_i32, %c0_i32_0 : i32, i32
  }
  func.func @transform_2(%arg0: i32) -> (i32, i32) {
    %c0_i32 = arith.constant 0 : i32
    %c0_i32_0 = arith.constant 0 : i32
    %c0_i32_1 = arith.constant 0 : i32
    return %c0_i32, %c0_i32_0 : i32, i32
  }
  func.func @transform_3(%arg0: i32) -> (i32, i32) {
    %c0_i32 = arith.constant 0 : i32
    %c0_i32_0 = arith.constant 0 : i32
    return %arg0, %c0_i32 : i32, i32
  }
  func.func @transform_4(%arg0: i32) -> (i32, i32) {
    %c0_i32 = arith.constant 0 : i32
    %c0_i32_0 = arith.constant 0 : i32
    return %arg0, %c0_i32 : i32, i32
  }
}

module attributes {stable_mosaic.version = 11 : i64} {
  func.func @_conv_stack_kernel(%arg0: i32, %arg1: memref<8x784xf32, #tpu.memory_space<vmem>>, %arg2: memref<64x72xf32, #tpu.memory_space<vmem>>, %arg3: memref<64x1xf32, #tpu.memory_space<vmem>>, %arg4: memref<16x72xf32, #tpu.memory_space<vmem>>, %arg5: memref<16x1xf32, #tpu.memory_space<vmem>>, %arg6: memref<755x196xf32, #tpu.memory_space<vmem>>, %arg7: memref<181x49xf32, #tpu.memory_space<vmem>>, %arg8: memref<1x784xf32, #tpu.memory_space<vmem>>, %arg9: memref<1x784xf32, #tpu.memory_space<vmem>>, %arg10: memref<1x196xf32, #tpu.memory_space<vmem>>, %arg11: memref<1x196xf32, #tpu.memory_space<vmem>>, %arg12: memref<64x784xf32, #tpu.memory_space<vmem>>, %arg13: memref<128x196xf32, #tpu.memory_space<vmem>>, %arg14: memref<128x49xf32, #tpu.memory_space<vmem>>, %arg15: memref<8x842xf32, #tpu.memory_space<vmem>>, %arg16: memref<72x784xf32, #tpu.memory_space<vmem>>, %arg17: memref<64x226xf32, #tpu.memory_space<vmem>>, %arg18: memref<72x196xf32, #tpu.memory_space<vmem>>) attributes {dimension_semantics = [#tpu.dimension_semantics<parallel>], iteration_bounds = array<i64: 2>, scalar_prefetch = 0 : i64, scratch_operands = 4 : i64, tpu.core_type = #tpu.core_type<tc>, window_params = [{transform_indices = @transform_0, window_bounds = array<i64: 8, 784>}, {pipeline_mode = #tpu.pipeline_mode<synchronous>, transform_indices = @transform_1, window_bounds = array<i64: 64, 72>}, {pipeline_mode = #tpu.pipeline_mode<synchronous>, transform_indices = @transform_2, window_bounds = array<i64: 64, 1>}, {pipeline_mode = #tpu.pipeline_mode<synchronous>, transform_indices = @transform_3, window_bounds = array<i64: 16, 72>}, {pipeline_mode = #tpu.pipeline_mode<synchronous>, transform_indices = @transform_4, window_bounds = array<i64: 16, 1>}, {pipeline_mode = #tpu.pipeline_mode<synchronous>, transform_indices = @transform_5, window_bounds = array<i64: 755, 196>}, {pipeline_mode = #tpu.pipeline_mode<synchronous>, transform_indices = @transform_6, window_bounds = array<i64: 181, 49>}, {pipeline_mode = #tpu.pipeline_mode<synchronous>, transform_indices = @transform_7, window_bounds = array<i64: 1, 784>}, {pipeline_mode = #tpu.pipeline_mode<synchronous>, transform_indices = @transform_8, window_bounds = array<i64: 1, 784>}, {pipeline_mode = #tpu.pipeline_mode<synchronous>, transform_indices = @transform_9, window_bounds = array<i64: 1, 196>}, {pipeline_mode = #tpu.pipeline_mode<synchronous>, transform_indices = @transform_10, window_bounds = array<i64: 1, 196>}, {transform_indices = @transform_11, window_bounds = array<i64: 64, 784>}, {transform_indices = @transform_12, window_bounds = array<i64: 128, 196>}, {transform_indices = @transform_13, window_bounds = array<i64: 128, 49>}]} {
    %cst = arith.constant 0.000000e+00 : f32
    %0 = vector.broadcast %cst : f32 to vector<8x29xf32>
    %c0 = arith.constant 0 : index
    %c0_0 = arith.constant 0 : index
    %1 = vector.load %arg15[%c0, %c0_0] : memref<8x842xf32, #tpu.memory_space<vmem>>, vector<8x29xf32>
    tpu.vector_store %arg15[%c0, %c0_0], %0 {strides = array<i32>} : memref<8x842xf32, #tpu.memory_space<vmem>>, vector<8x29xf32>,
    %cst_1 = arith.constant 0.000000e+00 : f32
    %2 = vector.broadcast %cst_1 : f32 to vector<8x29xf32>
    %c0_2 = arith.constant 0 : index
    %c813 = arith.constant 813 : index
    %3 = vector.load %arg15[%c0_2, %c813] : memref<8x842xf32, #tpu.memory_space<vmem>>, vector<8x29xf32>
    tpu.vector_store %arg15[%c0_2, %c813], %2 {strides = array<i32>} : memref<8x842xf32, #tpu.memory_space<vmem>>, vector<8x29xf32>,
    %c0_3 = arith.constant 0 : index
    %c0_4 = arith.constant 0 : index
    %4 = vector.load %arg1[%c0_3, %c0_4] : memref<8x784xf32, #tpu.memory_space<vmem>>, vector<8x784xf32>
    %c0_5 = arith.constant 0 : index
    %c29 = arith.constant 29 : index
    %5 = vector.load %arg15[%c0_5, %c29] : memref<8x842xf32, #tpu.memory_space<vmem>>, vector<8x784xf32>
    tpu.vector_store %arg15[%c0_5, %c29], %4 {strides = array<i32>} : memref<8x842xf32, #tpu.memory_space<vmem>>, vector<8x784xf32>,
    %c0_6 = arith.constant 0 : index
    %c0_7 = arith.constant 0 : index
    %6 = vector.load %arg8[%c0_6, %c0_7] : memref<1x784xf32, #tpu.memory_space<vmem>>, vector<1x784xf32>
    %c0_8 = arith.constant 0 : index
    %c0_9 = arith.constant 0 : index
    %7 = vector.load %arg9[%c0_8, %c0_9] : memref<1x784xf32, #tpu.memory_space<vmem>>, vector<1x784xf32>
    %c0_10 = arith.constant 0 : index
    %c0_11 = arith.constant 0 : index
    %8 = vector.load %arg15[%c0_10, %c0_11] : memref<8x842xf32, #tpu.memory_space<vmem>>, vector<8x784xf32>
    %9 = vector.broadcast %6 : vector<1x784xf32> to vector<8x784xf32>
    %10 = arith.mulf %8, %9 : vector<8x784xf32>
    %c0_12 = arith.constant 0 : index
    %c0_13 = arith.constant 0 : index
    %11 = vector.load %arg16[%c0_12, %c0_13] : memref<72x784xf32, #tpu.memory_space<vmem>>, vector<8x784xf32>
    tpu.vector_store %arg16[%c0_12, %c0_13], %10 {strides = array<i32>} : memref<72x784xf32, #tpu.memory_space<vmem>>, vector<8x784xf32>,
    %c0_14 = arith.constant 0 : index
    %c1 = arith.constant 1 : index
    %12 = vector.load %arg15[%c0_14, %c1] : memref<8x842xf32, #tpu.memory_space<vmem>>, vector<8x784xf32>
    %c8 = arith.constant 8 : index
    %c0_15 = arith.constant 0 : index
    %13 = vector.load %arg16[%c8, %c0_15] : memref<72x784xf32, #tpu.memory_space<vmem>>, vector<8x784xf32>
    tpu.vector_store %arg16[%c8, %c0_15], %12 {strides = array<i32>} : memref<72x784xf32, #tpu.memory_space<vmem>>, vector<8x784xf32>,
    %c0_16 = arith.constant 0 : index
    %c2 = arith.constant 2 : index
    %14 = vector.load %arg15[%c0_16, %c2] : memref<8x842xf32, #tpu.memory_space<vmem>>, vector<8x784xf32>
    %15 = vector.broadcast %7 : vector<1x784xf32> to vector<8x784xf32>
    %16 = arith.mulf %14, %15 : vector<8x784xf32>
    %c16 = arith.constant 16 : index
    %c0_17 = arith.constant 0 : index
    %17 = vector.load %arg16[%c16, %c0_17] : memref<72x784xf32, #tpu.memory_space<vmem>>, vector<8x784xf32>
    tpu.vector_store %arg16[%c16, %c0_17], %16 {strides = array<i32>} : memref<72x784xf32, #tpu.memory_space<vmem>>, vector<8x784xf32>,
    %c0_18 = arith.constant 0 : index
    %c28 = arith.constant 28 : index
    %18 = vector.load %arg15[%c0_18, %c28] : memref<8x842xf32, #tpu.memory_space<vmem>>, vector<8x784xf32>
    %19 = vector.broadcast %6 : vector<1x784xf32> to vector<8x784xf32>
    %20 = arith.mulf %18, %19 : vector<8x784xf32>
    %c24 = arith.constant 24 : index
    %c0_19 = arith.constant 0 : index
    %21 = vector.load %arg16[%c24, %c0_19] : memref<72x784xf32, #tpu.memory_space<vmem>>, vector<8x784xf32>
    tpu.vector_store %arg16[%c24, %c0_19], %20 {strides = array<i32>} : memref<72x784xf32, #tpu.memory_space<vmem>>, vector<8x784xf32>,
    %c0_20 = arith.constant 0 : index
    %c29_21 = arith.constant 29 : index
    %22 = vector.load %arg15[%c0_20, %c29_21] : memref<8x842xf32, #tpu.memory_space<vmem>>, vector<8x784xf32>
    %c32 = arith.constant 32 : index
    %c0_22 = arith.constant 0 : index
    %23 = vector.load %arg16[%c32, %c0_22] : memref<72x784xf32, #tpu.memory_space<vmem>>, vector<8x784xf32>
    tpu.vector_store %arg16[%c32, %c0_22], %22 {strides = array<i32>} : memref<72x784xf32, #tpu.memory_space<vmem>>, vector<8x784xf32>,
    %c0_23 = arith.constant 0 : index
    %c30 = arith.constant 30 : index
    %24 = vector.load %arg15[%c0_23, %c30] : memref<8x842xf32, #tpu.memory_space<vmem>>, vector<8x784xf32>
    %25 = vector.broadcast %7 : vector<1x784xf32> to vector<8x784xf32>
    %26 = arith.mulf %24, %25 : vector<8x784xf32>
    %c40 = arith.constant 40 : index
    %c0_24 = arith.constant 0 : index
    %27 = vector.load %arg16[%c40, %c0_24] : memref<72x784xf32, #tpu.memory_space<vmem>>, vector<8x784xf32>
    tpu.vector_store %arg16[%c40, %c0_24], %26 {strides = array<i32>} : memref<72x784xf32, #tpu.memory_space<vmem>>, vector<8x784xf32>,
    %c0_25 = arith.constant 0 : index
    %c56 = arith.constant 56 : index
    %28 = vector.load %arg15[%c0_25, %c56] : memref<8x842xf32, #tpu.memory_space<vmem>>, vector<8x784xf32>
    %29 = vector.broadcast %6 : vector<1x784xf32> to vector<8x784xf32>
    %30 = arith.mulf %28, %29 : vector<8x784xf32>
    %c48 = arith.constant 48 : index
    %c0_26 = arith.constant 0 : index
    %31 = vector.load %arg16[%c48, %c0_26] : memref<72x784xf32, #tpu.memory_space<vmem>>, vector<8x784xf32>
    tpu.vector_store %arg16[%c48, %c0_26], %30 {strides = array<i32>} : memref<72x784xf32, #tpu.memory_space<vmem>>, vector<8x784xf32>,
    %c0_27 = arith.constant 0 : index
    %c57 = arith.constant 57 : index
    %32 = vector.load %arg15[%c0_27, %c57] : memref<8x842xf32, #tpu.memory_space<vmem>>, vector<8x784xf32>
    %c56_28 = arith.constant 56 : index
    %c0_29 = arith.constant 0 : index
    %33 = vector.load %arg16[%c56_28, %c0_29] : memref<72x784xf32, #tpu.memory_space<vmem>>, vector<8x784xf32>
    tpu.vector_store %arg16[%c56_28, %c0_29], %32 {strides = array<i32>} : memref<72x784xf32, #tpu.memory_space<vmem>>, vector<8x784xf32>,
    %c0_30 = arith.constant 0 : index
    %c58 = arith.constant 58 : index
    %34 = vector.load %arg15[%c0_30, %c58] : memref<8x842xf32, #tpu.memory_space<vmem>>, vector<8x784xf32>
    %35 = vector.broadcast %7 : vector<1x784xf32> to vector<8x784xf32>
    %36 = arith.mulf %34, %35 : vector<8x784xf32>
    %c64 = arith.constant 64 : index
    %c0_31 = arith.constant 0 : index
    %37 = vector.load %arg16[%c64, %c0_31] : memref<72x784xf32, #tpu.memory_space<vmem>>, vector<8x784xf32>
    tpu.vector_store %arg16[%c64, %c0_31], %36 {strides = array<i32>} : memref<72x784xf32, #tpu.memory_space<vmem>>, vector<8x784xf32>,
    %c0_32 = arith.constant 0 : index
    %c0_33 = arith.constant 0 : index
    %38 = vector.load %arg2[%c0_32, %c0_33] : memref<64x72xf32, #tpu.memory_space<vmem>>, vector<64x72xf32>
    %c0_34 = arith.constant 0 : index
    %c0_35 = arith.constant 0 : index
    %39 = vector.load %arg16[%c0_34, %c0_35] : memref<72x784xf32, #tpu.memory_space<vmem>>, vector<72x784xf32>
    %cst_36 = arith.constant dense<0.000000e+00> : vector<64x784xf32>
    %40 = tpu.matmul %38, %39, %cst_36 {dimension_numbers = #tpu.dot_dimension_numbers<[1], [0], [0], [1], [0, 0, 1, 1], [], []>} : vector<64x72xf32>, vector<72x784xf32>, vector<64x784xf32> -> vector<64x784xf32>
    %c0_37 = arith.constant 0 : index
    %c0_38 = arith.constant 0 : index
    %41 = vector.load %arg3[%c0_37, %c0_38] : memref<64x1xf32, #tpu.memory_space<vmem>>, vector<64x1xf32>
    %42 = vector.broadcast %41 : vector<64x1xf32> to vector<64x784xf32>
    %43 = arith.addf %40, %42 : vector<64x784xf32>
    %cst_39 = arith.constant 0.000000e+00 : f32
    %44 = vector.broadcast %cst_39 : f32 to vector<64x784xf32>
    %45 = arith.maximumf %43, %44 : vector<64x784xf32>
    %46 = arith.mulf %45, %45 : vector<64x784xf32>
    %c0_40 = arith.constant 0 : index
    %c0_41 = arith.constant 0 : index
    %47 = vector.load %arg12[%c0_40, %c0_41] : memref<64x784xf32, #tpu.memory_space<vmem>>, vector<64x784xf32>
    tpu.vector_store %arg12[%c0_40, %c0_41], %46 {strides = array<i32>} : memref<64x784xf32, #tpu.memory_space<vmem>>, vector<64x784xf32>,
    %c0_42 = arith.constant 0 : index
    %c0_43 = arith.constant 0 : index
    %48 = vector.load %arg12[%c0_42, %c0_43] : memref<64x784xf32, #tpu.memory_space<vmem>>, vector<64x783xf32>
    %c0_44 = arith.constant 0 : index
    %c1_45 = arith.constant 1 : index
    %49 = vector.load %arg12[%c0_44, %c1_45] : memref<64x784xf32, #tpu.memory_space<vmem>>, vector<64x783xf32>
    %50 = arith.maximumf %48, %49 : vector<64x783xf32>
    %51 = vector.extract_strided_slice %50 {offsets = [0, 0], sizes = [64, 755], strides = [1, 1]} : vector<64x783xf32> to vector<64x755xf32>
    %52 = vector.extract_strided_slice %50 {offsets = [0, 28], sizes = [64, 755], strides = [1, 1]} : vector<64x783xf32> to vector<64x755xf32>
    %53 = arith.maximumf %51, %52 : vector<64x755xf32>
    %c0_46 = arith.constant 0 : index
    %c0_47 = arith.constant 0 : index
    %54 = vector.load %arg6[%c0_46, %c0_47] : memref<755x196xf32, #tpu.memory_space<vmem>>, vector<755x196xf32>
    %cst_48 = arith.constant dense<0.000000e+00> : vector<64x196xf32>
    %55 = tpu.matmul %53, %54, %cst_48 {dimension_numbers = #tpu.dot_dimension_numbers<[1], [0], [0], [1], [0, 0, 1, 1], [], []>} : vector<64x755xf32>, vector<755x196xf32>, vector<64x196xf32> -> vector<64x196xf32>
    %56 = math.sqrt %55 : vector<64x196xf32>
    %cst_49 = arith.constant 0.000000e+00 : f32
    %57 = vector.broadcast %cst_49 : f32 to vector<64x15xf32>
    %c0_50 = arith.constant 0 : index
    %c0_51 = arith.constant 0 : index
    %58 = vector.load %arg17[%c0_50, %c0_51] : memref<64x226xf32, #tpu.memory_space<vmem>>, vector<64x15xf32>
    tpu.vector_store %arg17[%c0_50, %c0_51], %57 {strides = array<i32>} : memref<64x226xf32, #tpu.memory_space<vmem>>, vector<64x15xf32>,
    %cst_52 = arith.constant 0.000000e+00 : f32
    %59 = vector.broadcast %cst_52 : f32 to vector<64x15xf32>
    %c0_53 = arith.constant 0 : index
    %c211 = arith.constant 211 : index
    %60 = vector.load %arg17[%c0_53, %c211] : memref<64x226xf32, #tpu.memory_space<vmem>>, vector<64x15xf32>
    tpu.vector_store %arg17[%c0_53, %c211], %59 {strides = array<i32>} : memref<64x226xf32, #tpu.memory_space<vmem>>, vector<64x15xf32>,
    %c0_54 = arith.constant 0 : index
    %c15 = arith.constant 15 : index
    %61 = vector.load %arg17[%c0_54, %c15] : memref<64x226xf32, #tpu.memory_space<vmem>>, vector<64x196xf32>
    tpu.vector_store %arg17[%c0_54, %c15], %56 {strides = array<i32>} : memref<64x226xf32, #tpu.memory_space<vmem>>, vector<64x196xf32>,
    %c0_55 = arith.constant 0 : index
    %c0_56 = arith.constant 0 : index
    %62 = vector.load %arg10[%c0_55, %c0_56] : memref<1x196xf32, #tpu.memory_space<vmem>>, vector<1x196xf32>
    %c0_57 = arith.constant 0 : index
    %c0_58 = arith.constant 0 : index
    %63 = vector.load %arg11[%c0_57, %c0_58] : memref<1x196xf32, #tpu.memory_space<vmem>>, vector<1x196xf32>
    %c0_59 = arith.constant 0 : index
    %c0_60 = arith.constant 0 : index
    %64 = vector.load %arg17[%c0_59, %c0_60] : memref<64x226xf32, #tpu.memory_space<vmem>>, vector<8x196xf32>
    %65 = vector.broadcast %62 : vector<1x196xf32> to vector<8x196xf32>
    %66 = arith.mulf %64, %65 : vector<8x196xf32>
    %c0_61 = arith.constant 0 : index
    %c0_62 = arith.constant 0 : index
    %67 = vector.load %arg18[%c0_61, %c0_62] : memref<72x196xf32, #tpu.memory_space<vmem>>, vector<8x196xf32>
    tpu.vector_store %arg18[%c0_61, %c0_62], %66 {strides = array<i32>} : memref<72x196xf32, #tpu.memory_space<vmem>>, vector<8x196xf32>,
    %c0_63 = arith.constant 0 : index
    %c1_64 = arith.constant 1 : index
    %68 = vector.load %arg17[%c0_63, %c1_64] : memref<64x226xf32, #tpu.memory_space<vmem>>, vector<8x196xf32>
    %c8_65 = arith.constant 8 : index
    %c0_66 = arith.constant 0 : index
    %69 = vector.load %arg18[%c8_65, %c0_66] : memref<72x196xf32, #tpu.memory_space<vmem>>, vector<8x196xf32>
    tpu.vector_store %arg18[%c8_65, %c0_66], %68 {strides = array<i32>} : memref<72x196xf32, #tpu.memory_space<vmem>>, vector<8x196xf32>,
    %c0_67 = arith.constant 0 : index
    %c2_68 = arith.constant 2 : index
    %70 = vector.load %arg17[%c0_67, %c2_68] : memref<64x226xf32, #tpu.memory_space<vmem>>, vector<8x196xf32>
    %71 = vector.broadcast %63 : vector<1x196xf32> to vector<8x196xf32>
    %72 = arith.mulf %70, %71 : vector<8x196xf32>
    %c16_69 = arith.constant 16 : index
    %c0_70 = arith.constant 0 : index
    %73 = vector.load %arg18[%c16_69, %c0_70] : memref<72x196xf32, #tpu.memory_space<vmem>>, vector<8x196xf32>
    tpu.vector_store %arg18[%c16_69, %c0_70], %72 {strides = array<i32>} : memref<72x196xf32, #tpu.memory_space<vmem>>, vector<8x196xf32>,
    %c0_71 = arith.constant 0 : index
    %c14 = arith.constant 14 : index
    %74 = vector.load %arg17[%c0_71, %c14] : memref<64x226xf32, #tpu.memory_space<vmem>>, vector<8x196xf32>
    %75 = vector.broadcast %62 : vector<1x196xf32> to vector<8x196xf32>
    %76 = arith.mulf %74, %75 : vector<8x196xf32>
    %c24_72 = arith.constant 24 : index
    %c0_73 = arith.constant 0 : index
    %77 = vector.load %arg18[%c24_72, %c0_73] : memref<72x196xf32, #tpu.memory_space<vmem>>, vector<8x196xf32>
    tpu.vector_store %arg18[%c24_72, %c0_73], %76 {strides = array<i32>} : memref<72x196xf32, #tpu.memory_space<vmem>>, vector<8x196xf32>,
    %c0_74 = arith.constant 0 : index
    %c15_75 = arith.constant 15 : index
    %78 = vector.load %arg17[%c0_74, %c15_75] : memref<64x226xf32, #tpu.memory_space<vmem>>, vector<8x196xf32>
    %c32_76 = arith.constant 32 : index
    %c0_77 = arith.constant 0 : index
    %79 = vector.load %arg18[%c32_76, %c0_77] : memref<72x196xf32, #tpu.memory_space<vmem>>, vector<8x196xf32>
    tpu.vector_store %arg18[%c32_76, %c0_77], %78 {strides = array<i32>} : memref<72x196xf32, #tpu.memory_space<vmem>>, vector<8x196xf32>,
    %c0_78 = arith.constant 0 : index
    %c16_79 = arith.constant 16 : index
    %80 = vector.load %arg17[%c0_78, %c16_79] : memref<64x226xf32, #tpu.memory_space<vmem>>, vector<8x196xf32>
    %81 = vector.broadcast %63 : vector<1x196xf32> to vector<8x196xf32>
    %82 = arith.mulf %80, %81 : vector<8x196xf32>
    %c40_80 = arith.constant 40 : index
    %c0_81 = arith.constant 0 : index
    %83 = vector.load %arg18[%c40_80, %c0_81] : memref<72x196xf32, #tpu.memory_space<vmem>>, vector<8x196xf32>
    tpu.vector_store %arg18[%c40_80, %c0_81], %82 {strides = array<i32>} : memref<72x196xf32, #tpu.memory_space<vmem>>, vector<8x196xf32>,
    %c0_82 = arith.constant 0 : index
    %c28_83 = arith.constant 28 : index
    %84 = vector.load %arg17[%c0_82, %c28_83] : memref<64x226xf32, #tpu.memory_space<vmem>>, vector<8x196xf32>
    %85 = vector.broadcast %62 : vector<1x196xf32> to vector<8x196xf32>
    %86 = arith.mulf %84, %85 : vector<8x196xf32>
    %c48_84 = arith.constant 48 : index
    %c0_85 = arith.constant 0 : index
    %87 = vector.load %arg18[%c48_84, %c0_85] : memref<72x196xf32, #tpu.memory_space<vmem>>, vector<8x196xf32>
    tpu.vector_store %arg18[%c48_84, %c0_85], %86 {strides = array<i32>} : memref<72x196xf32, #tpu.memory_space<vmem>>, vector<8x196xf32>,
    %c0_86 = arith.constant 0 : index
    %c29_87 = arith.constant 29 : index
    %88 = vector.load %arg17[%c0_86, %c29_87] : memref<64x226xf32, #tpu.memory_space<vmem>>, vector<8x196xf32>
    %c56_88 = arith.constant 56 : index
    %c0_89 = arith.constant 0 : index
    %89 = vector.load %arg18[%c56_88, %c0_89] : memref<72x196xf32, #tpu.memory_space<vmem>>, vector<8x196xf32>
    tpu.vector_store %arg18[%c56_88, %c0_89], %88 {strides = array<i32>} : memref<72x196xf32, #tpu.memory_space<vmem>>, vector<8x196xf32>,
    %c0_90 = arith.constant 0 : index
    %c30_91 = arith.constant 30 : index
    %90 = vector.load %arg17[%c0_90, %c30_91] : memref<64x226xf32, #tpu.memory_space<vmem>>, vector<8x196xf32>
    %91 = vector.broadcast %63 : vector<1x196xf32> to vector<8x196xf32>
    %92 = arith.mulf %90, %91 : vector<8x196xf32>
    %c64_92 = arith.constant 64 : index
    %c0_93 = arith.constant 0 : index
    %93 = vector.load %arg18[%c64_92, %c0_93] : memref<72x196xf32, #tpu.memory_space<vmem>>, vector<8x196xf32>
    tpu.vector_store %arg18[%c64_92, %c0_93], %92 {strides = array<i32>} : memref<72x196xf32, #tpu.memory_space<vmem>>, vector<8x196xf32>,
    %c0_94 = arith.constant 0 : index
    %c0_95 = arith.constant 0 : index
    %94 = vector.load %arg4[%c0_94, %c0_95] : memref<16x72xf32, #tpu.memory_space<vmem>>, vector<16x72xf32>
    %c0_96 = arith.constant 0 : index
    %c0_97 = arith.constant 0 : index
    %95 = vector.load %arg18[%c0_96, %c0_97] : memref<72x196xf32, #tpu.memory_space<vmem>>, vector<72x196xf32>
    %cst_98 = arith.constant dense<0.000000e+00> : vector<16x196xf32>
    %96 = tpu.matmul %94, %95, %cst_98 {dimension_numbers = #tpu.dot_dimension_numbers<[1], [0], [0], [1], [0, 0, 1, 1], [], []>} : vector<16x72xf32>, vector<72x196xf32>, vector<16x196xf32> -> vector<16x196xf32>
    %c0_99 = arith.constant 0 : index
    %c0_100 = arith.constant 0 : index
    %97 = vector.load %arg5[%c0_99, %c0_100] : memref<16x1xf32, #tpu.memory_space<vmem>>, vector<16x1xf32>
    %98 = vector.broadcast %97 : vector<16x1xf32> to vector<16x196xf32>
    %99 = arith.addf %96, %98 : vector<16x196xf32>
    %cst_101 = arith.constant 0.000000e+00 : f32
    %100 = vector.broadcast %cst_101 : f32 to vector<16x196xf32>
    %101 = arith.maximumf %99, %100 : vector<16x196xf32>
    %102 = arith.mulf %101, %101 : vector<16x196xf32>
    %c0_102 = arith.constant 0 : index
    %c0_103 = arith.constant 0 : index
    %103 = vector.load %arg13[%c0_102, %c0_103] : memref<128x196xf32, #tpu.memory_space<vmem>>, vector<16x196xf32>
    tpu.vector_store %arg13[%c0_102, %c0_103], %102 {strides = array<i32>} : memref<128x196xf32, #tpu.memory_space<vmem>>, vector<16x196xf32>,
    %c8_104 = arith.constant 8 : index
    %c0_105 = arith.constant 0 : index
    %104 = vector.load %arg17[%c8_104, %c0_105] : memref<64x226xf32, #tpu.memory_space<vmem>>, vector<8x196xf32>
    %105 = vector.broadcast %62 : vector<1x196xf32> to vector<8x196xf32>
    %106 = arith.mulf %104, %105 : vector<8x196xf32>
    %c0_106 = arith.constant 0 : index
    %c0_107 = arith.constant 0 : index
    %107 = vector.load %arg18[%c0_106, %c0_107] : memref<72x196xf32, #tpu.memory_space<vmem>>, vector<8x196xf32>
    tpu.vector_store %arg18[%c0_106, %c0_107], %106 {strides = array<i32>} : memref<72x196xf32, #tpu.memory_space<vmem>>, vector<8x196xf32>,
    %c8_108 = arith.constant 8 : index
    %c1_109 = arith.constant 1 : index
    %108 = vector.load %arg17[%c8_108, %c1_109] : memref<64x226xf32, #tpu.memory_space<vmem>>, vector<8x196xf32>
    %c8_110 = arith.constant 8 : index
    %c0_111 = arith.constant 0 : index
    %109 = vector.load %arg18[%c8_110, %c0_111] : memref<72x196xf32, #tpu.memory_space<vmem>>, vector<8x196xf32>
    tpu.vector_store %arg18[%c8_110, %c0_111], %108 {strides = array<i32>} : memref<72x196xf32, #tpu.memory_space<vmem>>, vector<8x196xf32>,
    %c8_112 = arith.constant 8 : index
    %c2_113 = arith.constant 2 : index
    %110 = vector.load %arg17[%c8_112, %c2_113] : memref<64x226xf32, #tpu.memory_space<vmem>>, vector<8x196xf32>
    %111 = vector.broadcast %63 : vector<1x196xf32> to vector<8x196xf32>
    %112 = arith.mulf %110, %111 : vector<8x196xf32>
    %c16_114 = arith.constant 16 : index
    %c0_115 = arith.constant 0 : index
    %113 = vector.load %arg18[%c16_114, %c0_115] : memref<72x196xf32, #tpu.memory_space<vmem>>, vector<8x196xf32>
    tpu.vector_store %arg18[%c16_114, %c0_115], %112 {strides = array<i32>} : memref<72x196xf32, #tpu.memory_space<vmem>>, vector<8x196xf32>,
    %c8_116 = arith.constant 8 : index
    %c14_117 = arith.constant 14 : index
    %114 = vector.load %arg17[%c8_116, %c14_117] : memref<64x226xf32, #tpu.memory_space<vmem>>, vector<8x196xf32>
    %115 = vector.broadcast %62 : vector<1x196xf32> to vector<8x196xf32>
    %116 = arith.mulf %114, %115 : vector<8x196xf32>
    %c24_118 = arith.constant 24 : index
    %c0_119 = arith.constant 0 : index
    %117 = vector.load %arg18[%c24_118, %c0_119] : memref<72x196xf32, #tpu.memory_space<vmem>>, vector<8x196xf32>
    tpu.vector_store %arg18[%c24_118, %c0_119], %116 {strides = array<i32>} : memref<72x196xf32, #tpu.memory_space<vmem>>, vector<8x196xf32>,
    %c8_120 = arith.constant 8 : index
    %c15_121 = arith.constant 15 : index
    %118 = vector.load %arg17[%c8_120, %c15_121] : memref<64x226xf32, #tpu.memory_space<vmem>>, vector<8x196xf32>
    %c32_122 = arith.constant 32 : index
    %c0_123 = arith.constant 0 : index
    %119 = vector.load %arg18[%c32_122, %c0_123] : memref<72x196xf32, #tpu.memory_space<vmem>>, vector<8x196xf32>
    tpu.vector_store %arg18[%c32_122, %c0_123], %118 {strides = array<i32>} : memref<72x196xf32, #tpu.memory_space<vmem>>, vector<8x196xf32>,
    %c8_124 = arith.constant 8 : index
    %c16_125 = arith.constant 16 : index
    %120 = vector.load %arg17[%c8_124, %c16_125] : memref<64x226xf32, #tpu.memory_space<vmem>>, vector<8x196xf32>
    %121 = vector.broadcast %63 : vector<1x196xf32> to vector<8x196xf32>
    %122 = arith.mulf %120, %121 : vector<8x196xf32>
    %c40_126 = arith.constant 40 : index
    %c0_127 = arith.constant 0 : index
    %123 = vector.load %arg18[%c40_126, %c0_127] : memref<72x196xf32, #tpu.memory_space<vmem>>, vector<8x196xf32>
    tpu.vector_store %arg18[%c40_126, %c0_127], %122 {strides = array<i32>} : memref<72x196xf32, #tpu.memory_space<vmem>>, vector<8x196xf32>,
    %c8_128 = arith.constant 8 : index
    %c28_129 = arith.constant 28 : index
    %124 = vector.load %arg17[%c8_128, %c28_129] : memref<64x226xf32, #tpu.memory_space<vmem>>, vector<8x196xf32>
    %125 = vector.broadcast %62 : vector<1x196xf32> to vector<8x196xf32>
    %126 = arith.mulf %124, %125 : vector<8x196xf32>
    %c48_130 = arith.constant 48 : index
    %c0_131 = arith.constant 0 : index
    %127 = vector.load %arg18[%c48_130, %c0_131] : memref<72x196xf32, #tpu.memory_space<vmem>>, vector<8x196xf32>
    tpu.vector_store %arg18[%c48_130, %c0_131], %126 {strides = array<i32>} : memref<72x196xf32, #tpu.memory_space<vmem>>, vector<8x196xf32>,
    %c8_132 = arith.constant 8 : index
    %c29_133 = arith.constant 29 : index
    %128 = vector.load %arg17[%c8_132, %c29_133] : memref<64x226xf32, #tpu.memory_space<vmem>>, vector<8x196xf32>
    %c56_134 = arith.constant 56 : index
    %c0_135 = arith.constant 0 : index
    %129 = vector.load %arg18[%c56_134, %c0_135] : memref<72x196xf32, #tpu.memory_space<vmem>>, vector<8x196xf32>
    tpu.vector_store %arg18[%c56_134, %c0_135], %128 {strides = array<i32>} : memref<72x196xf32, #tpu.memory_space<vmem>>, vector<8x196xf32>,
    %c8_136 = arith.constant 8 : index
    %c30_137 = arith.constant 30 : index
    %130 = vector.load %arg17[%c8_136, %c30_137] : memref<64x226xf32, #tpu.memory_space<vmem>>, vector<8x196xf32>
    %131 = vector.broadcast %63 : vector<1x196xf32> to vector<8x196xf32>
    %132 = arith.mulf %130, %131 : vector<8x196xf32>
    %c64_138 = arith.constant 64 : index
    %c0_139 = arith.constant 0 : index
    %133 = vector.load %arg18[%c64_138, %c0_139] : memref<72x196xf32, #tpu.memory_space<vmem>>, vector<8x196xf32>
    tpu.vector_store %arg18[%c64_138, %c0_139], %132 {strides = array<i32>} : memref<72x196xf32, #tpu.memory_space<vmem>>, vector<8x196xf32>,
    %c0_140 = arith.constant 0 : index
    %c0_141 = arith.constant 0 : index
    %134 = vector.load %arg4[%c0_140, %c0_141] : memref<16x72xf32, #tpu.memory_space<vmem>>, vector<16x72xf32>
    %c0_142 = arith.constant 0 : index
    %c0_143 = arith.constant 0 : index
    %135 = vector.load %arg18[%c0_142, %c0_143] : memref<72x196xf32, #tpu.memory_space<vmem>>, vector<72x196xf32>
    %cst_144 = arith.constant dense<0.000000e+00> : vector<16x196xf32>
    %136 = tpu.matmul %134, %135, %cst_144 {dimension_numbers = #tpu.dot_dimension_numbers<[1], [0], [0], [1], [0, 0, 1, 1], [], []>} : vector<16x72xf32>, vector<72x196xf32>, vector<16x196xf32> -> vector<16x196xf32>
    %c0_145 = arith.constant 0 : index
    %c0_146 = arith.constant 0 : index
    %137 = vector.load %arg5[%c0_145, %c0_146] : memref<16x1xf32, #tpu.memory_space<vmem>>, vector<16x1xf32>
    %138 = vector.broadcast %137 : vector<16x1xf32> to vector<16x196xf32>
    %139 = arith.addf %136, %138 : vector<16x196xf32>
    %cst_147 = arith.constant 0.000000e+00 : f32
    %140 = vector.broadcast %cst_147 : f32 to vector<16x196xf32>
    %141 = arith.maximumf %139, %140 : vector<16x196xf32>
    %142 = arith.mulf %141, %141 : vector<16x196xf32>
    %c16_148 = arith.constant 16 : index
    %c0_149 = arith.constant 0 : index
    %143 = vector.load %arg13[%c16_148, %c0_149] : memref<128x196xf32, #tpu.memory_space<vmem>>, vector<16x196xf32>
    tpu.vector_store %arg13[%c16_148, %c0_149], %142 {strides = array<i32>} : memref<128x196xf32, #tpu.memory_space<vmem>>, vector<16x196xf32>,
    %c16_150 = arith.constant 16 : index
    %c0_151 = arith.constant 0 : index
    %144 = vector.load %arg17[%c16_150, %c0_151] : memref<64x226xf32, #tpu.memory_space<vmem>>, vector<8x196xf32>
    %145 = vector.broadcast %62 : vector<1x196xf32> to vector<8x196xf32>
    %146 = arith.mulf %144, %145 : vector<8x196xf32>
    %c0_152 = arith.constant 0 : index
    %c0_153 = arith.constant 0 : index
    %147 = vector.load %arg18[%c0_152, %c0_153] : memref<72x196xf32, #tpu.memory_space<vmem>>, vector<8x196xf32>
    tpu.vector_store %arg18[%c0_152, %c0_153], %146 {strides = array<i32>} : memref<72x196xf32, #tpu.memory_space<vmem>>, vector<8x196xf32>,
    %c16_154 = arith.constant 16 : index
    %c1_155 = arith.constant 1 : index
    %148 = vector.load %arg17[%c16_154, %c1_155] : memref<64x226xf32, #tpu.memory_space<vmem>>, vector<8x196xf32>
    %c8_156 = arith.constant 8 : index
    %c0_157 = arith.constant 0 : index
    %149 = vector.load %arg18[%c8_156, %c0_157] : memref<72x196xf32, #tpu.memory_space<vmem>>, vector<8x196xf32>
    tpu.vector_store %arg18[%c8_156, %c0_157], %148 {strides = array<i32>} : memref<72x196xf32, #tpu.memory_space<vmem>>, vector<8x196xf32>,
    %c16_158 = arith.constant 16 : index
    %c2_159 = arith.constant 2 : index
    %150 = vector.load %arg17[%c16_158, %c2_159] : memref<64x226xf32, #tpu.memory_space<vmem>>, vector<8x196xf32>
    %151 = vector.broadcast %63 : vector<1x196xf32> to vector<8x196xf32>
    %152 = arith.mulf %150, %151 : vector<8x196xf32>
    %c16_160 = arith.constant 16 : index
    %c0_161 = arith.constant 0 : index
    %153 = vector.load %arg18[%c16_160, %c0_161] : memref<72x196xf32, #tpu.memory_space<vmem>>, vector<8x196xf32>
    tpu.vector_store %arg18[%c16_160, %c0_161], %152 {strides = array<i32>} : memref<72x196xf32, #tpu.memory_space<vmem>>, vector<8x196xf32>,
    %c16_162 = arith.constant 16 : index
    %c14_163 = arith.constant 14 : index
    %154 = vector.load %arg17[%c16_162, %c14_163] : memref<64x226xf32, #tpu.memory_space<vmem>>, vector<8x196xf32>
    %155 = vector.broadcast %62 : vector<1x196xf32> to vector<8x196xf32>
    %156 = arith.mulf %154, %155 : vector<8x196xf32>
    %c24_164 = arith.constant 24 : index
    %c0_165 = arith.constant 0 : index
    %157 = vector.load %arg18[%c24_164, %c0_165] : memref<72x196xf32, #tpu.memory_space<vmem>>, vector<8x196xf32>
    tpu.vector_store %arg18[%c24_164, %c0_165], %156 {strides = array<i32>} : memref<72x196xf32, #tpu.memory_space<vmem>>, vector<8x196xf32>,
    %c16_166 = arith.constant 16 : index
    %c15_167 = arith.constant 15 : index
    %158 = vector.load %arg17[%c16_166, %c15_167] : memref<64x226xf32, #tpu.memory_space<vmem>>, vector<8x196xf32>
    %c32_168 = arith.constant 32 : index
    %c0_169 = arith.constant 0 : index
    %159 = vector.load %arg18[%c32_168, %c0_169] : memref<72x196xf32, #tpu.memory_space<vmem>>, vector<8x196xf32>
    tpu.vector_store %arg18[%c32_168, %c0_169], %158 {strides = array<i32>} : memref<72x196xf32, #tpu.memory_space<vmem>>, vector<8x196xf32>,
    %c16_170 = arith.constant 16 : index
    %c16_171 = arith.constant 16 : index
    %160 = vector.load %arg17[%c16_170, %c16_171] : memref<64x226xf32, #tpu.memory_space<vmem>>, vector<8x196xf32>
    %161 = vector.broadcast %63 : vector<1x196xf32> to vector<8x196xf32>
    %162 = arith.mulf %160, %161 : vector<8x196xf32>
    %c40_172 = arith.constant 40 : index
    %c0_173 = arith.constant 0 : index
    %163 = vector.load %arg18[%c40_172, %c0_173] : memref<72x196xf32, #tpu.memory_space<vmem>>, vector<8x196xf32>
    tpu.vector_store %arg18[%c40_172, %c0_173], %162 {strides = array<i32>} : memref<72x196xf32, #tpu.memory_space<vmem>>, vector<8x196xf32>,
    %c16_174 = arith.constant 16 : index
    %c28_175 = arith.constant 28 : index
    %164 = vector.load %arg17[%c16_174, %c28_175] : memref<64x226xf32, #tpu.memory_space<vmem>>, vector<8x196xf32>
    %165 = vector.broadcast %62 : vector<1x196xf32> to vector<8x196xf32>
    %166 = arith.mulf %164, %165 : vector<8x196xf32>
    %c48_176 = arith.constant 48 : index
    %c0_177 = arith.constant 0 : index
    %167 = vector.load %arg18[%c48_176, %c0_177] : memref<72x196xf32, #tpu.memory_space<vmem>>, vector<8x196xf32>
    tpu.vector_store %arg18[%c48_176, %c0_177], %166 {strides = array<i32>} : memref<72x196xf32, #tpu.memory_space<vmem>>, vector<8x196xf32>,
    %c16_178 = arith.constant 16 : index
    %c29_179 = arith.constant 29 : index
    %168 = vector.load %arg17[%c16_178, %c29_179] : memref<64x226xf32, #tpu.memory_space<vmem>>, vector<8x196xf32>
    %c56_180 = arith.constant 56 : index
    %c0_181 = arith.constant 0 : index
    %169 = vector.load %arg18[%c56_180, %c0_181] : memref<72x196xf32, #tpu.memory_space<vmem>>, vector<8x196xf32>
    tpu.vector_store %arg18[%c56_180, %c0_181], %168 {strides = array<i32>} : memref<72x196xf32, #tpu.memory_space<vmem>>, vector<8x196xf32>,
    %c16_182 = arith.constant 16 : index
    %c30_183 = arith.constant 30 : index
    %170 = vector.load %arg17[%c16_182, %c30_183] : memref<64x226xf32, #tpu.memory_space<vmem>>, vector<8x196xf32>
    %171 = vector.broadcast %63 : vector<1x196xf32> to vector<8x196xf32>
    %172 = arith.mulf %170, %171 : vector<8x196xf32>
    %c64_184 = arith.constant 64 : index
    %c0_185 = arith.constant 0 : index
    %173 = vector.load %arg18[%c64_184, %c0_185] : memref<72x196xf32, #tpu.memory_space<vmem>>, vector<8x196xf32>
    tpu.vector_store %arg18[%c64_184, %c0_185], %172 {strides = array<i32>} : memref<72x196xf32, #tpu.memory_space<vmem>>, vector<8x196xf32>,
    %c0_186 = arith.constant 0 : index
    %c0_187 = arith.constant 0 : index
    %174 = vector.load %arg4[%c0_186, %c0_187] : memref<16x72xf32, #tpu.memory_space<vmem>>, vector<16x72xf32>
    %c0_188 = arith.constant 0 : index
    %c0_189 = arith.constant 0 : index
    %175 = vector.load %arg18[%c0_188, %c0_189] : memref<72x196xf32, #tpu.memory_space<vmem>>, vector<72x196xf32>
    %cst_190 = arith.constant dense<0.000000e+00> : vector<16x196xf32>
    %176 = tpu.matmul %174, %175, %cst_190 {dimension_numbers = #tpu.dot_dimension_numbers<[1], [0], [0], [1], [0, 0, 1, 1], [], []>} : vector<16x72xf32>, vector<72x196xf32>, vector<16x196xf32> -> vector<16x196xf32>
    %c0_191 = arith.constant 0 : index
    %c0_192 = arith.constant 0 : index
    %177 = vector.load %arg5[%c0_191, %c0_192] : memref<16x1xf32, #tpu.memory_space<vmem>>, vector<16x1xf32>
    %178 = vector.broadcast %177 : vector<16x1xf32> to vector<16x196xf32>
    %179 = arith.addf %176, %178 : vector<16x196xf32>
    %cst_193 = arith.constant 0.000000e+00 : f32
    %180 = vector.broadcast %cst_193 : f32 to vector<16x196xf32>
    %181 = arith.maximumf %179, %180 : vector<16x196xf32>
    %182 = arith.mulf %181, %181 : vector<16x196xf32>
    %c32_194 = arith.constant 32 : index
    %c0_195 = arith.constant 0 : index
    %183 = vector.load %arg13[%c32_194, %c0_195] : memref<128x196xf32, #tpu.memory_space<vmem>>, vector<16x196xf32>
    tpu.vector_store %arg13[%c32_194, %c0_195], %182 {strides = array<i32>} : memref<128x196xf32, #tpu.memory_space<vmem>>, vector<16x196xf32>,
    %c24_196 = arith.constant 24 : index
    %c0_197 = arith.constant 0 : index
    %184 = vector.load %arg17[%c24_196, %c0_197] : memref<64x226xf32, #tpu.memory_space<vmem>>, vector<8x196xf32>
    %185 = vector.broadcast %62 : vector<1x196xf32> to vector<8x196xf32>
    %186 = arith.mulf %184, %185 : vector<8x196xf32>
    %c0_198 = arith.constant 0 : index
    %c0_199 = arith.constant 0 : index
    %187 = vector.load %arg18[%c0_198, %c0_199] : memref<72x196xf32, #tpu.memory_space<vmem>>, vector<8x196xf32>
    tpu.vector_store %arg18[%c0_198, %c0_199], %186 {strides = array<i32>} : memref<72x196xf32, #tpu.memory_space<vmem>>, vector<8x196xf32>,
    %c24_200 = arith.constant 24 : index
    %c1_201 = arith.constant 1 : index
    %188 = vector.load %arg17[%c24_200, %c1_201] : memref<64x226xf32, #tpu.memory_space<vmem>>, vector<8x196xf32>
    %c8_202 = arith.constant 8 : index
    %c0_203 = arith.constant 0 : index
    %189 = vector.load %arg18[%c8_202, %c0_203] : memref<72x196xf32, #tpu.memory_space<vmem>>, vector<8x196xf32>
    tpu.vector_store %arg18[%c8_202, %c0_203], %188 {strides = array<i32>} : memref<72x196xf32, #tpu.memory_space<vmem>>, vector<8x196xf32>,
    %c24_204 = arith.constant 24 : index
    %c2_205 = arith.constant 2 : index
    %190 = vector.load %arg17[%c24_204, %c2_205] : memref<64x226xf32, #tpu.memory_space<vmem>>, vector<8x196xf32>
    %191 = vector.broadcast %63 : vector<1x196xf32> to vector<8x196xf32>
    %192 = arith.mulf %190, %191 : vector<8x196xf32>
    %c16_206 = arith.constant 16 : index
    %c0_207 = arith.constant 0 : index
    %193 = vector.load %arg18[%c16_206, %c0_207] : memref<72x196xf32, #tpu.memory_space<vmem>>, vector<8x196xf32>
    tpu.vector_store %arg18[%c16_206, %c0_207], %192 {strides = array<i32>} : memref<72x196xf32, #tpu.memory_space<vmem>>, vector<8x196xf32>,
    %c24_208 = arith.constant 24 : index
    %c14_209 = arith.constant 14 : index
    %194 = vector.load %arg17[%c24_208, %c14_209] : memref<64x226xf32, #tpu.memory_space<vmem>>, vector<8x196xf32>
    %195 = vector.broadcast %62 : vector<1x196xf32> to vector<8x196xf32>
    %196 = arith.mulf %194, %195 : vector<8x196xf32>
    %c24_210 = arith.constant 24 : index
    %c0_211 = arith.constant 0 : index
    %197 = vector.load %arg18[%c24_210, %c0_211] : memref<72x196xf32, #tpu.memory_space<vmem>>, vector<8x196xf32>
    tpu.vector_store %arg18[%c24_210, %c0_211], %196 {strides = array<i32>} : memref<72x196xf32, #tpu.memory_space<vmem>>, vector<8x196xf32>,
    %c24_212 = arith.constant 24 : index
    %c15_213 = arith.constant 15 : index
    %198 = vector.load %arg17[%c24_212, %c15_213] : memref<64x226xf32, #tpu.memory_space<vmem>>, vector<8x196xf32>
    %c32_214 = arith.constant 32 : index
    %c0_215 = arith.constant 0 : index
    %199 = vector.load %arg18[%c32_214, %c0_215] : memref<72x196xf32, #tpu.memory_space<vmem>>, vector<8x196xf32>
    tpu.vector_store %arg18[%c32_214, %c0_215], %198 {strides = array<i32>} : memref<72x196xf32, #tpu.memory_space<vmem>>, vector<8x196xf32>,
    %c24_216 = arith.constant 24 : index
    %c16_217 = arith.constant 16 : index
    %200 = vector.load %arg17[%c24_216, %c16_217] : memref<64x226xf32, #tpu.memory_space<vmem>>, vector<8x196xf32>
    %201 = vector.broadcast %63 : vector<1x196xf32> to vector<8x196xf32>
    %202 = arith.mulf %200, %201 : vector<8x196xf32>
    %c40_218 = arith.constant 40 : index
    %c0_219 = arith.constant 0 : index
    %203 = vector.load %arg18[%c40_218, %c0_219] : memref<72x196xf32, #tpu.memory_space<vmem>>, vector<8x196xf32>
    tpu.vector_store %arg18[%c40_218, %c0_219], %202 {strides = array<i32>} : memref<72x196xf32, #tpu.memory_space<vmem>>, vector<8x196xf32>,
    %c24_220 = arith.constant 24 : index
    %c28_221 = arith.constant 28 : index
    %204 = vector.load %arg17[%c24_220, %c28_221] : memref<64x226xf32, #tpu.memory_space<vmem>>, vector<8x196xf32>
    %205 = vector.broadcast %62 : vector<1x196xf32> to vector<8x196xf32>
    %206 = arith.mulf %204, %205 : vector<8x196xf32>
    %c48_222 = arith.constant 48 : index
    %c0_223 = arith.constant 0 : index
    %207 = vector.load %arg18[%c48_222, %c0_223] : memref<72x196xf32, #tpu.memory_space<vmem>>, vector<8x196xf32>
    tpu.vector_store %arg18[%c48_222, %c0_223], %206 {strides = array<i32>} : memref<72x196xf32, #tpu.memory_space<vmem>>, vector<8x196xf32>,
    %c24_224 = arith.constant 24 : index
    %c29_225 = arith.constant 29 : index
    %208 = vector.load %arg17[%c24_224, %c29_225] : memref<64x226xf32, #tpu.memory_space<vmem>>, vector<8x196xf32>
    %c56_226 = arith.constant 56 : index
    %c0_227 = arith.constant 0 : index
    %209 = vector.load %arg18[%c56_226, %c0_227] : memref<72x196xf32, #tpu.memory_space<vmem>>, vector<8x196xf32>
    tpu.vector_store %arg18[%c56_226, %c0_227], %208 {strides = array<i32>} : memref<72x196xf32, #tpu.memory_space<vmem>>, vector<8x196xf32>,
    %c24_228 = arith.constant 24 : index
    %c30_229 = arith.constant 30 : index
    %210 = vector.load %arg17[%c24_228, %c30_229] : memref<64x226xf32, #tpu.memory_space<vmem>>, vector<8x196xf32>
    %211 = vector.broadcast %63 : vector<1x196xf32> to vector<8x196xf32>
    %212 = arith.mulf %210, %211 : vector<8x196xf32>
    %c64_230 = arith.constant 64 : index
    %c0_231 = arith.constant 0 : index
    %213 = vector.load %arg18[%c64_230, %c0_231] : memref<72x196xf32, #tpu.memory_space<vmem>>, vector<8x196xf32>
    tpu.vector_store %arg18[%c64_230, %c0_231], %212 {strides = array<i32>} : memref<72x196xf32, #tpu.memory_space<vmem>>, vector<8x196xf32>,
    %c0_232 = arith.constant 0 : index
    %c0_233 = arith.constant 0 : index
    %214 = vector.load %arg4[%c0_232, %c0_233] : memref<16x72xf32, #tpu.memory_space<vmem>>, vector<16x72xf32>
    %c0_234 = arith.constant 0 : index
    %c0_235 = arith.constant 0 : index
    %215 = vector.load %arg18[%c0_234, %c0_235] : memref<72x196xf32, #tpu.memory_space<vmem>>, vector<72x196xf32>
    %cst_236 = arith.constant dense<0.000000e+00> : vector<16x196xf32>
    %216 = tpu.matmul %214, %215, %cst_236 {dimension_numbers = #tpu.dot_dimension_numbers<[1], [0], [0], [1], [0, 0, 1, 1], [], []>} : vector<16x72xf32>, vector<72x196xf32>, vector<16x196xf32> -> vector<16x196xf32>
    %c0_237 = arith.constant 0 : index
    %c0_238 = arith.constant 0 : index
    %217 = vector.load %arg5[%c0_237, %c0_238] : memref<16x1xf32, #tpu.memory_space<vmem>>, vector<16x1xf32>
    %218 = vector.broadcast %217 : vector<16x1xf32> to vector<16x196xf32>
    %219 = arith.addf %216, %218 : vector<16x196xf32>
    %cst_239 = arith.constant 0.000000e+00 : f32
    %220 = vector.broadcast %cst_239 : f32 to vector<16x196xf32>
    %221 = arith.maximumf %219, %220 : vector<16x196xf32>
    %222 = arith.mulf %221, %221 : vector<16x196xf32>
    %c48_240 = arith.constant 48 : index
    %c0_241 = arith.constant 0 : index
    %223 = vector.load %arg13[%c48_240, %c0_241] : memref<128x196xf32, #tpu.memory_space<vmem>>, vector<16x196xf32>
    tpu.vector_store %arg13[%c48_240, %c0_241], %222 {strides = array<i32>} : memref<128x196xf32, #tpu.memory_space<vmem>>, vector<16x196xf32>,
    %c32_242 = arith.constant 32 : index
    %c0_243 = arith.constant 0 : index
    %224 = vector.load %arg17[%c32_242, %c0_243] : memref<64x226xf32, #tpu.memory_space<vmem>>, vector<8x196xf32>
    %225 = vector.broadcast %62 : vector<1x196xf32> to vector<8x196xf32>
    %226 = arith.mulf %224, %225 : vector<8x196xf32>
    %c0_244 = arith.constant 0 : index
    %c0_245 = arith.constant 0 : index
    %227 = vector.load %arg18[%c0_244, %c0_245] : memref<72x196xf32, #tpu.memory_space<vmem>>, vector<8x196xf32>
    tpu.vector_store %arg18[%c0_244, %c0_245], %226 {strides = array<i32>} : memref<72x196xf32, #tpu.memory_space<vmem>>, vector<8x196xf32>,
    %c32_246 = arith.constant 32 : index
    %c1_247 = arith.constant 1 : index
    %228 = vector.load %arg17[%c32_246, %c1_247] : memref<64x226xf32, #tpu.memory_space<vmem>>, vector<8x196xf32>
    %c8_248 = arith.constant 8 : index
    %c0_249 = arith.constant 0 : index
    %229 = vector.load %arg18[%c8_248, %c0_249] : memref<72x196xf32, #tpu.memory_space<vmem>>, vector<8x196xf32>
    tpu.vector_store %arg18[%c8_248, %c0_249], %228 {strides = array<i32>} : memref<72x196xf32, #tpu.memory_space<vmem>>, vector<8x196xf32>,
    %c32_250 = arith.constant 32 : index
    %c2_251 = arith.constant 2 : index
    %230 = vector.load %arg17[%c32_250, %c2_251] : memref<64x226xf32, #tpu.memory_space<vmem>>, vector<8x196xf32>
    %231 = vector.broadcast %63 : vector<1x196xf32> to vector<8x196xf32>
    %232 = arith.mulf %230, %231 : vector<8x196xf32>
    %c16_252 = arith.constant 16 : index
    %c0_253 = arith.constant 0 : index
    %233 = vector.load %arg18[%c16_252, %c0_253] : memref<72x196xf32, #tpu.memory_space<vmem>>, vector<8x196xf32>
    tpu.vector_store %arg18[%c16_252, %c0_253], %232 {strides = array<i32>} : memref<72x196xf32, #tpu.memory_space<vmem>>, vector<8x196xf32>,
    %c32_254 = arith.constant 32 : index
    %c14_255 = arith.constant 14 : index
    %234 = vector.load %arg17[%c32_254, %c14_255] : memref<64x226xf32, #tpu.memory_space<vmem>>, vector<8x196xf32>
    %235 = vector.broadcast %62 : vector<1x196xf32> to vector<8x196xf32>
    %236 = arith.mulf %234, %235 : vector<8x196xf32>
    %c24_256 = arith.constant 24 : index
    %c0_257 = arith.constant 0 : index
    %237 = vector.load %arg18[%c24_256, %c0_257] : memref<72x196xf32, #tpu.memory_space<vmem>>, vector<8x196xf32>
    tpu.vector_store %arg18[%c24_256, %c0_257], %236 {strides = array<i32>} : memref<72x196xf32, #tpu.memory_space<vmem>>, vector<8x196xf32>,
    %c32_258 = arith.constant 32 : index
    %c15_259 = arith.constant 15 : index
    %238 = vector.load %arg17[%c32_258, %c15_259] : memref<64x226xf32, #tpu.memory_space<vmem>>, vector<8x196xf32>
    %c32_260 = arith.constant 32 : index
    %c0_261 = arith.constant 0 : index
    %239 = vector.load %arg18[%c32_260, %c0_261] : memref<72x196xf32, #tpu.memory_space<vmem>>, vector<8x196xf32>
    tpu.vector_store %arg18[%c32_260, %c0_261], %238 {strides = array<i32>} : memref<72x196xf32, #tpu.memory_space<vmem>>, vector<8x196xf32>,
    %c32_262 = arith.constant 32 : index
    %c16_263 = arith.constant 16 : index
    %240 = vector.load %arg17[%c32_262, %c16_263] : memref<64x226xf32, #tpu.memory_space<vmem>>, vector<8x196xf32>
    %241 = vector.broadcast %63 : vector<1x196xf32> to vector<8x196xf32>
    %242 = arith.mulf %240, %241 : vector<8x196xf32>
    %c40_264 = arith.constant 40 : index
    %c0_265 = arith.constant 0 : index
    %243 = vector.load %arg18[%c40_264, %c0_265] : memref<72x196xf32, #tpu.memory_space<vmem>>, vector<8x196xf32>
    tpu.vector_store %arg18[%c40_264, %c0_265], %242 {strides = array<i32>} : memref<72x196xf32, #tpu.memory_space<vmem>>, vector<8x196xf32>,
    %c32_266 = arith.constant 32 : index
    %c28_267 = arith.constant 28 : index
    %244 = vector.load %arg17[%c32_266, %c28_267] : memref<64x226xf32, #tpu.memory_space<vmem>>, vector<8x196xf32>
    %245 = vector.broadcast %62 : vector<1x196xf32> to vector<8x196xf32>
    %246 = arith.mulf %244, %245 : vector<8x196xf32>
    %c48_268 = arith.constant 48 : index
    %c0_269 = arith.constant 0 : index
    %247 = vector.load %arg18[%c48_268, %c0_269] : memref<72x196xf32, #tpu.memory_space<vmem>>, vector<8x196xf32>
    tpu.vector_store %arg18[%c48_268, %c0_269], %246 {strides = array<i32>} : memref<72x196xf32, #tpu.memory_space<vmem>>, vector<8x196xf32>,
    %c32_270 = arith.constant 32 : index
    %c29_271 = arith.constant 29 : index
    %248 = vector.load %arg17[%c32_270, %c29_271] : memref<64x226xf32, #tpu.memory_space<vmem>>, vector<8x196xf32>
    %c56_272 = arith.constant 56 : index
    %c0_273 = arith.constant 0 : index
    %249 = vector.load %arg18[%c56_272, %c0_273] : memref<72x196xf32, #tpu.memory_space<vmem>>, vector<8x196xf32>
    tpu.vector_store %arg18[%c56_272, %c0_273], %248 {strides = array<i32>} : memref<72x196xf32, #tpu.memory_space<vmem>>, vector<8x196xf32>,
    %c32_274 = arith.constant 32 : index
    %c30_275 = arith.constant 30 : index
    %250 = vector.load %arg17[%c32_274, %c30_275] : memref<64x226xf32, #tpu.memory_space<vmem>>, vector<8x196xf32>
    %251 = vector.broadcast %63 : vector<1x196xf32> to vector<8x196xf32>
    %252 = arith.mulf %250, %251 : vector<8x196xf32>
    %c64_276 = arith.constant 64 : index
    %c0_277 = arith.constant 0 : index
    %253 = vector.load %arg18[%c64_276, %c0_277] : memref<72x196xf32, #tpu.memory_space<vmem>>, vector<8x196xf32>
    tpu.vector_store %arg18[%c64_276, %c0_277], %252 {strides = array<i32>} : memref<72x196xf32, #tpu.memory_space<vmem>>, vector<8x196xf32>,
    %c0_278 = arith.constant 0 : index
    %c0_279 = arith.constant 0 : index
    %254 = vector.load %arg4[%c0_278, %c0_279] : memref<16x72xf32, #tpu.memory_space<vmem>>, vector<16x72xf32>
    %c0_280 = arith.constant 0 : index
    %c0_281 = arith.constant 0 : index
    %255 = vector.load %arg18[%c0_280, %c0_281] : memref<72x196xf32, #tpu.memory_space<vmem>>, vector<72x196xf32>
    %cst_282 = arith.constant dense<0.000000e+00> : vector<16x196xf32>
    %256 = tpu.matmul %254, %255, %cst_282 {dimension_numbers = #tpu.dot_dimension_numbers<[1], [0], [0], [1], [0, 0, 1, 1], [], []>} : vector<16x72xf32>, vector<72x196xf32>, vector<16x196xf32> -> vector<16x196xf32>
    %c0_283 = arith.constant 0 : index
    %c0_284 = arith.constant 0 : index
    %257 = vector.load %arg5[%c0_283, %c0_284] : memref<16x1xf32, #tpu.memory_space<vmem>>, vector<16x1xf32>
    %258 = vector.broadcast %257 : vector<16x1xf32> to vector<16x196xf32>
    %259 = arith.addf %256, %258 : vector<16x196xf32>
    %cst_285 = arith.constant 0.000000e+00 : f32
    %260 = vector.broadcast %cst_285 : f32 to vector<16x196xf32>
    %261 = arith.maximumf %259, %260 : vector<16x196xf32>
    %262 = arith.mulf %261, %261 : vector<16x196xf32>
    %c64_286 = arith.constant 64 : index
    %c0_287 = arith.constant 0 : index
    %263 = vector.load %arg13[%c64_286, %c0_287] : memref<128x196xf32, #tpu.memory_space<vmem>>, vector<16x196xf32>
    tpu.vector_store %arg13[%c64_286, %c0_287], %262 {strides = array<i32>} : memref<128x196xf32, #tpu.memory_space<vmem>>, vector<16x196xf32>,
    %c40_288 = arith.constant 40 : index
    %c0_289 = arith.constant 0 : index
    %264 = vector.load %arg17[%c40_288, %c0_289] : memref<64x226xf32, #tpu.memory_space<vmem>>, vector<8x196xf32>
    %265 = vector.broadcast %62 : vector<1x196xf32> to vector<8x196xf32>
    %266 = arith.mulf %264, %265 : vector<8x196xf32>
    %c0_290 = arith.constant 0 : index
    %c0_291 = arith.constant 0 : index
    %267 = vector.load %arg18[%c0_290, %c0_291] : memref<72x196xf32, #tpu.memory_space<vmem>>, vector<8x196xf32>
    tpu.vector_store %arg18[%c0_290, %c0_291], %266 {strides = array<i32>} : memref<72x196xf32, #tpu.memory_space<vmem>>, vector<8x196xf32>,
    %c40_292 = arith.constant 40 : index
    %c1_293 = arith.constant 1 : index
    %268 = vector.load %arg17[%c40_292, %c1_293] : memref<64x226xf32, #tpu.memory_space<vmem>>, vector<8x196xf32>
    %c8_294 = arith.constant 8 : index
    %c0_295 = arith.constant 0 : index
    %269 = vector.load %arg18[%c8_294, %c0_295] : memref<72x196xf32, #tpu.memory_space<vmem>>, vector<8x196xf32>
    tpu.vector_store %arg18[%c8_294, %c0_295], %268 {strides = array<i32>} : memref<72x196xf32, #tpu.memory_space<vmem>>, vector<8x196xf32>,
    %c40_296 = arith.constant 40 : index
    %c2_297 = arith.constant 2 : index
    %270 = vector.load %arg17[%c40_296, %c2_297] : memref<64x226xf32, #tpu.memory_space<vmem>>, vector<8x196xf32>
    %271 = vector.broadcast %63 : vector<1x196xf32> to vector<8x196xf32>
    %272 = arith.mulf %270, %271 : vector<8x196xf32>
    %c16_298 = arith.constant 16 : index
    %c0_299 = arith.constant 0 : index
    %273 = vector.load %arg18[%c16_298, %c0_299] : memref<72x196xf32, #tpu.memory_space<vmem>>, vector<8x196xf32>
    tpu.vector_store %arg18[%c16_298, %c0_299], %272 {strides = array<i32>} : memref<72x196xf32, #tpu.memory_space<vmem>>, vector<8x196xf32>,
    %c40_300 = arith.constant 40 : index
    %c14_301 = arith.constant 14 : index
    %274 = vector.load %arg17[%c40_300, %c14_301] : memref<64x226xf32, #tpu.memory_space<vmem>>, vector<8x196xf32>
    %275 = vector.broadcast %62 : vector<1x196xf32> to vector<8x196xf32>
    %276 = arith.mulf %274, %275 : vector<8x196xf32>
    %c24_302 = arith.constant 24 : index
    %c0_303 = arith.constant 0 : index
    %277 = vector.load %arg18[%c24_302, %c0_303] : memref<72x196xf32, #tpu.memory_space<vmem>>, vector<8x196xf32>
    tpu.vector_store %arg18[%c24_302, %c0_303], %276 {strides = array<i32>} : memref<72x196xf32, #tpu.memory_space<vmem>>, vector<8x196xf32>,
    %c40_304 = arith.constant 40 : index
    %c15_305 = arith.constant 15 : index
    %278 = vector.load %arg17[%c40_304, %c15_305] : memref<64x226xf32, #tpu.memory_space<vmem>>, vector<8x196xf32>
    %c32_306 = arith.constant 32 : index
    %c0_307 = arith.constant 0 : index
    %279 = vector.load %arg18[%c32_306, %c0_307] : memref<72x196xf32, #tpu.memory_space<vmem>>, vector<8x196xf32>
    tpu.vector_store %arg18[%c32_306, %c0_307], %278 {strides = array<i32>} : memref<72x196xf32, #tpu.memory_space<vmem>>, vector<8x196xf32>,
    %c40_308 = arith.constant 40 : index
    %c16_309 = arith.constant 16 : index
    %280 = vector.load %arg17[%c40_308, %c16_309] : memref<64x226xf32, #tpu.memory_space<vmem>>, vector<8x196xf32>
    %281 = vector.broadcast %63 : vector<1x196xf32> to vector<8x196xf32>
    %282 = arith.mulf %280, %281 : vector<8x196xf32>
    %c40_310 = arith.constant 40 : index
    %c0_311 = arith.constant 0 : index
    %283 = vector.load %arg18[%c40_310, %c0_311] : memref<72x196xf32, #tpu.memory_space<vmem>>, vector<8x196xf32>
    tpu.vector_store %arg18[%c40_310, %c0_311], %282 {strides = array<i32>} : memref<72x196xf32, #tpu.memory_space<vmem>>, vector<8x196xf32>,
    %c40_312 = arith.constant 40 : index
    %c28_313 = arith.constant 28 : index
    %284 = vector.load %arg17[%c40_312, %c28_313] : memref<64x226xf32, #tpu.memory_space<vmem>>, vector<8x196xf32>
    %285 = vector.broadcast %62 : vector<1x196xf32> to vector<8x196xf32>
    %286 = arith.mulf %284, %285 : vector<8x196xf32>
    %c48_314 = arith.constant 48 : index
    %c0_315 = arith.constant 0 : index
    %287 = vector.load %arg18[%c48_314, %c0_315] : memref<72x196xf32, #tpu.memory_space<vmem>>, vector<8x196xf32>
    tpu.vector_store %arg18[%c48_314, %c0_315], %286 {strides = array<i32>} : memref<72x196xf32, #tpu.memory_space<vmem>>, vector<8x196xf32>,
    %c40_316 = arith.constant 40 : index
    %c29_317 = arith.constant 29 : index
    %288 = vector.load %arg17[%c40_316, %c29_317] : memref<64x226xf32, #tpu.memory_space<vmem>>, vector<8x196xf32>
    %c56_318 = arith.constant 56 : index
    %c0_319 = arith.constant 0 : index
    %289 = vector.load %arg18[%c56_318, %c0_319] : memref<72x196xf32, #tpu.memory_space<vmem>>, vector<8x196xf32>
    tpu.vector_store %arg18[%c56_318, %c0_319], %288 {strides = array<i32>} : memref<72x196xf32, #tpu.memory_space<vmem>>, vector<8x196xf32>,
    %c40_320 = arith.constant 40 : index
    %c30_321 = arith.constant 30 : index
    %290 = vector.load %arg17[%c40_320, %c30_321] : memref<64x226xf32, #tpu.memory_space<vmem>>, vector<8x196xf32>
    %291 = vector.broadcast %63 : vector<1x196xf32> to vector<8x196xf32>
    %292 = arith.mulf %290, %291 : vector<8x196xf32>
    %c64_322 = arith.constant 64 : index
    %c0_323 = arith.constant 0 : index
    %293 = vector.load %arg18[%c64_322, %c0_323] : memref<72x196xf32, #tpu.memory_space<vmem>>, vector<8x196xf32>
    tpu.vector_store %arg18[%c64_322, %c0_323], %292 {strides = array<i32>} : memref<72x196xf32, #tpu.memory_space<vmem>>, vector<8x196xf32>,
    %c0_324 = arith.constant 0 : index
    %c0_325 = arith.constant 0 : index
    %294 = vector.load %arg4[%c0_324, %c0_325] : memref<16x72xf32, #tpu.memory_space<vmem>>, vector<16x72xf32>
    %c0_326 = arith.constant 0 : index
    %c0_327 = arith.constant 0 : index
    %295 = vector.load %arg18[%c0_326, %c0_327] : memref<72x196xf32, #tpu.memory_space<vmem>>, vector<72x196xf32>
    %cst_328 = arith.constant dense<0.000000e+00> : vector<16x196xf32>
    %296 = tpu.matmul %294, %295, %cst_328 {dimension_numbers = #tpu.dot_dimension_numbers<[1], [0], [0], [1], [0, 0, 1, 1], [], []>} : vector<16x72xf32>, vector<72x196xf32>, vector<16x196xf32> -> vector<16x196xf32>
    %c0_329 = arith.constant 0 : index
    %c0_330 = arith.constant 0 : index
    %297 = vector.load %arg5[%c0_329, %c0_330] : memref<16x1xf32, #tpu.memory_space<vmem>>, vector<16x1xf32>
    %298 = vector.broadcast %297 : vector<16x1xf32> to vector<16x196xf32>
    %299 = arith.addf %296, %298 : vector<16x196xf32>
    %cst_331 = arith.constant 0.000000e+00 : f32
    %300 = vector.broadcast %cst_331 : f32 to vector<16x196xf32>
    %301 = arith.maximumf %299, %300 : vector<16x196xf32>
    %302 = arith.mulf %301, %301 : vector<16x196xf32>
    %c80 = arith.constant 80 : index
    %c0_332 = arith.constant 0 : index
    %303 = vector.load %arg13[%c80, %c0_332] : memref<128x196xf32, #tpu.memory_space<vmem>>, vector<16x196xf32>
    tpu.vector_store %arg13[%c80, %c0_332], %302 {strides = array<i32>} : memref<128x196xf32, #tpu.memory_space<vmem>>, vector<16x196xf32>,
    %c48_333 = arith.constant 48 : index
    %c0_334 = arith.constant 0 : index
    %304 = vector.load %arg17[%c48_333, %c0_334] : memref<64x226xf32, #tpu.memory_space<vmem>>, vector<8x196xf32>
    %305 = vector.broadcast %62 : vector<1x196xf32> to vector<8x196xf32>
    %306 = arith.mulf %304, %305 : vector<8x196xf32>
    %c0_335 = arith.constant 0 : index
    %c0_336 = arith.constant 0 : index
    %307 = vector.load %arg18[%c0_335, %c0_336] : memref<72x196xf32, #tpu.memory_space<vmem>>, vector<8x196xf32>
    tpu.vector_store %arg18[%c0_335, %c0_336], %306 {strides = array<i32>} : memref<72x196xf32, #tpu.memory_space<vmem>>, vector<8x196xf32>,
    %c48_337 = arith.constant 48 : index
    %c1_338 = arith.constant 1 : index
    %308 = vector.load %arg17[%c48_337, %c1_338] : memref<64x226xf32, #tpu.memory_space<vmem>>, vector<8x196xf32>
    %c8_339 = arith.constant 8 : index
    %c0_340 = arith.constant 0 : index
    %309 = vector.load %arg18[%c8_339, %c0_340] : memref<72x196xf32, #tpu.memory_space<vmem>>, vector<8x196xf32>
    tpu.vector_store %arg18[%c8_339, %c0_340], %308 {strides = array<i32>} : memref<72x196xf32, #tpu.memory_space<vmem>>, vector<8x196xf32>,
    %c48_341 = arith.constant 48 : index
    %c2_342 = arith.constant 2 : index
    %310 = vector.load %arg17[%c48_341, %c2_342] : memref<64x226xf32, #tpu.memory_space<vmem>>, vector<8x196xf32>
    %311 = vector.broadcast %63 : vector<1x196xf32> to vector<8x196xf32>
    %312 = arith.mulf %310, %311 : vector<8x196xf32>
    %c16_343 = arith.constant 16 : index
    %c0_344 = arith.constant 0 : index
    %313 = vector.load %arg18[%c16_343, %c0_344] : memref<72x196xf32, #tpu.memory_space<vmem>>, vector<8x196xf32>
    tpu.vector_store %arg18[%c16_343, %c0_344], %312 {strides = array<i32>} : memref<72x196xf32, #tpu.memory_space<vmem>>, vector<8x196xf32>,
    %c48_345 = arith.constant 48 : index
    %c14_346 = arith.constant 14 : index
    %314 = vector.load %arg17[%c48_345, %c14_346] : memref<64x226xf32, #tpu.memory_space<vmem>>, vector<8x196xf32>
    %315 = vector.broadcast %62 : vector<1x196xf32> to vector<8x196xf32>
    %316 = arith.mulf %314, %315 : vector<8x196xf32>
    %c24_347 = arith.constant 24 : index
    %c0_348 = arith.constant 0 : index
    %317 = vector.load %arg18[%c24_347, %c0_348] : memref<72x196xf32, #tpu.memory_space<vmem>>, vector<8x196xf32>
    tpu.vector_store %arg18[%c24_347, %c0_348], %316 {strides = array<i32>} : memref<72x196xf32, #tpu.memory_space<vmem>>, vector<8x196xf32>,
    %c48_349 = arith.constant 48 : index
    %c15_350 = arith.constant 15 : index
    %318 = vector.load %arg17[%c48_349, %c15_350] : memref<64x226xf32, #tpu.memory_space<vmem>>, vector<8x196xf32>
    %c32_351 = arith.constant 32 : index
    %c0_352 = arith.constant 0 : index
    %319 = vector.load %arg18[%c32_351, %c0_352] : memref<72x196xf32, #tpu.memory_space<vmem>>, vector<8x196xf32>
    tpu.vector_store %arg18[%c32_351, %c0_352], %318 {strides = array<i32>} : memref<72x196xf32, #tpu.memory_space<vmem>>, vector<8x196xf32>,
    %c48_353 = arith.constant 48 : index
    %c16_354 = arith.constant 16 : index
    %320 = vector.load %arg17[%c48_353, %c16_354] : memref<64x226xf32, #tpu.memory_space<vmem>>, vector<8x196xf32>
    %321 = vector.broadcast %63 : vector<1x196xf32> to vector<8x196xf32>
    %322 = arith.mulf %320, %321 : vector<8x196xf32>
    %c40_355 = arith.constant 40 : index
    %c0_356 = arith.constant 0 : index
    %323 = vector.load %arg18[%c40_355, %c0_356] : memref<72x196xf32, #tpu.memory_space<vmem>>, vector<8x196xf32>
    tpu.vector_store %arg18[%c40_355, %c0_356], %322 {strides = array<i32>} : memref<72x196xf32, #tpu.memory_space<vmem>>, vector<8x196xf32>,
    %c48_357 = arith.constant 48 : index
    %c28_358 = arith.constant 28 : index
    %324 = vector.load %arg17[%c48_357, %c28_358] : memref<64x226xf32, #tpu.memory_space<vmem>>, vector<8x196xf32>
    %325 = vector.broadcast %62 : vector<1x196xf32> to vector<8x196xf32>
    %326 = arith.mulf %324, %325 : vector<8x196xf32>
    %c48_359 = arith.constant 48 : index
    %c0_360 = arith.constant 0 : index
    %327 = vector.load %arg18[%c48_359, %c0_360] : memref<72x196xf32, #tpu.memory_space<vmem>>, vector<8x196xf32>
    tpu.vector_store %arg18[%c48_359, %c0_360], %326 {strides = array<i32>} : memref<72x196xf32, #tpu.memory_space<vmem>>, vector<8x196xf32>,
    %c48_361 = arith.constant 48 : index
    %c29_362 = arith.constant 29 : index
    %328 = vector.load %arg17[%c48_361, %c29_362] : memref<64x226xf32, #tpu.memory_space<vmem>>, vector<8x196xf32>
    %c56_363 = arith.constant 56 : index
    %c0_364 = arith.constant 0 : index
    %329 = vector.load %arg18[%c56_363, %c0_364] : memref<72x196xf32, #tpu.memory_space<vmem>>, vector<8x196xf32>
    tpu.vector_store %arg18[%c56_363, %c0_364], %328 {strides = array<i32>} : memref<72x196xf32, #tpu.memory_space<vmem>>, vector<8x196xf32>,
    %c48_365 = arith.constant 48 : index
    %c30_366 = arith.constant 30 : index
    %330 = vector.load %arg17[%c48_365, %c30_366] : memref<64x226xf32, #tpu.memory_space<vmem>>, vector<8x196xf32>
    %331 = vector.broadcast %63 : vector<1x196xf32> to vector<8x196xf32>
    %332 = arith.mulf %330, %331 : vector<8x196xf32>
    %c64_367 = arith.constant 64 : index
    %c0_368 = arith.constant 0 : index
    %333 = vector.load %arg18[%c64_367, %c0_368] : memref<72x196xf32, #tpu.memory_space<vmem>>, vector<8x196xf32>
    tpu.vector_store %arg18[%c64_367, %c0_368], %332 {strides = array<i32>} : memref<72x196xf32, #tpu.memory_space<vmem>>, vector<8x196xf32>,
    %c0_369 = arith.constant 0 : index
    %c0_370 = arith.constant 0 : index
    %334 = vector.load %arg4[%c0_369, %c0_370] : memref<16x72xf32, #tpu.memory_space<vmem>>, vector<16x72xf32>
    %c0_371 = arith.constant 0 : index
    %c0_372 = arith.constant 0 : index
    %335 = vector.load %arg18[%c0_371, %c0_372] : memref<72x196xf32, #tpu.memory_space<vmem>>, vector<72x196xf32>
    %cst_373 = arith.constant dense<0.000000e+00> : vector<16x196xf32>
    %336 = tpu.matmul %334, %335, %cst_373 {dimension_numbers = #tpu.dot_dimension_numbers<[1], [0], [0], [1], [0, 0, 1, 1], [], []>} : vector<16x72xf32>, vector<72x196xf32>, vector<16x196xf32> -> vector<16x196xf32>
    %c0_374 = arith.constant 0 : index
    %c0_375 = arith.constant 0 : index
    %337 = vector.load %arg5[%c0_374, %c0_375] : memref<16x1xf32, #tpu.memory_space<vmem>>, vector<16x1xf32>
    %338 = vector.broadcast %337 : vector<16x1xf32> to vector<16x196xf32>
    %339 = arith.addf %336, %338 : vector<16x196xf32>
    %cst_376 = arith.constant 0.000000e+00 : f32
    %340 = vector.broadcast %cst_376 : f32 to vector<16x196xf32>
    %341 = arith.maximumf %339, %340 : vector<16x196xf32>
    %342 = arith.mulf %341, %341 : vector<16x196xf32>
    %c96 = arith.constant 96 : index
    %c0_377 = arith.constant 0 : index
    %343 = vector.load %arg13[%c96, %c0_377] : memref<128x196xf32, #tpu.memory_space<vmem>>, vector<16x196xf32>
    tpu.vector_store %arg13[%c96, %c0_377], %342 {strides = array<i32>} : memref<128x196xf32, #tpu.memory_space<vmem>>, vector<16x196xf32>,
    %c56_378 = arith.constant 56 : index
    %c0_379 = arith.constant 0 : index
    %344 = vector.load %arg17[%c56_378, %c0_379] : memref<64x226xf32, #tpu.memory_space<vmem>>, vector<8x196xf32>
    %345 = vector.broadcast %62 : vector<1x196xf32> to vector<8x196xf32>
    %346 = arith.mulf %344, %345 : vector<8x196xf32>
    %c0_380 = arith.constant 0 : index
    %c0_381 = arith.constant 0 : index
    %347 = vector.load %arg18[%c0_380, %c0_381] : memref<72x196xf32, #tpu.memory_space<vmem>>, vector<8x196xf32>
    tpu.vector_store %arg18[%c0_380, %c0_381], %346 {strides = array<i32>} : memref<72x196xf32, #tpu.memory_space<vmem>>, vector<8x196xf32>,
    %c56_382 = arith.constant 56 : index
    %c1_383 = arith.constant 1 : index
    %348 = vector.load %arg17[%c56_382, %c1_383] : memref<64x226xf32, #tpu.memory_space<vmem>>, vector<8x196xf32>
    %c8_384 = arith.constant 8 : index
    %c0_385 = arith.constant 0 : index
    %349 = vector.load %arg18[%c8_384, %c0_385] : memref<72x196xf32, #tpu.memory_space<vmem>>, vector<8x196xf32>
    tpu.vector_store %arg18[%c8_384, %c0_385], %348 {strides = array<i32>} : memref<72x196xf32, #tpu.memory_space<vmem>>, vector<8x196xf32>,
    %c56_386 = arith.constant 56 : index
    %c2_387 = arith.constant 2 : index
    %350 = vector.load %arg17[%c56_386, %c2_387] : memref<64x226xf32, #tpu.memory_space<vmem>>, vector<8x196xf32>
    %351 = vector.broadcast %63 : vector<1x196xf32> to vector<8x196xf32>
    %352 = arith.mulf %350, %351 : vector<8x196xf32>
    %c16_388 = arith.constant 16 : index
    %c0_389 = arith.constant 0 : index
    %353 = vector.load %arg18[%c16_388, %c0_389] : memref<72x196xf32, #tpu.memory_space<vmem>>, vector<8x196xf32>
    tpu.vector_store %arg18[%c16_388, %c0_389], %352 {strides = array<i32>} : memref<72x196xf32, #tpu.memory_space<vmem>>, vector<8x196xf32>,
    %c56_390 = arith.constant 56 : index
    %c14_391 = arith.constant 14 : index
    %354 = vector.load %arg17[%c56_390, %c14_391] : memref<64x226xf32, #tpu.memory_space<vmem>>, vector<8x196xf32>
    %355 = vector.broadcast %62 : vector<1x196xf32> to vector<8x196xf32>
    %356 = arith.mulf %354, %355 : vector<8x196xf32>
    %c24_392 = arith.constant 24 : index
    %c0_393 = arith.constant 0 : index
    %357 = vector.load %arg18[%c24_392, %c0_393] : memref<72x196xf32, #tpu.memory_space<vmem>>, vector<8x196xf32>
    tpu.vector_store %arg18[%c24_392, %c0_393], %356 {strides = array<i32>} : memref<72x196xf32, #tpu.memory_space<vmem>>, vector<8x196xf32>,
    %c56_394 = arith.constant 56 : index
    %c15_395 = arith.constant 15 : index
    %358 = vector.load %arg17[%c56_394, %c15_395] : memref<64x226xf32, #tpu.memory_space<vmem>>, vector<8x196xf32>
    %c32_396 = arith.constant 32 : index
    %c0_397 = arith.constant 0 : index
    %359 = vector.load %arg18[%c32_396, %c0_397] : memref<72x196xf32, #tpu.memory_space<vmem>>, vector<8x196xf32>
    tpu.vector_store %arg18[%c32_396, %c0_397], %358 {strides = array<i32>} : memref<72x196xf32, #tpu.memory_space<vmem>>, vector<8x196xf32>,
    %c56_398 = arith.constant 56 : index
    %c16_399 = arith.constant 16 : index
    %360 = vector.load %arg17[%c56_398, %c16_399] : memref<64x226xf32, #tpu.memory_space<vmem>>, vector<8x196xf32>
    %361 = vector.broadcast %63 : vector<1x196xf32> to vector<8x196xf32>
    %362 = arith.mulf %360, %361 : vector<8x196xf32>
    %c40_400 = arith.constant 40 : index
    %c0_401 = arith.constant 0 : index
    %363 = vector.load %arg18[%c40_400, %c0_401] : memref<72x196xf32, #tpu.memory_space<vmem>>, vector<8x196xf32>
    tpu.vector_store %arg18[%c40_400, %c0_401], %362 {strides = array<i32>} : memref<72x196xf32, #tpu.memory_space<vmem>>, vector<8x196xf32>,
    %c56_402 = arith.constant 56 : index
    %c28_403 = arith.constant 28 : index
    %364 = vector.load %arg17[%c56_402, %c28_403] : memref<64x226xf32, #tpu.memory_space<vmem>>, vector<8x196xf32>
    %365 = vector.broadcast %62 : vector<1x196xf32> to vector<8x196xf32>
    %366 = arith.mulf %364, %365 : vector<8x196xf32>
    %c48_404 = arith.constant 48 : index
    %c0_405 = arith.constant 0 : index
    %367 = vector.load %arg18[%c48_404, %c0_405] : memref<72x196xf32, #tpu.memory_space<vmem>>, vector<8x196xf32>
    tpu.vector_store %arg18[%c48_404, %c0_405], %366 {strides = array<i32>} : memref<72x196xf32, #tpu.memory_space<vmem>>, vector<8x196xf32>,
    %c56_406 = arith.constant 56 : index
    %c29_407 = arith.constant 29 : index
    %368 = vector.load %arg17[%c56_406, %c29_407] : memref<64x226xf32, #tpu.memory_space<vmem>>, vector<8x196xf32>
    %c56_408 = arith.constant 56 : index
    %c0_409 = arith.constant 0 : index
    %369 = vector.load %arg18[%c56_408, %c0_409] : memref<72x196xf32, #tpu.memory_space<vmem>>, vector<8x196xf32>
    tpu.vector_store %arg18[%c56_408, %c0_409], %368 {strides = array<i32>} : memref<72x196xf32, #tpu.memory_space<vmem>>, vector<8x196xf32>,
    %c56_410 = arith.constant 56 : index
    %c30_411 = arith.constant 30 : index
    %370 = vector.load %arg17[%c56_410, %c30_411] : memref<64x226xf32, #tpu.memory_space<vmem>>, vector<8x196xf32>
    %371 = vector.broadcast %63 : vector<1x196xf32> to vector<8x196xf32>
    %372 = arith.mulf %370, %371 : vector<8x196xf32>
    %c64_412 = arith.constant 64 : index
    %c0_413 = arith.constant 0 : index
    %373 = vector.load %arg18[%c64_412, %c0_413] : memref<72x196xf32, #tpu.memory_space<vmem>>, vector<8x196xf32>
    tpu.vector_store %arg18[%c64_412, %c0_413], %372 {strides = array<i32>} : memref<72x196xf32, #tpu.memory_space<vmem>>, vector<8x196xf32>,
    %c0_414 = arith.constant 0 : index
    %c0_415 = arith.constant 0 : index
    %374 = vector.load %arg4[%c0_414, %c0_415] : memref<16x72xf32, #tpu.memory_space<vmem>>, vector<16x72xf32>
    %c0_416 = arith.constant 0 : index
    %c0_417 = arith.constant 0 : index
    %375 = vector.load %arg18[%c0_416, %c0_417] : memref<72x196xf32, #tpu.memory_space<vmem>>, vector<72x196xf32>
    %cst_418 = arith.constant dense<0.000000e+00> : vector<16x196xf32>
    %376 = tpu.matmul %374, %375, %cst_418 {dimension_numbers = #tpu.dot_dimension_numbers<[1], [0], [0], [1], [0, 0, 1, 1], [], []>} : vector<16x72xf32>, vector<72x196xf32>, vector<16x196xf32> -> vector<16x196xf32>
    %c0_419 = arith.constant 0 : index
    %c0_420 = arith.constant 0 : index
    %377 = vector.load %arg5[%c0_419, %c0_420] : memref<16x1xf32, #tpu.memory_space<vmem>>, vector<16x1xf32>
    %378 = vector.broadcast %377 : vector<16x1xf32> to vector<16x196xf32>
    %379 = arith.addf %376, %378 : vector<16x196xf32>
    %cst_421 = arith.constant 0.000000e+00 : f32
    %380 = vector.broadcast %cst_421 : f32 to vector<16x196xf32>
    %381 = arith.maximumf %379, %380 : vector<16x196xf32>
    %382 = arith.mulf %381, %381 : vector<16x196xf32>
    %c112 = arith.constant 112 : index
    %c0_422 = arith.constant 0 : index
    %383 = vector.load %arg13[%c112, %c0_422] : memref<128x196xf32, #tpu.memory_space<vmem>>, vector<16x196xf32>
    tpu.vector_store %arg13[%c112, %c0_422], %382 {strides = array<i32>} : memref<128x196xf32, #tpu.memory_space<vmem>>, vector<16x196xf32>,
    %c0_423 = arith.constant 0 : index
    %c0_424 = arith.constant 0 : index
    %384 = vector.load %arg13[%c0_423, %c0_424] : memref<128x196xf32, #tpu.memory_space<vmem>>, vector<128x195xf32>
    %c0_425 = arith.constant 0 : index
    %c1_426 = arith.constant 1 : index
    %385 = vector.load %arg13[%c0_425, %c1_426] : memref<128x196xf32, #tpu.memory_space<vmem>>, vector<128x195xf32>
    %386 = arith.maximumf %384, %385 : vector<128x195xf32>
    %387 = vector.extract_strided_slice %386 {offsets = [0, 0], sizes = [128, 181], strides = [1, 1]} : vector<128x195xf32> to vector<128x181xf32>
    %388 = vector.extract_strided_slice %386 {offsets = [0, 14], sizes = [128, 181], strides = [1, 1]} : vector<128x195xf32> to vector<128x181xf32>
    %389 = arith.maximumf %387, %388 : vector<128x181xf32>
    %c0_427 = arith.constant 0 : index
    %c0_428 = arith.constant 0 : index
    %390 = vector.load %arg7[%c0_427, %c0_428] : memref<181x49xf32, #tpu.memory_space<vmem>>, vector<181x49xf32>
    %cst_429 = arith.constant dense<0.000000e+00> : vector<128x49xf32>
    %391 = tpu.matmul %389, %390, %cst_429 {dimension_numbers = #tpu.dot_dimension_numbers<[1], [0], [0], [1], [0, 0, 1, 1], [], []>} : vector<128x181xf32>, vector<181x49xf32>, vector<128x49xf32> -> vector<128x49xf32>
    %392 = math.sqrt %391 : vector<128x49xf32>
    %c0_430 = arith.constant 0 : index
    %c0_431 = arith.constant 0 : index
    %393 = vector.load %arg14[%c0_430, %c0_431] : memref<128x49xf32, #tpu.memory_space<vmem>>, vector<128x49xf32>
    tpu.vector_store %arg14[%c0_430, %c0_431], %392 {strides = array<i32>} : memref<128x49xf32, #tpu.memory_space<vmem>>, vector<128x49xf32>,
    return
  }
  func.func @transform_0(%arg0: i32) -> (i32, i32) {
    %c0_i32 = arith.constant 0 : i32
    %c0_i32_0 = arith.constant 0 : i32
    return %arg0, %c0_i32 : i32, i32
  }
  func.func @transform_1(%arg0: i32) -> (i32, i32) {
    %c0_i32 = arith.constant 0 : i32
    %c0_i32_0 = arith.constant 0 : i32
    %c0_i32_1 = arith.constant 0 : i32
    return %c0_i32, %c0_i32_0 : i32, i32
  }
  func.func @transform_2(%arg0: i32) -> (i32, i32) {
    %c0_i32 = arith.constant 0 : i32
    %c0_i32_0 = arith.constant 0 : i32
    %c0_i32_1 = arith.constant 0 : i32
    return %c0_i32, %c0_i32_0 : i32, i32
  }
  func.func @transform_3(%arg0: i32) -> (i32, i32) {
    %c0_i32 = arith.constant 0 : i32
    %c0_i32_0 = arith.constant 0 : i32
    %c0_i32_1 = arith.constant 0 : i32
    return %c0_i32, %c0_i32_0 : i32, i32
  }
  func.func @transform_4(%arg0: i32) -> (i32, i32) {
    %c0_i32 = arith.constant 0 : i32
    %c0_i32_0 = arith.constant 0 : i32
    %c0_i32_1 = arith.constant 0 : i32
    return %c0_i32, %c0_i32_0 : i32, i32
  }
  func.func @transform_5(%arg0: i32) -> (i32, i32) {
    %c0_i32 = arith.constant 0 : i32
    %c0_i32_0 = arith.constant 0 : i32
    %c0_i32_1 = arith.constant 0 : i32
    return %c0_i32, %c0_i32_0 : i32, i32
  }
  func.func @transform_6(%arg0: i32) -> (i32, i32) {
    %c0_i32 = arith.constant 0 : i32
    %c0_i32_0 = arith.constant 0 : i32
    %c0_i32_1 = arith.constant 0 : i32
    return %c0_i32, %c0_i32_0 : i32, i32
  }
  func.func @transform_7(%arg0: i32) -> (i32, i32) {
    %c0_i32 = arith.constant 0 : i32
    %c0_i32_0 = arith.constant 0 : i32
    %c0_i32_1 = arith.constant 0 : i32
    return %c0_i32, %c0_i32_0 : i32, i32
  }
  func.func @transform_8(%arg0: i32) -> (i32, i32) {
    %c0_i32 = arith.constant 0 : i32
    %c0_i32_0 = arith.constant 0 : i32
    %c0_i32_1 = arith.constant 0 : i32
    return %c0_i32, %c0_i32_0 : i32, i32
  }
  func.func @transform_9(%arg0: i32) -> (i32, i32) {
    %c0_i32 = arith.constant 0 : i32
    %c0_i32_0 = arith.constant 0 : i32
    %c0_i32_1 = arith.constant 0 : i32
    return %c0_i32, %c0_i32_0 : i32, i32
  }
  func.func @transform_10(%arg0: i32) -> (i32, i32) {
    %c0_i32 = arith.constant 0 : i32
    %c0_i32_0 = arith.constant 0 : i32
    %c0_i32_1 = arith.constant 0 : i32
    return %c0_i32, %c0_i32_0 : i32, i32
  }
  func.func @transform_11(%arg0: i32) -> (i32, i32) {
    %c0_i32 = arith.constant 0 : i32
    %c0_i32_0 = arith.constant 0 : i32
    return %arg0, %c0_i32 : i32, i32
  }
  func.func @transform_12(%arg0: i32) -> (i32, i32) {
    %c0_i32 = arith.constant 0 : i32
    %c0_i32_0 = arith.constant 0 : i32
    return %arg0, %c0_i32 : i32, i32
  }
  func.func @transform_13(%arg0: i32) -> (i32, i32) {
    %c0_i32 = arith.constant 0 : i32
    %c0_i32_0 = arith.constant 0 : i32
    return %arg0, %c0_i32 : i32, i32
  }
}

</mosaic_0001>

<llo_original>
// kernel: mul.11
$region0: #{mul.11}
  %s0 = inlined_call_operand.vmem [shape: f32[8,3,3], index: 0, kind: input, shape index: {}]
  %s1 = inlined_call_operand.vmem [shape: f32[8,9], index: 1, kind: output, shape index: {}]
  $region1: #{mul.11} parent=0
    #allocation0 [shape = 'u8[12288]{0}', space=vmem, size = 0x3000, scoped, tag = 'scoped mem for input reshape']
    %s3 = sshll.u32 1, 4
    %s4 = ssub.s32 %s3, 1
    %s5 = smul.addr 4, 2
    %s6 = scalar_lea.vmem %s0, %s5
    %v7 = vld [vmem:[%s6] sm:%s4]
    %s8 = scalar_lea.vmem [#allocation0], 16
    %9 = vst [vmem:[%s8] sm:%s4] %v7
    %s10 = scalar_lea.vmem %s0, 4
    %v11 = vld [vmem:[%s10] sm:%s4]
    %s12 = scalar_lea.vmem [#allocation0], 8
    %13 = vst [vmem:[%s12] sm:%s4] %v11
    %v14 = vld [vmem:[%s0] sm:%s4]
    %15 = vst [vmem:[#allocation0] sm:%s4] %v14
    %v16 = vld [vmem:[#allocation0] sm:$0x7]
    %vm17 = vcmask 64512
    %18 = vst.msk [vmem:[%s1] sm:$0x7] %vm17, %v16
    %s19 = scalar_lea.vmem [#allocation0], 8
    %v20 = vld [vmem:[%s19] sm:$0x7]
    %vm21 = vcmask 64512
    %s22 = scalar_lea.vmem %s1, 3
    %23 = vst.msk [vmem:[%s22] sm:$0x7] %vm21, %v20
    %s24 = scalar_lea.vmem [#allocation0], 16
    %v25 = vld [vmem:[%s24] sm:$0x7]
    %vm26 = vcmask 64512
    %s27 = scalar_lea.vmem %s1, 6
    %28 = vst.msk [vmem:[%s27] sm:$0x7] %vm26, %v25

// kernel: tile.8
$region0: #{tile.8}
  #allocation2 [shape = 's32[1]{0}', space=sflag, size = 0x4, scoped, tag = 'scoped memory for tile.8']
  %s0 = inlined_call_operand.hbm [shape: f32[8], index: 0, kind: input, shape index: {}]
  %s1 = inlined_call_operand.vmem [shape: f32[8,8], index: 1, kind: output, shape index: {}]
  $region1: #{tile.8} parent=0
    #allocation0 [shape = 'u8[512]{0}', space=vmem, size = 0x400, scoped, tag = 'operand span for operand 0']
    #allocation1 [shape = 's32[1]{0}', space=sflag, size = 0x4, scoped, tag = 'scoped memory for tile.8']
    %2 = vsyncpa [#allocation1], 0
    // Predicated region
    $region2: #{tile.8} parent=1 // pred_check
      _
    $region3: #{tile.8} parent=1 // pred_check_branch
      %4 = sbr.rel (0) target = $region5
    $region4: #{tile.8} parent=1 // pred_region
      %s6 = ssub.s32 16, 16
      %7 = vsyncadd [#allocation1], %s6
      %s9 = sshll.u32 [#allocation0], 4
      %s10 = int_to_ptr.vmem [resolvable:$true] %s9
      %12 = dma.hbm_to_vmem [thread:$0]  %s0, 16, %s10, [#allocation1]
    $region5: #{tile.8} parent=1 // pred_fallthru
      _
    // Predicated region
    $region6: #{tile.8} parent=1 // pred_check
      _
    $region7: #{tile.8} parent=1 // pred_check_branch
      %14 = sbr.rel (0) target = $region9
    $region8: #{tile.8} parent=1 // pred_region
      %15 = dma.done [#allocation1], 16
    $region9: #{tile.8} parent=1 // pred_fallthru
      _
    %v16 = vld [vmem:[#allocation0] ss:$0 sm:$0xff]
    %17 = vst [vmem:[%s1] sm:$0xff] %v16
    %18 = vsyncpa [#allocation1], 1

// kernel: tile.0
$region0: #{tile.0}
  %s0 = inlined_call_operand.vmem [shape: f32[8,8], index: 0, kind: input, shape index: {}]
  %s1 = inlined_call_operand.vmem [shape: f32[64,1], index: 1, kind: output, shape index: {}]
  %v2 = vld [vmem:[%s0] sm:$0xff]
  %vm3 = vcmask 7168
  %4 = vst.msk [vmem:[%s1] ss:$8 sm:$0xf] %vm3, %v2
  %5 = vst.msk [vmem:[%s1] ss:$8 sm:$0xf0] %vm3, %v2
  %v6 = vld [vmem:[%s0] sm:$0xff]
  %7 = vrot.lane.b32.xlu0 %v6, 127
  %v8 = vpop.permute.xlu0 %7
  %vm9 = vcmask 7168
  %s10 = scalar_lea.vmem %s1, 1
  %11 = vst.msk [vmem:[%s10] ss:$8 sm:$0xf] %vm9, %v8
  %s12 = scalar_lea.vmem %s1, 1
  %13 = vst.msk [vmem:[%s12] ss:$8 sm:$0xf0] %vm9, %v8
  %v14 = vld [vmem:[%s0] sm:$0xff]
  %15 = vrot.lane.b32.xlu0 %v14, 126
  %v16 = vpop.permute.xlu0 %15
  %vm17 = vcmask 7168
  %s18 = scalar_lea.vmem %s1, 2
  %19 = vst.msk [vmem:[%s18] ss:$8 sm:$0xf] %vm17, %v16
  %s20 = scalar_lea.vmem %s1, 2
  %21 = vst.msk [vmem:[%s20] ss:$8 sm:$0xf0] %vm17, %v16
  %v22 = vld [vmem:[%s0] sm:$0xff]
  %23 = vrot.lane.b32.xlu0 %v22, 125
  %v24 = vpop.permute.xlu0 %23
  %vm25 = vcmask 7168
  %s26 = scalar_lea.vmem %s1, 3
  %27 = vst.msk [vmem:[%s26] ss:$8 sm:$0xf] %vm25, %v24
  %s28 = scalar_lea.vmem %s1, 3
  %29 = vst.msk [vmem:[%s28] ss:$8 sm:$0xf0] %vm25, %v24
  %v30 = vld [vmem:[%s0] sm:$0xff]
  %31 = vrot.lane.b32.xlu0 %v30, 124
  %v32 = vpop.permute.xlu0 %31
  %vm33 = vcmask 7168
  %s34 = scalar_lea.vmem %s1, 4
  %35 = vst.msk [vmem:[%s34] ss:$8 sm:$0xf] %vm33, %v32
  %s36 = scalar_lea.vmem %s1, 4
  %37 = vst.msk [vmem:[%s36] ss:$8 sm:$0xf0] %vm33, %v32
  %v38 = vld [vmem:[%s0] sm:$0xff]
  %39 = vrot.lane.b32.xlu0 %v38, 123
  %v40 = vpop.permute.xlu0 %39
  %vm41 = vcmask 7168
  %s42 = scalar_lea.vmem %s1, 5
  %43 = vst.msk [vmem:[%s42] ss:$8 sm:$0xf] %vm41, %v40
  %s44 = scalar_lea.vmem %s1, 5
  %45 = vst.msk [vmem:[%s44] ss:$8 sm:$0xf0] %vm41, %v40
  %v46 = vld [vmem:[%s0] sm:$0xff]
  %47 = vrot.lane.b32.xlu0 %v46, 122
  %v48 = vpop.permute.xlu0 %47
  %vm49 = vcmask 7168
  %s50 = scalar_lea.vmem %s1, 6
  %51 = vst.msk [vmem:[%s50] ss:$8 sm:$0xf] %vm49, %v48
  %s52 = scalar_lea.vmem %s1, 6
  %53 = vst.msk [vmem:[%s52] ss:$8 sm:$0xf0] %vm49, %v48
  %v54 = vld [vmem:[%s0] sm:$0xff]
  %55 = vrot.lane.b32.xlu0 %v54, 121
  %v56 = vpop.permute.xlu0 %55
  %vm57 = vcmask 7168
  %s58 = scalar_lea.vmem %s1, 7
  %59 = vst.msk [vmem:[%s58] ss:$8 sm:$0xf] %vm57, %v56
  %s60 = scalar_lea.vmem %s1, 7
  %61 = vst.msk [vmem:[%s60] ss:$8 sm:$0xf0] %vm57, %v56

// kernel: convnet_forward.3
$region0: #{convnet_forward.3}
  #allocation0 [shape = 'u32[]', space=smem, size = 0x4, offset = 0x4, fixed_abs, tag = 'smem constant byte address 0x4 - core index']
  #allocation1 [shape = 'u32[144,128]{1,0:T(1,128)}', space=vmem, size = 0x12000, scoped, tag = 'internal scratch']
  %s0 = inlined_call_operand.vmem [shape: f32[16,784], index: 0, kind: input, shape index: {}]
  %s1 = inlined_call_operand.vmem [shape: f32[784,10], index: 1, kind: input, shape index: {}]
  %s2 = inlined_call_operand.vmem [shape: f32[1,10], index: 2, kind: input, shape index: {}]
  %s3 = inlined_call_operand.hbm [shape: f32[16,10], index: 3, kind: output, shape index: {0}]
  %s4 = inlined_call_operand.hbm [shape: f32[16,10], index: 4, kind: output, shape index: {1}]
  %5 = xla_tuple %s3, %s4
  %s6 = sld [smem:[#allocation0]]
  $region53: #{convnet_forward.3} parent=0
    _
  %s8 = ssub.s32 1, %s6
  %s9 = scalar_select 0, %s8, %s6
  $region1: #{convnet_forward.3} parent=0
    #allocation2 [shape = 'u8[8192]{0}', space=vmem, size = 0x2000, scoped, tag = 'output window, operand 0']
    #allocation3 [shape = 's32[2]{0}', space=sflag, size = 0x8, scoped, tag = 'scoped memory for convnet_forward.3']
    #allocation4 [shape = 'u8[8192]{0}', space=vmem, size = 0x2000, scoped, tag = 'output window, operand 1']
    #allocation5 [shape = 's32[2]{0}', space=sflag, size = 0x8, scoped, tag = 'scoped memory for convnet_forward.3']
    %10 = vsyncpa [#allocation3], 0
    %s11 = scalar_lea.sflag [#allocation3], 1
    %12 = vsyncpa %s11, 0
    %13 = vsyncpa [#allocation5], 0
    %s14 = scalar_lea.sflag [#allocation5], 1
    %15 = vsyncpa %s14, 0
    loop: start=0, step=1, limit=4
    $region2: #{convnet_forward.3} parent=1 // loop_pre_header
      _
    $region3: #{convnet_forward.3} parent=1 // loop_header
      %s17 = sphi 0, %s21
      %p18 = scmp.ge.s32.totalorder %s17, 4
      %s27 = sphi 0, %s29
      %s30 = sphi 0, %s27
      %s31 = sphi 0, %s30
      %s47 = sphi 0, %s31
      %s51 = sphi 0, %s51
      %s53 = sphi 0, %s51
      %s54 = sphi 0, %s53
      %s68 = sphi 0, %s54
      %s72 = sphi 0, %s72
      %s74 = sphi 0, %s72
      %s75 = sphi 0, %s74
      %s89 = sphi 0, %s75
      %s95 = sphi 0, %s97
      %s98 = sphi 0, %s95
      %s99 = sphi 0, %s98
      %s115 = sphi 0, %s99
      %s121 = sphi 0, %s123
      %s124 = sphi 0, %s121
      %s125 = sphi 0, %s124
      %s141 = sphi 0, %s125
    $region4: #{convnet_forward.3} parent=1 // loop_header_branch
      %20 = sbr.rel (%p18) target = $region8
    $region5: #{convnet_forward.3} parent=1 // loop_body
      %s22 = ssub.s32 %s17, 1
      %s23 = ssub.s32 %s17, 2
      %s24 = sadd.s32 %s17, 1
      %s25 = ssub.s32 %s17, %s24
      %p26 = scmp.eq.s32.totalorder %s25, 0
      %s28 = sadd.s32 %s27, 1
      %s29 = scalar_select %p26, %s27, %s28
      %p32 = pneg %p26
      %p33 = scmp.eq.s32.totalorder %s17, 1
      %p34 = por %p32, %p33
      %p35 = scmp.ne.s32.totalorder %s27, %s30
      %p36 = scmp.eq.s32.totalorder %s17, 0
      %p37 = por %p35, %p36
      %p38 = scmp.ne.s32.totalorder %s27, %s30
      %p39 = scmp.eq.s32.totalorder %s22, 1
      %p40 = por %p38, %p39
      %p41 = scmp.ne.s32.totalorder %s30, %s31
      %p42 = scmp.eq.s32.totalorder %s22, 0
      %p43 = por %p41, %p42
      %p44 = scmp.ne.s32.totalorder %s30, %s31
      %p45 = scmp.eq.s32.totalorder %s23, 1
      %p46 = por %p44, %p45
      %p48 = scmp.ne.s32.totalorder %s31, %s47
      %p49 = scmp.eq.s32.totalorder %s23, 0
      %p50 = por %p48, %p49
      %s52 = sadd.s32 %s51, 1
      %p55 = scmp.eq.s32.totalorder %s17, 1
      %p56 = scmp.ne.s32.totalorder %s51, %s53
      %p57 = scmp.eq.s32.totalorder %s17, 0
      %p58 = por %p56, %p57
      %p59 = scmp.ne.s32.totalorder %s51, %s53
      %p60 = scmp.eq.s32.totalorder %s22, 1
      %p61 = por %p59, %p60
      %p62 = scmp.ne.s32.totalorder %s53, %s54
      %p63 = scmp.eq.s32.totalorder %s22, 0
      %p64 = por %p62, %p63
      %p65 = scmp.ne.s32.totalorder %s53, %s54
      %p66 = scmp.eq.s32.totalorder %s23, 1
      %p67 = por %p65, %p66
      %p69 = scmp.ne.s32.totalorder %s54, %s68
      %p70 = scmp.eq.s32.totalorder %s23, 0
      %p71 = por %p69, %p70
      %s73 = sadd.s32 %s72, 1
      %p76 = scmp.eq.s32.totalorder %s17, 1
      %p77 = scmp.ne.s32.totalorder %s72, %s74
      %p78 = scmp.eq.s32.totalorder %s17, 0
      %p79 = por %p77, %p78
      %p80 = scmp.ne.s32.totalorder %s72, %s74
      %p81 = scmp.eq.s32.totalorder %s22, 1
      %p82 = por %p80, %p81
      %p83 = scmp.ne.s32.totalorder %s74, %s75
      %p84 = scmp.eq.s32.totalorder %s22, 0
      %p85 = por %p83, %p84
      %p86 = scmp.ne.s32.totalorder %s74, %s75
      %p87 = scmp.eq.s32.totalorder %s23, 1
      %p88 = por %p86, %p87
      %p90 = scmp.ne.s32.totalorder %s75, %s89
      %p91 = scmp.eq.s32.totalorder %s23, 0
      %p92 = por %p90, %p91
      %s93 = ssub.s32 %s17, %s24
      %p94 = scmp.eq.s32.totalorder %s93, 0
      %s96 = sadd.s32 %s95, 1
      %s97 = scalar_select %p94, %s95, %s96
      %p100 = pneg %p94
      %p101 = scmp.eq.s32.totalorder %s17, 1
      %p102 = por %p100, %p101
      %p103 = scmp.ne.s32.totalorder %s95, %s98
      %p104 = scmp.eq.s32.totalorder %s17, 0
      %p105 = por %p103, %p104
      %p106 = scmp.ne.s32.totalorder %s95, %s98
      %p107 = scmp.eq.s32.totalorder %s22, 1
      %p108 = por %p106, %p107
      %p109 = scmp.ne.s32.totalorder %s98, %s99
      %p110 = scmp.eq.s32.totalorder %s22, 0
      %p111 = por %p109, %p110
      %p112 = scmp.ne.s32.totalorder %s98, %s99
      %p113 = scmp.eq.s32.totalorder %s23, 1
      %p114 = por %p112, %p113
      %p116 = scmp.ne.s32.totalorder %s99, %s115
      %p117 = scmp.eq.s32.totalorder %s23, 0
      %p118 = por %p116, %p117
      %s119 = ssub.s32 %s17, %s24
      %p120 = scmp.eq.s32.totalorder %s119, 0
      %s122 = sadd.s32 %s121, 1
      %s123 = scalar_select %p120, %s121, %s122
      %p126 = pneg %p120
      %p127 = scmp.eq.s32.totalorder %s17, 1
      %p128 = por %p126, %p127
      %p129 = scmp.ne.s32.totalorder %s121, %s124
      %p130 = scmp.eq.s32.totalorder %s17, 0
      %p131 = por %p129, %p130
      %p132 = scmp.ne.s32.totalorder %s121, %s124
      %p133 = scmp.eq.s32.totalorder %s22, 1
      %p134 = por %p132, %p133
      %p135 = scmp.ne.s32.totalorder %s124, %s125
      %p136 = scmp.eq.s32.totalorder %s22, 0
      %p137 = por %p135, %p136
      %p138 = scmp.ne.s32.totalorder %s124, %s125
      %p139 = scmp.eq.s32.totalorder %s23, 1
      %p140 = por %p138, %p139
      %p142 = scmp.ne.s32.totalorder %s125, %s141
      %p143 = scmp.eq.s32.totalorder %s23, 0
      %p144 = por %p142, %p143
      %p145 = scmp.le.s32.totalorder 1, %s17
      %p146 = scmp.lt.s32.totalorder %s17, 3
      %p147 = pnand %p145, %p146
      %p148 = pneg %p147
      // Predicated region
      $region9: #{convnet_forward.3} parent=5 // pred_check
        _
      $region10: #{convnet_forward.3} parent=5 // pred_check_branch
        %150 = sbr.rel (%p147) target = $region12
      $region11: #{convnet_forward.3} parent=5 // pred_region
        %s151 = ssub.s32 %s17, 1
        // Predicated region
        $region13: #{convnet_forward.3} parent=11 // pred_check
          %p152 = pneg %p64
        $region14: #{convnet_forward.3} parent=11 // pred_check_branch
          %154 = sbr.rel (%p152) target = $region16
        $region15: #{convnet_forward.3} parent=11 // pred_region
          _
        $region16: #{convnet_forward.3} parent=11 // pred_fallthru
          _
        // Predicated region
        $region17: #{convnet_forward.3} parent=11 // pred_check
          %p155 = pneg %p85
        $region18: #{convnet_forward.3} parent=11 // pred_check_branch
          %157 = sbr.rel (%p155) target = $region20
        $region19: #{convnet_forward.3} parent=11 // pred_region
          _
        $region20: #{convnet_forward.3} parent=11 // pred_fallthru
          _
      $region12: #{convnet_forward.3} parent=5 // pred_fallthru
        _
      %p158 = scmp.lt.s32.totalorder %s17, 2
      // Predicated region
      $region21: #{convnet_forward.3} parent=5 // pred_check
        %p159 = pneg %p158
      $region22: #{convnet_forward.3} parent=5 // pred_check_branch
        %161 = sbr.rel (%p159) target = $region24
      $region23: #{convnet_forward.3} parent=5 // pred_region
        // Predicated region
        $region25: #{convnet_forward.3} parent=23 // pred_check
          %p162 = pneg %p37
        $region26: #{convnet_forward.3} parent=23 // pred_check_branch
          %164 = sbr.rel (%p162) target = $region28
        $region27: #{convnet_forward.3} parent=23 // pred_region
          %p165 = scmp.lt.s32.totalorder %s17, 1
          %s166 = scalar_select %p165, %s17, 1
          %s167 = smul.addr %s166, 7
          %s168 = smul.addr %s167, 8
          %s169 = scalar_lea.vmem %s0, %s168
        $region28: #{convnet_forward.3} parent=23 // pred_fallthru
          _
      $region24: #{convnet_forward.3} parent=5 // pred_fallthru
        _
      %p170 = scmp.le.s32.totalorder 1, %s17
      %p171 = scmp.lt.s32.totalorder %s17, 3
      %p172 = pnand %p170, %p171
      %p173 = pneg %p172
      // Predicated region
      $region29: #{convnet_forward.3} parent=5 // pred_check
        _
      $region30: #{convnet_forward.3} parent=5 // pred_check_branch
        %175 = sbr.rel (%p172) target = $region32
      $region31: #{convnet_forward.3} parent=5 // pred_region
        %s176 = ssub.s32 %s17, 1
        %p177 = scmp.lt.s32.totalorder %s22, 1
        %s178 = scalar_select %p177, %s22, 1
        %s179 = smul.addr %s178, 7
        %s180 = smul.addr %s179, 8
        %s181 = scalar_lea.vmem %s0, %s180
        %p182 = pneg %p43
        %p183 = pneg %p40
        %p184 = pneg %p64
        %p185 = pneg %p61
        %p186 = pneg %p85
        %p187 = pneg %p82
        %p188 = pneg %p111
        %p189 = pneg %p108
        %s190 = sand.u32 %s98, 1
        %s191 = scalar_lea.sflag [#allocation3], %s190
        %s192 = sand.u32 %s98, 1
        %s193 = smul.addr %s192, 8
        %s194 = scalar_lea.vmem [#allocation2], %s193
        %p195 = pneg %p137
        %p196 = pneg %p134
        %s197 = sand.u32 %s124, 1
        %s198 = scalar_lea.sflag [#allocation5], %s197
        %s199 = sand.u32 %s124, 1
        %s200 = smul.addr %s199, 8
        %s201 = scalar_lea.vmem [#allocation4], %s200
        %p202 = scmp.lt.s32.totalorder %s22, 1
        %s203 = scalar_select %p202, %s22, 1
        %s204 = smul.addr %s203, 7
        %s205 = smul.addr %s204, 8
        %s206 = scalar_lea.vmem %s0, %s205
        %v207 = vld [vmem:[%s206] sm:$0xff]
        %v208 = vld [vmem:[%s206 + $0x8] sm:$0xff]
        %v209 = vld [vmem:[%s206 + $0x10] sm:$0xff]
        %v210 = vld [vmem:[%s206 + $0x18] sm:$0xff]
        %v211 = vld [vmem:[%s206 + $0x20] sm:$0xff]
        %v212 = vld [vmem:[%s206 + $0x28] sm:$0xff]
        %v213 = vld [vmem:[%s206 + $0x30] sm:$0xff]
        %v214 = vld [vmem:[%s1] sm:$0xff]
        %v215 = vld [vmem:[%s1 + $0x8] sm:$0xff]
        %v216 = vld [vmem:[%s1 + $0x10] sm:$0xff]
        %v217 = vld [vmem:[%s1 + $0x18] sm:$0xff]
        %v218 = vld [vmem:[%s1 + $0x20] sm:$0xff]
        %v219 = vld [vmem:[%s1 + $0x28] sm:$0xff]
        %v220 = vld [vmem:[%s1 + $0x30] sm:$0xff]
        %v221 = vld [vmem:[%s1 + $0x38] sm:$0xff]
        %v222 = vld [vmem:[%s1 + $0x40] sm:$0xff]
        %v223 = vld [vmem:[%s1 + $0x48] sm:$0xff]
        %v224 = vld [vmem:[%s1 + $0x50] sm:$0xff]
        %v225 = vld [vmem:[%s1 + $0x58] sm:$0xff]
        %v226 = vld [vmem:[%s1 + $0x60] sm:$0xff]
        %v227 = vld [vmem:[%s1 + $0x68] sm:$0xff]
        %v228 = vld [vmem:[%s1 + $0x70] sm:$0xff]
        %v229 = vld [vmem:[%s1 + $0x78] sm:$0xff]
        %v230 = vld [vmem:[%s1 + $0x80] sm:$0xff]
        %v231 = vld [vmem:[%s1 + $0x88] sm:$0xff]
        %v232 = vld [vmem:[%s1 + $0x90] sm:$0xff]
        %v233 = vld [vmem:[%s1 + $0x98] sm:$0xff]
        %v234 = vld [vmem:[%s1 + $0xa0] sm:$0xff]
        %v235 = vld [vmem:[%s1 + $0xa8] sm:$0xff]
        %v236 = vld [vmem:[%s1 + $0xb0] sm:$0xff]
        %v237 = vld [vmem:[%s1 + $0xb8] sm:$0xff]
        %v238 = vld [vmem:[%s1 + $0xc0] sm:$0xff]
        %v239 = vld [vmem:[%s1 + $0xc8] sm:$0xff]
        %v240 = vld [vmem:[%s1 + $0xd0] sm:$0xff]
        %v241 = vld [vmem:[%s1 + $0xd8] sm:$0xff]
        %v242 = vld [vmem:[%s1 + $0xe0] sm:$0xff]
        %v243 = vld [vmem:[%s1 + $0xe8] sm:$0xff]
        %v244 = vld [vmem:[%s1 + $0xf0] sm:$0xff]
        %v245 = vld [vmem:[%s1 + $0xf8] sm:$0xff]
        %v246 = vld [vmem:[%s1 + $0x100] sm:$0xff]
        %v247 = vld [vmem:[%s1 + $0x108] sm:$0xff]
        %v248 = vld [vmem:[%s1 + $0x110] sm:$0xff]
        %v249 = vld [vmem:[%s1 + $0x118] sm:$0xff]
        %v250 = vld [vmem:[%s1 + $0x120] sm:$0xff]
        %v251 = vld [vmem:[%s1 + $0x128] sm:$0xff]
        %v252 = vld [vmem:[%s1 + $0x130] sm:$0xff]
        %v253 = vld [vmem:[%s1 + $0x138] sm:$0xff]
        %v254 = vld [vmem:[%s1 + $0x140] sm:$0xff]
        %v255 = vld [vmem:[%s1 + $0x148] sm:$0xff]
        %v256 = vld [vmem:[%s1 + $0x150] sm:$0xff]
        %v257 = vld [vmem:[%s1 + $0x158] sm:$0xff]
        %v258 = vld [vmem:[%s1 + $0x160] sm:$0xff]
        %v259 = vld [vmem:[%s1 + $0x168] sm:$0xff]
        %v260 = vld [vmem:[%s1 + $0x170] sm:$0xff]
        %v261 = vld [vmem:[%s1 + $0x178] sm:$0xff]
        %v262 = vld [vmem:[%s1 + $0x180] sm:$0xff]
        %v263 = vld [vmem:[%s1 + $0x188] sm:$0xff]
        %v264 = vld [vmem:[%s1 + $0x190] sm:$0xff]
        %v265 = vld [vmem:[%s1 + $0x198] sm:$0xff]
        %v266 = vld [vmem:[%s1 + $0x1a0] sm:$0xff]
        %v267 = vld [vmem:[%s1 + $0x1a8] sm:$0xff]
        %v268 = vld [vmem:[%s1 + $0x1b0] sm:$0xff]
        %v269 = vld [vmem:[%s1 + $0x1b8] sm:$0xff]
        %v270 = vld [vmem:[%s1 + $0x1c0] sm:$0xff]
        %v271 = vld [vmem:[%s1 + $0x1c8] sm:$0xff]
        %v272 = vld [vmem:[%s1 + $0x1d0] sm:$0xff]
        %v273 = vld [vmem:[%s1 + $0x1d8] sm:$0xff]
        %v274 = vld [vmem:[%s1 + $0x1e0] sm:$0xff]
        %v275 = vld [vmem:[%s1 + $0x1e8] sm:$0xff]
        %v276 = vld [vmem:[%s1 + $0x1f0] sm:$0xff]
        %v277 = vld [vmem:[%s1 + $0x1f8] sm:$0xff]
        %v278 = vld [vmem:[%s1 + $0x200] sm:$0xff]
        %v279 = vld [vmem:[%s1 + $0x208] sm:$0xff]
        %v280 = vld [vmem:[%s1 + $0x210] sm:$0xff]
        %v281 = vld [vmem:[%s1 + $0x218] sm:$0xff]
        %v282 = vld [vmem:[%s1 + $0x220] sm:$0xff]
        %v283 = vld [vmem:[%s1 + $0x228] sm:$0xff]
        %v284 = vld [vmem:[%s1 + $0x230] sm:$0xff]
        %v285 = vld [vmem:[%s1 + $0x238] sm:$0xff]
        %v286 = vld [vmem:[%s1 + $0x240] sm:$0xff]
        %v287 = vld [vmem:[%s1 + $0x248] sm:$0xff]
        %v288 = vld [vmem:[%s1 + $0x250] sm:$0xff]
        %v289 = vld [vmem:[%s1 + $0x258] sm:$0xff]
        %v290 = vld [vmem:[%s1 + $0x260] sm:$0xff]
        %v291 = vld [vmem:[%s1 + $0x268] sm:$0xff]
        %v292 = vld [vmem:[%s1 + $0x270] sm:$0xff]
        %v293 = vld [vmem:[%s1 + $0x278] sm:$0xff]
        %v294 = vld [vmem:[%s1 + $0x280] sm:$0xff]
        %v295 = vld [vmem:[%s1 + $0x288] sm:$0xff]
        %v296 = vld [vmem:[%s1 + $0x290] sm:$0xff]
        %v297 = vld [vmem:[%s1 + $0x298] sm:$0xff]
        %v298 = vld [vmem:[%s1 + $0x2a0] sm:$0xff]
        %v299 = vld [vmem:[%s1 + $0x2a8] sm:$0xff]
        %v300 = vld [vmem:[%s1 + $0x2b0] sm:$0xff]
        %v301 = vld [vmem:[%s1 + $0x2b8] sm:$0xff]
        %v302 = vld [vmem:[%s1 + $0x2c0] sm:$0xff]
        %v303 = vld [vmem:[%s1 + $0x2c8] sm:$0xff]
        %v304 = vld [vmem:[%s1 + $0x2d0] sm:$0xff]
        %v305 = vld [vmem:[%s1 + $0x2d8] sm:$0xff]
        %v306 = vld [vmem:[%s1 + $0x2e0] sm:$0xff]
        %v307 = vld [vmem:[%s1 + $0x2e8] sm:$0xff]
        %v308 = vld [vmem:[%s1 + $0x2f0] sm:$0xff]
        %v309 = vld [vmem:[%s1 + $0x2f8] sm:$0xff]
        %v310 = vld [vmem:[%s1 + $0x300] sm:$0xff]
        %v311 = vld [vmem:[%s1 + $0x308] sm:$0xff]
        %v312 = vld [vmem:[%s2] sm:$0x1]
        %v314 = vlaneseq
        %v315 = vshrl.u32 %v314, 7
        %v316 = vsub.s32 0, %v315
        %v317 = vrot.slane %v312, %v316
        %vm319 = vcmask 130048
        %v321 = vsel %vm319, %v213, 0
        %323 = vmatprep.subr.mxu0 0.0
        %324 = vmatpush1.msra.mxu0 %v229
        %325 = vmatprep.subr.mxu0 0.0
        %326 = vmatpush1.msra.mxu0 %v228
        %327 = vmatprep.subr.mxu0 0.0
        %328 = vmatpush1.msra.mxu0 %v227
        %329 = vmatprep.subr.mxu0 0.0
        %330 = vmatpush1.msra.mxu0 %v226
        %331 = vmatprep.subr.mxu0 0.0
        %332 = vmatpush1.msra.mxu0 %v225
        %333 = vmatprep.subr.mxu0 0.0
        %334 = vmatpush1.msra.mxu0 %v224
        %335 = vmatprep.subr.mxu0 0.0
        %336 = vmatpush1.msra.mxu0 %v223
        %337 = vmatprep.subr.mxu0 0.0
        %338 = vmatpush1.msra.mxu0 %v222
        %339 = vmatprep.subr.mxu0 0.0
        %340 = vmatpush1.msra.mxu0 %v221
        %341 = vmatprep.subr.mxu0 0.0
        %342 = vmatpush1.msra.mxu0 %v220
        %343 = vmatprep.subr.mxu0 0.0
        %344 = vmatpush1.msra.mxu0 %v219
        %345 = vmatprep.subr.mxu0 0.0
        %346 = vmatpush1.msra.mxu0 %v218
        %347 = vmatprep.subr.mxu0 0.0
        %348 = vmatpush1.msra.mxu0 %v217
        %349 = vmatprep.subr.mxu0 0.0
        %350 = vmatpush1.msra.mxu0 %v216
        %351 = vmatprep.subr.mxu0 0.0
        %352 = vmatpush1.msra.mxu0 %v215
        %353 = vmatprep.subr.mxu0 0.0
        %354 = vmatpush1.msra.mxu0 %v214
        %355 = vmatprep.subr.mxu0 0.0
        %356 = vmatpush2.msra.mxu0 %v245
        %357 = vmatprep.subr.mxu0 0.0
        %358 = vmatpush2.msra.mxu0 %v244
        %359 = vmatprep.subr.mxu0 0.0
        %360 = vmatpush2.msra.mxu0 %v243
        %361 = vmatprep.subr.mxu0 0.0
        %362 = vmatpush2.msra.mxu0 %v242
        %363 = vmatprep.subr.mxu0 0.0
        %364 = vmatpush2.msra.mxu0 %v241
        %365 = vmatprep.subr.mxu0 0.0
        %366 = vmatpush2.msra.mxu0 %v240
        %367 = vmatprep.subr.mxu0 0.0
        %368 = vmatpush2.msra.mxu0 %v239
        %369 = vmatprep.subr.mxu0 0.0
        %370 = vmatpush2.msra.mxu0 %v238
        %371 = vmatprep.subr.mxu0 0.0
        %372 = vmatpush2.msra.mxu0 %v237
        %373 = vmatprep.subr.mxu0 0.0
        %374 = vmatpush2.msra.mxu0 %v236
        %375 = vmatprep.subr.mxu0 0.0
        %376 = vmatpush2.msra.mxu0 %v235
        %377 = vmatprep.subr.mxu0 0.0
        %378 = vmatpush2.msra.mxu0 %v234
        %379 = vmatprep.subr.mxu0 0.0
        %380 = vmatpush2.msra.mxu0 %v233
        %381 = vmatprep.subr.mxu0 0.0
        %382 = vmatpush2.msra.mxu0 %v232
        %383 = vmatprep.subr.mxu0 0.0
        %384 = vmatpush2.msra.mxu0 %v231
        %385 = vmatprep.subr.mxu0 0.0
        %386 = vmatpush2.msra.mxu0 %v230
        %387 = vmatprep.mubr.f32.mxu0 %v208
        %388 = vmatmul.mubr.f32.gmra.mxu0 %v207
        %v389 = vpop.f32.mrf.mxu0
        %v390 = vadd.f32 %v317, %v389
        %v391 = vpop.f32.mrf.mxu0
        %392 = vdwg.mxu0
        %393 = vmatprep.subr.mxu0 0.0
        %394 = vmatpush1.msra.mxu0 %v261
        %395 = vmatprep.subr.mxu0 0.0
        %396 = vmatpush1.msra.mxu0 %v260
        %397 = vmatprep.subr.mxu0 0.0
        %398 = vmatpush1.msra.mxu0 %v259
        %399 = vmatprep.subr.mxu0 0.0
        %400 = vmatpush1.msra.mxu0 %v258
        %401 = vmatprep.subr.mxu0 0.0
        %402 = vmatpush1.msra.mxu0 %v257
        %403 = vmatprep.subr.mxu0 0.0
        %404 = vmatpush1.msra.mxu0 %v256
        %405 = vmatprep.subr.mxu0 0.0
        %406 = vmatpush1.msra.mxu0 %v255
        %407 = vmatprep.subr.mxu0 0.0
        %408 = vmatpush1.msra.mxu0 %v254
        %409 = vmatprep.subr.mxu0 0.0
        %410 = vmatpush1.msra.mxu0 %v253
        %411 = vmatprep.subr.mxu0 0.0
        %412 = vmatpush1.msra.mxu0 %v252
        %413 = vmatprep.subr.mxu0 0.0
        %414 = vmatpush1.msra.mxu0 %v251
        %415 = vmatprep.subr.mxu0 0.0
        %416 = vmatpush1.msra.mxu0 %v250
        %417 = vmatprep.subr.mxu0 0.0
        %418 = vmatpush1.msra.mxu0 %v249
        %419 = vmatprep.subr.mxu0 0.0
        %420 = vmatpush1.msra.mxu0 %v248
        %421 = vmatprep.subr.mxu0 0.0
        %422 = vmatpush1.msra.mxu0 %v247
        %423 = vmatprep.subr.mxu0 0.0
        %424 = vmatpush1.msra.mxu0 %v246
        %425 = vmatprep.subr.mxu0 0.0
        %426 = vmatpush2.msra.mxu0 %v277
        %427 = vmatprep.subr.mxu0 0.0
        %428 = vmatpush2.msra.mxu0 %v276
        %429 = vmatprep.subr.mxu0 0.0
        %430 = vmatpush2.msra.mxu0 %v275
        %431 = vmatprep.subr.mxu0 0.0
        %432 = vmatpush2.msra.mxu0 %v274
        %433 = vmatprep.subr.mxu0 0.0
        %434 = vmatpush2.msra.mxu0 %v273
        %435 = vmatprep.subr.mxu0 0.0
        %436 = vmatpush2.msra.mxu0 %v272
        %437 = vmatprep.subr.mxu0 0.0
        %438 = vmatpush2.msra.mxu0 %v271
        %439 = vmatprep.subr.mxu0 0.0
        %440 = vmatpush2.msra.mxu0 %v270
        %441 = vmatprep.subr.mxu0 0.0
        %442 = vmatpush2.msra.mxu0 %v269
        %443 = vmatprep.subr.mxu0 0.0
        %444 = vmatpush2.msra.mxu0 %v268
        %445 = vmatprep.subr.mxu0 0.0
        %446 = vmatpush2.msra.mxu0 %v267
        %447 = vmatprep.subr.mxu0 0.0
        %448 = vmatpush2.msra.mxu0 %v266
        %449 = vmatprep.subr.mxu0 0.0
        %450 = vmatpush2.msra.mxu0 %v265
        %451 = vmatprep.subr.mxu0 0.0
        %452 = vmatpush2.msra.mxu0 %v264
        %453 = vmatprep.subr.mxu0 0.0
        %454 = vmatpush2.msra.mxu0 %v263
        %455 = vmatprep.subr.mxu0 0.0
        %456 = vmatpush2.msra.mxu0 %v262
        %457 = vmatprep.mubr.f32.mxu0 %v210
        %458 = vmatmul.mubr.f32.gmra.mxu0 %v209
        %v459 = vpop.f32.mrf.mxu0
        %v460 = vadd.f32 %v390, %v459
        %v461 = vpop.f32.mrf.mxu0
        %462 = vdwg.mxu0
        %463 = vmatprep.subr.mxu0 0.0
        %464 = vmatpush1.msra.mxu0 %v293
        %465 = vmatprep.subr.mxu0 0.0
        %466 = vmatpush1.msra.mxu0 %v292
        %467 = vmatprep.subr.mxu0 0.0
        %468 = vmatpush1.msra.mxu0 %v291
        %469 = vmatprep.subr.mxu0 0.0
        %470 = vmatpush1.msra.mxu0 %v290
        %471 = vmatprep.subr.mxu0 0.0
        %472 = vmatpush1.msra.mxu0 %v289
        %473 = vmatprep.subr.mxu0 0.0
        %474 = vmatpush1.msra.mxu0 %v288
        %475 = vmatprep.subr.mxu0 0.0
        %476 = vmatpush1.msra.mxu0 %v287
        %477 = vmatprep.subr.mxu0 0.0
        %478 = vmatpush1.msra.mxu0 %v286
        %479 = vmatprep.subr.mxu0 0.0
        %480 = vmatpush1.msra.mxu0 %v285
        %481 = vmatprep.subr.mxu0 0.0
        %482 = vmatpush1.msra.mxu0 %v284
        %483 = vmatprep.subr.mxu0 0.0
        %484 = vmatpush1.msra.mxu0 %v283
        %485 = vmatprep.subr.mxu0 0.0
        %486 = vmatpush1.msra.mxu0 %v282
        %487 = vmatprep.subr.mxu0 0.0
        %488 = vmatpush1.msra.mxu0 %v281
        %489 = vmatprep.subr.mxu0 0.0
        %490 = vmatpush1.msra.mxu0 %v280
        %491 = vmatprep.subr.mxu0 0.0
        %492 = vmatpush1.msra.mxu0 %v279
        %493 = vmatprep.subr.mxu0 0.0
        %494 = vmatpush1.msra.mxu0 %v278
        %495 = vmatprep.subr.mxu0 0.0
        %496 = vmatpush2.msra.mxu0 %v309
        %497 = vmatprep.subr.mxu0 0.0
        %498 = vmatpush2.msra.mxu0 %v308
        %499 = vmatprep.subr.mxu0 0.0
        %500 = vmatpush2.msra.mxu0 %v307
        %501 = vmatprep.subr.mxu0 0.0
        %502 = vmatpush2.msra.mxu0 %v306
        %503 = vmatprep.subr.mxu0 0.0
        %504 = vmatpush2.msra.mxu0 %v305
        %505 = vmatprep.subr.mxu0 0.0
        %506 = vmatpush2.msra.mxu0 %v304
        %507 = vmatprep.subr.mxu0 0.0
        %508 = vmatpush2.msra.mxu0 %v303
        %509 = vmatprep.subr.mxu0 0.0
        %510 = vmatpush2.msra.mxu0 %v302
        %511 = vmatprep.subr.mxu0 0.0
        %512 = vmatpush2.msra.mxu0 %v301
        %513 = vmatprep.subr.mxu0 0.0
        %514 = vmatpush2.msra.mxu0 %v300
        %515 = vmatprep.subr.mxu0 0.0
        %516 = vmatpush2.msra.mxu0 %v299
        %517 = vmatprep.subr.mxu0 0.0
        %518 = vmatpush2.msra.mxu0 %v298
        %519 = vmatprep.subr.mxu0 0.0
        %520 = vmatpush2.msra.mxu0 %v297
        %521 = vmatprep.subr.mxu0 0.0
        %522 = vmatpush2.msra.mxu0 %v296
        %523 = vmatprep.subr.mxu0 0.0
        %524 = vmatpush2.msra.mxu0 %v295
        %525 = vmatprep.subr.mxu0 0.0
        %526 = vmatpush2.msra.mxu0 %v294
        %527 = vmatprep.mubr.f32.mxu0 %v212
        %528 = vmatmul.mubr.f32.gmra.mxu0 %v211
        %v529 = vpop.f32.mrf.mxu0
        %v530 = vadd.f32 %v460, %v529
        %v531 = vpop.f32.mrf.mxu0
        %532 = vdwg.mxu0
        %533 = vmatprep.subr.mxu0 0.0
        %534 = vmatpush1.msra.mxu0 0.0
        %535 = vmatprep.subr.mxu0 0.0
        %536 = vmatpush1.msra.mxu0 0.0
        %537 = vmatprep.subr.mxu0 0.0
        %538 = vmatpush1.msra.mxu0 0.0
        %539 = vmatprep.subr.mxu0 0.0
        %540 = vmatpush1.msra.mxu0 0.0
        %541 = vmatprep.subr.mxu0 0.0
        %542 = vmatpush1.msra.mxu0 0.0
        %543 = vmatprep.subr.mxu0 0.0
        %544 = vmatpush1.msra.mxu0 0.0
        %545 = vmatprep.subr.mxu0 0.0
        %546 = vmatpush1.msra.mxu0 0.0
        %547 = vmatprep.subr.mxu0 0.0
        %548 = vmatpush1.msra.mxu0 0.0
        %549 = vmatprep.subr.mxu0 0.0
        %550 = vmatpush1.msra.mxu0 0.0
        %551 = vmatprep.subr.mxu0 0.0
        %552 = vmatpush1.msra.mxu0 0.0
        %553 = vmatprep.subr.mxu0 0.0
        %554 = vmatpush1.msra.mxu0 0.0
        %555 = vmatprep.subr.mxu0 0.0
        %556 = vmatpush1.msra.mxu0 0.0
        %557 = vmatprep.subr.mxu0 0.0
        %558 = vmatpush1.msra.mxu0 0.0
        %559 = vmatprep.subr.mxu0 0.0
        %560 = vmatpush1.msra.mxu0 0.0
        %561 = vmatprep.subr.mxu0 0.0
        %562 = vmatpush1.msra.mxu0 %v311
        %563 = vmatprep.subr.mxu0 0.0
        %564 = vmatpush1.msra.mxu0 %v310
        %565 = vmatprep.subr.mxu0 0.0
        %566 = vmatpush2.msra.mxu0 0.0
        %567 = vmatprep.subr.mxu0 0.0
        %568 = vmatpush2.msra.mxu0 0.0
        %569 = vmatprep.subr.mxu0 0.0
        %570 = vmatpush2.msra.mxu0 0.0
        %571 = vmatprep.subr.mxu0 0.0
        %572 = vmatpush2.msra.mxu0 0.0
        %573 = vmatprep.subr.mxu0 0.0
        %574 = vmatpush2.msra.mxu0 0.0
        %575 = vmatprep.subr.mxu0 0.0
        %576 = vmatpush2.msra.mxu0 0.0
        %577 = vmatprep.subr.mxu0 0.0
        %578 = vmatpush2.msra.mxu0 0.0
        %579 = vmatprep.subr.mxu0 0.0
        %580 = vmatpush2.msra.mxu0 0.0
        %581 = vmatprep.subr.mxu0 0.0
        %582 = vmatpush2.msra.mxu0 0.0
        %583 = vmatprep.subr.mxu0 0.0
        %584 = vmatpush2.msra.mxu0 0.0
        %585 = vmatprep.subr.mxu0 0.0
        %586 = vmatpush2.msra.mxu0 0.0
        %587 = vmatprep.subr.mxu0 0.0
        %588 = vmatpush2.msra.mxu0 0.0
        %589 = vmatprep.subr.mxu0 0.0
        %590 = vmatpush2.msra.mxu0 0.0
        %591 = vmatprep.subr.mxu0 0.0
        %592 = vmatpush2.msra.mxu0 0.0
        %593 = vmatprep.subr.mxu0 0.0
        %594 = vmatpush2.msra.mxu0 0.0
        %595 = vmatprep.subr.mxu0 0.0
        %596 = vmatpush2.msra.mxu0 0.0
        %597 = vmatprep.mubr.f32.mxu0 0.0
        %598 = vmatmul.mubr.f32.gmra.mxu0 %v321
        %v599 = vpop.f32.mrf.mxu0
        %v600 = vadd.f32 %v530, %v599
        %v601 = vpop.f32.mrf.mxu0
        %602 = vdwg.mxu0
        %vm603 = vcmask 80896
        %604 = vst.msk [vmem:[%s194] sm:$0xff] %vm603, %v600
        %v605 = vsel %vm603, %v600, -inf
        %606 = vmax.xlane.f32.xlu0 %v605
        %v607 = vpop.xlane.xlu0 %606
        %v608 = vsub.f32 %v600, %v607
        %v609 = vmul.f32 %v608, 1.442695
        %v610 = vpow.pop %v609
        %v611 = vsel %vm603, %v610, 0.0
        %612 = vadd.xlane.f32.xlu0 %v611
        %v613 = vpop.xlane.xlu0 %612
        %v614 = vrcp.pop %v613
        %v615 = vmul.f32 %v610, %v614
        %616 = vst.msk [vmem:[%s201] sm:$0xff] %vm603, %v615
        %s617 = sand.u32 %s98, 1
        %s618 = scalar_lea.sflag [#allocation3], %s617
        %s619 = sand.u32 %s98, 1
        %s620 = smul.addr %s619, 8
        %s621 = scalar_lea.vmem [#allocation2], %s620
        %s622 = sand.u32 %s124, 1
        %s623 = scalar_lea.sflag [#allocation5], %s622
        %s624 = sand.u32 %s124, 1
        %s625 = smul.addr %s624, 8
        %s626 = scalar_lea.vmem [#allocation4], %s625
        // Predicated region
        $region33: #{convnet_forward.3} parent=31 // pred_check
          %p627 = pneg %p108
        $region34: #{convnet_forward.3} parent=31 // pred_check_branch
          %629 = sbr.rel (%p627) target = $region36
        $region35: #{convnet_forward.3} parent=31 // pred_region
          %s631 = ssub.s32 128, 128
          %632 = vsyncadd %s618, %s631
          %s633 = smul.addr %s22, 128
          %s634 = scalar_lea.hbm %s3, %s633
          %s636 = sshll.u32 %s621, 4
          %s637 = int_to_ptr.vmem [resolvable:$true] %s636
          %639 = dma.vmem_to_hbm [thread:$0]  %s637, 128, %s634, %s618
        $region36: #{convnet_forward.3} parent=31 // pred_fallthru
          _
        // Predicated region
        $region37: #{convnet_forward.3} parent=31 // pred_check
          %p640 = pneg %p134
        $region38: #{convnet_forward.3} parent=31 // pred_check_branch
          %642 = sbr.rel (%p640) target = $region40
        $region39: #{convnet_forward.3} parent=31 // pred_region
          %s644 = ssub.s32 128, 128
          %645 = vsyncadd %s623, %s644
          %s646 = smul.addr %s22, 128
          %s647 = scalar_lea.hbm %s4, %s646
          %s649 = sshll.u32 %s626, 4
          %s650 = int_to_ptr.vmem [resolvable:$true] %s649
          %652 = dma.vmem_to_hbm [thread:$0]  %s650, 128, %s647, %s623
        $region40: #{convnet_forward.3} parent=31 // pred_fallthru
          _
      $region32: #{convnet_forward.3} parent=5 // pred_fallthru
        _
      %p653 = scmp.le.s32.totalorder 2, %s17
      // Predicated region
      $region41: #{convnet_forward.3} parent=5 // pred_check
        %p654 = pneg %p653
      $region42: #{convnet_forward.3} parent=5 // pred_check_branch
        %656 = sbr.rel (%p654) target = $region44
      $region43: #{convnet_forward.3} parent=5 // pred_region
        %s657 = ssub.s32 %s17, 2
        // Predicated region
        $region45: #{convnet_forward.3} parent=43 // pred_check
          %p658 = pneg %p114
        $region46: #{convnet_forward.3} parent=43 // pred_check_branch
          %660 = sbr.rel (%p658) target = $region48
        $region47: #{convnet_forward.3} parent=43 // pred_region
          %s661 = sand.u32 %s99, 1
          %s662 = scalar_lea.sflag [#allocation3], %s661
          %s663 = sand.u32 %s99, 1
          %s664 = smul.addr %s663, 8
          %s665 = scalar_lea.vmem [#allocation2], %s664
          %666 = dma.done %s662, 128
        $region48: #{convnet_forward.3} parent=43 // pred_fallthru
          _
        // Predicated region
        $region49: #{convnet_forward.3} parent=43 // pred_check
          %p667 = pneg %p140
        $region50: #{convnet_forward.3} parent=43 // pred_check_branch
          %669 = sbr.rel (%p667) target = $region52
        $region51: #{convnet_forward.3} parent=43 // pred_region
          %s670 = sand.u32 %s125, 1
          %s671 = scalar_lea.sflag [#allocation5], %s670
          %s672 = sand.u32 %s125, 1
          %s673 = smul.addr %s672, 8
          %s674 = scalar_lea.vmem [#allocation4], %s673
          %675 = dma.done %s671, 128
        $region52: #{convnet_forward.3} parent=43 // pred_fallthru
          _
      $region44: #{convnet_forward.3} parent=5 // pred_fallthru
        _
    $region6: #{convnet_forward.3} parent=1 // loop_footer
      %s21 = sadd.s32 1, %s17
    $region7: #{convnet_forward.3} parent=1 // loop_footer_branch
      %16 = sbr.rel target = $region3
    $region8: #{convnet_forward.3} parent=1 // loop_exit
      _
    %676 = vsyncpa [#allocation3], 1
    %s677 = scalar_lea.sflag [#allocation3], 1
    %678 = vsyncpa %s677, 1
    %679 = vsyncpa [#allocation5], 1
    %s680 = scalar_lea.sflag [#allocation5], 1
    %681 = vsyncpa %s680, 1

// kernel: convnet_forward.2
$region0: #{convnet_forward.2}
  #allocation0 [shape = 'u32[]', space=smem, size = 0x4, offset = 0x4, fixed_abs, tag = 'smem constant byte address 0x4 - core index']
  #allocation1 [shape = 'u32[144,128]{1,0:T(1,128)}', space=vmem, size = 0x12000, scoped, tag = 'internal scratch']
  #allocation2 [shape = 'f32[8,842]{1,0:T(8,128)}', space=vmem, size = 0x7000, scoped, tag = 'scratch operand']
  #allocation3 [shape = 'f32[72,784]{1,0:T(8,128)}', space=vmem, size = 0x3f000, scoped, tag = 'scratch operand']
  #allocation4 [shape = 'f32[64,226]{1,0:T(8,128)}', space=vmem, size = 0x10000, scoped, tag = 'scratch operand']
  #allocation5 [shape = 'f32[72,196]{1,0:T(8,128)}', space=vmem, size = 0x12000, scoped, tag = 'scratch operand']
  %s0 = inlined_call_operand.vmem [shape: f32[16,784], index: 0, kind: input, shape index: {}]
  %s1 = inlined_call_operand.vmem [shape: f32[64,72], index: 1, kind: input, shape index: {}]
  %s2 = inlined_call_operand.vmem [shape: f32[64,1], index: 2, kind: input, shape index: {}]
  %s3 = inlined_call_operand.vmem [shape: f32[16,72], index: 3, kind: input, shape index: {}]
  %s4 = inlined_call_operand.vmem [shape: f32[16,1], index: 4, kind: input, shape index: {}]
  %s5 = inlined_call_operand.vmem [shape: f32[755,196], index: 5, kind: input, shape index: {}]
  %s6 = inlined_call_operand.vmem [shape: f32[181,49], index: 6, kind: input, shape index: {}]
  %s7 = inlined_call_operand.vmem [shape: f32[1,784], index: 7, kind: input, shape index: {}]
  %s8 = inlined_call_operand.vmem [shape: f32[1,784], index: 8, kind: input, shape index: {}]
  %s9 = inlined_call_operand.vmem [shape: f32[1,196], index: 9, kind: input, shape index: {}]
  %s10 = inlined_call_operand.vmem [shape: f32[1,196], index: 10, kind: input, shape index: {}]
  %s11 = inlined_call_operand.vmem [shape: f32[128,784], index: 11, kind: output, shape index: {0}]
  %s12 = inlined_call_operand.vmem [shape: f32[256,196], index: 12, kind: output, shape index: {1}]
  %s13 = inlined_call_operand.vmem [shape: f32[256,49], index: 13, kind: output, shape index: {2}]
  %14 = xla_tuple %s11, %s12, %s13
  %s15 = sld [smem:[#allocation0]]
  $region93: #{convnet_forward.2} parent=0
    _
  %s17 = ssub.s32 1, %s15
  %s18 = scalar_select 0, %s17, %s15
  loop: start=0, step=1, limit=4
  $region2: #{convnet_forward.2} parent=0 // loop_pre_header
    _
  $region3: #{convnet_forward.2} parent=0 // loop_header
    %s20 = sphi 0, %s24
    %p21 = scmp.ge.s32.totalorder %s20, 4
    %s30 = sphi 0, %s32
    %s33 = sphi 0, %s30
    %s34 = sphi 0, %s33
    %s50 = sphi 0, %s34
    %s54 = sphi 0, %s54
    %s56 = sphi 0, %s54
    %s57 = sphi 0, %s56
    %s71 = sphi 0, %s57
    %s75 = sphi 0, %s75
    %s77 = sphi 0, %s75
    %s78 = sphi 0, %s77
    %s92 = sphi 0, %s78
    %s96 = sphi 0, %s96
    %s98 = sphi 0, %s96
    %s99 = sphi 0, %s98
    %s113 = sphi 0, %s99
    %s117 = sphi 0, %s117
    %s119 = sphi 0, %s117
    %s120 = sphi 0, %s119
    %s134 = sphi 0, %s120
    %s138 = sphi 0, %s138
    %s140 = sphi 0, %s138
    %s141 = sphi 0, %s140
    %s155 = sphi 0, %s141
    %s159 = sphi 0, %s159
    %s161 = sphi 0, %s159
    %s162 = sphi 0, %s161
    %s176 = sphi 0, %s162
    %s180 = sphi 0, %s180
    %s182 = sphi 0, %s180
    %s183 = sphi 0, %s182
    %s197 = sphi 0, %s183
    %s201 = sphi 0, %s201
    %s203 = sphi 0, %s201
    %s204 = sphi 0, %s203
    %s218 = sphi 0, %s204
    %s222 = sphi 0, %s222
    %s224 = sphi 0, %s222
    %s225 = sphi 0, %s224
    %s239 = sphi 0, %s225
    %s243 = sphi 0, %s243
    %s245 = sphi 0, %s243
    %s246 = sphi 0, %s245
    %s260 = sphi 0, %s246
    %s266 = sphi 0, %s268
    %s269 = sphi 0, %s266
    %s270 = sphi 0, %s269
    %s286 = sphi 0, %s270
    %s292 = sphi 0, %s294
    %s295 = sphi 0, %s292
    %s296 = sphi 0, %s295
    %s312 = sphi 0, %s296
    %s318 = sphi 0, %s320
    %s321 = sphi 0, %s318
    %s322 = sphi 0, %s321
    %s338 = sphi 0, %s322
  $region4: #{convnet_forward.2} parent=0 // loop_header_branch
    %23 = sbr.rel (%p21) target = $region8
  $region5: #{convnet_forward.2} parent=0 // loop_body
    %s25 = ssub.s32 %s20, 1
    %s26 = ssub.s32 %s20, 2
    %s27 = sadd.s32 %s20, 1
    %s28 = ssub.s32 %s20, %s27
    %p29 = scmp.eq.s32.totalorder %s28, 0
    %s31 = sadd.s32 %s30, 1
    %s32 = scalar_select %p29, %s30, %s31
    %p35 = pneg %p29
    %p36 = scmp.eq.s32.totalorder %s20, 1
    %p37 = por %p35, %p36
    %p38 = scmp.ne.s32.totalorder %s30, %s33
    %p39 = scmp.eq.s32.totalorder %s20, 0
    %p40 = por %p38, %p39
    %p41 = scmp.ne.s32.totalorder %s30, %s33
    %p42 = scmp.eq.s32.totalorder %s25, 1
    %p43 = por %p41, %p42
    %p44 = scmp.ne.s32.totalorder %s33, %s34
    %p45 = scmp.eq.s32.totalorder %s25, 0
    %p46 = por %p44, %p45
    %p47 = scmp.ne.s32.totalorder %s33, %s34
    %p48 = scmp.eq.s32.totalorder %s26, 1
    %p49 = por %p47, %p48
    %p51 = scmp.ne.s32.totalorder %s34, %s50
    %p52 = scmp.eq.s32.totalorder %s26, 0
    %p53 = por %p51, %p52
    %s55 = sadd.s32 %s54, 1
    %p58 = scmp.eq.s32.totalorder %s20, 1
    %p59 = scmp.ne.s32.totalorder %s54, %s56
    %p60 = scmp.eq.s32.totalorder %s20, 0
    %p61 = por %p59, %p60
    %p62 = scmp.ne.s32.totalorder %s54, %s56
    %p63 = scmp.eq.s32.totalorder %s25, 1
    %p64 = por %p62, %p63
    %p65 = scmp.ne.s32.totalorder %s56, %s57
    %p66 = scmp.eq.s32.totalorder %s25, 0
    %p67 = por %p65, %p66
    %p68 = scmp.ne.s32.totalorder %s56, %s57
    %p69 = scmp.eq.s32.totalorder %s26, 1
    %p70 = por %p68, %p69
    %p72 = scmp.ne.s32.totalorder %s57, %s71
    %p73 = scmp.eq.s32.totalorder %s26, 0
    %p74 = por %p72, %p73
    %s76 = sadd.s32 %s75, 1
    %p79 = scmp.eq.s32.totalorder %s20, 1
    %p80 = scmp.ne.s32.totalorder %s75, %s77
    %p81 = scmp.eq.s32.totalorder %s20, 0
    %p82 = por %p80, %p81
    %p83 = scmp.ne.s32.totalorder %s75, %s77
    %p84 = scmp.eq.s32.totalorder %s25, 1
    %p85 = por %p83, %p84
    %p86 = scmp.ne.s32.totalorder %s77, %s78
    %p87 = scmp.eq.s32.totalorder %s25, 0
    %p88 = por %p86, %p87
    %p89 = scmp.ne.s32.totalorder %s77, %s78
    %p90 = scmp.eq.s32.totalorder %s26, 1
    %p91 = por %p89, %p90
    %p93 = scmp.ne.s32.totalorder %s78, %s92
    %p94 = scmp.eq.s32.totalorder %s26, 0
    %p95 = por %p93, %p94
    %s97 = sadd.s32 %s96, 1
    %p100 = scmp.eq.s32.totalorder %s20, 1
    %p101 = scmp.ne.s32.totalorder %s96, %s98
    %p102 = scmp.eq.s32.totalorder %s20, 0
    %p103 = por %p101, %p102
    %p104 = scmp.ne.s32.totalorder %s96, %s98
    %p105 = scmp.eq.s32.totalorder %s25, 1
    %p106 = por %p104, %p105
    %p107 = scmp.ne.s32.totalorder %s98, %s99
    %p108 = scmp.eq.s32.totalorder %s25, 0
    %p109 = por %p107, %p108
    %p110 = scmp.ne.s32.totalorder %s98, %s99
    %p111 = scmp.eq.s32.totalorder %s26, 1
    %p112 = por %p110, %p111
    %p114 = scmp.ne.s32.totalorder %s99, %s113
    %p115 = scmp.eq.s32.totalorder %s26, 0
    %p116 = por %p114, %p115
    %s118 = sadd.s32 %s117, 1
    %p121 = scmp.eq.s32.totalorder %s20, 1
    %p122 = scmp.ne.s32.totalorder %s117, %s119
    %p123 = scmp.eq.s32.totalorder %s20, 0
    %p124 = por %p122, %p123
    %p125 = scmp.ne.s32.totalorder %s117, %s119
    %p126 = scmp.eq.s32.totalorder %s25, 1
    %p127 = por %p125, %p126
    %p128 = scmp.ne.s32.totalorder %s119, %s120
    %p129 = scmp.eq.s32.totalorder %s25, 0
    %p130 = por %p128, %p129
    %p131 = scmp.ne.s32.totalorder %s119, %s120
    %p132 = scmp.eq.s32.totalorder %s26, 1
    %p133 = por %p131, %p132
    %p135 = scmp.ne.s32.totalorder %s120, %s134
    %p136 = scmp.eq.s32.totalorder %s26, 0
    %p137 = por %p135, %p136
    %s139 = sadd.s32 %s138, 1
    %p142 = scmp.eq.s32.totalorder %s20, 1
    %p143 = scmp.ne.s32.totalorder %s138, %s140
    %p144 = scmp.eq.s32.totalorder %s20, 0
    %p145 = por %p143, %p144
    %p146 = scmp.ne.s32.totalorder %s138, %s140
    %p147 = scmp.eq.s32.totalorder %s25, 1
    %p148 = por %p146, %p147
    %p149 = scmp.ne.s32.totalorder %s140, %s141
    %p150 = scmp.eq.s32.totalorder %s25, 0
    %p151 = por %p149, %p150
    %p152 = scmp.ne.s32.totalorder %s140, %s141
    %p153 = scmp.eq.s32.totalorder %s26, 1
    %p154 = por %p152, %p153
    %p156 = scmp.ne.s32.totalorder %s141, %s155
    %p157 = scmp.eq.s32.totalorder %s26, 0
    %p158 = por %p156, %p157
    %s160 = sadd.s32 %s159, 1
    %p163 = scmp.eq.s32.totalorder %s20, 1
    %p164 = scmp.ne.s32.totalorder %s159, %s161
    %p165 = scmp.eq.s32.totalorder %s20, 0
    %p166 = por %p164, %p165
    %p167 = scmp.ne.s32.totalorder %s159, %s161
    %p168 = scmp.eq.s32.totalorder %s25, 1
    %p169 = por %p167, %p168
    %p170 = scmp.ne.s32.totalorder %s161, %s162
    %p171 = scmp.eq.s32.totalorder %s25, 0
    %p172 = por %p170, %p171
    %p173 = scmp.ne.s32.totalorder %s161, %s162
    %p174 = scmp.eq.s32.totalorder %s26, 1
    %p175 = por %p173, %p174
    %p177 = scmp.ne.s32.totalorder %s162, %s176
    %p178 = scmp.eq.s32.totalorder %s26, 0
    %p179 = por %p177, %p178
    %s181 = sadd.s32 %s180, 1
    %p184 = scmp.eq.s32.totalorder %s20, 1
    %p185 = scmp.ne.s32.totalorder %s180, %s182
    %p186 = scmp.eq.s32.totalorder %s20, 0
    %p187 = por %p185, %p186
    %p188 = scmp.ne.s32.totalorder %s180, %s182
    %p189 = scmp.eq.s32.totalorder %s25, 1
    %p190 = por %p188, %p189
    %p191 = scmp.ne.s32.totalorder %s182, %s183
    %p192 = scmp.eq.s32.totalorder %s25, 0
    %p193 = por %p191, %p192
    %p194 = scmp.ne.s32.totalorder %s182, %s183
    %p195 = scmp.eq.s32.totalorder %s26, 1
    %p196 = por %p194, %p195
    %p198 = scmp.ne.s32.totalorder %s183, %s197
    %p199 = scmp.eq.s32.totalorder %s26, 0
    %p200 = por %p198, %p199
    %s202 = sadd.s32 %s201, 1
    %p205 = scmp.eq.s32.totalorder %s20, 1
    %p206 = scmp.ne.s32.totalorder %s201, %s203
    %p207 = scmp.eq.s32.totalorder %s20, 0
    %p208 = por %p206, %p207
    %p209 = scmp.ne.s32.totalorder %s201, %s203
    %p210 = scmp.eq.s32.totalorder %s25, 1
    %p211 = por %p209, %p210
    %p212 = scmp.ne.s32.totalorder %s203, %s204
    %p213 = scmp.eq.s32.totalorder %s25, 0
    %p214 = por %p212, %p213
    %p215 = scmp.ne.s32.totalorder %s203, %s204
    %p216 = scmp.eq.s32.totalorder %s26, 1
    %p217 = por %p215, %p216
    %p219 = scmp.ne.s32.totalorder %s204, %s218
    %p220 = scmp.eq.s32.totalorder %s26, 0
    %p221 = por %p219, %p220
    %s223 = sadd.s32 %s222, 1
    %p226 = scmp.eq.s32.totalorder %s20, 1
    %p227 = scmp.ne.s32.totalorder %s222, %s224
    %p228 = scmp.eq.s32.totalorder %s20, 0
    %p229 = por %p227, %p228
    %p230 = scmp.ne.s32.totalorder %s222, %s224
    %p231 = scmp.eq.s32.totalorder %s25, 1
    %p232 = por %p230, %p231
    %p233 = scmp.ne.s32.totalorder %s224, %s225
    %p234 = scmp.eq.s32.totalorder %s25, 0
    %p235 = por %p233, %p234
    %p236 = scmp.ne.s32.totalorder %s224, %s225
    %p237 = scmp.eq.s32.totalorder %s26, 1
    %p238 = por %p236, %p237
    %p240 = scmp.ne.s32.totalorder %s225, %s239
    %p241 = scmp.eq.s32.totalorder %s26, 0
    %p242 = por %p240, %p241
    %s244 = sadd.s32 %s243, 1
    %p247 = scmp.eq.s32.totalorder %s20, 1
    %p248 = scmp.ne.s32.totalorder %s243, %s245
    %p249 = scmp.eq.s32.totalorder %s20, 0
    %p250 = por %p248, %p249
    %p251 = scmp.ne.s32.totalorder %s243, %s245
    %p252 = scmp.eq.s32.totalorder %s25, 1
    %p253 = por %p251, %p252
    %p254 = scmp.ne.s32.totalorder %s245, %s246
    %p255 = scmp.eq.s32.totalorder %s25, 0
    %p256 = por %p254, %p255
    %p257 = scmp.ne.s32.totalorder %s245, %s246
    %p258 = scmp.eq.s32.totalorder %s26, 1
    %p259 = por %p257, %p258
    %p261 = scmp.ne.s32.totalorder %s246, %s260
    %p262 = scmp.eq.s32.totalorder %s26, 0
    %p263 = por %p261, %p262
    %s264 = ssub.s32 %s20, %s27
    %p265 = scmp.eq.s32.totalorder %s264, 0
    %s267 = sadd.s32 %s266, 1
    %s268 = scalar_select %p265, %s266, %s267
    %p271 = pneg %p265
    %p272 = scmp.eq.s32.totalorder %s20, 1
    %p273 = por %p271, %p272
    %p274 = scmp.ne.s32.totalorder %s266, %s269
    %p275 = scmp.eq.s32.totalorder %s20, 0
    %p276 = por %p274, %p275
    %p277 = scmp.ne.s32.totalorder %s266, %s269
    %p278 = scmp.eq.s32.totalorder %s25, 1
    %p279 = por %p277, %p278
    %p280 = scmp.ne.s32.totalorder %s269, %s270
    %p281 = scmp.eq.s32.totalorder %s25, 0
    %p282 = por %p280, %p281
    %p283 = scmp.ne.s32.totalorder %s269, %s270
    %p284 = scmp.eq.s32.totalorder %s26, 1
    %p285 = por %p283, %p284
    %p287 = scmp.ne.s32.totalorder %s270, %s286
    %p288 = scmp.eq.s32.totalorder %s26, 0
    %p289 = por %p287, %p288
    %s290 = ssub.s32 %s20, %s27
    %p291 = scmp.eq.s32.totalorder %s290, 0
    %s293 = sadd.s32 %s292, 1
    %s294 = scalar_select %p291, %s292, %s293
    %p297 = pneg %p291
    %p298 = scmp.eq.s32.totalorder %s20, 1
    %p299 = por %p297, %p298
    %p300 = scmp.ne.s32.totalorder %s292, %s295
    %p301 = scmp.eq.s32.totalorder %s20, 0
    %p302 = por %p300, %p301
    %p303 = scmp.ne.s32.totalorder %s292, %s295
    %p304 = scmp.eq.s32.totalorder %s25, 1
    %p305 = por %p303, %p304
    %p306 = scmp.ne.s32.totalorder %s295, %s296
    %p307 = scmp.eq.s32.totalorder %s25, 0
    %p308 = por %p306, %p307
    %p309 = scmp.ne.s32.totalorder %s295, %s296
    %p310 = scmp.eq.s32.totalorder %s26, 1
    %p311 = por %p309, %p310
    %p313 = scmp.ne.s32.totalorder %s296, %s312
    %p314 = scmp.eq.s32.totalorder %s26, 0
    %p315 = por %p313, %p314
    %s316 = ssub.s32 %s20, %s27
    %p317 = scmp.eq.s32.totalorder %s316, 0
    %s319 = sadd.s32 %s318, 1
    %s320 = scalar_select %p317, %s318, %s319
    %p323 = pneg %p317
    %p324 = scmp.eq.s32.totalorder %s20, 1
    %p325 = por %p323, %p324
    %p326 = scmp.ne.s32.totalorder %s318, %s321
    %p327 = scmp.eq.s32.totalorder %s20, 0
    %p328 = por %p326, %p327
    %p329 = scmp.ne.s32.totalorder %s318, %s321
    %p330 = scmp.eq.s32.totalorder %s25, 1
    %p331 = por %p329, %p330
    %p332 = scmp.ne.s32.totalorder %s321, %s322
    %p333 = scmp.eq.s32.totalorder %s25, 0
    %p334 = por %p332, %p333
    %p335 = scmp.ne.s32.totalorder %s321, %s322
    %p336 = scmp.eq.s32.totalorder %s26, 1
    %p337 = por %p335, %p336
    %p339 = scmp.ne.s32.totalorder %s322, %s338
    %p340 = scmp.eq.s32.totalorder %s26, 0
    %p341 = por %p339, %p340
    %p342 = scmp.le.s32.totalorder 1, %s20
    %p343 = scmp.lt.s32.totalorder %s20, 3
    %p344 = pnand %p342, %p343
    %p345 = pneg %p344
    // Predicated region
    $region9: #{convnet_forward.2} parent=5 // pred_check
      _
    $region10: #{convnet_forward.2} parent=5 // pred_check_branch
      %347 = sbr.rel (%p344) target = $region12
    $region11: #{convnet_forward.2} parent=5 // pred_region
      %s348 = ssub.s32 %s20, 1
      // Predicated region
      $region13: #{convnet_forward.2} parent=11 // pred_check
        %p349 = pneg %p67
      $region14: #{convnet_forward.2} parent=11 // pred_check_branch
        %351 = sbr.rel (%p349) target = $region16
      $region15: #{convnet_forward.2} parent=11 // pred_region
        _
      $region16: #{convnet_forward.2} parent=11 // pred_fallthru
        _
      // Predicated region
      $region17: #{convnet_forward.2} parent=11 // pred_check
        %p352 = pneg %p88
      $region18: #{convnet_forward.2} parent=11 // pred_check_branch
        %354 = sbr.rel (%p352) target = $region20
      $region19: #{convnet_forward.2} parent=11 // pred_region
        _
      $region20: #{convnet_forward.2} parent=11 // pred_fallthru
        _
      // Predicated region
      $region21: #{convnet_forward.2} parent=11 // pred_check
        %p355 = pneg %p109
      $region22: #{convnet_forward.2} parent=11 // pred_check_branch
        %357 = sbr.rel (%p355) target = $region24
      $region23: #{convnet_forward.2} parent=11 // pred_region
        _
      $region24: #{convnet_forward.2} parent=11 // pred_fallthru
        _
      // Predicated region
      $region25: #{convnet_forward.2} parent=11 // pred_check
        %p358 = pneg %p130
      $region26: #{convnet_forward.2} parent=11 // pred_check_branch
        %360 = sbr.rel (%p358) target = $region28
      $region27: #{convnet_forward.2} parent=11 // pred_region
        _
      $region28: #{convnet_forward.2} parent=11 // pred_fallthru
        _
      // Predicated region
      $region29: #{convnet_forward.2} parent=11 // pred_check
        %p361 = pneg %p151
      $region30: #{convnet_forward.2} parent=11 // pred_check_branch
        %363 = sbr.rel (%p361) target = $region32
      $region31: #{convnet_forward.2} parent=11 // pred_region
        _
      $region32: #{convnet_forward.2} parent=11 // pred_fallthru
        _
      // Predicated region
      $region33: #{convnet_forward.2} parent=11 // pred_check
        %p364 = pneg %p172
      $region34: #{convnet_forward.2} parent=11 // pred_check_branch
        %366 = sbr.rel (%p364) target = $region36
      $region35: #{convnet_forward.2} parent=11 // pred_region
        _
      $region36: #{convnet_forward.2} parent=11 // pred_fallthru
        _
      // Predicated region
      $region37: #{convnet_forward.2} parent=11 // pred_check
        %p367 = pneg %p193
      $region38: #{convnet_forward.2} parent=11 // pred_check_branch
        %369 = sbr.rel (%p367) target = $region40
      $region39: #{convnet_forward.2} parent=11 // pred_region
        _
      $region40: #{convnet_forward.2} parent=11 // pred_fallthru
        _
      // Predicated region
      $region41: #{convnet_forward.2} parent=11 // pred_check
        %p370 = pneg %p214
      $region42: #{convnet_forward.2} parent=11 // pred_check_branch
        %372 = sbr.rel (%p370) target = $region44
      $region43: #{convnet_forward.2} parent=11 // pred_region
        _
      $region44: #{convnet_forward.2} parent=11 // pred_fallthru
        _
      // Predicated region
      $region45: #{convnet_forward.2} parent=11 // pred_check
        %p373 = pneg %p235
      $region46: #{convnet_forward.2} parent=11 // pred_check_branch
        %375 = sbr.rel (%p373) target = $region48
      $region47: #{convnet_forward.2} parent=11 // pred_region
        _
      $region48: #{convnet_forward.2} parent=11 // pred_fallthru
        _
      // Predicated region
      $region49: #{convnet_forward.2} parent=11 // pred_check
        %p376 = pneg %p256
      $region50: #{convnet_forward.2} parent=11 // pred_check_branch
        %378 = sbr.rel (%p376) target = $region52
      $region51: #{convnet_forward.2} parent=11 // pred_region
        _
      $region52: #{convnet_forward.2} parent=11 // pred_fallthru
        _
    $region12: #{convnet_forward.2} parent=5 // pred_fallthru
      _
    %p379 = scmp.lt.s32.totalorder %s20, 2
    // Predicated region
    $region53: #{convnet_forward.2} parent=5 // pred_check
      %p380 = pneg %p379
    $region54: #{convnet_forward.2} parent=5 // pred_check_branch
      %382 = sbr.rel (%p380) target = $region56
    $region55: #{convnet_forward.2} parent=5 // pred_region
      // Predicated region
      $region57: #{convnet_forward.2} parent=55 // pred_check
        %p383 = pneg %p40
      $region58: #{convnet_forward.2} parent=55 // pred_check_branch
        %385 = sbr.rel (%p383) target = $region60
      $region59: #{convnet_forward.2} parent=55 // pred_region
        %p386 = scmp.lt.s32.totalorder %s20, 1
        %s387 = scalar_select %p386, %s20, 1
        %s388 = smul.addr %s387, 7
        %s389 = smul.addr %s388, 8
        %s390 = scalar_lea.vmem %s0, %s389
      $region60: #{convnet_forward.2} parent=55 // pred_fallthru
        _
    $region56: #{convnet_forward.2} parent=5 // pred_fallthru
      _
    %p391 = scmp.le.s32.totalorder 1, %s20
    %p392 = scmp.lt.s32.totalorder %s20, 3
    %p393 = pnand %p391, %p392
    %p394 = pneg %p393
    // Predicated region
    $region61: #{convnet_forward.2} parent=5 // pred_check
      _
    $region62: #{convnet_forward.2} parent=5 // pred_check_branch
      %396 = sbr.rel (%p393) target = $region64
    $region63: #{convnet_forward.2} parent=5 // pred_region
      %s397 = ssub.s32 %s20, 1
      %p398 = scmp.lt.s32.totalorder %s25, 1
      %s399 = scalar_select %p398, %s25, 1
      %s400 = smul.addr %s399, 7
      %s401 = smul.addr %s400, 8
      %s402 = scalar_lea.vmem %s0, %s401
      %p403 = pneg %p46
      %p404 = pneg %p43
      %p405 = pneg %p67
      %p406 = pneg %p64
      %p407 = pneg %p88
      %p408 = pneg %p85
      %p409 = pneg %p109
      %p410 = pneg %p106
      %p411 = pneg %p130
      %p412 = pneg %p127
      %p413 = pneg %p151
      %p414 = pneg %p148
      %p415 = pneg %p172
      %p416 = pneg %p169
      %p417 = pneg %p193
      %p418 = pneg %p190
      %p419 = pneg %p214
      %p420 = pneg %p211
      %p421 = pneg %p235
      %p422 = pneg %p232
      %p423 = pneg %p256
      %p424 = pneg %p253
      %p425 = pneg %p282
      %p426 = pneg %p279
      %s427 = smul.u32 8, %s25
      %p428 = scmp.lt.s32.totalorder %s427, 15
      %s429 = scalar_select %p428, %s427, 15
      %s430 = smul.addr %s429, 7
      %s431 = smul.addr %s430, 8
      %s432 = scalar_lea.vmem %s11, %s431
      %p433 = pneg %p308
      %p434 = pneg %p305
      %s435 = smul.u32 16, %s25
      %p436 = scmp.lt.s32.totalorder %s435, 31
      %s437 = scalar_select %p436, %s435, 31
      %s438 = smul.addr %s437, 2
      %s439 = smul.addr %s438, 8
      %s440 = scalar_lea.vmem %s12, %s439
      %p441 = pneg %p334
      %p442 = pneg %p331
      %s443 = smul.u32 16, %s25
      %p444 = scmp.lt.s32.totalorder %s443, 31
      %s445 = scalar_select %p444, %s443, 31
      %s446 = smul.addr %s445, 8
      %s447 = scalar_lea.vmem %s13, %s446
      %p448 = scmp.lt.s32.totalorder %s25, 1
      %s449 = scalar_select %p448, %s25, 1
      %s450 = smul.addr %s449, 7
      %s451 = smul.addr %s450, 8
      %s452 = scalar_lea.vmem %s0, %s451
      %s453 = smul.u32 8, %s25
      %p454 = scmp.lt.s32.totalorder %s453, 15
      %s455 = scalar_select %p454, %s453, 15
      %s456 = smul.addr %s455, 7
      %s457 = smul.addr %s456, 8
      %s458 = scalar_lea.vmem %s11, %s457
      %s459 = smul.u32 8, %s25
      %s460 = smul.u32 16, %s25
      %p461 = scmp.lt.s32.totalorder %s460, 31
      %s462 = scalar_select %p461, %s460, 31
      %s463 = smul.addr %s462, 2
      %s464 = smul.addr %s463, 8
      %s465 = scalar_lea.vmem %s12, %s464
      %s466 = smul.u32 16, %s25
      %s467 = smul.u32 16, %s25
      %p468 = scmp.lt.s32.totalorder %s467, 31
      %s469 = scalar_select %p468, %s467, 31
      %s470 = smul.addr %s469, 8
      %s471 = scalar_lea.vmem %s13, %s470
      %s472 = smul.u32 16, %s25
      %vm473 = vcmask 236544
      %474 = vst.msk [vmem:[#allocation2] sm:$0xff] %vm473, 0.0
      %vm475 = vcmask 605544
      %476 = vst.msk [vmem:[#allocation2 + $0x30] sm:$0xff] %vm475, 0.0
      %v477 = vld [vmem:[%s452] sm:$0xff]
      %v478 = vld [vmem:[%s452 + $0x8] sm:$0xff]
      %v479 = vld [vmem:[%s452 + $0x10] sm:$0xff]
      %v480 = vld [vmem:[%s452 + $0x18] sm:$0xff]
      %v481 = vld [vmem:[%s452 + $0x20] sm:$0xff]
      %v482 = vld [vmem:[%s452 + $0x28] sm:$0xff]
      %v483 = vld [vmem:[%s452 + $0x30] sm:$0xff]
      %491 = vrot.lane.b32.xlu0 %v477, 29
      %v492 = vpop.permute.xlu0 %491
      %493 = vrot.lane.b32.xlu0 %v478, 29
      %v494 = vpop.permute.xlu0 %493
      %495 = vrot.lane.b32.xlu0 %v479, 29
      %v496 = vpop.permute.xlu0 %495
      %497 = vrot.lane.b32.xlu0 %v480, 29
      %v498 = vpop.permute.xlu0 %497
      %499 = vrot.lane.b32.xlu0 %v481, 29
      %v500 = vpop.permute.xlu0 %499
      %501 = vrot.lane.b32.xlu0 %v482, 29
      %v502 = vpop.permute.xlu0 %501
      %503 = vrot.lane.b32.xlu0 %v483, 29
      %v504 = vpop.permute.xlu0 %503
      %v505 = vsel %vm473, %v492, %v494
      %v506 = vsel %vm473, %v494, %v496
      %v507 = vsel %vm473, %v496, %v498
      %v508 = vsel %vm473, %v498, %v500
      %v509 = vsel %vm473, %v500, %v502
      %v510 = vsel %vm473, %v502, %v504
      %vm518 = vcmask 1047784
      %519 = vst.msk [vmem:[#allocation2] sm:$0xff] %vm518, %v492
      %520 = vst [vmem:[#allocation2 + $0x8] sm:$0xff] %v505
      %521 = vst [vmem:[#allocation2 + $0x10] sm:$0xff] %v506
      %522 = vst [vmem:[#allocation2 + $0x18] sm:$0xff] %v507
      %523 = vst [vmem:[#allocation2 + $0x20] sm:$0xff] %v508
      %524 = vst [vmem:[#allocation2 + $0x28] sm:$0xff] %v509
      %vm525 = vcmask 367616
      %526 = vst.msk [vmem:[#allocation2 + $0x30] sm:$0xff] %vm525, %v510
      %v527 = vld [vmem:[%s7] sm:$0x7f]
      %v528 = vld [vmem:[%s8] sm:$0x7f]
      %v529 = vld [vmem:[#allocation2] sm:$0xff]
      %v530 = vld [vmem:[#allocation2 + $0x8] sm:$0xff]
      %v531 = vld [vmem:[#allocation2 + $0x10] sm:$0xff]
      %v532 = vld [vmem:[#allocation2 + $0x18] sm:$0xff]
      %v533 = vld [vmem:[#allocation2 + $0x20] sm:$0xff]
      %v534 = vld [vmem:[#allocation2 + $0x28] sm:$0xff]
      %v535 = vld [vmem:[#allocation2 + $0x30] sm:$0xff]
      %v537 = vlaneseq
      %v538 = vshrl.u32 %v537, 7
      %v539 = vsub.s32 0, %v538
      %v540 = vrot.slane %v527, %v539
      %v541 = vlaneseq
      %v542 = vshrl.u32 %v541, 7
      %v543 = vsub.s32 1, %v542
      %v544 = vrot.slane %v527, %v543
      %v545 = vlaneseq
      %v546 = vshrl.u32 %v545, 7
      %v547 = vsub.s32 2, %v546
      %v548 = vrot.slane %v527, %v547
      %v549 = vlaneseq
      %v550 = vshrl.u32 %v549, 7
      %v551 = vsub.s32 3, %v550
      %v552 = vrot.slane %v527, %v551
      %v553 = vlaneseq
      %v554 = vshrl.u32 %v553, 7
      %v555 = vsub.s32 4, %v554
      %v556 = vrot.slane %v527, %v555
      %v557 = vlaneseq
      %v558 = vshrl.u32 %v557, 7
      %v559 = vsub.s32 5, %v558
      %v560 = vrot.slane %v527, %v559
      %v561 = vlaneseq
      %v562 = vshrl.u32 %v561, 7
      %v563 = vsub.s32 6, %v562
      %v564 = vrot.slane %v527, %v563
      %v572 = vmul.f32 %v529, %v540
      %v573 = vmul.f32 %v530, %v544
      %v574 = vmul.f32 %v531, %v548
      %v575 = vmul.f32 %v532, %v552
      %v576 = vmul.f32 %v533, %v556
      %v577 = vmul.f32 %v534, %v560
      %v578 = vmul.f32 %v535, %v564
      %579 = vst [vmem:[#allocation3] sm:$0xff] %v572
      %580 = vst [vmem:[#allocation3 + $0x8] sm:$0xff] %v573
      %581 = vst [vmem:[#allocation3 + $0x10] sm:$0xff] %v574
      %582 = vst [vmem:[#allocation3 + $0x18] sm:$0xff] %v575
      %583 = vst [vmem:[#allocation3 + $0x20] sm:$0xff] %v576
      %584 = vst [vmem:[#allocation3 + $0x28] sm:$0xff] %v577
      %vm585 = vcmask 130048
      %586 = vst.msk [vmem:[#allocation3 + $0x30] sm:$0xff] %vm585, %v578
      %v587 = vld [vmem:[#allocation2] sm:$0xff]
      %v588 = vld [vmem:[#allocation2 + $0x8] sm:$0xff]
      %v589 = vld [vmem:[#allocation2 + $0x10] sm:$0xff]
      %v590 = vld [vmem:[#allocation2 + $0x18] sm:$0xff]
      %v591 = vld [vmem:[#allocation2 + $0x20] sm:$0xff]
      %v592 = vld [vmem:[#allocation2 + $0x28] sm:$0xff]
      %v593 = vld [vmem:[#allocation2 + $0x30] sm:$0xff]
      %601 = vrot.lane.b32.xlu0 %v587, 127
      %v602 = vpop.permute.xlu0 %601
      %603 = vrot.lane.b32.xlu0 %v588, 127
      %v604 = vpop.permute.xlu0 %603
      %605 = vrot.lane.b32.xlu0 %v589, 127
      %v606 = vpop.permute.xlu0 %605
      %607 = vrot.lane.b32.xlu0 %v590, 127
      %v608 = vpop.permute.xlu0 %607
      %609 = vrot.lane.b32.xlu0 %v591, 127
      %v610 = vpop.permute.xlu0 %609
      %611 = vrot.lane.b32.xlu0 %v592, 127
      %v612 = vpop.permute.xlu0 %611
      %613 = vrot.lane.b32.xlu0 %v593, 127
      %v614 = vpop.permute.xlu0 %613
      %vm615 = vcmask 1039360
      %v616 = vsel %vm615, %v602, %v604
      %v617 = vsel %vm615, %v604, %v606
      %v618 = vsel %vm615, %v606, %v608
      %v619 = vsel %vm615, %v608, %v610
      %v620 = vsel %vm615, %v610, %v612
      %v621 = vsel %vm615, %v612, %v614
      %629 = vst [vmem:[#allocation3 + $0x38] sm:$0xff] %v616
      %630 = vst [vmem:[#allocation3 + $0x40] sm:$0xff] %v617
      %631 = vst [vmem:[#allocation3 + $0x48] sm:$0xff] %v618
      %632 = vst [vmem:[#allocation3 + $0x50] sm:$0xff] %v619
      %633 = vst [vmem:[#allocation3 + $0x58] sm:$0xff] %v620
      %634 = vst [vmem:[#allocation3 + $0x60] sm:$0xff] %v621
      %635 = vst.msk [vmem:[#allocation3 + $0x68] sm:$0xff] %vm585, %v614
      %v636 = vld [vmem:[#allocation2] sm:$0xff]
      %v637 = vld [vmem:[#allocation2 + $0x8] sm:$0xff]
      %v638 = vld [vmem:[#allocation2 + $0x10] sm:$0xff]
      %v639 = vld [vmem:[#allocation2 + $0x18] sm:$0xff]
      %v640 = vld [vmem:[#allocation2 + $0x20] sm:$0xff]
      %v641 = vld [vmem:[#allocation2 + $0x28] sm:$0xff]
      %v642 = vld [vmem:[#allocation2 + $0x30] sm:$0xff]
      %v644 = vlaneseq
      %v645 = vshrl.u32 %v644, 7
      %v646 = vsub.s32 0, %v645
      %v647 = vrot.slane %v528, %v646
      %v648 = vlaneseq
      %v649 = vshrl.u32 %v648, 7
      %v650 = vsub.s32 1, %v649
      %v651 = vrot.slane %v528, %v650
      %v652 = vlaneseq
      %v653 = vshrl.u32 %v652, 7
      %v654 = vsub.s32 2, %v653
      %v655 = vrot.slane %v528, %v654
      %v656 = vlaneseq
      %v657 = vshrl.u32 %v656, 7
      %v658 = vsub.s32 3, %v657
      %v659 = vrot.slane %v528, %v658
      %v660 = vlaneseq
      %v661 = vshrl.u32 %v660, 7
      %v662 = vsub.s32 4, %v661
      %v663 = vrot.slane %v528, %v662
      %v664 = vlaneseq
      %v665 = vshrl.u32 %v664, 7
      %v666 = vsub.s32 5, %v665
      %v667 = vrot.slane %v528, %v666
      %v668 = vlaneseq
      %v669 = vshrl.u32 %v668, 7
      %v670 = vsub.s32 6, %v669
      %v671 = vrot.slane %v528, %v670
      %672 = vrot.lane.b32.xlu0 %v647, 2
      %v673 = vpop.permute.xlu0 %672
      %674 = vrot.lane.b32.xlu0 %v651, 2
      %v675 = vpop.permute.xlu0 %674
      %676 = vrot.lane.b32.xlu0 %v655, 2
      %v677 = vpop.permute.xlu0 %676
      %678 = vrot.lane.b32.xlu0 %v659, 2
      %v679 = vpop.permute.xlu0 %678
      %680 = vrot.lane.b32.xlu0 %v663, 2
      %v681 = vpop.permute.xlu0 %680
      %682 = vrot.lane.b32.xlu0 %v667, 2
      %v683 = vpop.permute.xlu0 %682
      %684 = vrot.lane.b32.xlu0 %v671, 2
      %v685 = vpop.permute.xlu0 %684
      %vm686 = vcmask 15360
      %v687 = vsel %vm686, %v673, %v675
      %v688 = vsel %vm686, %v675, %v677
      %v689 = vsel %vm686, %v677, %v679
      %v690 = vsel %vm686, %v679, %v681
      %v691 = vsel %vm686, %v681, %v683
      %v692 = vsel %vm686, %v683, %v685
      %v700 = vmul.f32 %v636, %v673
      %v701 = vmul.f32 %v637, %v687
      %v702 = vmul.f32 %v638, %v688
      %v703 = vmul.f32 %v639, %v689
      %v704 = vmul.f32 %v640, %v690
      %v705 = vmul.f32 %v641, %v691
      %v706 = vmul.f32 %v642, %v692
      %714 = vrot.lane.b32.xlu0 %v700, 126
      %v715 = vpop.permute.xlu0 %714
      %716 = vrot.lane.b32.xlu0 %v701, 126
      %v717 = vpop.permute.xlu0 %716
      %718 = vrot.lane.b32.xlu0 %v702, 126
      %v719 = vpop.permute.xlu0 %718
      %720 = vrot.lane.b32.xlu0 %v703, 126
      %v721 = vpop.permute.xlu0 %720
      %722 = vrot.lane.b32.xlu0 %v704, 126
      %v723 = vpop.permute.xlu0 %722
      %724 = vrot.lane.b32.xlu0 %v705, 126
      %v725 = vpop.permute.xlu0 %724
      %726 = vrot.lane.b32.xlu0 %v706, 126
      %v727 = vpop.permute.xlu0 %726
      %vm728 = vcmask 1031168
      %v729 = vsel %vm728, %v715, %v717
      %v730 = vsel %vm728, %v717, %v719
      %v731 = vsel %vm728, %v719, %v721
      %v732 = vsel %vm728, %v721, %v723
      %v733 = vsel %vm728, %v723, %v725
      %v734 = vsel %vm728, %v725, %v727
      %742 = vst [vmem:[#allocation3 + $0x70] sm:$0xff] %v729
      %743 = vst [vmem:[#allocation3 + $0x78] sm:$0xff] %v730
      %744 = vst [vmem:[#allocation3 + $0x80] sm:$0xff] %v731
      %745 = vst [vmem:[#allocation3 + $0x88] sm:$0xff] %v732
      %746 = vst [vmem:[#allocation3 + $0x90] sm:$0xff] %v733
      %747 = vst [vmem:[#allocation3 + $0x98] sm:$0xff] %v734
      %748 = vst.msk [vmem:[#allocation3 + $0xa0] sm:$0xff] %vm585, %v727
      %v749 = vld [vmem:[#allocation2] sm:$0xff]
      %v750 = vld [vmem:[#allocation2 + $0x8] sm:$0xff]
      %v751 = vld [vmem:[#allocation2 + $0x10] sm:$0xff]
      %v752 = vld [vmem:[#allocation2 + $0x18] sm:$0xff]
      %v753 = vld [vmem:[#allocation2 + $0x20] sm:$0xff]
      %v754 = vld [vmem:[#allocation2 + $0x28] sm:$0xff]
      %v755 = vld [vmem:[#allocation2 + $0x30] sm:$0xff]
      %756 = vrot.lane.b32.xlu0 %v540, 28
      %v757 = vpop.permute.xlu0 %756
      %758 = vrot.lane.b32.xlu0 %v544, 28
      %v759 = vpop.permute.xlu0 %758
      %760 = vrot.lane.b32.xlu0 %v548, 28
      %v761 = vpop.permute.xlu0 %760
      %762 = vrot.lane.b32.xlu0 %v552, 28
      %v763 = vpop.permute.xlu0 %762
      %764 = vrot.lane.b32.xlu0 %v556, 28
      %v765 = vpop.permute.xlu0 %764
      %766 = vrot.lane.b32.xlu0 %v560, 28
      %v767 = vpop.permute.xlu0 %766
      %768 = vrot.lane.b32.xlu0 %v564, 28
      %v769 = vpop.permute.xlu0 %768
      %vm770 = vcmask 228352
      %v771 = vsel %vm770, %v757, %v759
      %v772 = vsel %vm770, %v759, %v761
      %v773 = vsel %vm770, %v761, %v763
      %v774 = vsel %vm770, %v763, %v765
      %v775 = vsel %vm770, %v765, %v767
      %v776 = vsel %vm770, %v767, %v769
      %v784 = vmul.f32 %v749, %v757
      %v785 = vmul.f32 %v750, %v771
      %v786 = vmul.f32 %v751, %v772
      %v787 = vmul.f32 %v752, %v773
      %v788 = vmul.f32 %v753, %v774
      %v789 = vmul.f32 %v754, %v775
      %v790 = vmul.f32 %v755, %v776
      %798 = vrot.lane.b32.xlu0 %v784, 100
      %v799 = vpop.permute.xlu0 %798
      %800 = vrot.lane.b32.xlu0 %v785, 100
      %v801 = vpop.permute.xlu0 %800
      %802 = vrot.lane.b32.xlu0 %v786, 100
      %v803 = vpop.permute.xlu0 %802
      %804 = vrot.lane.b32.xlu0 %v787, 100
      %v805 = vpop.permute.xlu0 %804
      %806 = vrot.lane.b32.xlu0 %v788, 100
      %v807 = vpop.permute.xlu0 %806
      %808 = vrot.lane.b32.xlu0 %v789, 100
      %v809 = vpop.permute.xlu0 %808
      %810 = vrot.lane.b32.xlu0 %v790, 100
      %v811 = vpop.permute.xlu0 %810
      %vm812 = vcmask 818176
      %v813 = vsel %vm812, %v799, %v801
      %v814 = vsel %vm812, %v801, %v803
      %v815 = vsel %vm812, %v803, %v805
      %v816 = vsel %vm812, %v805, %v807
      %v817 = vsel %vm812, %v807, %v809
      %v818 = vsel %vm812, %v809, %v811
      %826 = vst [vmem:[#allocation3 + $0xa8] sm:$0xff] %v813
      %827 = vst [vmem:[#allocation3 + $0xb0] sm:$0xff] %v814
      %828 = vst [vmem:[#allocation3 + $0xb8] sm:$0xff] %v815
      %829 = vst [vmem:[#allocation3 + $0xc0] sm:$0xff] %v816
      %830 = vst [vmem:[#allocation3 + $0xc8] sm:$0xff] %v817
      %831 = vst [vmem:[#allocation3 + $0xd0] sm:$0xff] %v818
      %832 = vst.msk [vmem:[#allocation3 + $0xd8] sm:$0xff] %vm585, %v811
      %v833 = vld [vmem:[#allocation2] sm:$0xff]
      %v834 = vld [vmem:[#allocation2 + $0x8] sm:$0xff]
      %v835 = vld [vmem:[#allocation2 + $0x10] sm:$0xff]
      %v836 = vld [vmem:[#allocation2 + $0x18] sm:$0xff]
      %v837 = vld [vmem:[#allocation2 + $0x20] sm:$0xff]
      %v838 = vld [vmem:[#allocation2 + $0x28] sm:$0xff]
      %v839 = vld [vmem:[#allocation2 + $0x30] sm:$0xff]
      %847 = vrot.lane.b32.xlu0 %v833, 99
      %v848 = vpop.permute.xlu0 %847
      %849 = vrot.lane.b32.xlu0 %v834, 99
      %v850 = vpop.permute.xlu0 %849
      %851 = vrot.lane.b32.xlu0 %v835, 99
      %v852 = vpop.permute.xlu0 %851
      %853 = vrot.lane.b32.xlu0 %v836, 99
      %v854 = vpop.permute.xlu0 %853
      %855 = vrot.lane.b32.xlu0 %v837, 99
      %v856 = vpop.permute.xlu0 %855
      %857 = vrot.lane.b32.xlu0 %v838, 99
      %v858 = vpop.permute.xlu0 %857
      %859 = vrot.lane.b32.xlu0 %v839, 99
      %v860 = vpop.permute.xlu0 %859
      %vm861 = vcmask 809984
      %v862 = vsel %vm861, %v848, %v850
      %v863 = vsel %vm861, %v850, %v852
      %v864 = vsel %vm861, %v852, %v854
      %v865 = vsel %vm861, %v854, %v856
      %v866 = vsel %vm861, %v856, %v858
      %v867 = vsel %vm861, %v858, %v860
      %875 = vst [vmem:[#allocation3 + $0xe0] sm:$0xff] %v862
      %876 = vst [vmem:[#allocation3 + $0xe8] sm:$0xff] %v863
      %877 = vst [vmem:[#allocation3 + $0xf0] sm:$0xff] %v864
      %878 = vst [vmem:[#allocation3 + $0xf8] sm:$0xff] %v865
      %879 = vst [vmem:[#allocation3 + $0x100] sm:$0xff] %v866
      %880 = vst [vmem:[#allocation3 + $0x108] sm:$0xff] %v867
      %881 = vst.msk [vmem:[#allocation3 + $0x110] sm:$0xff] %vm585, %v860
      %v882 = vld [vmem:[#allocation2] sm:$0xff]
      %v883 = vld [vmem:[#allocation2 + $0x8] sm:$0xff]
      %v884 = vld [vmem:[#allocation2 + $0x10] sm:$0xff]
      %v885 = vld [vmem:[#allocation2 + $0x18] sm:$0xff]
      %v886 = vld [vmem:[#allocation2 + $0x20] sm:$0xff]
      %v887 = vld [vmem:[#allocation2 + $0x28] sm:$0xff]
      %v888 = vld [vmem:[#allocation2 + $0x30] sm:$0xff]
      %889 = vrot.lane.b32.xlu0 %v647, 30
      %v890 = vpop.permute.xlu0 %889
      %891 = vrot.lane.b32.xlu0 %v651, 30
      %v892 = vpop.permute.xlu0 %891
      %893 = vrot.lane.b32.xlu0 %v655, 30
      %v894 = vpop.permute.xlu0 %893
      %895 = vrot.lane.b32.xlu0 %v659, 30
      %v896 = vpop.permute.xlu0 %895
      %897 = vrot.lane.b32.xlu0 %v663, 30
      %v898 = vpop.permute.xlu0 %897
      %899 = vrot.lane.b32.xlu0 %v667, 30
      %v900 = vpop.permute.xlu0 %899
      %901 = vrot.lane.b32.xlu0 %v671, 30
      %v902 = vpop.permute.xlu0 %901
      %vm903 = vcmask 244736
      %v904 = vsel %vm903, %v890, %v892
      %v905 = vsel %vm903, %v892, %v894
      %v906 = vsel %vm903, %v894, %v896
      %v907 = vsel %vm903, %v896, %v898
      %v908 = vsel %vm903, %v898, %v900
      %v909 = vsel %vm903, %v900, %v902
      %v917 = vmul.f32 %v882, %v890
      %v918 = vmul.f32 %v883, %v904
      %v919 = vmul.f32 %v884, %v905
      %v920 = vmul.f32 %v885, %v906
      %v921 = vmul.f32 %v886, %v907
      %v922 = vmul.f32 %v887, %v908
      %v923 = vmul.f32 %v888, %v909
      %931 = vrot.lane.b32.xlu0 %v917, 98
      %v932 = vpop.permute.xlu0 %931
      %933 = vrot.lane.b32.xlu0 %v918, 98
      %v934 = vpop.permute.xlu0 %933
      %935 = vrot.lane.b32.xlu0 %v919, 98
      %v936 = vpop.permute.xlu0 %935
      %937 = vrot.lane.b32.xlu0 %v920, 98
      %v938 = vpop.permute.xlu0 %937
      %939 = vrot.lane.b32.xlu0 %v921, 98
      %v940 = vpop.permute.xlu0 %939
      %941 = vrot.lane.b32.xlu0 %v922, 98
      %v942 = vpop.permute.xlu0 %941
      %943 = vrot.lane.b32.xlu0 %v923, 98
      %v944 = vpop.permute.xlu0 %943
      %vm945 = vcmask 801792
      %v946 = vsel %vm945, %v932, %v934
      %v947 = vsel %vm945, %v934, %v936
      %v948 = vsel %vm945, %v936, %v938
      %v949 = vsel %vm945, %v938, %v940
      %v950 = vsel %vm945, %v940, %v942
      %v951 = vsel %vm945, %v942, %v944
      %959 = vst [vmem:[#allocation3 + $0x118] sm:$0xff] %v946
      %960 = vst [vmem:[#allocation3 + $0x120] sm:$0xff] %v947
      %961 = vst [vmem:[#allocation3 + $0x128] sm:$0xff] %v948
      %962 = vst [vmem:[#allocation3 + $0x130] sm:$0xff] %v949
      %963 = vst [vmem:[#allocation3 + $0x138] sm:$0xff] %v950
      %964 = vst [vmem:[#allocation3 + $0x140] sm:$0xff] %v951
      %965 = vst.msk [vmem:[#allocation3 + $0x148] sm:$0xff] %vm585, %v944
      %v966 = vld [vmem:[#allocation2] sm:$0xff]
      %v967 = vld [vmem:[#allocation2 + $0x8] sm:$0xff]
      %v968 = vld [vmem:[#allocation2 + $0x10] sm:$0xff]
      %v969 = vld [vmem:[#allocation2 + $0x18] sm:$0xff]
      %v970 = vld [vmem:[#allocation2 + $0x20] sm:$0xff]
      %v971 = vld [vmem:[#allocation2 + $0x28] sm:$0xff]
      %v972 = vld [vmem:[#allocation2 + $0x30] sm:$0xff]
      %973 = vrot.lane.b32.xlu0 %v540, 56
      %v974 = vpop.permute.xlu0 %973
      %975 = vrot.lane.b32.xlu0 %v544, 56
      %v976 = vpop.permute.xlu0 %975
      %977 = vrot.lane.b32.xlu0 %v548, 56
      %v978 = vpop.permute.xlu0 %977
      %979 = vrot.lane.b32.xlu0 %v552, 56
      %v980 = vpop.permute.xlu0 %979
      %981 = vrot.lane.b32.xlu0 %v556, 56
      %v982 = vpop.permute.xlu0 %981
      %983 = vrot.lane.b32.xlu0 %v560, 56
      %v984 = vpop.permute.xlu0 %983
      %985 = vrot.lane.b32.xlu0 %v564, 56
      %v986 = vpop.permute.xlu0 %985
      %vm987 = vcmask 457728
      %v988 = vsel %vm987, %v974, %v976
      %v989 = vsel %vm987, %v976, %v978
      %v990 = vsel %vm987, %v978, %v980
      %v991 = vsel %vm987, %v980, %v982
      %v992 = vsel %vm987, %v982, %v984
      %v993 = vsel %vm987, %v984, %v986
      %v1001 = vmul.f32 %v966, %v974
      %v1002 = vmul.f32 %v967, %v988
      %v1003 = vmul.f32 %v968, %v989
      %v1004 = vmul.f32 %v969, %v990
      %v1005 = vmul.f32 %v970, %v991
      %v1006 = vmul.f32 %v971, %v992
      %v1007 = vmul.f32 %v972, %v993
      %1015 = vrot.lane.b32.xlu0 %v1001, 72
      %v1016 = vpop.permute.xlu0 %1015
      %1017 = vrot.lane.b32.xlu0 %v1002, 72
      %v1018 = vpop.permute.xlu0 %1017
      %1019 = vrot.lane.b32.xlu0 %v1003, 72
      %v1020 = vpop.permute.xlu0 %1019
      %1021 = vrot.lane.b32.xlu0 %v1004, 72
      %v1022 = vpop.permute.xlu0 %1021
      %1023 = vrot.lane.b32.xlu0 %v1005, 72
      %v1024 = vpop.permute.xlu0 %1023
      %1025 = vrot.lane.b32.xlu0 %v1006, 72
      %v1026 = vpop.permute.xlu0 %1025
      %1027 = vrot.lane.b32.xlu0 %v1007, 72
      %v1028 = vpop.permute.xlu0 %1027
      %vm1029 = vcmask 588800
      %v1030 = vsel %vm1029, %v1016, %v1018
      %v1031 = vsel %vm1029, %v1018, %v1020
      %v1032 = vsel %vm1029, %v1020, %v1022
      %v1033 = vsel %vm1029, %v1022, %v1024
      %v1034 = vsel %vm1029, %v1024, %v1026
      %v1035 = vsel %vm1029, %v1026, %v1028
      %1043 = vst [vmem:[#allocation3 + $0x150] sm:$0xff] %v1030
      %1044 = vst [vmem:[#allocation3 + $0x158] sm:$0xff] %v1031
      %1045 = vst [vmem:[#allocation3 + $0x160] sm:$0xff] %v1032
      %1046 = vst [vmem:[#allocation3 + $0x168] sm:$0xff] %v1033
      %1047 = vst [vmem:[#allocation3 + $0x170] sm:$0xff] %v1034
      %1048 = vst [vmem:[#allocation3 + $0x178] sm:$0xff] %v1035
      %1049 = vst.msk [vmem:[#allocation3 + $0x180] sm:$0xff] %vm585, %v1028
      %v1050 = vld [vmem:[#allocation2] sm:$0xff]
      %v1051 = vld [vmem:[#allocation2 + $0x8] sm:$0xff]
      %v1052 = vld [vmem:[#allocation2 + $0x10] sm:$0xff]
      %v1053 = vld [vmem:[#allocation2 + $0x18] sm:$0xff]
      %v1054 = vld [vmem:[#allocation2 + $0x20] sm:$0xff]
      %v1055 = vld [vmem:[#allocation2 + $0x28] sm:$0xff]
      %v1056 = vld [vmem:[#allocation2 + $0x30] sm:$0xff]
      %1064 = vrot.lane.b32.xlu0 %v1050, 71
      %v1065 = vpop.permute.xlu0 %1064
      %1066 = vrot.lane.b32.xlu0 %v1051, 71
      %v1067 = vpop.permute.xlu0 %1066
      %1068 = vrot.lane.b32.xlu0 %v1052, 71
      %v1069 = vpop.permute.xlu0 %1068
      %1070 = vrot.lane.b32.xlu0 %v1053, 71
      %v1071 = vpop.permute.xlu0 %1070
      %1072 = vrot.lane.b32.xlu0 %v1054, 71
      %v1073 = vpop.permute.xlu0 %1072
      %1074 = vrot.lane.b32.xlu0 %v1055, 71
      %v1075 = vpop.permute.xlu0 %1074
      %1076 = vrot.lane.b32.xlu0 %v1056, 71
      %v1077 = vpop.permute.xlu0 %1076
      %vm1078 = vcmask 580608
      %v1079 = vsel %vm1078, %v1065, %v1067
      %v1080 = vsel %vm1078, %v1067, %v1069
      %v1081 = vsel %vm1078, %v1069, %v1071
      %v1082 = vsel %vm1078, %v1071, %v1073
      %v1083 = vsel %vm1078, %v1073, %v1075
      %v1084 = vsel %vm1078, %v1075, %v1077
      %1092 = vst [vmem:[#allocation3 + $0x188] sm:$0xff] %v1079
      %1093 = vst [vmem:[#allocation3 + $0x190] sm:$0xff] %v1080
      %1094 = vst [vmem:[#allocation3 + $0x198] sm:$0xff] %v1081
      %1095 = vst [vmem:[#allocation3 + $0x1a0] sm:$0xff] %v1082
      %1096 = vst [vmem:[#allocation3 + $0x1a8] sm:$0xff] %v1083
      %1097 = vst [vmem:[#allocation3 + $0x1b0] sm:$0xff] %v1084
      %1098 = vst.msk [vmem:[#allocation3 + $0x1b8] sm:$0xff] %vm585, %v1077
      %v1099 = vld [vmem:[#allocation2] sm:$0xff]
      %v1100 = vld [vmem:[#allocation2 + $0x8] sm:$0xff]
      %v1101 = vld [vmem:[#allocation2 + $0x10] sm:$0xff]
      %v1102 = vld [vmem:[#allocation2 + $0x18] sm:$0xff]
      %v1103 = vld [vmem:[#allocation2 + $0x20] sm:$0xff]
      %v1104 = vld [vmem:[#allocation2 + $0x28] sm:$0xff]
      %v1105 = vld [vmem:[#allocation2 + $0x30] sm:$0xff]
      %1106 = vrot.lane.b32.xlu0 %v647, 58
      %v1107 = vpop.permute.xlu0 %1106
      %1108 = vrot.lane.b32.xlu0 %v651, 58
      %v1109 = vpop.permute.xlu0 %1108
      %1110 = vrot.lane.b32.xlu0 %v655, 58
      %v1111 = vpop.permute.xlu0 %1110
      %1112 = vrot.lane.b32.xlu0 %v659, 58
      %v1113 = vpop.permute.xlu0 %1112
      %1114 = vrot.lane.b32.xlu0 %v663, 58
      %v1115 = vpop.permute.xlu0 %1114
      %1116 = vrot.lane.b32.xlu0 %v667, 58
      %v1117 = vpop.permute.xlu0 %1116
      %1118 = vrot.lane.b32.xlu0 %v671, 58
      %v1119 = vpop.permute.xlu0 %1118
      %vm1120 = vcmask 474112
      %v1121 = vsel %vm1120, %v1107, %v1109
      %v1122 = vsel %vm1120, %v1109, %v1111
      %v1123 = vsel %vm1120, %v1111, %v1113
      %v1124 = vsel %vm1120, %v1113, %v1115
      %v1125 = vsel %vm1120, %v1115, %v1117
      %v1126 = vsel %vm1120, %v1117, %v1119
      %v1134 = vmul.f32 %v1099, %v1107
      %v1135 = vmul.f32 %v1100, %v1121
      %v1136 = vmul.f32 %v1101, %v1122
      %v1137 = vmul.f32 %v1102, %v1123
      %v1138 = vmul.f32 %v1103, %v1124
      %v1139 = vmul.f32 %v1104, %v1125
      %v1140 = vmul.f32 %v1105, %v1126
      %1148 = vrot.lane.b32.xlu0 %v1134, 70
      %v1149 = vpop.permute.xlu0 %1148
      %1150 = vrot.lane.b32.xlu0 %v1135, 70
      %v1151 = vpop.permute.xlu0 %1150
      %1152 = vrot.lane.b32.xlu0 %v1136, 70
      %v1153 = vpop.permute.xlu0 %1152
      %1154 = vrot.lane.b32.xlu0 %v1137, 70
      %v1155 = vpop.permute.xlu0 %1154
      %1156 = vrot.lane.b32.xlu0 %v1138, 70
      %v1157 = vpop.permute.xlu0 %1156
      %1158 = vrot.lane.b32.xlu0 %v1139, 70
      %v1159 = vpop.permute.xlu0 %1158
      %1160 = vrot.lane.b32.xlu0 %v1140, 70
      %v1161 = vpop.permute.xlu0 %1160
      %vm1162 = vcmask 572416
      %v1163 = vsel %vm1162, %v1149, %v1151
      %v1164 = vsel %vm1162, %v1151, %v1153
      %v1165 = vsel %vm1162, %v1153, %v1155
      %v1166 = vsel %vm1162, %v1155, %v1157
      %v1167 = vsel %vm1162, %v1157, %v1159
      %v1168 = vsel %vm1162, %v1159, %v1161
      %1176 = vst [vmem:[#allocation3 + $0x1c0] sm:$0xff] %v1163
      %1177 = vst [vmem:[#allocation3 + $0x1c8] sm:$0xff] %v1164
      %1178 = vst [vmem:[#allocation3 + $0x1d0] sm:$0xff] %v1165
      %1179 = vst [vmem:[#allocation3 + $0x1d8] sm:$0xff] %v1166
      %1180 = vst [vmem:[#allocation3 + $0x1e0] sm:$0xff] %v1167
      %1181 = vst [vmem:[#allocation3 + $0x1e8] sm:$0xff] %v1168
      %1182 = vst.msk [vmem:[#allocation3 + $0x1f0] sm:$0xff] %vm585, %v1161
      %v1183 = vld [vmem:[%s1] sm:$0xff]
      %v1184 = vld [vmem:[%s1 + $0x8] sm:$0xff]
      %v1185 = vld [vmem:[%s1 + $0x10] sm:$0xff]
      %v1186 = vld [vmem:[%s1 + $0x18] sm:$0xff]
      %v1187 = vld [vmem:[%s1 + $0x20] sm:$0xff]
      %v1188 = vld [vmem:[%s1 + $0x28] sm:$0xff]
      %v1189 = vld [vmem:[%s1 + $0x30] sm:$0xff]
      %v1190 = vld [vmem:[%s1 + $0x38] sm:$0xff]
      %v1191 = vld [vmem:[#allocation3] sm:$0xff]
      %v1192 = vld [vmem:[#allocation3 + $0x8] sm:$0xff]
      %v1193 = vld [vmem:[#allocation3 + $0x10] sm:$0xff]
      %v1194 = vld [vmem:[#allocation3 + $0x18] sm:$0xff]
      %v1195 = vld [vmem:[#allocation3 + $0x20] sm:$0xff]
      %v1196 = vld [vmem:[#allocation3 + $0x28] sm:$0xff]
      %v1197 = vld [vmem:[#allocation3 + $0x30] sm:$0xff]
      %v1198 = vld [vmem:[#allocation3 + $0x38] sm:$0xff]
      %v1199 = vld [vmem:[#allocation3 + $0x40] sm:$0xff]
      %v1200 = vld [vmem:[#allocation3 + $0x48] sm:$0xff]
      %v1201 = vld [vmem:[#allocation3 + $0x50] sm:$0xff]
      %v1202 = vld [vmem:[#allocation3 + $0x58] sm:$0xff]
      %v1203 = vld [vmem:[#allocation3 + $0x60] sm:$0xff]
      %v1204 = vld [vmem:[#allocation3 + $0x68] sm:$0xff]
      %v1205 = vld [vmem:[#allocation3 + $0x70] sm:$0xff]
      %v1206 = vld [vmem:[#allocation3 + $0x78] sm:$0xff]
      %v1207 = vld [vmem:[#allocation3 + $0x80] sm:$0xff]
      %v1208 = vld [vmem:[#allocation3 + $0x88] sm:$0xff]
      %v1209 = vld [vmem:[#allocation3 + $0x90] sm:$0xff]
      %v1210 = vld [vmem:[#allocation3 + $0x98] sm:$0xff]
      %v1211 = vld [vmem:[#allocation3 + $0xa0] sm:$0xff]
      %v1212 = vld [vmem:[#allocation3 + $0xa8] sm:$0xff]
      %v1213 = vld [vmem:[#allocation3 + $0xb0] sm:$0xff]
      %v1214 = vld [vmem:[#allocation3 + $0xb8] sm:$0xff]
      %v1215 = vld [vmem:[#allocation3 + $0xc0] sm:$0xff]
      %v1216 = vld [vmem:[#allocation3 + $0xc8] sm:$0xff]
      %v1217 = vld [vmem:[#allocation3 + $0xd0] sm:$0xff]
      %v1218 = vld [vmem:[#allocation3 + $0xd8] sm:$0xff]
      %v1219 = vld [vmem:[#allocation3 + $0xe0] sm:$0xff]
      %v1220 = vld [vmem:[#allocation3 + $0xe8] sm:$0xff]
      %v1221 = vld [vmem:[#allocation3 + $0xf0] sm:$0xff]
      %v1222 = vld [vmem:[#allocation3 + $0xf8] sm:$0xff]
      %v1223 = vld [vmem:[#allocation3 + $0x100] sm:$0xff]
      %v1224 = vld [vmem:[#allocation3 + $0x108] sm:$0xff]
      %v1225 = vld [vmem:[#allocation3 + $0x110] sm:$0xff]
      %v1226 = vld [vmem:[#allocation3 + $0x118] sm:$0xff]
      %v1227 = vld [vmem:[#allocation3 + $0x120] sm:$0xff]
      %v1228 = vld [vmem:[#allocation3 + $0x128] sm:$0xff]
      %v1229 = vld [vmem:[#allocation3 + $0x130] sm:$0xff]
      %v1230 = vld [vmem:[#allocation3 + $0x138] sm:$0xff]
      %v1231 = vld [vmem:[#allocation3 + $0x140] sm:$0xff]
      %v1232 = vld [vmem:[#allocation3 + $0x148] sm:$0xff]
      %v1233 = vld [vmem:[#allocation3 + $0x150] sm:$0xff]
      %v1234 = vld [vmem:[#allocation3 + $0x158] sm:$0xff]
      %v1235 = vld [vmem:[#allocation3 + $0x160] sm:$0xff]
      %v1236 = vld [vmem:[#allocation3 + $0x168] sm:$0xff]
      %v1237 = vld [vmem:[#allocation3 + $0x170] sm:$0xff]
      %v1238 = vld [vmem:[#allocation3 + $0x178] sm:$0xff]
      %v1239 = vld [vmem:[#allocation3 + $0x180] sm:$0xff]
      %v1240 = vld [vmem:[#allocation3 + $0x188] sm:$0xff]
      %v1241 = vld [vmem:[#allocation3 + $0x190] sm:$0xff]
      %v1242 = vld [vmem:[#allocation3 + $0x198] sm:$0xff]
      %v1243 = vld [vmem:[#allocation3 + $0x1a0] sm:$0xff]
      %v1244 = vld [vmem:[#allocation3 + $0x1a8] sm:$0xff]
      %v1245 = vld [vmem:[#allocation3 + $0x1b0] sm:$0xff]
      %v1246 = vld [vmem:[#allocation3 + $0x1b8] sm:$0xff]
      %v1247 = vld [vmem:[#allocation3 + $0x1c0] sm:$0xff]
      %v1248 = vld [vmem:[#allocation3 + $0x1c8] sm:$0xff]
      %v1249 = vld [vmem:[#allocation3 + $0x1d0] sm:$0xff]
      %v1250 = vld [vmem:[#allocation3 + $0x1d8] sm:$0xff]
      %v1251 = vld [vmem:[#allocation3 + $0x1e0] sm:$0xff]
      %v1252 = vld [vmem:[#allocation3 + $0x1e8] sm:$0xff]
      %v1253 = vld [vmem:[#allocation3 + $0x1f0] sm:$0xff]
      %v1254 = vld [vmem:[%s2] sm:$0xff]
      %v1255 = vld [vmem:[%s2 + $0x8] sm:$0xff]
      %v1256 = vld [vmem:[%s2 + $0x10] sm:$0xff]
      %v1257 = vld [vmem:[%s2 + $0x18] sm:$0xff]
      %v1258 = vld [vmem:[%s2 + $0x20] sm:$0xff]
      %v1259 = vld [vmem:[%s2 + $0x28] sm:$0xff]
      %v1260 = vld [vmem:[%s2 + $0x30] sm:$0xff]
      %v1261 = vld [vmem:[%s2 + $0x38] sm:$0xff]
      %1263 = vset.pattern.permute.xlu0 0
      %1264 = vperm.xlu0 %1263, %v1254
      %v1265 = vpop.permute.xlu0 %1264
      %1268 = vset.pattern.permute.xlu0 0
      %1269 = vperm.xlu0 %1268, %v1255
      %v1270 = vpop.permute.xlu0 %1269
      %1273 = vset.pattern.permute.xlu0 0
      %1274 = vperm.xlu0 %1273, %v1256
      %v1275 = vpop.permute.xlu0 %1274
      %1278 = vset.pattern.permute.xlu0 0
      %1279 = vperm.xlu0 %1278, %v1257
      %v1280 = vpop.permute.xlu0 %1279
      %1283 = vset.pattern.permute.xlu0 0
      %1284 = vperm.xlu0 %1283, %v1258
      %v1285 = vpop.permute.xlu0 %1284
      %1288 = vset.pattern.permute.xlu0 0
      %1289 = vperm.xlu0 %1288, %v1259
      %v1290 = vpop.permute.xlu0 %1289
      %1293 = vset.pattern.permute.xlu0 0
      %1294 = vperm.xlu0 %1293, %v1260
      %v1295 = vpop.permute.xlu0 %1294
      %1298 = vset.pattern.permute.xlu0 0
      %1299 = vperm.xlu0 %1298, %v1261
      %v1300 = vpop.permute.xlu0 %1299
      %v1303 = vsel %vm1029, %v1183, 0
      %v1306 = vsel %vm1029, %v1184, 0
      %v1309 = vsel %vm1029, %v1185, 0
      %v1312 = vsel %vm1029, %v1186, 0
      %v1315 = vsel %vm1029, %v1187, 0
      %v1318 = vsel %vm1029, %v1188, 0
      %v1321 = vsel %vm1029, %v1189, 0
      %v1324 = vsel %vm1029, %v1190, 0
      %1326 = vmatprep.subr.mxu0 0.0
      %1327 = vmatpush1.msra.mxu0 0.0
      %1328 = vmatprep.subr.mxu0 0.0
      %1329 = vmatpush1.msra.mxu0 0.0
      %1330 = vmatprep.subr.mxu0 0.0
      %1331 = vmatpush1.msra.mxu0 0.0
      %1332 = vmatprep.subr.mxu0 0.0
      %1333 = vmatpush1.msra.mxu0 0.0
      %1334 = vmatprep.subr.mxu0 0.0
      %1335 = vmatpush1.msra.mxu0 0.0
      %1336 = vmatprep.subr.mxu0 0.0
      %1337 = vmatpush1.msra.mxu0 0.0
      %1338 = vmatprep.subr.mxu0 0.0
      %1339 = vmatpush1.msra.mxu0 0.0
      %1340 = vmatprep.subr.mxu0 %v1248
      %1341 = vmatpush1.msra.mxu0 %v1247
      %1342 = vmatprep.subr.mxu0 %v1241
      %1343 = vmatpush1.msra.mxu0 %v1240
      %1344 = vmatprep.subr.mxu0 %v1234
      %1345 = vmatpush1.msra.mxu0 %v1233
      %1346 = vmatprep.subr.mxu0 %v1227
      %1347 = vmatpush1.msra.mxu0 %v1226
      %1348 = vmatprep.subr.mxu0 %v1220
      %1349 = vmatpush1.msra.mxu0 %v1219
      %1350 = vmatprep.subr.mxu0 %v1213
      %1351 = vmatpush1.msra.mxu0 %v1212
      %1352 = vmatprep.subr.mxu0 %v1206
      %1353 = vmatpush1.msra.mxu0 %v1205
      %1354 = vmatprep.subr.mxu0 %v1199
      %1355 = vmatpush1.msra.mxu0 %v1198
      %1356 = vmatprep.subr.mxu0 %v1192
      %1357 = vmatpush1.msra.mxu0 %v1191
      %1358 = vmatprep.subr.mxu0 0.0
      %1359 = vmatpush2.msra.mxu0 0.0
      %1360 = vmatprep.subr.mxu0 0.0
      %1361 = vmatpush2.msra.mxu0 0.0
      %1362 = vmatprep.subr.mxu0 0.0
      %1363 = vmatpush2.msra.mxu0 0.0
      %1364 = vmatprep.subr.mxu0 0.0
      %1365 = vmatpush2.msra.mxu0 0.0
      %1366 = vmatprep.subr.mxu0 0.0
      %1367 = vmatpush2.msra.mxu0 0.0
      %1368 = vmatprep.subr.mxu0 0.0
      %1369 = vmatpush2.msra.mxu0 0.0
      %1370 = vmatprep.subr.mxu0 0.0
      %1371 = vmatpush2.msra.mxu0 0.0
      %1372 = vmatprep.subr.mxu0 0.0
      %1373 = vmatpush2.msra.mxu0 0.0
      %1374 = vmatprep.subr.mxu0 0.0
      %1375 = vmatpush2.msra.mxu0 0.0
      %1376 = vmatprep.subr.mxu0 0.0
      %1377 = vmatpush2.msra.mxu0 0.0
      %1378 = vmatprep.subr.mxu0 0.0
      %1379 = vmatpush2.msra.mxu0 0.0
      %1380 = vmatprep.subr.mxu0 0.0
      %1381 = vmatpush2.msra.mxu0 0.0
      %1382 = vmatprep.subr.mxu0 0.0
      %1383 = vmatpush2.msra.mxu0 0.0
      %1384 = vmatprep.subr.mxu0 0.0
      %1385 = vmatpush2.msra.mxu0 0.0
      %1386 = vmatprep.subr.mxu0 0.0
      %1387 = vmatpush2.msra.mxu0 0.0
      %1388 = vmatprep.subr.mxu0 0.0
      %1389 = vmatpush2.msra.mxu0 0.0
      %1390 = vmatprep.mubr.f32.mxu0 0.0
      %1391 = vmatmul.mubr.f32.gmra.mxu0 %v1303
      %v1392 = vpop.f32.mrf.mxu0
      %v1393 = vadd.f32 %v1265, %v1392
      %v1394 = vpop.f32.mrf.mxu0
      %v1395 = vadd.f32 %v1265, %v1394
      %1396 = vmatprep.mubr.f32.mxu0 0.0
      %1397 = vmatmul.mubr.f32.gmra.mxu0 %v1306
      %v1398 = vpop.f32.mrf.mxu0
      %v1399 = vadd.f32 %v1270, %v1398
      %v1400 = vpop.f32.mrf.mxu0
      %v1401 = vadd.f32 %v1270, %v1400
      %1402 = vmatprep.mubr.f32.mxu0 0.0
      %1403 = vmatmul.mubr.f32.gmra.mxu0 %v1309
      %v1404 = vpop.f32.mrf.mxu0
      %v1405 = vadd.f32 %v1275, %v1404
      %v1406 = vpop.f32.mrf.mxu0
      %v1407 = vadd.f32 %v1275, %v1406
      %1408 = vmatprep.mubr.f32.mxu0 0.0
      %1409 = vmatmul.mubr.f32.gmra.mxu0 %v1312
      %v1410 = vpop.f32.mrf.mxu0
      %v1411 = vadd.f32 %v1280, %v1410
      %v1412 = vpop.f32.mrf.mxu0
      %v1413 = vadd.f32 %v1280, %v1412
      %1414 = vmatprep.mubr.f32.mxu0 0.0
      %1415 = vmatmul.mubr.f32.gmra.mxu0 %v1315
      %v1416 = vpop.f32.mrf.mxu0
      %v1417 = vadd.f32 %v1285, %v1416
      %v1418 = vpop.f32.mrf.mxu0
      %v1419 = vadd.f32 %v1285, %v1418
      %1420 = vmatprep.mubr.f32.mxu0 0.0
      %1421 = vmatmul.mubr.f32.gmra.mxu0 %v1318
      %v1422 = vpop.f32.mrf.mxu0
      %v1423 = vadd.f32 %v1290, %v1422
      %v1424 = vpop.f32.mrf.mxu0
      %v1425 = vadd.f32 %v1290, %v1424
      %1426 = vmatprep.mubr.f32.mxu0 0.0
      %1427 = vmatmul.mubr.f32.gmra.mxu0 %v1321
      %v1428 = vpop.f32.mrf.mxu0
      %v1429 = vadd.f32 %v1295, %v1428
      %v1430 = vpop.f32.mrf.mxu0
      %v1431 = vadd.f32 %v1295, %v1430
      %1432 = vmatprep.mubr.f32.mxu0 0.0
      %1433 = vmatmul.mubr.f32.gmra.mxu0 %v1324
      %v1434 = vpop.f32.mrf.mxu0
      %v1435 = vadd.f32 %v1300, %v1434
      %v1436 = vpop.f32.mrf.mxu0
      %v1437 = vadd.f32 %v1300, %v1436
      %1438 = vdwg.mxu0
      %1439 = vmatprep.subr.mxu0 0.0
      %1440 = vmatpush1.msra.mxu0 0.0
      %1441 = vmatprep.subr.mxu0 0.0
      %1442 = vmatpush1.msra.mxu0 0.0
      %1443 = vmatprep.subr.mxu0 0.0
      %1444 = vmatpush1.msra.mxu0 0.0
      %1445 = vmatprep.subr.mxu0 0.0
      %1446 = vmatpush1.msra.mxu0 0.0
      %1447 = vmatprep.subr.mxu0 0.0
      %1448 = vmatpush1.msra.mxu0 0.0
      %1449 = vmatprep.subr.mxu0 0.0
      %1450 = vmatpush1.msra.mxu0 0.0
      %1451 = vmatprep.subr.mxu0 0.0
      %1452 = vmatpush1.msra.mxu0 0.0
      %1453 = vmatprep.subr.mxu0 %v1250
      %1454 = vmatpush1.msra.mxu0 %v1249
      %1455 = vmatprep.subr.mxu0 %v1243
      %1456 = vmatpush1.msra.mxu0 %v1242
      %1457 = vmatprep.subr.mxu0 %v1236
      %1458 = vmatpush1.msra.mxu0 %v1235
      %1459 = vmatprep.subr.mxu0 %v1229
      %1460 = vmatpush1.msra.mxu0 %v1228
      %1461 = vmatprep.subr.mxu0 %v1222
      %1462 = vmatpush1.msra.mxu0 %v1221
      %1463 = vmatprep.subr.mxu0 %v1215
      %1464 = vmatpush1.msra.mxu0 %v1214
      %1465 = vmatprep.subr.mxu0 %v1208
      %1466 = vmatpush1.msra.mxu0 %v1207
      %1467 = vmatprep.subr.mxu0 %v1201
      %1468 = vmatpush1.msra.mxu0 %v1200
      %1469 = vmatprep.subr.mxu0 %v1194
      %1470 = vmatpush1.msra.mxu0 %v1193
      %1471 = vmatprep.subr.mxu0 0.0
      %1472 = vmatpush2.msra.mxu0 0.0
      %1473 = vmatprep.subr.mxu0 0.0
      %1474 = vmatpush2.msra.mxu0 0.0
      %1475 = vmatprep.subr.mxu0 0.0
      %1476 = vmatpush2.msra.mxu0 0.0
      %1477 = vmatprep.subr.mxu0 0.0
      %1478 = vmatpush2.msra.mxu0 0.0
      %1479 = vmatprep.subr.mxu0 0.0
      %1480 = vmatpush2.msra.mxu0 0.0
      %1481 = vmatprep.subr.mxu0 0.0
      %1482 = vmatpush2.msra.mxu0 0.0
      %1483 = vmatprep.subr.mxu0 0.0
      %1484 = vmatpush2.msra.mxu0 0.0
      %1485 = vmatprep.subr.mxu0 0.0
      %1486 = vmatpush2.msra.mxu0 0.0
      %1487 = vmatprep.subr.mxu0 0.0
      %1488 = vmatpush2.msra.mxu0 0.0
      %1489 = vmatprep.subr.mxu0 0.0
      %1490 = vmatpush2.msra.mxu0 0.0
      %1491 = vmatprep.subr.mxu0 0.0
      %1492 = vmatpush2.msra.mxu0 0.0
      %1493 = vmatprep.subr.mxu0 0.0
      %1494 = vmatpush2.msra.mxu0 0.0
      %1495 = vmatprep.subr.mxu0 0.0
      %1496 = vmatpush2.msra.mxu0 0.0
      %1497 = vmatprep.subr.mxu0 0.0
      %1498 = vmatpush2.msra.mxu0 0.0
      %1499 = vmatprep.subr.mxu0 0.0
      %1500 = vmatpush2.msra.mxu0 0.0
      %1501 = vmatprep.subr.mxu0 0.0
      %1502 = vmatpush2.msra.mxu0 0.0
      %1503 = vmatprep.mubr.f32.mxu0 0.0
      %1504 = vmatmul.mubr.f32.gmra.mxu0 %v1303
      %v1505 = vpop.f32.mrf.mxu0
      %v1506 = vadd.f32 %v1265, %v1505
      %v1507 = vpop.f32.mrf.mxu0
      %v1508 = vadd.f32 %v1265, %v1507
      %1509 = vmatprep.mubr.f32.mxu0 0.0
      %1510 = vmatmul.mubr.f32.gmra.mxu0 %v1306
      %v1511 = vpop.f32.mrf.mxu0
      %v1512 = vadd.f32 %v1270, %v1511
      %v1513 = vpop.f32.mrf.mxu0
      %v1514 = vadd.f32 %v1270, %v1513
      %1515 = vmatprep.mubr.f32.mxu0 0.0
      %1516 = vmatmul.mubr.f32.gmra.mxu0 %v1309
      %v1517 = vpop.f32.mrf.mxu0
      %v1518 = vadd.f32 %v1275, %v1517
      %v1519 = vpop.f32.mrf.mxu0
      %v1520 = vadd.f32 %v1275, %v1519
      %1521 = vmatprep.mubr.f32.mxu0 0.0
      %1522 = vmatmul.mubr.f32.gmra.mxu0 %v1312
      %v1523 = vpop.f32.mrf.mxu0
      %v1524 = vadd.f32 %v1280, %v1523
      %v1525 = vpop.f32.mrf.mxu0
      %v1526 = vadd.f32 %v1280, %v1525
      %1527 = vmatprep.mubr.f32.mxu0 0.0
      %1528 = vmatmul.mubr.f32.gmra.mxu0 %v1315
      %v1529 = vpop.f32.mrf.mxu0
      %v1530 = vadd.f32 %v1285, %v1529
      %v1531 = vpop.f32.mrf.mxu0
      %v1532 = vadd.f32 %v1285, %v1531
      %1533 = vmatprep.mubr.f32.mxu0 0.0
      %1534 = vmatmul.mubr.f32.gmra.mxu0 %v1318
      %v1535 = vpop.f32.mrf.mxu0
      %v1536 = vadd.f32 %v1290, %v1535
      %v1537 = vpop.f32.mrf.mxu0
      %v1538 = vadd.f32 %v1290, %v1537
      %1539 = vmatprep.mubr.f32.mxu0 0.0
      %1540 = vmatmul.mubr.f32.gmra.mxu0 %v1321
      %v1541 = vpop.f32.mrf.mxu0
      %v1542 = vadd.f32 %v1295, %v1541
      %v1543 = vpop.f32.mrf.mxu0
      %v1544 = vadd.f32 %v1295, %v1543
      %1545 = vmatprep.mubr.f32.mxu0 0.0
      %1546 = vmatmul.mubr.f32.gmra.mxu0 %v1324
      %v1547 = vpop.f32.mrf.mxu0
      %v1548 = vadd.f32 %v1300, %v1547
      %v1549 = vpop.f32.mrf.mxu0
      %v1550 = vadd.f32 %v1300, %v1549
      %1551 = vdwg.mxu0
      %1552 = vmatprep.subr.mxu0 0.0
      %1553 = vmatpush1.msra.mxu0 0.0
      %1554 = vmatprep.subr.mxu0 0.0
      %1555 = vmatpush1.msra.mxu0 0.0
      %1556 = vmatprep.subr.mxu0 0.0
      %1557 = vmatpush1.msra.mxu0 0.0
      %1558 = vmatprep.subr.mxu0 0.0
      %1559 = vmatpush1.msra.mxu0 0.0
      %1560 = vmatprep.subr.mxu0 0.0
      %1561 = vmatpush1.msra.mxu0 0.0
      %1562 = vmatprep.subr.mxu0 0.0
      %1563 = vmatpush1.msra.mxu0 0.0
      %1564 = vmatprep.subr.mxu0 0.0
      %1565 = vmatpush1.msra.mxu0 0.0
      %1566 = vmatprep.subr.mxu0 %v1252
      %1567 = vmatpush1.msra.mxu0 %v1251
      %1568 = vmatprep.subr.mxu0 %v1245
      %1569 = vmatpush1.msra.mxu0 %v1244
      %1570 = vmatprep.subr.mxu0 %v1238
      %1571 = vmatpush1.msra.mxu0 %v1237
      %1572 = vmatprep.subr.mxu0 %v1231
      %1573 = vmatpush1.msra.mxu0 %v1230
      %1574 = vmatprep.subr.mxu0 %v1224
      %1575 = vmatpush1.msra.mxu0 %v1223
      %1576 = vmatprep.subr.mxu0 %v1217
      %1577 = vmatpush1.msra.mxu0 %v1216
      %1578 = vmatprep.subr.mxu0 %v1210
      %1579 = vmatpush1.msra.mxu0 %v1209
      %1580 = vmatprep.subr.mxu0 %v1203
      %1581 = vmatpush1.msra.mxu0 %v1202
      %1582 = vmatprep.subr.mxu0 %v1196
      %1583 = vmatpush1.msra.mxu0 %v1195
      %1584 = vmatprep.subr.mxu0 0.0
      %1585 = vmatpush2.msra.mxu0 0.0
      %1586 = vmatprep.subr.mxu0 0.0
      %1587 = vmatpush2.msra.mxu0 0.0
      %1588 = vmatprep.subr.mxu0 0.0
      %1589 = vmatpush2.msra.mxu0 0.0
      %1590 = vmatprep.subr.mxu0 0.0
      %1591 = vmatpush2.msra.mxu0 0.0
      %1592 = vmatprep.subr.mxu0 0.0
      %1593 = vmatpush2.msra.mxu0 0.0
      %1594 = vmatprep.subr.mxu0 0.0
      %1595 = vmatpush2.msra.mxu0 0.0
      %1596 = vmatprep.subr.mxu0 0.0
      %1597 = vmatpush2.msra.mxu0 0.0
      %1598 = vmatprep.subr.mxu0 0.0
      %1599 = vmatpush2.msra.mxu0 0.0
      %1600 = vmatprep.subr.mxu0 0.0
      %1601 = vmatpush2.msra.mxu0 0.0
      %1602 = vmatprep.subr.mxu0 0.0
      %1603 = vmatpush2.msra.mxu0 0.0
      %1604 = vmatprep.subr.mxu0 0.0
      %1605 = vmatpush2.msra.mxu0 0.0
      %1606 = vmatprep.subr.mxu0 0.0
      %1607 = vmatpush2.msra.mxu0 0.0
      %1608 = vmatprep.subr.mxu0 0.0
      %1609 = vmatpush2.msra.mxu0 0.0
      %1610 = vmatprep.subr.mxu0 0.0
      %1611 = vmatpush2.msra.mxu0 0.0
      %1612 = vmatprep.subr.mxu0 0.0
      %1613 = vmatpush2.msra.mxu0 0.0
      %1614 = vmatprep.subr.mxu0 0.0
      %1615 = vmatpush2.msra.mxu0 0.0
      %1616 = vmatprep.mubr.f32.mxu0 0.0
      %1617 = vmatmul.mubr.f32.gmra.mxu0 %v1303
      %v1618 = vpop.f32.mrf.mxu0
      %v1619 = vadd.f32 %v1265, %v1618
      %v1620 = vpop.f32.mrf.mxu0
      %v1621 = vadd.f32 %v1265, %v1620
      %1622 = vmatprep.mubr.f32.mxu0 0.0
      %1623 = vmatmul.mubr.f32.gmra.mxu0 %v1306
      %v1624 = vpop.f32.mrf.mxu0
      %v1625 = vadd.f32 %v1270, %v1624
      %v1626 = vpop.f32.mrf.mxu0
      %v1627 = vadd.f32 %v1270, %v1626
      %1628 = vmatprep.mubr.f32.mxu0 0.0
      %1629 = vmatmul.mubr.f32.gmra.mxu0 %v1309
      %v1630 = vpop.f32.mrf.mxu0
      %v1631 = vadd.f32 %v1275, %v1630
      %v1632 = vpop.f32.mrf.mxu0
      %v1633 = vadd.f32 %v1275, %v1632
      %1634 = vmatprep.mubr.f32.mxu0 0.0
      %1635 = vmatmul.mubr.f32.gmra.mxu0 %v1312
      %v1636 = vpop.f32.mrf.mxu0
      %v1637 = vadd.f32 %v1280, %v1636
      %v1638 = vpop.f32.mrf.mxu0
      %v1639 = vadd.f32 %v1280, %v1638
      %1640 = vmatprep.mubr.f32.mxu0 0.0
      %1641 = vmatmul.mubr.f32.gmra.mxu0 %v1315
      %v1642 = vpop.f32.mrf.mxu0
      %v1643 = vadd.f32 %v1285, %v1642
      %v1644 = vpop.f32.mrf.mxu0
      %v1645 = vadd.f32 %v1285, %v1644
      %1646 = vmatprep.mubr.f32.mxu0 0.0
      %1647 = vmatmul.mubr.f32.gmra.mxu0 %v1318
      %v1648 = vpop.f32.mrf.mxu0
      %v1649 = vadd.f32 %v1290, %v1648
      %v1650 = vpop.f32.mrf.mxu0
      %v1651 = vadd.f32 %v1290, %v1650
      %1652 = vmatprep.mubr.f32.mxu0 0.0
      %1653 = vmatmul.mubr.f32.gmra.mxu0 %v1321
      %v1654 = vpop.f32.mrf.mxu0
      %v1655 = vadd.f32 %v1295, %v1654
      %v1656 = vpop.f32.mrf.mxu0
      %v1657 = vadd.f32 %v1295, %v1656
      %1658 = vmatprep.mubr.f32.mxu0 0.0
      %1659 = vmatmul.mubr.f32.gmra.mxu0 %v1324
      %v1660 = vpop.f32.mrf.mxu0
      %v1661 = vadd.f32 %v1300, %v1660
      %v1662 = vpop.f32.mrf.mxu0
      %v1663 = vadd.f32 %v1300, %v1662
      %1664 = vdwg.mxu0
      %1665 = vmatprep.subr.mxu0 0.0
      %1666 = vmatpush1.msra.mxu0 0.0
      %1667 = vmatprep.subr.mxu0 0.0
      %1668 = vmatpush1.msra.mxu0 0.0
      %1669 = vmatprep.subr.mxu0 0.0
      %1670 = vmatpush1.msra.mxu0 0.0
      %1671 = vmatprep.subr.mxu0 0.0
      %1672 = vmatpush1.msra.mxu0 0.0
      %1673 = vmatprep.subr.mxu0 0.0
      %1674 = vmatpush1.msra.mxu0 0.0
      %1675 = vmatprep.subr.mxu0 0.0
      %1676 = vmatpush1.msra.mxu0 0.0
      %1677 = vmatprep.subr.mxu0 0.0
      %1678 = vmatpush1.msra.mxu0 0.0
      %1679 = vmatprep.subr.mxu0 0.0
      %1680 = vmatpush1.msra.mxu0 %v1253
      %1681 = vmatprep.subr.mxu0 0.0
      %1682 = vmatpush1.msra.mxu0 %v1246
      %1683 = vmatprep.subr.mxu0 0.0
      %1684 = vmatpush1.msra.mxu0 %v1239
      %1685 = vmatprep.subr.mxu0 0.0
      %1686 = vmatpush1.msra.mxu0 %v1232
      %1687 = vmatprep.subr.mxu0 0.0
      %1688 = vmatpush1.msra.mxu0 %v1225
      %1689 = vmatprep.subr.mxu0 0.0
      %1690 = vmatpush1.msra.mxu0 %v1218
      %1691 = vmatprep.subr.mxu0 0.0
      %1692 = vmatpush1.msra.mxu0 %v1211
      %1693 = vmatprep.subr.mxu0 0.0
      %1694 = vmatpush1.msra.mxu0 %v1204
      %1695 = vmatprep.subr.mxu0 0.0
      %1696 = vmatpush1.msra.mxu0 %v1197
      %1697 = vmatprep.subr.mxu0 0.0
      %1698 = vmatpush2.msra.mxu0 0.0
      %1699 = vmatprep.subr.mxu0 0.0
      %1700 = vmatpush2.msra.mxu0 0.0
      %1701 = vmatprep.subr.mxu0 0.0
      %1702 = vmatpush2.msra.mxu0 0.0
      %1703 = vmatprep.subr.mxu0 0.0
      %1704 = vmatpush2.msra.mxu0 0.0
      %1705 = vmatprep.subr.mxu0 0.0
      %1706 = vmatpush2.msra.mxu0 0.0
      %1707 = vmatprep.subr.mxu0 0.0
      %1708 = vmatpush2.msra.mxu0 0.0
      %1709 = vmatprep.subr.mxu0 0.0
      %1710 = vmatpush2.msra.mxu0 0.0
      %1711 = vmatprep.subr.mxu0 0.0
      %1712 = vmatpush2.msra.mxu0 0.0
      %1713 = vmatprep.subr.mxu0 0.0
      %1714 = vmatpush2.msra.mxu0 0.0
      %1715 = vmatprep.subr.mxu0 0.0
      %1716 = vmatpush2.msra.mxu0 0.0
      %1717 = vmatprep.subr.mxu0 0.0
      %1718 = vmatpush2.msra.mxu0 0.0
      %1719 = vmatprep.subr.mxu0 0.0
      %1720 = vmatpush2.msra.mxu0 0.0
      %1721 = vmatprep.subr.mxu0 0.0
      %1722 = vmatpush2.msra.mxu0 0.0
      %1723 = vmatprep.subr.mxu0 0.0
      %1724 = vmatpush2.msra.mxu0 0.0
      %1725 = vmatprep.subr.mxu0 0.0
      %1726 = vmatpush2.msra.mxu0 0.0
      %1727 = vmatprep.subr.mxu0 0.0
      %1728 = vmatpush2.msra.mxu0 0.0
      %1729 = vmatprep.mubr.f32.mxu0 0.0
      %1730 = vmatmul.mubr.f32.gmra.mxu0 %v1303
      %v1731 = vpop.f32.mrf.mxu0
      %v1732 = vadd.f32 %v1265, %v1731
      %v1733 = vpop.f32.mrf.mxu0
      %1734 = vmatprep.mubr.f32.mxu0 0.0
      %1735 = vmatmul.mubr.f32.gmra.mxu0 %v1306
      %v1736 = vpop.f32.mrf.mxu0
      %v1737 = vadd.f32 %v1270, %v1736
      %v1738 = vpop.f32.mrf.mxu0
      %1739 = vmatprep.mubr.f32.mxu0 0.0
      %1740 = vmatmul.mubr.f32.gmra.mxu0 %v1309
      %v1741 = vpop.f32.mrf.mxu0
      %v1742 = vadd.f32 %v1275, %v1741
      %v1743 = vpop.f32.mrf.mxu0
      %1744 = vmatprep.mubr.f32.mxu0 0.0
      %1745 = vmatmul.mubr.f32.gmra.mxu0 %v1312
      %v1746 = vpop.f32.mrf.mxu0
      %v1747 = vadd.f32 %v1280, %v1746
      %v1748 = vpop.f32.mrf.mxu0
      %1749 = vmatprep.mubr.f32.mxu0 0.0
      %1750 = vmatmul.mubr.f32.gmra.mxu0 %v1315
      %v1751 = vpop.f32.mrf.mxu0
      %v1752 = vadd.f32 %v1285, %v1751
      %v1753 = vpop.f32.mrf.mxu0
      %1754 = vmatprep.mubr.f32.mxu0 0.0
      %1755 = vmatmul.mubr.f32.gmra.mxu0 %v1318
      %v1756 = vpop.f32.mrf.mxu0
      %v1757 = vadd.f32 %v1290, %v1756
      %v1758 = vpop.f32.mrf.mxu0
      %1759 = vmatprep.mubr.f32.mxu0 0.0
      %1760 = vmatmul.mubr.f32.gmra.mxu0 %v1321
      %v1761 = vpop.f32.mrf.mxu0
      %v1762 = vadd.f32 %v1295, %v1761
      %v1763 = vpop.f32.mrf.mxu0
      %1764 = vmatprep.mubr.f32.mxu0 0.0
      %1765 = vmatmul.mubr.f32.gmra.mxu0 %v1324
      %v1766 = vpop.f32.mrf.mxu0
      %v1767 = vadd.f32 %v1300, %v1766
      %v1768 = vpop.f32.mrf.mxu0
      %1769 = vdwg.mxu0
      %v1770 = vmax.f32 %v1393, 0.0
      %v1771 = vmax.f32 %v1395, 0.0
      %v1772 = vmax.f32 %v1506, 0.0
      %v1773 = vmax.f32 %v1508, 0.0
      %v1774 = vmax.f32 %v1619, 0.0
      %v1775 = vmax.f32 %v1621, 0.0
      %v1776 = vmax.f32 %v1732, 0.0
      %v1777 = vmax.f32 %v1399, 0.0
      %v1778 = vmax.f32 %v1401, 0.0
      %v1779 = vmax.f32 %v1512, 0.0
      %v1780 = vmax.f32 %v1514, 0.0
      %v1781 = vmax.f32 %v1625, 0.0
      %v1782 = vmax.f32 %v1627, 0.0
      %v1783 = vmax.f32 %v1737, 0.0
      %v1784 = vmax.f32 %v1405, 0.0
      %v1785 = vmax.f32 %v1407, 0.0
      %v1786 = vmax.f32 %v1518, 0.0
      %v1787 = vmax.f32 %v1520, 0.0
      %v1788 = vmax.f32 %v1631, 0.0
      %v1789 = vmax.f32 %v1633, 0.0
      %v1790 = vmax.f32 %v1742, 0.0
      %v1791 = vmax.f32 %v1411, 0.0
      %v1792 = vmax.f32 %v1413, 0.0
      %v1793 = vmax.f32 %v1524, 0.0
      %v1794 = vmax.f32 %v1526, 0.0
      %v1795 = vmax.f32 %v1637, 0.0
      %v1796 = vmax.f32 %v1639, 0.0
      %v1797 = vmax.f32 %v1747, 0.0
      %v1798 = vmax.f32 %v1417, 0.0
      %v1799 = vmax.f32 %v1419, 0.0
      %v1800 = vmax.f32 %v1530, 0.0
      %v1801 = vmax.f32 %v1532, 0.0
      %v1802 = vmax.f32 %v1643, 0.0
      %v1803 = vmax.f32 %v1645, 0.0
      %v1804 = vmax.f32 %v1752, 0.0
      %v1805 = vmax.f32 %v1423, 0.0
      %v1806 = vmax.f32 %v1425, 0.0
      %v1807 = vmax.f32 %v1536, 0.0
      %v1808 = vmax.f32 %v1538, 0.0
      %v1809 = vmax.f32 %v1649, 0.0
      %v1810 = vmax.f32 %v1651, 0.0
      %v1811 = vmax.f32 %v1757, 0.0
      %v1812 = vmax.f32 %v1429, 0.0
      %v1813 = vmax.f32 %v1431, 0.0
      %v1814 = vmax.f32 %v1542, 0.0
      %v1815 = vmax.f32 %v1544, 0.0
      %v1816 = vmax.f32 %v1655, 0.0
      %v1817 = vmax.f32 %v1657, 0.0
      %v1818 = vmax.f32 %v1762, 0.0
      %v1819 = vmax.f32 %v1435, 0.0
      %v1820 = vmax.f32 %v1437, 0.0
      %v1821 = vmax.f32 %v1548, 0.0
      %v1822 = vmax.f32 %v1550, 0.0
      %v1823 = vmax.f32 %v1661, 0.0
      %v1824 = vmax.f32 %v1663, 0.0
      %v1825 = vmax.f32 %v1767, 0.0
      %v1826 = vmul.f32 %v1770, %v1770
      %v1827 = vmul.f32 %v1771, %v1771
      %v1828 = vmul.f32 %v1772, %v1772
      %v1829 = vmul.f32 %v1773, %v1773
      %v1830 = vmul.f32 %v1774, %v1774
      %v1831 = vmul.f32 %v1775, %v1775
      %v1832 = vmul.f32 %v1776, %v1776
      %v1833 = vmul.f32 %v1777, %v1777
      %v1834 = vmul.f32 %v1778, %v1778
      %v1835 = vmul.f32 %v1779, %v1779
      %v1836 = vmul.f32 %v1780, %v1780
      %v1837 = vmul.f32 %v1781, %v1781
      %v1838 = vmul.f32 %v1782, %v1782
      %v1839 = vmul.f32 %v1783, %v1783
      %v1840 = vmul.f32 %v1784, %v1784
      %v1841 = vmul.f32 %v1785, %v1785
      %v1842 = vmul.f32 %v1786, %v1786
      %v1843 = vmul.f32 %v1787, %v1787
      %v1844 = vmul.f32 %v1788, %v1788
      %v1845 = vmul.f32 %v1789, %v1789
      %v1846 = vmul.f32 %v1790, %v1790
      %v1847 = vmul.f32 %v1791, %v1791
      %v1848 = vmul.f32 %v1792, %v1792
      %v1849 = vmul.f32 %v1793, %v1793
      %v1850 = vmul.f32 %v1794, %v1794
      %v1851 = vmul.f32 %v1795, %v1795
      %v1852 = vmul.f32 %v1796, %v1796
      %v1853 = vmul.f32 %v1797, %v1797
      %v1854 = vmul.f32 %v1798, %v1798
      %v1855 = vmul.f32 %v1799, %v1799
      %v1856 = vmul.f32 %v1800, %v1800
      %v1857 = vmul.f32 %v1801, %v1801
      %v1858 = vmul.f32 %v1802, %v1802
      %v1859 = vmul.f32 %v1803, %v1803
      %v1860 = vmul.f32 %v1804, %v1804
      %v1861 = vmul.f32 %v1805, %v1805
      %v1862 = vmul.f32 %v1806, %v1806
      %v1863 = vmul.f32 %v1807, %v1807
      %v1864 = vmul.f32 %v1808, %v1808
      %v1865 = vmul.f32 %v1809, %v1809
      %v1866 = vmul.f32 %v1810, %v1810
      %v1867 = vmul.f32 %v1811, %v1811
      %v1868 = vmul.f32 %v1812, %v1812
      %v1869 = vmul.f32 %v1813, %v1813
      %v1870 = vmul.f32 %v1814, %v1814
      %v1871 = vmul.f32 %v1815, %v1815
      %v1872 = vmul.f32 %v1816, %v1816
      %v1873 = vmul.f32 %v1817, %v1817
      %v1874 = vmul.f32 %v1818, %v1818
      %v1875 = vmul.f32 %v1819, %v1819
      %v1876 = vmul.f32 %v1820, %v1820
      %v1877 = vmul.f32 %v1821, %v1821
      %v1878 = vmul.f32 %v1822, %v1822
      %v1879 = vmul.f32 %v1823, %v1823
      %v1880 = vmul.f32 %v1824, %v1824
      %v1881 = vmul.f32 %v1825, %v1825
      %1882 = vst [vmem:[%s458] sm:$0xff] %v1826
      %1883 = vst [vmem:[%s458 + $0x8] sm:$0xff] %v1827
      %1884 = vst [vmem:[%s458 + $0x10] sm:$0xff] %v1828
      %1885 = vst [vmem:[%s458 + $0x18] sm:$0xff] %v1829
      %1886 = vst [vmem:[%s458 + $0x20] sm:$0xff] %v1830
      %1887 = vst [vmem:[%s458 + $0x28] sm:$0xff] %v1831
      %1888 = vst.msk [vmem:[%s458 + $0x30] sm:$0xff] %vm585, %v1832
      %1889 = vst [vmem:[%s458 + $0x38] sm:$0xff] %v1833
      %1890 = vst [vmem:[%s458 + $0x40] sm:$0xff] %v1834
      %1891 = vst [vmem:[%s458 + $0x48] sm:$0xff] %v1835
      %1892 = vst [vmem:[%s458 + $0x50] sm:$0xff] %v1836
      %1893 = vst [vmem:[%s458 + $0x58] sm:$0xff] %v1837
      %1894 = vst [vmem:[%s458 + $0x60] sm:$0xff] %v1838
      %1895 = vst.msk [vmem:[%s458 + $0x68] sm:$0xff] %vm585, %v1839
      %1896 = vst [vmem:[%s458 + $0x70] sm:$0xff] %v1840
      %1897 = vst [vmem:[%s458 + $0x78] sm:$0xff] %v1841
      %1898 = vst [vmem:[%s458 + $0x80] sm:$0xff] %v1842
      %1899 = vst [vmem:[%s458 + $0x88] sm:$0xff] %v1843
      %1900 = vst [vmem:[%s458 + $0x90] sm:$0xff] %v1844
      %1901 = vst [vmem:[%s458 + $0x98] sm:$0xff] %v1845
      %1902 = vst.msk [vmem:[%s458 + $0xa0] sm:$0xff] %vm585, %v1846
      %1903 = vst [vmem:[%s458 + $0xa8] sm:$0xff] %v1847
      %1904 = vst [vmem:[%s458 + $0xb0] sm:$0xff] %v1848
      %1905 = vst [vmem:[%s458 + $0xb8] sm:$0xff] %v1849
      %1906 = vst [vmem:[%s458 + $0xc0] sm:$0xff] %v1850
      %1907 = vst [vmem:[%s458 + $0xc8] sm:$0xff] %v1851
      %1908 = vst [vmem:[%s458 + $0xd0] sm:$0xff] %v1852
      %1909 = vst.msk [vmem:[%s458 + $0xd8] sm:$0xff] %vm585, %v1853
      %1910 = vst [vmem:[%s458 + $0xe0] sm:$0xff] %v1854
      %1911 = vst [vmem:[%s458 + $0xe8] sm:$0xff] %v1855
      %1912 = vst [vmem:[%s458 + $0xf0] sm:$0xff] %v1856
      %1913 = vst [vmem:[%s458 + $0xf8] sm:$0xff] %v1857
      %1914 = vst [vmem:[%s458 + $0x100] sm:$0xff] %v1858
      %1915 = vst [vmem:[%s458 + $0x108] sm:$0xff] %v1859
      %1916 = vst.msk [vmem:[%s458 + $0x110] sm:$0xff] %vm585, %v1860
      %1917 = vst [vmem:[%s458 + $0x118] sm:$0xff] %v1861
      %1918 = vst [vmem:[%s458 + $0x120] sm:$0xff] %v1862
      %1919 = vst [vmem:[%s458 + $0x128] sm:$0xff] %v1863
      %1920 = vst [vmem:[%s458 + $0x130] sm:$0xff] %v1864
      %1921 = vst [vmem:[%s458 + $0x138] sm:$0xff] %v1865
      %1922 = vst [vmem:[%s458 + $0x140] sm:$0xff] %v1866
      %1923 = vst.msk [vmem:[%s458 + $0x148] sm:$0xff] %vm585, %v1867
      %1924 = vst [vmem:[%s458 + $0x150] sm:$0xff] %v1868
      %1925 = vst [vmem:[%s458 + $0x158] sm:$0xff] %v1869
      %1926 = vst [vmem:[%s458 + $0x160] sm:$0xff] %v1870
      %1927 = vst [vmem:[%s458 + $0x168] sm:$0xff] %v1871
      %1928 = vst [vmem:[%s458 + $0x170] sm:$0xff] %v1872
      %1929 = vst [vmem:[%s458 + $0x178] sm:$0xff] %v1873
      %1930 = vst.msk [vmem:[%s458 + $0x180] sm:$0xff] %vm585, %v1874
      %1931 = vst [vmem:[%s458 + $0x188] sm:$0xff] %v1875
      %1932 = vst [vmem:[%s458 + $0x190] sm:$0xff] %v1876
      %1933 = vst [vmem:[%s458 + $0x198] sm:$0xff] %v1877
      %1934 = vst [vmem:[%s458 + $0x1a0] sm:$0xff] %v1878
      %1935 = vst [vmem:[%s458 + $0x1a8] sm:$0xff] %v1879
      %1936 = vst [vmem:[%s458 + $0x1b0] sm:$0xff] %v1880
      %1937 = vst.msk [vmem:[%s458 + $0x1b8] sm:$0xff] %vm585, %v1881
      %v1938 = vld [vmem:[%s458] sm:$0xff]
      %v1939 = vld [vmem:[%s458 + $0x8] sm:$0xff]
      %v1940 = vld [vmem:[%s458 + $0x10] sm:$0xff]
      %v1941 = vld [vmem:[%s458 + $0x18] sm:$0xff]
      %v1942 = vld [vmem:[%s458 + $0x20] sm:$0xff]
      %v1943 = vld [vmem:[%s458 + $0x28] sm:$0xff]
      %v1944 = vld [vmem:[%s458 + $0x30] sm:$0xff]
      %v1945 = vld [vmem:[%s458 + $0x38] sm:$0xff]
      %v1946 = vld [vmem:[%s458 + $0x40] sm:$0xff]
      %v1947 = vld [vmem:[%s458 + $0x48] sm:$0xff]
      %v1948 = vld [vmem:[%s458 + $0x50] sm:$0xff]
      %v1949 = vld [vmem:[%s458 + $0x58] sm:$0xff]
      %v1950 = vld [vmem:[%s458 + $0x60] sm:$0xff]
      %v1951 = vld [vmem:[%s458 + $0x68] sm:$0xff]
      %v1952 = vld [vmem:[%s458 + $0x70] sm:$0xff]
      %v1953 = vld [vmem:[%s458 + $0x78] sm:$0xff]
      %v1954 = vld [vmem:[%s458 + $0x80] sm:$0xff]
      %v1955 = vld [vmem:[%s458 + $0x88] sm:$0xff]
      %v1956 = vld [vmem:[%s458 + $0x90] sm:$0xff]
      %v1957 = vld [vmem:[%s458 + $0x98] sm:$0xff]
      %v1958 = vld [vmem:[%s458 + $0xa0] sm:$0xff]
      %v1959 = vld [vmem:[%s458 + $0xa8] sm:$0xff]
      %v1960 = vld [vmem:[%s458 + $0xb0] sm:$0xff]
      %v1961 = vld [vmem:[%s458 + $0xb8] sm:$0xff]
      %v1962 = vld [vmem:[%s458 + $0xc0] sm:$0xff]
      %v1963 = vld [vmem:[%s458 + $0xc8] sm:$0xff]
      %v1964 = vld [vmem:[%s458 + $0xd0] sm:$0xff]
      %v1965 = vld [vmem:[%s458 + $0xd8] sm:$0xff]
      %v1966 = vld [vmem:[%s458 + $0xe0] sm:$0xff]
      %v1967 = vld [vmem:[%s458 + $0xe8] sm:$0xff]
      %v1968 = vld [vmem:[%s458 + $0xf0] sm:$0xff]
      %v1969 = vld [vmem:[%s458 + $0xf8] sm:$0xff]
      %v1970 = vld [vmem:[%s458 + $0x100] sm:$0xff]
      %v1971 = vld [vmem:[%s458 + $0x108] sm:$0xff]
      %v1972 = vld [vmem:[%s458 + $0x110] sm:$0xff]
      %v1973 = vld [vmem:[%s458 + $0x118] sm:$0xff]
      %v1974 = vld [vmem:[%s458 + $0x120] sm:$0xff]
      %v1975 = vld [vmem:[%s458 + $0x128] sm:$0xff]
      %v1976 = vld [vmem:[%s458 + $0x130] sm:$0xff]
      %v1977 = vld [vmem:[%s458 + $0x138] sm:$0xff]
      %v1978 = vld [vmem:[%s458 + $0x140] sm:$0xff]
      %v1979 = vld [vmem:[%s458 + $0x148] sm:$0xff]
      %v1980 = vld [vmem:[%s458 + $0x150] sm:$0xff]
      %v1981 = vld [vmem:[%s458 + $0x158] sm:$0xff]
      %v1982 = vld [vmem:[%s458 + $0x160] sm:$0xff]
      %v1983 = vld [vmem:[%s458 + $0x168] sm:$0xff]
      %v1984 = vld [vmem:[%s458 + $0x170] sm:$0xff]
      %v1985 = vld [vmem:[%s458 + $0x178] sm:$0xff]
      %v1986 = vld [vmem:[%s458 + $0x180] sm:$0xff]
      %v1987 = vld [vmem:[%s458 + $0x188] sm:$0xff]
      %v1988 = vld [vmem:[%s458 + $0x190] sm:$0xff]
      %v1989 = vld [vmem:[%s458 + $0x198] sm:$0xff]
      %v1990 = vld [vmem:[%s458 + $0x1a0] sm:$0xff]
      %v1991 = vld [vmem:[%s458 + $0x1a8] sm:$0xff]
      %v1992 = vld [vmem:[%s458 + $0x1b0] sm:$0xff]
      %v1993 = vld [vmem:[%s458 + $0x1b8] sm:$0xff]
      %2050 = vrot.lane.b32.xlu0 %v1938, 127
      %v2051 = vpop.permute.xlu0 %2050
      %2052 = vrot.lane.b32.xlu0 %v1939, 127
      %v2053 = vpop.permute.xlu0 %2052
      %2054 = vrot.lane.b32.xlu0 %v1940, 127
      %v2055 = vpop.permute.xlu0 %2054
      %2056 = vrot.lane.b32.xlu0 %v1941, 127
      %v2057 = vpop.permute.xlu0 %2056
      %2058 = vrot.lane.b32.xlu0 %v1942, 127
      %v2059 = vpop.permute.xlu0 %2058
      %2060 = vrot.lane.b32.xlu0 %v1943, 127
      %v2061 = vpop.permute.xlu0 %2060
      %2062 = vrot.lane.b32.xlu0 %v1944, 127
      %v2063 = vpop.permute.xlu0 %2062
      %2064 = vrot.lane.b32.xlu0 %v1945, 127
      %v2065 = vpop.permute.xlu0 %2064
      %2066 = vrot.lane.b32.xlu0 %v1946, 127
      %v2067 = vpop.permute.xlu0 %2066
      %2068 = vrot.lane.b32.xlu0 %v1947, 127
      %v2069 = vpop.permute.xlu0 %2068
      %2070 = vrot.lane.b32.xlu0 %v1948, 127
      %v2071 = vpop.permute.xlu0 %2070
      %2072 = vrot.lane.b32.xlu0 %v1949, 127
      %v2073 = vpop.permute.xlu0 %2072
      %2074 = vrot.lane.b32.xlu0 %v1950, 127
      %v2075 = vpop.permute.xlu0 %2074
      %2076 = vrot.lane.b32.xlu0 %v1951, 127
      %v2077 = vpop.permute.xlu0 %2076
      %2078 = vrot.lane.b32.xlu0 %v1952, 127
      %v2079 = vpop.permute.xlu0 %2078
      %2080 = vrot.lane.b32.xlu0 %v1953, 127
      %v2081 = vpop.permute.xlu0 %2080
      %2082 = vrot.lane.b32.xlu0 %v1954, 127
      %v2083 = vpop.permute.xlu0 %2082
      %2084 = vrot.lane.b32.xlu0 %v1955, 127
      %v2085 = vpop.permute.xlu0 %2084
      %2086 = vrot.lane.b32.xlu0 %v1956, 127
      %v2087 = vpop.permute.xlu0 %2086
      %2088 = vrot.lane.b32.xlu0 %v1957, 127
      %v2089 = vpop.permute.xlu0 %2088
      %2090 = vrot.lane.b32.xlu0 %v1958, 127
      %v2091 = vpop.permute.xlu0 %2090
      %2092 = vrot.lane.b32.xlu0 %v1959, 127
      %v2093 = vpop.permute.xlu0 %2092
      %2094 = vrot.lane.b32.xlu0 %v1960, 127
      %v2095 = vpop.permute.xlu0 %2094
      %2096 = vrot.lane.b32.xlu0 %v1961, 127
      %v2097 = vpop.permute.xlu0 %2096
      %2098 = vrot.lane.b32.xlu0 %v1962, 127
      %v2099 = vpop.permute.xlu0 %2098
      %2100 = vrot.lane.b32.xlu0 %v1963, 127
      %v2101 = vpop.permute.xlu0 %2100
      %2102 = vrot.lane.b32.xlu0 %v1964, 127
      %v2103 = vpop.permute.xlu0 %2102
      %2104 = vrot.lane.b32.xlu0 %v1965, 127
      %v2105 = vpop.permute.xlu0 %2104
      %2106 = vrot.lane.b32.xlu0 %v1966, 127
      %v2107 = vpop.permute.xlu0 %2106
      %2108 = vrot.lane.b32.xlu0 %v1967, 127
      %v2109 = vpop.permute.xlu0 %2108
      %2110 = vrot.lane.b32.xlu0 %v1968, 127
      %v2111 = vpop.permute.xlu0 %2110
      %2112 = vrot.lane.b32.xlu0 %v1969, 127
      %v2113 = vpop.permute.xlu0 %2112
      %2114 = vrot.lane.b32.xlu0 %v1970, 127
      %v2115 = vpop.permute.xlu0 %2114
      %2116 = vrot.lane.b32.xlu0 %v1971, 127
      %v2117 = vpop.permute.xlu0 %2116
      %2118 = vrot.lane.b32.xlu0 %v1972, 127
      %v2119 = vpop.permute.xlu0 %2118
      %2120 = vrot.lane.b32.xlu0 %v1973, 127
      %v2121 = vpop.permute.xlu0 %2120
      %2122 = vrot.lane.b32.xlu0 %v1974, 127
      %v2123 = vpop.permute.xlu0 %2122
      %2124 = vrot.lane.b32.xlu0 %v1975, 127
      %v2125 = vpop.permute.xlu0 %2124
      %2126 = vrot.lane.b32.xlu0 %v1976, 127
      %v2127 = vpop.permute.xlu0 %2126
      %2128 = vrot.lane.b32.xlu0 %v1977, 127
      %v2129 = vpop.permute.xlu0 %2128
      %2130 = vrot.lane.b32.xlu0 %v1978, 127
      %v2131 = vpop.permute.xlu0 %2130
      %2132 = vrot.lane.b32.xlu0 %v1979, 127
      %v2133 = vpop.permute.xlu0 %2132
      %2134 = vrot.lane.b32.xlu0 %v1980, 127
      %v2135 = vpop.permute.xlu0 %2134
      %2136 = vrot.lane.b32.xlu0 %v1981, 127
      %v2137 = vpop.permute.xlu0 %2136
      %2138 = vrot.lane.b32.xlu0 %v1982, 127
      %v2139 = vpop.permute.xlu0 %2138
      %2140 = vrot.lane.b32.xlu0 %v1983, 127
      %v2141 = vpop.permute.xlu0 %2140
      %2142 = vrot.lane.b32.xlu0 %v1984, 127
      %v2143 = vpop.permute.xlu0 %2142
      %2144 = vrot.lane.b32.xlu0 %v1985, 127
      %v2145 = vpop.permute.xlu0 %2144
      %2146 = vrot.lane.b32.xlu0 %v1986, 127
      %v2147 = vpop.permute.xlu0 %2146
      %2148 = vrot.lane.b32.xlu0 %v1987, 127
      %v2149 = vpop.permute.xlu0 %2148
      %2150 = vrot.lane.b32.xlu0 %v1988, 127
      %v2151 = vpop.permute.xlu0 %2150
      %2152 = vrot.lane.b32.xlu0 %v1989, 127
      %v2153 = vpop.permute.xlu0 %2152
      %2154 = vrot.lane.b32.xlu0 %v1990, 127
      %v2155 = vpop.permute.xlu0 %2154
      %2156 = vrot.lane.b32.xlu0 %v1991, 127
      %v2157 = vpop.permute.xlu0 %2156
      %2158 = vrot.lane.b32.xlu0 %v1992, 127
      %v2159 = vpop.permute.xlu0 %2158
      %2160 = vrot.lane.b32.xlu0 %v1993, 127
      %v2161 = vpop.permute.xlu0 %2160
      %v2162 = vsel %vm615, %v2051, %v2053
      %v2163 = vsel %vm615, %v2053, %v2055
      %v2164 = vsel %vm615, %v2055, %v2057
      %v2165 = vsel %vm615, %v2057, %v2059
      %v2166 = vsel %vm615, %v2059, %v2061
      %v2167 = vsel %vm615, %v2061, %v2063
      %v2168 = vsel %vm615, %v2065, %v2067
      %v2169 = vsel %vm615, %v2067, %v2069
      %v2170 = vsel %vm615, %v2069, %v2071
      %v2171 = vsel %vm615, %v2071, %v2073
      %v2172 = vsel %vm615, %v2073, %v2075
      %v2173 = vsel %vm615, %v2075, %v2077
      %v2174 = vsel %vm615, %v2079, %v2081
      %v2175 = vsel %vm615, %v2081, %v2083
      %v2176 = vsel %vm615, %v2083, %v2085
      %v2177 = vsel %vm615, %v2085, %v2087
      %v2178 = vsel %vm615, %v2087, %v2089
      %v2179 = vsel %vm615, %v2089, %v2091
      %v2180 = vsel %vm615, %v2093, %v2095
      %v2181 = vsel %vm615, %v2095, %v2097
      %v2182 = vsel %vm615, %v2097, %v2099
      %v2183 = vsel %vm615, %v2099, %v2101
      %v2184 = vsel %vm615, %v2101, %v2103
      %v2185 = vsel %vm615, %v2103, %v2105
      %v2186 = vsel %vm615, %v2107, %v2109
      %v2187 = vsel %vm615, %v2109, %v2111
      %v2188 = vsel %vm615, %v2111, %v2113
      %v2189 = vsel %vm615, %v2113, %v2115
      %v2190 = vsel %vm615, %v2115, %v2117
      %v2191 = vsel %vm615, %v2117, %v2119
      %v2192 = vsel %vm615, %v2121, %v2123
      %v2193 = vsel %vm615, %v2123, %v2125
      %v2194 = vsel %vm615, %v2125, %v2127
      %v2195 = vsel %vm615, %v2127, %v2129
      %v2196 = vsel %vm615, %v2129, %v2131
      %v2197 = vsel %vm615, %v2131, %v2133
      %v2198 = vsel %vm615, %v2135, %v2137
      %v2199 = vsel %vm615, %v2137, %v2139
      %v2200 = vsel %vm615, %v2139, %v2141
      %v2201 = vsel %vm615, %v2141, %v2143
      %v2202 = vsel %vm615, %v2143, %v2145
      %v2203 = vsel %vm615, %v2145, %v2147
      %v2204 = vsel %vm615, %v2149, %v2151
      %v2205 = vsel %vm615, %v2151, %v2153
      %v2206 = vsel %vm615, %v2153, %v2155
      %v2207 = vsel %vm615, %v2155, %v2157
      %v2208 = vsel %vm615, %v2157, %v2159
      %v2209 = vsel %vm615, %v2159, %v2161
      %v2266 = vmax.f32 %v1938, %v2162
      %v2267 = vmax.f32 %v1939, %v2163
      %v2268 = vmax.f32 %v1940, %v2164
      %v2269 = vmax.f32 %v1941, %v2165
      %v2270 = vmax.f32 %v1942, %v2166
      %v2271 = vmax.f32 %v1943, %v2167
      %v2272 = vmax.f32 %v1944, %v2063
      %v2273 = vmax.f32 %v1945, %v2168
      %v2274 = vmax.f32 %v1946, %v2169
      %v2275 = vmax.f32 %v1947, %v2170
      %v2276 = vmax.f32 %v1948, %v2171
      %v2277 = vmax.f32 %v1949, %v2172
      %v2278 = vmax.f32 %v1950, %v2173
      %v2279 = vmax.f32 %v1951, %v2077
      %v2280 = vmax.f32 %v1952, %v2174
      %v2281 = vmax.f32 %v1953, %v2175
      %v2282 = vmax.f32 %v1954, %v2176
      %v2283 = vmax.f32 %v1955, %v2177
      %v2284 = vmax.f32 %v1956, %v2178
      %v2285 = vmax.f32 %v1957, %v2179
      %v2286 = vmax.f32 %v1958, %v2091
      %v2287 = vmax.f32 %v1959, %v2180
      %v2288 = vmax.f32 %v1960, %v2181
      %v2289 = vmax.f32 %v1961, %v2182
      %v2290 = vmax.f32 %v1962, %v2183
      %v2291 = vmax.f32 %v1963, %v2184
      %v2292 = vmax.f32 %v1964, %v2185
      %v2293 = vmax.f32 %v1965, %v2105
      %v2294 = vmax.f32 %v1966, %v2186
      %v2295 = vmax.f32 %v1967, %v2187
      %v2296 = vmax.f32 %v1968, %v2188
      %v2297 = vmax.f32 %v1969, %v2189
      %v2298 = vmax.f32 %v1970, %v2190
      %v2299 = vmax.f32 %v1971, %v2191
      %v2300 = vmax.f32 %v1972, %v2119
      %v2301 = vmax.f32 %v1973, %v2192
      %v2302 = vmax.f32 %v1974, %v2193
      %v2303 = vmax.f32 %v1975, %v2194
      %v2304 = vmax.f32 %v1976, %v2195
      %v2305 = vmax.f32 %v1977, %v2196
      %v2306 = vmax.f32 %v1978, %v2197
      %v2307 = vmax.f32 %v1979, %v2133
      %v2308 = vmax.f32 %v1980, %v2198
      %v2309 = vmax.f32 %v1981, %v2199
      %v2310 = vmax.f32 %v1982, %v2200
      %v2311 = vmax.f32 %v1983, %v2201
      %v2312 = vmax.f32 %v1984, %v2202
      %v2313 = vmax.f32 %v1985, %v2203
      %v2314 = vmax.f32 %v1986, %v2147
      %v2315 = vmax.f32 %v1987, %v2204
      %v2316 = vmax.f32 %v1988, %v2205
      %v2317 = vmax.f32 %v1989, %v2206
      %v2318 = vmax.f32 %v1990, %v2207
      %v2319 = vmax.f32 %v1991, %v2208
      %v2320 = vmax.f32 %v1992, %v2209
      %v2321 = vmax.f32 %v1993, %v2161
      %2378 = vrot.lane.b32.xlu0 %v2266, 100
      %v2379 = vpop.permute.xlu0 %2378
      %2380 = vrot.lane.b32.xlu0 %v2267, 100
      %v2381 = vpop.permute.xlu0 %2380
      %2382 = vrot.lane.b32.xlu0 %v2268, 100
      %v2383 = vpop.permute.xlu0 %2382
      %2384 = vrot.lane.b32.xlu0 %v2269, 100
      %v2385 = vpop.permute.xlu0 %2384
      %2386 = vrot.lane.b32.xlu0 %v2270, 100
      %v2387 = vpop.permute.xlu0 %2386
      %2388 = vrot.lane.b32.xlu0 %v2271, 100
      %v2389 = vpop.permute.xlu0 %2388
      %2390 = vrot.lane.b32.xlu0 %v2272, 100
      %v2391 = vpop.permute.xlu0 %2390
      %2392 = vrot.lane.b32.xlu0 %v2273, 100
      %v2393 = vpop.permute.xlu0 %2392
      %2394 = vrot.lane.b32.xlu0 %v2274, 100
      %v2395 = vpop.permute.xlu0 %2394
      %2396 = vrot.lane.b32.xlu0 %v2275, 100
      %v2397 = vpop.permute.xlu0 %2396
      %2398 = vrot.lane.b32.xlu0 %v2276, 100
      %v2399 = vpop.permute.xlu0 %2398
      %2400 = vrot.lane.b32.xlu0 %v2277, 100
      %v2401 = vpop.permute.xlu0 %2400
      %2402 = vrot.lane.b32.xlu0 %v2278, 100
      %v2403 = vpop.permute.xlu0 %2402
      %2404 = vrot.lane.b32.xlu0 %v2279, 100
      %v2405 = vpop.permute.xlu0 %2404
      %2406 = vrot.lane.b32.xlu0 %v2280, 100
      %v2407 = vpop.permute.xlu0 %2406
      %2408 = vrot.lane.b32.xlu0 %v2281, 100
      %v2409 = vpop.permute.xlu0 %2408
      %2410 = vrot.lane.b32.xlu0 %v2282, 100
      %v2411 = vpop.permute.xlu0 %2410
      %2412 = vrot.lane.b32.xlu0 %v2283, 100
      %v2413 = vpop.permute.xlu0 %2412
      %2414 = vrot.lane.b32.xlu0 %v2284, 100
      %v2415 = vpop.permute.xlu0 %2414
      %2416 = vrot.lane.b32.xlu0 %v2285, 100
      %v2417 = vpop.permute.xlu0 %2416
      %2418 = vrot.lane.b32.xlu0 %v2286, 100
      %v2419 = vpop.permute.xlu0 %2418
      %2420 = vrot.lane.b32.xlu0 %v2287, 100
      %v2421 = vpop.permute.xlu0 %2420
      %2422 = vrot.lane.b32.xlu0 %v2288, 100
      %v2423 = vpop.permute.xlu0 %2422
      %2424 = vrot.lane.b32.xlu0 %v2289, 100
      %v2425 = vpop.permute.xlu0 %2424
      %2426 = vrot.lane.b32.xlu0 %v2290, 100
      %v2427 = vpop.permute.xlu0 %2426
      %2428 = vrot.lane.b32.xlu0 %v2291, 100
      %v2429 = vpop.permute.xlu0 %2428
      %2430 = vrot.lane.b32.xlu0 %v2292, 100
      %v2431 = vpop.permute.xlu0 %2430
      %2432 = vrot.lane.b32.xlu0 %v2293, 100
      %v2433 = vpop.permute.xlu0 %2432
      %2434 = vrot.lane.b32.xlu0 %v2294, 100
      %v2435 = vpop.permute.xlu0 %2434
      %2436 = vrot.lane.b32.xlu0 %v2295, 100
      %v2437 = vpop.permute.xlu0 %2436
      %2438 = vrot.lane.b32.xlu0 %v2296, 100
      %v2439 = vpop.permute.xlu0 %2438
      %2440 = vrot.lane.b32.xlu0 %v2297, 100
      %v2441 = vpop.permute.xlu0 %2440
      %2442 = vrot.lane.b32.xlu0 %v2298, 100
      %v2443 = vpop.permute.xlu0 %2442
      %2444 = vrot.lane.b32.xlu0 %v2299, 100
      %v2445 = vpop.permute.xlu0 %2444
      %2446 = vrot.lane.b32.xlu0 %v2300, 100
      %v2447 = vpop.permute.xlu0 %2446
      %2448 = vrot.lane.b32.xlu0 %v2301, 100
      %v2449 = vpop.permute.xlu0 %2448
      %2450 = vrot.lane.b32.xlu0 %v2302, 100
      %v2451 = vpop.permute.xlu0 %2450
      %2452 = vrot.lane.b32.xlu0 %v2303, 100
      %v2453 = vpop.permute.xlu0 %2452
      %2454 = vrot.lane.b32.xlu0 %v2304, 100
      %v2455 = vpop.permute.xlu0 %2454
      %2456 = vrot.lane.b32.xlu0 %v2305, 100
      %v2457 = vpop.permute.xlu0 %2456
      %2458 = vrot.lane.b32.xlu0 %v2306, 100
      %v2459 = vpop.permute.xlu0 %2458
      %2460 = vrot.lane.b32.xlu0 %v2307, 100
      %v2461 = vpop.permute.xlu0 %2460
      %2462 = vrot.lane.b32.xlu0 %v2308, 100
      %v2463 = vpop.permute.xlu0 %2462
      %2464 = vrot.lane.b32.xlu0 %v2309, 100
      %v2465 = vpop.permute.xlu0 %2464
      %2466 = vrot.lane.b32.xlu0 %v2310, 100
      %v2467 = vpop.permute.xlu0 %2466
      %2468 = vrot.lane.b32.xlu0 %v2311, 100
      %v2469 = vpop.permute.xlu0 %2468
      %2470 = vrot.lane.b32.xlu0 %v2312, 100
      %v2471 = vpop.permute.xlu0 %2470
      %2472 = vrot.lane.b32.xlu0 %v2313, 100
      %v2473 = vpop.permute.xlu0 %2472
      %2474 = vrot.lane.b32.xlu0 %v2314, 100
      %v2475 = vpop.permute.xlu0 %2474
      %2476 = vrot.lane.b32.xlu0 %v2315, 100
      %v2477 = vpop.permute.xlu0 %2476
      %2478 = vrot.lane.b32.xlu0 %v2316, 100
      %v2479 = vpop.permute.xlu0 %2478
      %2480 = vrot.lane.b32.xlu0 %v2317, 100
      %v2481 = vpop.permute.xlu0 %2480
      %2482 = vrot.lane.b32.xlu0 %v2318, 100
      %v2483 = vpop.permute.xlu0 %2482
      %2484 = vrot.lane.b32.xlu0 %v2319, 100
      %v2485 = vpop.permute.xlu0 %2484
      %2486 = vrot.lane.b32.xlu0 %v2320, 100
      %v2487 = vpop.permute.xlu0 %2486
      %2488 = vrot.lane.b32.xlu0 %v2321, 100
      %v2489 = vpop.permute.xlu0 %2488
      %v2490 = vsel %vm812, %v2379, %v2381
      %v2491 = vsel %vm812, %v2381, %v2383
      %v2492 = vsel %vm812, %v2383, %v2385
      %v2493 = vsel %vm812, %v2385, %v2387
      %v2494 = vsel %vm812, %v2387, %v2389
      %v2495 = vsel %vm812, %v2389, %v2391
      %v2496 = vsel %vm812, %v2393, %v2395
      %v2497 = vsel %vm812, %v2395, %v2397
      %v2498 = vsel %vm812, %v2397, %v2399
      %v2499 = vsel %vm812, %v2399, %v2401
      %v2500 = vsel %vm812, %v2401, %v2403
      %v2501 = vsel %vm812, %v2403, %v2405
      %v2502 = vsel %vm812, %v2407, %v2409
      %v2503 = vsel %vm812, %v2409, %v2411
      %v2504 = vsel %vm812, %v2411, %v2413
      %v2505 = vsel %vm812, %v2413, %v2415
      %v2506 = vsel %vm812, %v2415, %v2417
      %v2507 = vsel %vm812, %v2417, %v2419
      %v2508 = vsel %vm812, %v2421, %v2423
      %v2509 = vsel %vm812, %v2423, %v2425
      %v2510 = vsel %vm812, %v2425, %v2427
      %v2511 = vsel %vm812, %v2427, %v2429
      %v2512 = vsel %vm812, %v2429, %v2431
      %v2513 = vsel %vm812, %v2431, %v2433
      %v2514 = vsel %vm812, %v2435, %v2437
      %v2515 = vsel %vm812, %v2437, %v2439
      %v2516 = vsel %vm812, %v2439, %v2441
      %v2517 = vsel %vm812, %v2441, %v2443
      %v2518 = vsel %vm812, %v2443, %v2445
      %v2519 = vsel %vm812, %v2445, %v2447
      %v2520 = vsel %vm812, %v2449, %v2451
      %v2521 = vsel %vm812, %v2451, %v2453
      %v2522 = vsel %vm812, %v2453, %v2455
      %v2523 = vsel %vm812, %v2455, %v2457
      %v2524 = vsel %vm812, %v2457, %v2459
      %v2525 = vsel %vm812, %v2459, %v2461
      %v2526 = vsel %vm812, %v2463, %v2465
      %v2527 = vsel %vm812, %v2465, %v2467
      %v2528 = vsel %vm812, %v2467, %v2469
      %v2529 = vsel %vm812, %v2469, %v2471
      %v2530 = vsel %vm812, %v2471, %v2473
      %v2531 = vsel %vm812, %v2473, %v2475
      %v2532 = vsel %vm812, %v2477, %v2479
      %v2533 = vsel %vm812, %v2479, %v2481
      %v2534 = vsel %vm812, %v2481, %v2483
      %v2535 = vsel %vm812, %v2483, %v2485
      %v2536 = vsel %vm812, %v2485, %v2487
      %v2537 = vsel %vm812, %v2487, %v2489
      %v2586 = vmax.f32 %v2266, %v2490
      %v2587 = vmax.f32 %v2267, %v2491
      %v2588 = vmax.f32 %v2268, %v2492
      %v2589 = vmax.f32 %v2269, %v2493
      %v2590 = vmax.f32 %v2270, %v2494
      %v2591 = vmax.f32 %v2271, %v2495
      %v2592 = vmax.f32 %v2273, %v2496
      %v2593 = vmax.f32 %v2274, %v2497
      %v2594 = vmax.f32 %v2275, %v2498
      %v2595 = vmax.f32 %v2276, %v2499
      %v2596 = vmax.f32 %v2277, %v2500
      %v2597 = vmax.f32 %v2278, %v2501
      %v2598 = vmax.f32 %v2280, %v2502
      %v2599 = vmax.f32 %v2281, %v2503
      %v2600 = vmax.f32 %v2282, %v2504
      %v2601 = vmax.f32 %v2283, %v2505
      %v2602 = vmax.f32 %v2284, %v2506
      %v2603 = vmax.f32 %v2285, %v2507
      %v2604 = vmax.f32 %v2287, %v2508
      %v2605 = vmax.f32 %v2288, %v2509
      %v2606 = vmax.f32 %v2289, %v2510
      %v2607 = vmax.f32 %v2290, %v2511
      %v2608 = vmax.f32 %v2291, %v2512
      %v2609 = vmax.f32 %v2292, %v2513
      %v2610 = vmax.f32 %v2294, %v2514
      %v2611 = vmax.f32 %v2295, %v2515
      %v2612 = vmax.f32 %v2296, %v2516
      %v2613 = vmax.f32 %v2297, %v2517
      %v2614 = vmax.f32 %v2298, %v2518
      %v2615 = vmax.f32 %v2299, %v2519
      %v2616 = vmax.f32 %v2301, %v2520
      %v2617 = vmax.f32 %v2302, %v2521
      %v2618 = vmax.f32 %v2303, %v2522
      %v2619 = vmax.f32 %v2304, %v2523
      %v2620 = vmax.f32 %v2305, %v2524
      %v2621 = vmax.f32 %v2306, %v2525
      %v2622 = vmax.f32 %v2308, %v2526
      %v2623 = vmax.f32 %v2309, %v2527
      %v2624 = vmax.f32 %v2310, %v2528
      %v2625 = vmax.f32 %v2311, %v2529
      %v2626 = vmax.f32 %v2312, %v2530
      %v2627 = vmax.f32 %v2313, %v2531
      %v2628 = vmax.f32 %v2315, %v2532
      %v2629 = vmax.f32 %v2316, %v2533
      %v2630 = vmax.f32 %v2317, %v2534
      %v2631 = vmax.f32 %v2318, %v2535
      %v2632 = vmax.f32 %v2319, %v2536
      %v2633 = vmax.f32 %v2320, %v2537
      %v2634 = vld [vmem:[%s5] sm:$0xff]
      %v2635 = vld [vmem:[%s5 + $0x8] sm:$0xff]
      %v2636 = vld [vmem:[%s5 + $0x10] sm:$0xff]
      %v2637 = vld [vmem:[%s5 + $0x18] sm:$0xff]
      %v2638 = vld [vmem:[%s5 + $0x20] sm:$0xff]
      %v2639 = vld [vmem:[%s5 + $0x28] sm:$0xff]
      %v2640 = vld [vmem:[%s5 + $0x30] sm:$0xff]
      %v2641 = vld [vmem:[%s5 + $0x38] sm:$0xff]
      %v2642 = vld [vmem:[%s5 + $0x40] sm:$0xff]
      %v2643 = vld [vmem:[%s5 + $0x48] sm:$0xff]
      %v2644 = vld [vmem:[%s5 + $0x50] sm:$0xff]
      %v2645 = vld [vmem:[%s5 + $0x58] sm:$0xff]
      %v2646 = vld [vmem:[%s5 + $0x60] sm:$0xff]
      %v2647 = vld [vmem:[%s5 + $0x68] sm:$0xff]
      %v2648 = vld [vmem:[%s5 + $0x70] sm:$0xff]
      %v2649 = vld [vmem:[%s5 + $0x78] sm:$0xff]
      %v2650 = vld [vmem:[%s5 + $0x80] sm:$0xff]
      %v2651 = vld [vmem:[%s5 + $0x88] sm:$0xff]
      %v2652 = vld [vmem:[%s5 + $0x90] sm:$0xff]
      %v2653 = vld [vmem:[%s5 + $0x98] sm:$0xff]
      %v2654 = vld [vmem:[%s5 + $0xa0] sm:$0xff]
      %v2655 = vld [vmem:[%s5 + $0xa8] sm:$0xff]
      %v2656 = vld [vmem:[%s5 + $0xb0] sm:$0xff]
      %v2657 = vld [vmem:[%s5 + $0xb8] sm:$0xff]
      %v2658 = vld [vmem:[%s5 + $0xc0] sm:$0xff]
      %v2659 = vld [vmem:[%s5 + $0xc8] sm:$0xff]
      %v2660 = vld [vmem:[%s5 + $0xd0] sm:$0xff]
      %v2661 = vld [vmem:[%s5 + $0xd8] sm:$0xff]
      %v2662 = vld [vmem:[%s5 + $0xe0] sm:$0xff]
      %v2663 = vld [vmem:[%s5 + $0xe8] sm:$0xff]
      %v2664 = vld [vmem:[%s5 + $0xf0] sm:$0xff]
      %v2665 = vld [vmem:[%s5 + $0xf8] sm:$0xff]
      %v2666 = vld [vmem:[%s5 + $0x100] sm:$0xff]
      %v2667 = vld [vmem:[%s5 + $0x108] sm:$0xff]
      %v2668 = vld [vmem:[%s5 + $0x110] sm:$0xff]
      %v2669 = vld [vmem:[%s5 + $0x118] sm:$0xff]
      %v2670 = vld [vmem:[%s5 + $0x120] sm:$0xff]
      %v2671 = vld [vmem:[%s5 + $0x128] sm:$0xff]
      %v2672 = vld [vmem:[%s5 + $0x130] sm:$0xff]
      %v2673 = vld [vmem:[%s5 + $0x138] sm:$0xff]
      %v2674 = vld [vmem:[%s5 + $0x140] sm:$0xff]
      %v2675 = vld [vmem:[%s5 + $0x148] sm:$0xff]
      %v2676 = vld [vmem:[%s5 + $0x150] sm:$0xff]
      %v2677 = vld [vmem:[%s5 + $0x158] sm:$0xff]
      %v2678 = vld [vmem:[%s5 + $0x160] sm:$0xff]
      %v2679 = vld [vmem:[%s5 + $0x168] sm:$0xff]
      %v2680 = vld [vmem:[%s5 + $0x170] sm:$0xff]
      %v2681 = vld [vmem:[%s5 + $0x178] sm:$0xff]
      %v2682 = vld [vmem:[%s5 + $0x180] sm:$0xff]
      %v2683 = vld [vmem:[%s5 + $0x188] sm:$0xff]
      %v2684 = vld [vmem:[%s5 + $0x190] sm:$0xff]
      %v2685 = vld [vmem:[%s5 + $0x198] sm:$0xff]
      %v2686 = vld [vmem:[%s5 + $0x1a0] sm:$0xff]
      %v2687 = vld [vmem:[%s5 + $0x1a8] sm:$0xff]
      %v2688 = vld [vmem:[%s5 + $0x1b0] sm:$0xff]
      %v2689 = vld [vmem:[%s5 + $0x1b8] sm:$0xff]
      %v2690 = vld [vmem:[%s5 + $0x1c0] sm:$0xff]
      %v2691 = vld [vmem:[%s5 + $0x1c8] sm:$0xff]
      %v2692 = vld [vmem:[%s5 + $0x1d0] sm:$0xff]
      %v2693 = vld [vmem:[%s5 + $0x1d8] sm:$0xff]
      %v2694 = vld [vmem:[%s5 + $0x1e0] sm:$0xff]
      %v2695 = vld [vmem:[%s5 + $0x1e8] sm:$0xff]
      %v2696 = vld [vmem:[%s5 + $0x1f0] sm:$0xff]
      %v2697 = vld [vmem:[%s5 + $0x1f8] sm:$0xff]
      %v2698 = vld [vmem:[%s5 + $0x200] sm:$0xff]
      %v2699 = vld [vmem:[%s5 + $0x208] sm:$0xff]
      %v2700 = vld [vmem:[%s5 + $0x210] sm:$0xff]
      %v2701 = vld [vmem:[%s5 + $0x218] sm:$0xff]
      %v2702 = vld [vmem:[%s5 + $0x220] sm:$0xff]
      %v2703 = vld [vmem:[%s5 + $0x228] sm:$0xff]
      %v2704 = vld [vmem:[%s5 + $0x230] sm:$0xff]
      %v2705 = vld [vmem:[%s5 + $0x238] sm:$0xff]
      %v2706 = vld [vmem:[%s5 + $0x240] sm:$0xff]
      %v2707 = vld [vmem:[%s5 + $0x248] sm:$0xff]
      %v2708 = vld [vmem:[%s5 + $0x250] sm:$0xff]
      %v2709 = vld [vmem:[%s5 + $0x258] sm:$0xff]
      %v2710 = vld [vmem:[%s5 + $0x260] sm:$0xff]
      %v2711 = vld [vmem:[%s5 + $0x268] sm:$0xff]
      %v2712 = vld [vmem:[%s5 + $0x270] sm:$0xff]
      %v2713 = vld [vmem:[%s5 + $0x278] sm:$0xff]
      %v2714 = vld [vmem:[%s5 + $0x280] sm:$0xff]
      %v2715 = vld [vmem:[%s5 + $0x288] sm:$0xff]
      %v2716 = vld [vmem:[%s5 + $0x290] sm:$0xff]
      %v2717 = vld [vmem:[%s5 + $0x298] sm:$0xff]
      %v2718 = vld [vmem:[%s5 + $0x2a0] sm:$0xff]
      %v2719 = vld [vmem:[%s5 + $0x2a8] sm:$0xff]
      %v2720 = vld [vmem:[%s5 + $0x2b0] sm:$0xff]
      %v2721 = vld [vmem:[%s5 + $0x2b8] sm:$0xff]
      %v2722 = vld [vmem:[%s5 + $0x2c0] sm:$0xff]
      %v2723 = vld [vmem:[%s5 + $0x2c8] sm:$0xff]
      %v2724 = vld [vmem:[%s5 + $0x2d0] sm:$0xff]
      %v2725 = vld [vmem:[%s5 + $0x2d8] sm:$0xff]
      %v2726 = vld [vmem:[%s5 + $0x2e0] sm:$0xff]
      %v2727 = vld [vmem:[%s5 + $0x2e8] sm:$0xff]
      %v2728 = vld [vmem:[%s5 + $0x2f0] sm:$0xff]
      %v2729 = vld [vmem:[%s5 + $0x2f8] sm:$0xff]
      %v2730 = vld [vmem:[%s5 + $0x300] sm:$0xff]
      %v2731 = vld [vmem:[%s5 + $0x308] sm:$0xff]
      %v2732 = vld [vmem:[%s5 + $0x310] sm:$0xff]
      %v2733 = vld [vmem:[%s5 + $0x318] sm:$0xff]
      %v2734 = vld [vmem:[%s5 + $0x320] sm:$0xff]
      %v2735 = vld [vmem:[%s5 + $0x328] sm:$0xff]
      %v2736 = vld [vmem:[%s5 + $0x330] sm:$0xff]
      %v2737 = vld [vmem:[%s5 + $0x338] sm:$0xff]
      %v2738 = vld [vmem:[%s5 + $0x340] sm:$0xff]
      %v2739 = vld [vmem:[%s5 + $0x348] sm:$0xff]
      %v2740 = vld [vmem:[%s5 + $0x350] sm:$0xff]
      %v2741 = vld [vmem:[%s5 + $0x358] sm:$0xff]
      %v2742 = vld [vmem:[%s5 + $0x360] sm:$0xff]
      %v2743 = vld [vmem:[%s5 + $0x368] sm:$0xff]
      %v2744 = vld [vmem:[%s5 + $0x370] sm:$0xff]
      %v2745 = vld [vmem:[%s5 + $0x378] sm:$0xff]
      %v2746 = vld [vmem:[%s5 + $0x380] sm:$0xff]
      %v2747 = vld [vmem:[%s5 + $0x388] sm:$0xff]
      %v2748 = vld [vmem:[%s5 + $0x390] sm:$0xff]
      %v2749 = vld [vmem:[%s5 + $0x398] sm:$0xff]
      %v2750 = vld [vmem:[%s5 + $0x3a0] sm:$0xff]
      %v2751 = vld [vmem:[%s5 + $0x3a8] sm:$0xff]
      %v2752 = vld [vmem:[%s5 + $0x3b0] sm:$0xff]
      %v2753 = vld [vmem:[%s5 + $0x3b8] sm:$0xff]
      %v2754 = vld [vmem:[%s5 + $0x3c0] sm:$0xff]
      %v2755 = vld [vmem:[%s5 + $0x3c8] sm:$0xff]
      %v2756 = vld [vmem:[%s5 + $0x3d0] sm:$0xff]
      %v2757 = vld [vmem:[%s5 + $0x3d8] sm:$0xff]
      %v2758 = vld [vmem:[%s5 + $0x3e0] sm:$0xff]
      %v2759 = vld [vmem:[%s5 + $0x3e8] sm:$0xff]
      %v2760 = vld [vmem:[%s5 + $0x3f0] sm:$0xff]
      %v2761 = vld [vmem:[%s5 + $0x3f8] sm:$0xff]
      %v2762 = vld [vmem:[%s5 + $0x400] sm:$0xff]
      %v2763 = vld [vmem:[%s5 + $0x408] sm:$0xff]
      %v2764 = vld [vmem:[%s5 + $0x410] sm:$0xff]
      %v2765 = vld [vmem:[%s5 + $0x418] sm:$0xff]
      %v2766 = vld [vmem:[%s5 + $0x420] sm:$0xff]
      %v2767 = vld [vmem:[%s5 + $0x428] sm:$0xff]
      %v2768 = vld [vmem:[%s5 + $0x430] sm:$0xff]
      %v2769 = vld [vmem:[%s5 + $0x438] sm:$0xff]
      %v2770 = vld [vmem:[%s5 + $0x440] sm:$0xff]
      %v2771 = vld [vmem:[%s5 + $0x448] sm:$0xff]
      %v2772 = vld [vmem:[%s5 + $0x450] sm:$0xff]
      %v2773 = vld [vmem:[%s5 + $0x458] sm:$0xff]
      %v2774 = vld [vmem:[%s5 + $0x460] sm:$0xff]
      %v2775 = vld [vmem:[%s5 + $0x468] sm:$0xff]
      %v2776 = vld [vmem:[%s5 + $0x470] sm:$0xff]
      %v2777 = vld [vmem:[%s5 + $0x478] sm:$0xff]
      %v2778 = vld [vmem:[%s5 + $0x480] sm:$0xff]
      %v2779 = vld [vmem:[%s5 + $0x488] sm:$0xff]
      %v2780 = vld [vmem:[%s5 + $0x490] sm:$0xff]
      %v2781 = vld [vmem:[%s5 + $0x498] sm:$0xff]
      %v2782 = vld [vmem:[%s5 + $0x4a0] sm:$0xff]
      %v2783 = vld [vmem:[%s5 + $0x4a8] sm:$0xff]
      %v2784 = vld [vmem:[%s5 + $0x4b0] sm:$0xff]
      %v2785 = vld [vmem:[%s5 + $0x4b8] sm:$0xff]
      %v2786 = vld [vmem:[%s5 + $0x4c0] sm:$0xff]
      %v2787 = vld [vmem:[%s5 + $0x4c8] sm:$0xff]
      %v2788 = vld [vmem:[%s5 + $0x4d0] sm:$0xff]
      %v2789 = vld [vmem:[%s5 + $0x4d8] sm:$0xff]
      %v2790 = vld [vmem:[%s5 + $0x4e0] sm:$0xff]
      %v2791 = vld [vmem:[%s5 + $0x4e8] sm:$0xff]
      %v2792 = vld [vmem:[%s5 + $0x4f0] sm:$0xff]
      %v2793 = vld [vmem:[%s5 + $0x4f8] sm:$0xff]
      %v2794 = vld [vmem:[%s5 + $0x500] sm:$0xff]
      %v2795 = vld [vmem:[%s5 + $0x508] sm:$0xff]
      %v2796 = vld [vmem:[%s5 + $0x510] sm:$0xff]
      %v2797 = vld [vmem:[%s5 + $0x518] sm:$0xff]
      %v2798 = vld [vmem:[%s5 + $0x520] sm:$0xff]
      %v2799 = vld [vmem:[%s5 + $0x528] sm:$0xff]
      %v2800 = vld [vmem:[%s5 + $0x530] sm:$0xff]
      %v2801 = vld [vmem:[%s5 + $0x538] sm:$0xff]
      %v2802 = vld [vmem:[%s5 + $0x540] sm:$0xff]
      %v2803 = vld [vmem:[%s5 + $0x548] sm:$0xff]
      %v2804 = vld [vmem:[%s5 + $0x550] sm:$0xff]
      %v2805 = vld [vmem:[%s5 + $0x558] sm:$0xff]
      %v2806 = vld [vmem:[%s5 + $0x560] sm:$0xff]
      %v2807 = vld [vmem:[%s5 + $0x568] sm:$0xff]
      %v2808 = vld [vmem:[%s5 + $0x570] sm:$0xff]
      %v2809 = vld [vmem:[%s5 + $0x578] sm:$0xff]
      %v2810 = vld [vmem:[%s5 + $0x580] sm:$0xff]
      %v2811 = vld [vmem:[%s5 + $0x588] sm:$0xff]
      %v2812 = vld [vmem:[%s5 + $0x590] sm:$0xff]
      %v2813 = vld [vmem:[%s5 + $0x598] sm:$0xff]
      %v2814 = vld [vmem:[%s5 + $0x5a0] sm:$0xff]
      %v2815 = vld [vmem:[%s5 + $0x5a8] sm:$0xff]
      %v2816 = vld [vmem:[%s5 + $0x5b0] sm:$0xff]
      %v2817 = vld [vmem:[%s5 + $0x5b8] sm:$0xff]
      %v2818 = vld [vmem:[%s5 + $0x5c0] sm:$0xff]
      %v2819 = vld [vmem:[%s5 + $0x5c8] sm:$0xff]
      %v2820 = vld [vmem:[%s5 + $0x5d0] sm:$0xff]
      %v2821 = vld [vmem:[%s5 + $0x5d8] sm:$0xff]
      %v2822 = vld [vmem:[%s5 + $0x5e0] sm:$0x7]
      %v2823 = vld [vmem:[%s5 + $0x5e8] sm:$0x7]
      %vm2824 = vcmask 941056
      %v2826 = vsel %vm2824, %v2591, 0
      %v2829 = vsel %vm2824, %v2597, 0
      %v2832 = vsel %vm2824, %v2603, 0
      %v2835 = vsel %vm2824, %v2609, 0
      %v2838 = vsel %vm2824, %v2615, 0
      %v2841 = vsel %vm2824, %v2621, 0
      %v2844 = vsel %vm2824, %v2627, 0
      %v2847 = vsel %vm2824, %v2633, 0
      %vm2849 = vcmask 1042432
      %v2851 = vsel %vm2849, %v2822, 0
      %v2854 = vsel %vm2849, %v2823, 0
      %2856 = vmatprep.subr.mxu0 %v2665
      %2857 = vmatpush1.msra.mxu0 %v2664
      %2858 = vmatprep.subr.mxu0 %v2663
      %2859 = vmatpush1.msra.mxu0 %v2662
      %2860 = vmatprep.subr.mxu0 %v2661
      %2861 = vmatpush1.msra.mxu0 %v2660
      %2862 = vmatprep.subr.mxu0 %v2659
      %2863 = vmatpush1.msra.mxu0 %v2658
      %2864 = vmatprep.subr.mxu0 %v2657
      %2865 = vmatpush1.msra.mxu0 %v2656
      %2866 = vmatprep.subr.mxu0 %v2655
      %2867 = vmatpush1.msra.mxu0 %v2654
      %2868 = vmatprep.subr.mxu0 %v2653
      %2869 = vmatpush1.msra.mxu0 %v2652
      %2870 = vmatprep.subr.mxu0 %v2651
      %2871 = vmatpush1.msra.mxu0 %v2650
      %2872 = vmatprep.subr.mxu0 %v2649
      %2873 = vmatpush1.msra.mxu0 %v2648
      %2874 = vmatprep.subr.mxu0 %v2647
      %2875 = vmatpush1.msra.mxu0 %v2646
      %2876 = vmatprep.subr.mxu0 %v2645
      %2877 = vmatpush1.msra.mxu0 %v2644
      %2878 = vmatprep.subr.mxu0 %v2643
      %2879 = vmatpush1.msra.mxu0 %v2642
      %2880 = vmatprep.subr.mxu0 %v2641
      %2881 = vmatpush1.msra.mxu0 %v2640
      %2882 = vmatprep.subr.mxu0 %v2639
      %2883 = vmatpush1.msra.mxu0 %v2638
      %2884 = vmatprep.subr.mxu0 %v2637
      %2885 = vmatpush1.msra.mxu0 %v2636
      %2886 = vmatprep.subr.mxu0 %v2635
      %2887 = vmatpush1.msra.mxu0 %v2634
      %2888 = vmatprep.subr.mxu0 %v2697
      %2889 = vmatpush2.msra.mxu0 %v2696
      %2890 = vmatprep.subr.mxu0 %v2695
      %2891 = vmatpush2.msra.mxu0 %v2694
      %2892 = vmatprep.subr.mxu0 %v2693
      %2893 = vmatpush2.msra.mxu0 %v2692
      %2894 = vmatprep.subr.mxu0 %v2691
      %2895 = vmatpush2.msra.mxu0 %v2690
      %2896 = vmatprep.subr.mxu0 %v2689
      %2897 = vmatpush2.msra.mxu0 %v2688
      %2898 = vmatprep.subr.mxu0 %v2687
      %2899 = vmatpush2.msra.mxu0 %v2686
      %2900 = vmatprep.subr.mxu0 %v2685
      %2901 = vmatpush2.msra.mxu0 %v2684
      %2902 = vmatprep.subr.mxu0 %v2683
      %2903 = vmatpush2.msra.mxu0 %v2682
      %2904 = vmatprep.subr.mxu0 %v2681
      %2905 = vmatpush2.msra.mxu0 %v2680
      %2906 = vmatprep.subr.mxu0 %v2679
      %2907 = vmatpush2.msra.mxu0 %v2678
      %2908 = vmatprep.subr.mxu0 %v2677
      %2909 = vmatpush2.msra.mxu0 %v2676
      %2910 = vmatprep.subr.mxu0 %v2675
      %2911 = vmatpush2.msra.mxu0 %v2674
      %2912 = vmatprep.subr.mxu0 %v2673
      %2913 = vmatpush2.msra.mxu0 %v2672
      %2914 = vmatprep.subr.mxu0 %v2671
      %2915 = vmatpush2.msra.mxu0 %v2670
      %2916 = vmatprep.subr.mxu0 %v2669
      %2917 = vmatpush2.msra.mxu0 %v2668
      %2918 = vmatprep.subr.mxu0 %v2667
      %2919 = vmatpush2.msra.mxu0 %v2666
      %2920 = vmatprep.mubr.f32.mxu0 %v2587
      %2921 = vmatmul.mubr.f32.gmra.mxu0 %v2586
      %v2922 = vpop.f32.mrf.mxu0
      %v2923 = vadd.f32 0.0, %v2922
      %v2924 = vpop.f32.mrf.mxu0
      %v2925 = vadd.f32 0.0, %v2924
      %2926 = vmatprep.mubr.f32.mxu0 %v2593
      %2927 = vmatmul.mubr.f32.gmra.mxu0 %v2592
      %v2928 = vpop.f32.mrf.mxu0
      %v2929 = vadd.f32 0.0, %v2928
      %v2930 = vpop.f32.mrf.mxu0
      %v2931 = vadd.f32 0.0, %v2930
      %2932 = vmatprep.mubr.f32.mxu0 %v2599
      %2933 = vmatmul.mubr.f32.gmra.mxu0 %v2598
      %v2934 = vpop.f32.mrf.mxu0
      %v2935 = vadd.f32 0.0, %v2934
      %v2936 = vpop.f32.mrf.mxu0
      %v2937 = vadd.f32 0.0, %v2936
      %2938 = vmatprep.mubr.f32.mxu0 %v2605
      %2939 = vmatmul.mubr.f32.gmra.mxu0 %v2604
      %v2940 = vpop.f32.mrf.mxu0
      %v2941 = vadd.f32 0.0, %v2940
      %v2942 = vpop.f32.mrf.mxu0
      %v2943 = vadd.f32 0.0, %v2942
      %2944 = vmatprep.mubr.f32.mxu0 %v2611
      %2945 = vmatmul.mubr.f32.gmra.mxu0 %v2610
      %v2946 = vpop.f32.mrf.mxu0
      %v2947 = vadd.f32 0.0, %v2946
      %v2948 = vpop.f32.mrf.mxu0
      %v2949 = vadd.f32 0.0, %v2948
      %2950 = vmatprep.mubr.f32.mxu0 %v2617
      %2951 = vmatmul.mubr.f32.gmra.mxu0 %v2616
      %v2952 = vpop.f32.mrf.mxu0
      %v2953 = vadd.f32 0.0, %v2952
      %v2954 = vpop.f32.mrf.mxu0
      %v2955 = vadd.f32 0.0, %v2954
      %2956 = vmatprep.mubr.f32.mxu0 %v2623
      %2957 = vmatmul.mubr.f32.gmra.mxu0 %v2622
      %v2958 = vpop.f32.mrf.mxu0
      %v2959 = vadd.f32 0.0, %v2958
      %v2960 = vpop.f32.mrf.mxu0
      %v2961 = vadd.f32 0.0, %v2960
      %2962 = vmatprep.mubr.f32.mxu0 %v2629
      %2963 = vmatmul.mubr.f32.gmra.mxu0 %v2628
      %v2964 = vpop.f32.mrf.mxu0
      %v2965 = vadd.f32 0.0, %v2964
      %v2966 = vpop.f32.mrf.mxu0
      %v2967 = vadd.f32 0.0, %v2966
      %2968 = vdwg.mxu0
      %2969 = vmatprep.subr.mxu0 %v2729
      %2970 = vmatpush1.msra.mxu0 %v2728
      %2971 = vmatprep.subr.mxu0 %v2727
      %2972 = vmatpush1.msra.mxu0 %v2726
      %2973 = vmatprep.subr.mxu0 %v2725
      %2974 = vmatpush1.msra.mxu0 %v2724
      %2975 = vmatprep.subr.mxu0 %v2723
      %2976 = vmatpush1.msra.mxu0 %v2722
      %2977 = vmatprep.subr.mxu0 %v2721
      %2978 = vmatpush1.msra.mxu0 %v2720
      %2979 = vmatprep.subr.mxu0 %v2719
      %2980 = vmatpush1.msra.mxu0 %v2718
      %2981 = vmatprep.subr.mxu0 %v2717
      %2982 = vmatpush1.msra.mxu0 %v2716
      %2983 = vmatprep.subr.mxu0 %v2715
      %2984 = vmatpush1.msra.mxu0 %v2714
      %2985 = vmatprep.subr.mxu0 %v2713
      %2986 = vmatpush1.msra.mxu0 %v2712
      %2987 = vmatprep.subr.mxu0 %v2711
      %2988 = vmatpush1.msra.mxu0 %v2710
      %2989 = vmatprep.subr.mxu0 %v2709
      %2990 = vmatpush1.msra.mxu0 %v2708
      %2991 = vmatprep.subr.mxu0 %v2707
      %2992 = vmatpush1.msra.mxu0 %v2706
      %2993 = vmatprep.subr.mxu0 %v2705
      %2994 = vmatpush1.msra.mxu0 %v2704
      %2995 = vmatprep.subr.mxu0 %v2703
      %2996 = vmatpush1.msra.mxu0 %v2702
      %2997 = vmatprep.subr.mxu0 %v2701
      %2998 = vmatpush1.msra.mxu0 %v2700
      %2999 = vmatprep.subr.mxu0 %v2699
      %3000 = vmatpush1.msra.mxu0 %v2698
      %3001 = vmatprep.subr.mxu0 %v2761
      %3002 = vmatpush2.msra.mxu0 %v2760
      %3003 = vmatprep.subr.mxu0 %v2759
      %3004 = vmatpush2.msra.mxu0 %v2758
      %3005 = vmatprep.subr.mxu0 %v2757
      %3006 = vmatpush2.msra.mxu0 %v2756
      %3007 = vmatprep.subr.mxu0 %v2755
      %3008 = vmatpush2.msra.mxu0 %v2754
      %3009 = vmatprep.subr.mxu0 %v2753
      %3010 = vmatpush2.msra.mxu0 %v2752
      %3011 = vmatprep.subr.mxu0 %v2751
      %3012 = vmatpush2.msra.mxu0 %v2750
      %3013 = vmatprep.subr.mxu0 %v2749
      %3014 = vmatpush2.msra.mxu0 %v2748
      %3015 = vmatprep.subr.mxu0 %v2747
      %3016 = vmatpush2.msra.mxu0 %v2746
      %3017 = vmatprep.subr.mxu0 %v2745
      %3018 = vmatpush2.msra.mxu0 %v2744
      %3019 = vmatprep.subr.mxu0 %v2743
      %3020 = vmatpush2.msra.mxu0 %v2742
      %3021 = vmatprep.subr.mxu0 %v2741
      %3022 = vmatpush2.msra.mxu0 %v2740
      %3023 = vmatprep.subr.mxu0 %v2739
      %3024 = vmatpush2.msra.mxu0 %v2738
      %3025 = vmatprep.subr.mxu0 %v2737
      %3026 = vmatpush2.msra.mxu0 %v2736
      %3027 = vmatprep.subr.mxu0 %v2735
      %3028 = vmatpush2.msra.mxu0 %v2734
      %3029 = vmatprep.subr.mxu0 %v2733
      %3030 = vmatpush2.msra.mxu0 %v2732
      %3031 = vmatprep.subr.mxu0 %v2731
      %3032 = vmatpush2.msra.mxu0 %v2730
      %3033 = vmatprep.mubr.f32.mxu0 %v2589
      %3034 = vmatmul.mubr.f32.gmra.mxu0 %v2588
      %v3035 = vpop.f32.mrf.mxu0
      %v3036 = vadd.f32 %v2923, %v3035
      %v3037 = vpop.f32.mrf.mxu0
      %v3038 = vadd.f32 %v2925, %v3037
      %3039 = vmatprep.mubr.f32.mxu0 %v2595
      %3040 = vmatmul.mubr.f32.gmra.mxu0 %v2594
      %v3041 = vpop.f32.mrf.mxu0
      %v3042 = vadd.f32 %v2929, %v3041
      %v3043 = vpop.f32.mrf.mxu0
      %v3044 = vadd.f32 %v2931, %v3043
      %3045 = vmatprep.mubr.f32.mxu0 %v2601
      %3046 = vmatmul.mubr.f32.gmra.mxu0 %v2600
      %v3047 = vpop.f32.mrf.mxu0
      %v3048 = vadd.f32 %v2935, %v3047
      %v3049 = vpop.f32.mrf.mxu0
      %v3050 = vadd.f32 %v2937, %v3049
      %3051 = vmatprep.mubr.f32.mxu0 %v2607
      %3052 = vmatmul.mubr.f32.gmra.mxu0 %v2606
      %v3053 = vpop.f32.mrf.mxu0
      %v3054 = vadd.f32 %v2941, %v3053
      %v3055 = vpop.f32.mrf.mxu0
      %v3056 = vadd.f32 %v2943, %v3055
      %3057 = vmatprep.mubr.f32.mxu0 %v2613
      %3058 = vmatmul.mubr.f32.gmra.mxu0 %v2612
      %v3059 = vpop.f32.mrf.mxu0
      %v3060 = vadd.f32 %v2947, %v3059
      %v3061 = vpop.f32.mrf.mxu0
      %v3062 = vadd.f32 %v2949, %v3061
      %3063 = vmatprep.mubr.f32.mxu0 %v2619
      %3064 = vmatmul.mubr.f32.gmra.mxu0 %v2618
      %v3065 = vpop.f32.mrf.mxu0
      %v3066 = vadd.f32 %v2953, %v3065
      %v3067 = vpop.f32.mrf.mxu0
      %v3068 = vadd.f32 %v2955, %v3067
      %3069 = vmatprep.mubr.f32.mxu0 %v2625
      %3070 = vmatmul.mubr.f32.gmra.mxu0 %v2624
      %v3071 = vpop.f32.mrf.mxu0
      %v3072 = vadd.f32 %v2959, %v3071
      %v3073 = vpop.f32.mrf.mxu0
      %v3074 = vadd.f32 %v2961, %v3073
      %3075 = vmatprep.mubr.f32.mxu0 %v2631
      %3076 = vmatmul.mubr.f32.gmra.mxu0 %v2630
      %v3077 = vpop.f32.mrf.mxu0
      %v3078 = vadd.f32 %v2965, %v3077
      %v3079 = vpop.f32.mrf.mxu0
      %v3080 = vadd.f32 %v2967, %v3079
      %3081 = vdwg.mxu0
      %3082 = vmatprep.subr.mxu0 %v2793
      %3083 = vmatpush1.msra.mxu0 %v2792
      %3084 = vmatprep.subr.mxu0 %v2791
      %3085 = vmatpush1.msra.mxu0 %v2790
      %3086 = vmatprep.subr.mxu0 %v2789
      %3087 = vmatpush1.msra.mxu0 %v2788
      %3088 = vmatprep.subr.mxu0 %v2787
      %3089 = vmatpush1.msra.mxu0 %v2786
      %3090 = vmatprep.subr.mxu0 %v2785
      %3091 = vmatpush1.msra.mxu0 %v2784
      %3092 = vmatprep.subr.mxu0 %v2783
      %3093 = vmatpush1.msra.mxu0 %v2782
      %3094 = vmatprep.subr.mxu0 %v2781
      %3095 = vmatpush1.msra.mxu0 %v2780
      %3096 = vmatprep.subr.mxu0 %v2779
      %3097 = vmatpush1.msra.mxu0 %v2778
      %3098 = vmatprep.subr.mxu0 %v2777
      %3099 = vmatpush1.msra.mxu0 %v2776
      %3100 = vmatprep.subr.mxu0 %v2775
      %3101 = vmatpush1.msra.mxu0 %v2774
      %3102 = vmatprep.subr.mxu0 %v2773
      %3103 = vmatpush1.msra.mxu0 %v2772
      %3104 = vmatprep.subr.mxu0 %v2771
      %3105 = vmatpush1.msra.mxu0 %v2770
      %3106 = vmatprep.subr.mxu0 %v2769
      %3107 = vmatpush1.msra.mxu0 %v2768
      %3108 = vmatprep.subr.mxu0 %v2767
      %3109 = vmatpush1.msra.mxu0 %v2766
      %3110 = vmatprep.subr.mxu0 %v2765
      %3111 = vmatpush1.msra.mxu0 %v2764
      %3112 = vmatprep.subr.mxu0 %v2763
      %3113 = vmatpush1.msra.mxu0 %v2762
      %3114 = vmatprep.subr.mxu0 0.0
      %3115 = vmatpush2.msra.mxu0 0.0
      %3116 = vmatprep.subr.mxu0 %v2854
      %3117 = vmatpush2.msra.mxu0 %v2851
      %3118 = vmatprep.subr.mxu0 %v2821
      %3119 = vmatpush2.msra.mxu0 %v2820
      %3120 = vmatprep.subr.mxu0 %v2819
      %3121 = vmatpush2.msra.mxu0 %v2818
      %3122 = vmatprep.subr.mxu0 %v2817
      %3123 = vmatpush2.msra.mxu0 %v2816
      %3124 = vmatprep.subr.mxu0 %v2815
      %3125 = vmatpush2.msra.mxu0 %v2814
      %3126 = vmatprep.subr.mxu0 %v2813
      %3127 = vmatpush2.msra.mxu0 %v2812
      %3128 = vmatprep.subr.mxu0 %v2811
      %3129 = vmatpush2.msra.mxu0 %v2810
      %3130 = vmatprep.subr.mxu0 %v2809
      %3131 = vmatpush2.msra.mxu0 %v2808
      %3132 = vmatprep.subr.mxu0 %v2807
      %3133 = vmatpush2.msra.mxu0 %v2806
      %3134 = vmatprep.subr.mxu0 %v2805
      %3135 = vmatpush2.msra.mxu0 %v2804
      %3136 = vmatprep.subr.mxu0 %v2803
      %3137 = vmatpush2.msra.mxu0 %v2802
      %3138 = vmatprep.subr.mxu0 %v2801
      %3139 = vmatpush2.msra.mxu0 %v2800
      %3140 = vmatprep.subr.mxu0 %v2799
      %3141 = vmatpush2.msra.mxu0 %v2798
      %3142 = vmatprep.subr.mxu0 %v2797
      %3143 = vmatpush2.msra.mxu0 %v2796
      %3144 = vmatprep.subr.mxu0 %v2795
      %3145 = vmatpush2.msra.mxu0 %v2794
      %3146 = vmatprep.mubr.f32.mxu0 %v2826
      %3147 = vmatmul.mubr.f32.gmra.mxu0 %v2590
      %v3148 = vpop.f32.mrf.mxu0
      %v3149 = vadd.f32 %v3036, %v3148
      %v3150 = vpop.f32.mrf.mxu0
      %v3151 = vadd.f32 %v3038, %v3150
      %3152 = vmatprep.mubr.f32.mxu0 %v2829
      %3153 = vmatmul.mubr.f32.gmra.mxu0 %v2596
      %v3154 = vpop.f32.mrf.mxu0
      %v3155 = vadd.f32 %v3042, %v3154
      %v3156 = vpop.f32.mrf.mxu0
      %v3157 = vadd.f32 %v3044, %v3156
      %3158 = vmatprep.mubr.f32.mxu0 %v2832
      %3159 = vmatmul.mubr.f32.gmra.mxu0 %v2602
      %v3160 = vpop.f32.mrf.mxu0
      %v3161 = vadd.f32 %v3048, %v3160
      %v3162 = vpop.f32.mrf.mxu0
      %v3163 = vadd.f32 %v3050, %v3162
      %3164 = vmatprep.mubr.f32.mxu0 %v2835
      %3165 = vmatmul.mubr.f32.gmra.mxu0 %v2608
      %v3166 = vpop.f32.mrf.mxu0
      %v3167 = vadd.f32 %v3054, %v3166
      %v3168 = vpop.f32.mrf.mxu0
      %v3169 = vadd.f32 %v3056, %v3168
      %3170 = vmatprep.mubr.f32.mxu0 %v2838
      %3171 = vmatmul.mubr.f32.gmra.mxu0 %v2614
      %v3172 = vpop.f32.mrf.mxu0
      %v3173 = vadd.f32 %v3060, %v3172
      %v3174 = vpop.f32.mrf.mxu0
      %v3175 = vadd.f32 %v3062, %v3174
      %3176 = vmatprep.mubr.f32.mxu0 %v2841
      %3177 = vmatmul.mubr.f32.gmra.mxu0 %v2620
      %v3178 = vpop.f32.mrf.mxu0
      %v3179 = vadd.f32 %v3066, %v3178
      %v3180 = vpop.f32.mrf.mxu0
      %v3181 = vadd.f32 %v3068, %v3180
      %3182 = vmatprep.mubr.f32.mxu0 %v2844
      %3183 = vmatmul.mubr.f32.gmra.mxu0 %v2626
      %v3184 = vpop.f32.mrf.mxu0
      %v3185 = vadd.f32 %v3072, %v3184
      %v3186 = vpop.f32.mrf.mxu0
      %v3187 = vadd.f32 %v3074, %v3186
      %3188 = vmatprep.mubr.f32.mxu0 %v2847
      %3189 = vmatmul.mubr.f32.gmra.mxu0 %v2632
      %v3190 = vpop.f32.mrf.mxu0
      %v3191 = vadd.f32 %v3078, %v3190
      %v3192 = vpop.f32.mrf.mxu0
      %v3193 = vadd.f32 %v3080, %v3192
      %3194 = vdwg.mxu0
      %v3195 = vrsqrt.pop %v3149
      %v3196 = vmul.f32 %v3149, %v3195
      %vm3197 = vcmp.eq.f32.partialorder %v3149, inf
      %v3198 = vsel %vm3197, %v3149, %v3196
      %vm3199 = vcmp.eq.f32.partialorder %v3149, 0.0
      %v3200 = vand.u32 %v3149, 2147483648
      %v3201 = vsel %vm3199, %v3200, %v3198
      %v3202 = vrsqrt.pop %v3151
      %v3203 = vmul.f32 %v3151, %v3202
      %vm3204 = vcmp.eq.f32.partialorder %v3151, inf
      %v3205 = vsel %vm3204, %v3151, %v3203
      %vm3206 = vcmp.eq.f32.partialorder %v3151, 0.0
      %v3207 = vand.u32 %v3151, 2147483648
      %v3208 = vsel %vm3206, %v3207, %v3205
      %v3209 = vrsqrt.pop %v3155
      %v3210 = vmul.f32 %v3155, %v3209
      %vm3211 = vcmp.eq.f32.partialorder %v3155, inf
      %v3212 = vsel %vm3211, %v3155, %v3210
      %vm3213 = vcmp.eq.f32.partialorder %v3155, 0.0
      %v3214 = vand.u32 %v3155, 2147483648
      %v3215 = vsel %vm3213, %v3214, %v3212
      %v3216 = vrsqrt.pop %v3157
      %v3217 = vmul.f32 %v3157, %v3216
      %vm3218 = vcmp.eq.f32.partialorder %v3157, inf
      %v3219 = vsel %vm3218, %v3157, %v3217
      %vm3220 = vcmp.eq.f32.partialorder %v3157, 0.0
      %v3221 = vand.u32 %v3157, 2147483648
      %v3222 = vsel %vm3220, %v3221, %v3219
      %v3223 = vrsqrt.pop %v3161
      %v3224 = vmul.f32 %v3161, %v3223
      %vm3225 = vcmp.eq.f32.partialorder %v3161, inf
      %v3226 = vsel %vm3225, %v3161, %v3224
      %vm3227 = vcmp.eq.f32.partialorder %v3161, 0.0
      %v3228 = vand.u32 %v3161, 2147483648
      %v3229 = vsel %vm3227, %v3228, %v3226
      %v3230 = vrsqrt.pop %v3163
      %v3231 = vmul.f32 %v3163, %v3230
      %vm3232 = vcmp.eq.f32.partialorder %v3163, inf
      %v3233 = vsel %vm3232, %v3163, %v3231
      %vm3234 = vcmp.eq.f32.partialorder %v3163, 0.0
      %v3235 = vand.u32 %v3163, 2147483648
      %v3236 = vsel %vm3234, %v3235, %v3233
      %v3237 = vrsqrt.pop %v3167
      %v3238 = vmul.f32 %v3167, %v3237
      %vm3239 = vcmp.eq.f32.partialorder %v3167, inf
      %v3240 = vsel %vm3239, %v3167, %v3238
      %vm3241 = vcmp.eq.f32.partialorder %v3167, 0.0
      %v3242 = vand.u32 %v3167, 2147483648
      %v3243 = vsel %vm3241, %v3242, %v3240
      %v3244 = vrsqrt.pop %v3169
      %v3245 = vmul.f32 %v3169, %v3244
      %vm3246 = vcmp.eq.f32.partialorder %v3169, inf
      %v3247 = vsel %vm3246, %v3169, %v3245
      %vm3248 = vcmp.eq.f32.partialorder %v3169, 0.0
      %v3249 = vand.u32 %v3169, 2147483648
      %v3250 = vsel %vm3248, %v3249, %v3247
      %v3251 = vrsqrt.pop %v3173
      %v3252 = vmul.f32 %v3173, %v3251
      %vm3253 = vcmp.eq.f32.partialorder %v3173, inf
      %v3254 = vsel %vm3253, %v3173, %v3252
      %vm3255 = vcmp.eq.f32.partialorder %v3173, 0.0
      %v3256 = vand.u32 %v3173, 2147483648
      %v3257 = vsel %vm3255, %v3256, %v3254
      %v3258 = vrsqrt.pop %v3175
      %v3259 = vmul.f32 %v3175, %v3258
      %vm3260 = vcmp.eq.f32.partialorder %v3175, inf
      %v3261 = vsel %vm3260, %v3175, %v3259
      %vm3262 = vcmp.eq.f32.partialorder %v3175, 0.0
      %v3263 = vand.u32 %v3175, 2147483648
      %v3264 = vsel %vm3262, %v3263, %v3261
      %v3265 = vrsqrt.pop %v3179
      %v3266 = vmul.f32 %v3179, %v3265
      %vm3267 = vcmp.eq.f32.partialorder %v3179, inf
      %v3268 = vsel %vm3267, %v3179, %v3266
      %vm3269 = vcmp.eq.f32.partialorder %v3179, 0.0
      %v3270 = vand.u32 %v3179, 2147483648
      %v3271 = vsel %vm3269, %v3270, %v3268
      %v3272 = vrsqrt.pop %v3181
      %v3273 = vmul.f32 %v3181, %v3272
      %vm3274 = vcmp.eq.f32.partialorder %v3181, inf
      %v3275 = vsel %vm3274, %v3181, %v3273
      %vm3276 = vcmp.eq.f32.partialorder %v3181, 0.0
      %v3277 = vand.u32 %v3181, 2147483648
      %v3278 = vsel %vm3276, %v3277, %v3275
      %v3279 = vrsqrt.pop %v3185
      %v3280 = vmul.f32 %v3185, %v3279
      %vm3281 = vcmp.eq.f32.partialorder %v3185, inf
      %v3282 = vsel %vm3281, %v3185, %v3280
      %vm3283 = vcmp.eq.f32.partialorder %v3185, 0.0
      %v3284 = vand.u32 %v3185, 2147483648
      %v3285 = vsel %vm3283, %v3284, %v3282
      %v3286 = vrsqrt.pop %v3187
      %v3287 = vmul.f32 %v3187, %v3286
      %vm3288 = vcmp.eq.f32.partialorder %v3187, inf
      %v3289 = vsel %vm3288, %v3187, %v3287
      %vm3290 = vcmp.eq.f32.partialorder %v3187, 0.0
      %v3291 = vand.u32 %v3187, 2147483648
      %v3292 = vsel %vm3290, %v3291, %v3289
      %v3293 = vrsqrt.pop %v3191
      %v3294 = vmul.f32 %v3191, %v3293
      %vm3295 = vcmp.eq.f32.partialorder %v3191, inf
      %v3296 = vsel %vm3295, %v3191, %v3294
      %vm3297 = vcmp.eq.f32.partialorder %v3191, 0.0
      %v3298 = vand.u32 %v3191, 2147483648
      %v3299 = vsel %vm3297, %v3298, %v3296
      %v3300 = vrsqrt.pop %v3193
      %v3301 = vmul.f32 %v3193, %v3300
      %vm3302 = vcmp.eq.f32.partialorder %v3193, inf
      %v3303 = vsel %vm3302, %v3193, %v3301
      %vm3304 = vcmp.eq.f32.partialorder %v3193, 0.0
      %v3305 = vand.u32 %v3193, 2147483648
      %v3306 = vsel %vm3304, %v3305, %v3303
      %vm3307 = vcmask 121856
      %3308 = vst.msk [vmem:[#allocation4] sm:$0xff] %vm3307, 0.0
      %3309 = vst.msk [vmem:[#allocation4 + $0x10] sm:$0xff] %vm3307, 0.0
      %3310 = vst.msk [vmem:[#allocation4 + $0x20] sm:$0xff] %vm3307, 0.0
      %3311 = vst.msk [vmem:[#allocation4 + $0x30] sm:$0xff] %vm3307, 0.0
      %3312 = vst.msk [vmem:[#allocation4 + $0x40] sm:$0xff] %vm3307, 0.0
      %3313 = vst.msk [vmem:[#allocation4 + $0x50] sm:$0xff] %vm3307, 0.0
      %3314 = vst.msk [vmem:[#allocation4 + $0x60] sm:$0xff] %vm3307, 0.0
      %3315 = vst.msk [vmem:[#allocation4 + $0x70] sm:$0xff] %vm3307, 0.0
      %vm3316 = vcmask 802456
      %3317 = vst.msk [vmem:[#allocation4 + $0x8] sm:$0xff] %vm3316, 0.0
      %3318 = vst.msk [vmem:[#allocation4 + $0x18] sm:$0xff] %vm3316, 0.0
      %3319 = vst.msk [vmem:[#allocation4 + $0x28] sm:$0xff] %vm3316, 0.0
      %3320 = vst.msk [vmem:[#allocation4 + $0x38] sm:$0xff] %vm3316, 0.0
      %3321 = vst.msk [vmem:[#allocation4 + $0x48] sm:$0xff] %vm3316, 0.0
      %3322 = vst.msk [vmem:[#allocation4 + $0x58] sm:$0xff] %vm3316, 0.0
      %3323 = vst.msk [vmem:[#allocation4 + $0x68] sm:$0xff] %vm3316, 0.0
      %3324 = vst.msk [vmem:[#allocation4 + $0x78] sm:$0xff] %vm3316, 0.0
      %3341 = vrot.lane.b32.xlu0 %v3201, 15
      %v3342 = vpop.permute.xlu0 %3341
      %3343 = vrot.lane.b32.xlu0 %v3208, 15
      %v3344 = vpop.permute.xlu0 %3343
      %3345 = vrot.lane.b32.xlu0 %v3215, 15
      %v3346 = vpop.permute.xlu0 %3345
      %3347 = vrot.lane.b32.xlu0 %v3222, 15
      %v3348 = vpop.permute.xlu0 %3347
      %3349 = vrot.lane.b32.xlu0 %v3229, 15
      %v3350 = vpop.permute.xlu0 %3349
      %3351 = vrot.lane.b32.xlu0 %v3236, 15
      %v3352 = vpop.permute.xlu0 %3351
      %3353 = vrot.lane.b32.xlu0 %v3243, 15
      %v3354 = vpop.permute.xlu0 %3353
      %3355 = vrot.lane.b32.xlu0 %v3250, 15
      %v3356 = vpop.permute.xlu0 %3355
      %3357 = vrot.lane.b32.xlu0 %v3257, 15
      %v3358 = vpop.permute.xlu0 %3357
      %3359 = vrot.lane.b32.xlu0 %v3264, 15
      %v3360 = vpop.permute.xlu0 %3359
      %3361 = vrot.lane.b32.xlu0 %v3271, 15
      %v3362 = vpop.permute.xlu0 %3361
      %3363 = vrot.lane.b32.xlu0 %v3278, 15
      %v3364 = vpop.permute.xlu0 %3363
      %3365 = vrot.lane.b32.xlu0 %v3285, 15
      %v3366 = vpop.permute.xlu0 %3365
      %3367 = vrot.lane.b32.xlu0 %v3292, 15
      %v3368 = vpop.permute.xlu0 %3367
      %3369 = vrot.lane.b32.xlu0 %v3299, 15
      %v3370 = vpop.permute.xlu0 %3369
      %3371 = vrot.lane.b32.xlu0 %v3306, 15
      %v3372 = vpop.permute.xlu0 %3371
      %v3373 = vsel %vm3307, %v3342, %v3344
      %v3374 = vsel %vm3307, %v3346, %v3348
      %v3375 = vsel %vm3307, %v3350, %v3352
      %v3376 = vsel %vm3307, %v3354, %v3356
      %v3377 = vsel %vm3307, %v3358, %v3360
      %v3378 = vsel %vm3307, %v3362, %v3364
      %v3379 = vsel %vm3307, %v3366, %v3368
      %v3380 = vsel %vm3307, %v3370, %v3372
      %vm3397 = vcmask 1047672
      %3398 = vst.msk [vmem:[#allocation4] sm:$0xff] %vm3397, %v3342
      %vm3399 = vcmask 678912
      %3400 = vst.msk [vmem:[#allocation4 + $0x8] sm:$0xff] %vm3399, %v3373
      %3401 = vst.msk [vmem:[#allocation4 + $0x10] sm:$0xff] %vm3397, %v3346
      %3402 = vst.msk [vmem:[#allocation4 + $0x18] sm:$0xff] %vm3399, %v3374
      %3403 = vst.msk [vmem:[#allocation4 + $0x20] sm:$0xff] %vm3397, %v3350
      %3404 = vst.msk [vmem:[#allocation4 + $0x28] sm:$0xff] %vm3399, %v3375
      %3405 = vst.msk [vmem:[#allocation4 + $0x30] sm:$0xff] %vm3397, %v3354
      %3406 = vst.msk [vmem:[#allocation4 + $0x38] sm:$0xff] %vm3399, %v3376
      %3407 = vst.msk [vmem:[#allocation4 + $0x40] sm:$0xff] %vm3397, %v3358
      %3408 = vst.msk [vmem:[#allocation4 + $0x48] sm:$0xff] %vm3399, %v3377
      %3409 = vst.msk [vmem:[#allocation4 + $0x50] sm:$0xff] %vm3397, %v3362
      %3410 = vst.msk [vmem:[#allocation4 + $0x58] sm:$0xff] %vm3399, %v3378
      %3411 = vst.msk [vmem:[#allocation4 + $0x60] sm:$0xff] %vm3397, %v3366
      %3412 = vst.msk [vmem:[#allocation4 + $0x68] sm:$0xff] %vm3399, %v3379
      %3413 = vst.msk [vmem:[#allocation4 + $0x70] sm:$0xff] %vm3397, %v3370
      %3414 = vst.msk [vmem:[#allocation4 + $0x78] sm:$0xff] %vm3399, %v3380
      %v3415 = vld [vmem:[%s9] sm:$0x3]
      %v3416 = vld [vmem:[%s10] sm:$0x3]
      %v3417 = vld [vmem:[#allocation4] sm:$0xff]
      %v3418 = vld [vmem:[#allocation4 + $0x8] sm:$0xff]
      %v3420 = vlaneseq
      %v3421 = vshrl.u32 %v3420, 7
      %v3422 = vsub.s32 0, %v3421
      %v3423 = vrot.slane %v3415, %v3422
      %v3424 = vlaneseq
      %v3425 = vshrl.u32 %v3424, 7
      %v3426 = vsub.s32 1, %v3425
      %v3427 = vrot.slane %v3415, %v3426
      %v3430 = vmul.f32 %v3417, %v3423
      %v3431 = vmul.f32 %v3418, %v3427
      %3432 = vst [vmem:[#allocation5] sm:$0xff] %v3430
      %vm3433 = vcmask 556032
      %3434 = vst.msk [vmem:[#allocation5 + $0x8] sm:$0xff] %vm3433, %v3431
      %v3435 = vld [vmem:[#allocation4] sm:$0xff]
      %v3436 = vld [vmem:[#allocation4 + $0x8] sm:$0xff]
      %3439 = vrot.lane.b32.xlu0 %v3435, 127
      %v3440 = vpop.permute.xlu0 %3439
      %3441 = vrot.lane.b32.xlu0 %v3436, 127
      %v3442 = vpop.permute.xlu0 %3441
      %v3443 = vsel %vm615, %v3440, %v3442
      %3446 = vst [vmem:[#allocation5 + $0x10] sm:$0xff] %v3443
      %3447 = vst.msk [vmem:[#allocation5 + $0x18] sm:$0xff] %vm3433, %v3442
      %v3448 = vld [vmem:[#allocation4] sm:$0xff]
      %v3449 = vld [vmem:[#allocation4 + $0x8] sm:$0xff]
      %v3451 = vlaneseq
      %v3452 = vshrl.u32 %v3451, 7
      %v3453 = vsub.s32 0, %v3452
      %v3454 = vrot.slane %v3416, %v3453
      %v3455 = vlaneseq
      %v3456 = vshrl.u32 %v3455, 7
      %v3457 = vsub.s32 1, %v3456
      %v3458 = vrot.slane %v3416, %v3457
      %3459 = vrot.lane.b32.xlu0 %v3454, 2
      %v3460 = vpop.permute.xlu0 %3459
      %3461 = vrot.lane.b32.xlu0 %v3458, 2
      %v3462 = vpop.permute.xlu0 %3461
      %v3463 = vsel %vm686, %v3460, %v3462
      %v3466 = vmul.f32 %v3448, %v3460
      %v3467 = vmul.f32 %v3449, %v3463
      %3470 = vrot.lane.b32.xlu0 %v3466, 126
      %v3471 = vpop.permute.xlu0 %3470
      %3472 = vrot.lane.b32.xlu0 %v3467, 126
      %v3473 = vpop.permute.xlu0 %3472
      %v3474 = vsel %vm728, %v3471, %v3473
      %3477 = vst [vmem:[#allocation5 + $0x20] sm:$0xff] %v3474
      %3478 = vst.msk [vmem:[#allocation5 + $0x28] sm:$0xff] %vm3433, %v3473
      %v3479 = vld [vmem:[#allocation4] sm:$0xff]
      %v3480 = vld [vmem:[#allocation4 + $0x8] sm:$0xff]
      %3481 = vrot.lane.b32.xlu0 %v3423, 14
      %v3482 = vpop.permute.xlu0 %3481
      %3483 = vrot.lane.b32.xlu0 %v3427, 14
      %v3484 = vpop.permute.xlu0 %3483
      %vm3485 = vcmask 113664
      %v3486 = vsel %vm3485, %v3482, %v3484
      %v3489 = vmul.f32 %v3479, %v3482
      %v3490 = vmul.f32 %v3480, %v3486
      %3493 = vrot.lane.b32.xlu0 %v3489, 114
      %v3494 = vpop.permute.xlu0 %3493
      %3495 = vrot.lane.b32.xlu0 %v3490, 114
      %v3496 = vpop.permute.xlu0 %3495
      %vm3497 = vcmask 932864
      %v3498 = vsel %vm3497, %v3494, %v3496
      %3501 = vst [vmem:[#allocation5 + $0x30] sm:$0xff] %v3498
      %3502 = vst.msk [vmem:[#allocation5 + $0x38] sm:$0xff] %vm3433, %v3496
      %v3503 = vld [vmem:[#allocation4] sm:$0xff]
      %v3504 = vld [vmem:[#allocation4 + $0x8] sm:$0xff]
      %3507 = vrot.lane.b32.xlu0 %v3503, 113
      %v3508 = vpop.permute.xlu0 %3507
      %3509 = vrot.lane.b32.xlu0 %v3504, 113
      %v3510 = vpop.permute.xlu0 %3509
      %vm3511 = vcmask 924672
      %v3512 = vsel %vm3511, %v3508, %v3510
      %3515 = vst [vmem:[#allocation5 + $0x40] sm:$0xff] %v3512
      %3516 = vst.msk [vmem:[#allocation5 + $0x48] sm:$0xff] %vm3433, %v3510
      %v3517 = vld [vmem:[#allocation4] sm:$0xff]
      %v3518 = vld [vmem:[#allocation4 + $0x8] sm:$0xff]
      %3519 = vrot.lane.b32.xlu0 %v3454, 16
      %v3520 = vpop.permute.xlu0 %3519
      %3521 = vrot.lane.b32.xlu0 %v3458, 16
      %v3522 = vpop.permute.xlu0 %3521
      %v3523 = vsel %vm585, %v3520, %v3522
      %v3526 = vmul.f32 %v3517, %v3520
      %v3527 = vmul.f32 %v3518, %v3523
      %3530 = vrot.lane.b32.xlu0 %v3526, 112
      %v3531 = vpop.permute.xlu0 %3530
      %3532 = vrot.lane.b32.xlu0 %v3527, 112
      %v3533 = vpop.permute.xlu0 %3532
      %vm3534 = vcmask 916480
      %v3535 = vsel %vm3534, %v3531, %v3533
      %3538 = vst [vmem:[#allocation5 + $0x50] sm:$0xff] %v3535
      %3539 = vst.msk [vmem:[#allocation5 + $0x58] sm:$0xff] %vm3433, %v3533
      %v3540 = vld [vmem:[#allocation4] sm:$0xff]
      %v3541 = vld [vmem:[#allocation4 + $0x8] sm:$0xff]
      %3542 = vrot.lane.b32.xlu0 %v3423, 28
      %v3543 = vpop.permute.xlu0 %3542
      %3544 = vrot.lane.b32.xlu0 %v3427, 28
      %v3545 = vpop.permute.xlu0 %3544
      %v3546 = vsel %vm770, %v3543, %v3545
      %v3549 = vmul.f32 %v3540, %v3543
      %v3550 = vmul.f32 %v3541, %v3546
      %3553 = vrot.lane.b32.xlu0 %v3549, 100
      %v3554 = vpop.permute.xlu0 %3553
      %3555 = vrot.lane.b32.xlu0 %v3550, 100
      %v3556 = vpop.permute.xlu0 %3555
      %v3557 = vsel %vm812, %v3554, %v3556
      %3560 = vst [vmem:[#allocation5 + $0x60] sm:$0xff] %v3557
      %3561 = vst.msk [vmem:[#allocation5 + $0x68] sm:$0xff] %vm3433, %v3556
      %v3562 = vld [vmem:[#allocation4] sm:$0xff]
      %v3563 = vld [vmem:[#allocation4 + $0x8] sm:$0xff]
      %3566 = vrot.lane.b32.xlu0 %v3562, 99
      %v3567 = vpop.permute.xlu0 %3566
      %3568 = vrot.lane.b32.xlu0 %v3563, 99
      %v3569 = vpop.permute.xlu0 %3568
      %v3570 = vsel %vm861, %v3567, %v3569
      %3573 = vst [vmem:[#allocation5 + $0x70] sm:$0xff] %v3570
      %3574 = vst.msk [vmem:[#allocation5 + $0x78] sm:$0xff] %vm3433, %v3569
      %v3575 = vld [vmem:[#allocation4] sm:$0xff]
      %v3576 = vld [vmem:[#allocation4 + $0x8] sm:$0xff]
      %3577 = vrot.lane.b32.xlu0 %v3454, 30
      %v3578 = vpop.permute.xlu0 %3577
      %3579 = vrot.lane.b32.xlu0 %v3458, 30
      %v3580 = vpop.permute.xlu0 %3579
      %v3581 = vsel %vm903, %v3578, %v3580
      %v3584 = vmul.f32 %v3575, %v3578
      %v3585 = vmul.f32 %v3576, %v3581
      %3588 = vrot.lane.b32.xlu0 %v3584, 98
      %v3589 = vpop.permute.xlu0 %3588
      %3590 = vrot.lane.b32.xlu0 %v3585, 98
      %v3591 = vpop.permute.xlu0 %3590
      %v3592 = vsel %vm945, %v3589, %v3591
      %3595 = vst [vmem:[#allocation5 + $0x80] sm:$0xff] %v3592
      %3596 = vst.msk [vmem:[#allocation5 + $0x88] sm:$0xff] %vm3433, %v3591
      %v3597 = vld [vmem:[%s3] sm:$0xff]
      %v3598 = vld [vmem:[%s3 + $0x8] sm:$0xff]
      %v3599 = vld [vmem:[#allocation5] sm:$0xff]
      %v3600 = vld [vmem:[#allocation5 + $0x8] sm:$0xff]
      %v3601 = vld [vmem:[#allocation5 + $0x10] sm:$0xff]
      %v3602 = vld [vmem:[#allocation5 + $0x18] sm:$0xff]
      %v3603 = vld [vmem:[#allocation5 + $0x20] sm:$0xff]
      %v3604 = vld [vmem:[#allocation5 + $0x28] sm:$0xff]
      %v3605 = vld [vmem:[#allocation5 + $0x30] sm:$0xff]
      %v3606 = vld [vmem:[#allocation5 + $0x38] sm:$0xff]
      %v3607 = vld [vmem:[#allocation5 + $0x40] sm:$0xff]
      %v3608 = vld [vmem:[#allocation5 + $0x48] sm:$0xff]
      %v3609 = vld [vmem:[#allocation5 + $0x50] sm:$0xff]
      %v3610 = vld [vmem:[#allocation5 + $0x58] sm:$0xff]
      %v3611 = vld [vmem:[#allocation5 + $0x60] sm:$0xff]
      %v3612 = vld [vmem:[#allocation5 + $0x68] sm:$0xff]
      %v3613 = vld [vmem:[#allocation5 + $0x70] sm:$0xff]
      %v3614 = vld [vmem:[#allocation5 + $0x78] sm:$0xff]
      %v3615 = vld [vmem:[#allocation5 + $0x80] sm:$0xff]
      %v3616 = vld [vmem:[#allocation5 + $0x88] sm:$0xff]
      %v3617 = vld [vmem:[%s4] sm:$0xff]
      %v3618 = vld [vmem:[%s4 + $0x8] sm:$0xff]
      %3620 = vset.pattern.permute.xlu0 0
      %3621 = vperm.xlu0 %3620, %v3617
      %v3622 = vpop.permute.xlu0 %3621
      %3625 = vset.pattern.permute.xlu0 0
      %3626 = vperm.xlu0 %3625, %v3618
      %v3627 = vpop.permute.xlu0 %3626
      %v3630 = vsel %vm1029, %v3597, 0
      %v3633 = vsel %vm1029, %v3598, 0
      %3635 = vmatprep.subr.mxu0 0.0
      %3636 = vmatpush1.msra.mxu0 0.0
      %3637 = vmatprep.subr.mxu0 0.0
      %3638 = vmatpush1.msra.mxu0 0.0
      %3639 = vmatprep.subr.mxu0 0.0
      %3640 = vmatpush1.msra.mxu0 0.0
      %3641 = vmatprep.subr.mxu0 0.0
      %3642 = vmatpush1.msra.mxu0 0.0
      %3643 = vmatprep.subr.mxu0 0.0
      %3644 = vmatpush1.msra.mxu0 0.0
      %3645 = vmatprep.subr.mxu0 0.0
      %3646 = vmatpush1.msra.mxu0 0.0
      %3647 = vmatprep.subr.mxu0 0.0
      %3648 = vmatpush1.msra.mxu0 0.0
      %3649 = vmatprep.subr.mxu0 %v3616
      %3650 = vmatpush1.msra.mxu0 %v3615
      %3651 = vmatprep.subr.mxu0 %v3614
      %3652 = vmatpush1.msra.mxu0 %v3613
      %3653 = vmatprep.subr.mxu0 %v3612
      %3654 = vmatpush1.msra.mxu0 %v3611
      %3655 = vmatprep.subr.mxu0 %v3610
      %3656 = vmatpush1.msra.mxu0 %v3609
      %3657 = vmatprep.subr.mxu0 %v3608
      %3658 = vmatpush1.msra.mxu0 %v3607
      %3659 = vmatprep.subr.mxu0 %v3606
      %3660 = vmatpush1.msra.mxu0 %v3605
      %3661 = vmatprep.subr.mxu0 %v3604
      %3662 = vmatpush1.msra.mxu0 %v3603
      %3663 = vmatprep.subr.mxu0 %v3602
      %3664 = vmatpush1.msra.mxu0 %v3601
      %3665 = vmatprep.subr.mxu0 %v3600
      %3666 = vmatpush1.msra.mxu0 %v3599
      %3667 = vmatprep.subr.mxu0 0.0
      %3668 = vmatpush2.msra.mxu0 0.0
      %3669 = vmatprep.subr.mxu0 0.0
      %3670 = vmatpush2.msra.mxu0 0.0
      %3671 = vmatprep.subr.mxu0 0.0
      %3672 = vmatpush2.msra.mxu0 0.0
      %3673 = vmatprep.subr.mxu0 0.0
      %3674 = vmatpush2.msra.mxu0 0.0
      %3675 = vmatprep.subr.mxu0 0.0
      %3676 = vmatpush2.msra.mxu0 0.0
      %3677 = vmatprep.subr.mxu0 0.0
      %3678 = vmatpush2.msra.mxu0 0.0
      %3679 = vmatprep.subr.mxu0 0.0
      %3680 = vmatpush2.msra.mxu0 0.0
      %3681 = vmatprep.subr.mxu0 0.0
      %3682 = vmatpush2.msra.mxu0 0.0
      %3683 = vmatprep.subr.mxu0 0.0
      %3684 = vmatpush2.msra.mxu0 0.0
      %3685 = vmatprep.subr.mxu0 0.0
      %3686 = vmatpush2.msra.mxu0 0.0
      %3687 = vmatprep.subr.mxu0 0.0
      %3688 = vmatpush2.msra.mxu0 0.0
      %3689 = vmatprep.subr.mxu0 0.0
      %3690 = vmatpush2.msra.mxu0 0.0
      %3691 = vmatprep.subr.mxu0 0.0
      %3692 = vmatpush2.msra.mxu0 0.0
      %3693 = vmatprep.subr.mxu0 0.0
      %3694 = vmatpush2.msra.mxu0 0.0
      %3695 = vmatprep.subr.mxu0 0.0
      %3696 = vmatpush2.msra.mxu0 0.0
      %3697 = vmatprep.subr.mxu0 0.0
      %3698 = vmatpush2.msra.mxu0 0.0
      %3699 = vmatprep.mubr.f32.mxu0 0.0
      %3700 = vmatmul.mubr.f32.gmra.mxu0 %v3630
      %v3701 = vpop.f32.mrf.mxu0
      %v3702 = vadd.f32 %v3622, %v3701
      %v3703 = vpop.f32.mrf.mxu0
      %v3704 = vadd.f32 %v3622, %v3703
      %3705 = vmatprep.mubr.f32.mxu0 0.0
      %3706 = vmatmul.mubr.f32.gmra.mxu0 %v3633
      %v3707 = vpop.f32.mrf.mxu0
      %v3708 = vadd.f32 %v3627, %v3707
      %v3709 = vpop.f32.mrf.mxu0
      %v3710 = vadd.f32 %v3627, %v3709
      %3711 = vdwg.mxu0
      %v3712 = vmax.f32 %v3702, 0.0
      %v3713 = vmax.f32 %v3704, 0.0
      %v3714 = vmax.f32 %v3708, 0.0
      %v3715 = vmax.f32 %v3710, 0.0
      %v3716 = vmul.f32 %v3712, %v3712
      %v3717 = vmul.f32 %v3713, %v3713
      %v3718 = vmul.f32 %v3714, %v3714
      %v3719 = vmul.f32 %v3715, %v3715
      %3720 = vst [vmem:[%s465] sm:$0xff] %v3716
      %3721 = vst.msk [vmem:[%s465 + $0x8] sm:$0xff] %vm3433, %v3717
      %3722 = vst [vmem:[%s465 + $0x10] sm:$0xff] %v3718
      %3723 = vst.msk [vmem:[%s465 + $0x18] sm:$0xff] %vm3433, %v3719
      %v3724 = vld [vmem:[#allocation4 + $0x10] sm:$0xff]
      %v3725 = vld [vmem:[#allocation4 + $0x18] sm:$0xff]
      %v3726 = vmul.f32 %v3724, %v3423
      %v3727 = vmul.f32 %v3725, %v3427
      %3728 = vst [vmem:[#allocation5] sm:$0xff] %v3726
      %3729 = vst.msk [vmem:[#allocation5 + $0x8] sm:$0xff] %vm3433, %v3727
      %v3730 = vld [vmem:[#allocation4 + $0x10] sm:$0xff]
      %v3731 = vld [vmem:[#allocation4 + $0x18] sm:$0xff]
      %3734 = vrot.lane.b32.xlu0 %v3730, 127
      %v3735 = vpop.permute.xlu0 %3734
      %3736 = vrot.lane.b32.xlu0 %v3731, 127
      %v3737 = vpop.permute.xlu0 %3736
      %v3738 = vsel %vm615, %v3735, %v3737
      %3741 = vst [vmem:[#allocation5 + $0x10] sm:$0xff] %v3738
      %3742 = vst.msk [vmem:[#allocation5 + $0x18] sm:$0xff] %vm3433, %v3737
      %v3743 = vld [vmem:[#allocation4 + $0x10] sm:$0xff]
      %v3744 = vld [vmem:[#allocation4 + $0x18] sm:$0xff]
      %v3745 = vmul.f32 %v3743, %v3460
      %v3746 = vmul.f32 %v3744, %v3463
      %3749 = vrot.lane.b32.xlu0 %v3745, 126
      %v3750 = vpop.permute.xlu0 %3749
      %3751 = vrot.lane.b32.xlu0 %v3746, 126
      %v3752 = vpop.permute.xlu0 %3751
      %v3753 = vsel %vm728, %v3750, %v3752
      %3756 = vst [vmem:[#allocation5 + $0x20] sm:$0xff] %v3753
      %3757 = vst.msk [vmem:[#allocation5 + $0x28] sm:$0xff] %vm3433, %v3752
      %v3758 = vld [vmem:[#allocation4 + $0x10] sm:$0xff]
      %v3759 = vld [vmem:[#allocation4 + $0x18] sm:$0xff]
      %v3760 = vmul.f32 %v3758, %v3482
      %v3761 = vmul.f32 %v3759, %v3486
      %3764 = vrot.lane.b32.xlu0 %v3760, 114
      %v3765 = vpop.permute.xlu0 %3764
      %3766 = vrot.lane.b32.xlu0 %v3761, 114
      %v3767 = vpop.permute.xlu0 %3766
      %v3768 = vsel %vm3497, %v3765, %v3767
      %3771 = vst [vmem:[#allocation5 + $0x30] sm:$0xff] %v3768
      %3772 = vst.msk [vmem:[#allocation5 + $0x38] sm:$0xff] %vm3433, %v3767
      %v3773 = vld [vmem:[#allocation4 + $0x10] sm:$0xff]
      %v3774 = vld [vmem:[#allocation4 + $0x18] sm:$0xff]
      %3777 = vrot.lane.b32.xlu0 %v3773, 113
      %v3778 = vpop.permute.xlu0 %3777
      %3779 = vrot.lane.b32.xlu0 %v3774, 113
      %v3780 = vpop.permute.xlu0 %3779
      %v3781 = vsel %vm3511, %v3778, %v3780
      %3784 = vst [vmem:[#allocation5 + $0x40] sm:$0xff] %v3781
      %3785 = vst.msk [vmem:[#allocation5 + $0x48] sm:$0xff] %vm3433, %v3780
      %v3786 = vld [vmem:[#allocation4 + $0x10] sm:$0xff]
      %v3787 = vld [vmem:[#allocation4 + $0x18] sm:$0xff]
      %v3788 = vmul.f32 %v3786, %v3520
      %v3789 = vmul.f32 %v3787, %v3523
      %3792 = vrot.lane.b32.xlu0 %v3788, 112
      %v3793 = vpop.permute.xlu0 %3792
      %3794 = vrot.lane.b32.xlu0 %v3789, 112
      %v3795 = vpop.permute.xlu0 %3794
      %v3796 = vsel %vm3534, %v3793, %v3795
      %3799 = vst [vmem:[#allocation5 + $0x50] sm:$0xff] %v3796
      %3800 = vst.msk [vmem:[#allocation5 + $0x58] sm:$0xff] %vm3433, %v3795
      %v3801 = vld [vmem:[#allocation4 + $0x10] sm:$0xff]
      %v3802 = vld [vmem:[#allocation4 + $0x18] sm:$0xff]
      %v3803 = vmul.f32 %v3801, %v3543
      %v3804 = vmul.f32 %v3802, %v3546
      %3807 = vrot.lane.b32.xlu0 %v3803, 100
      %v3808 = vpop.permute.xlu0 %3807
      %3809 = vrot.lane.b32.xlu0 %v3804, 100
      %v3810 = vpop.permute.xlu0 %3809
      %v3811 = vsel %vm812, %v3808, %v3810
      %3814 = vst [vmem:[#allocation5 + $0x60] sm:$0xff] %v3811
      %3815 = vst.msk [vmem:[#allocation5 + $0x68] sm:$0xff] %vm3433, %v3810
      %v3816 = vld [vmem:[#allocation4 + $0x10] sm:$0xff]
      %v3817 = vld [vmem:[#allocation4 + $0x18] sm:$0xff]
      %3820 = vrot.lane.b32.xlu0 %v3816, 99
      %v3821 = vpop.permute.xlu0 %3820
      %3822 = vrot.lane.b32.xlu0 %v3817, 99
      %v3823 = vpop.permute.xlu0 %3822
      %v3824 = vsel %vm861, %v3821, %v3823
      %3827 = vst [vmem:[#allocation5 + $0x70] sm:$0xff] %v3824
      %3828 = vst.msk [vmem:[#allocation5 + $0x78] sm:$0xff] %vm3433, %v3823
      %v3829 = vld [vmem:[#allocation4 + $0x10] sm:$0xff]
      %v3830 = vld [vmem:[#allocation4 + $0x18] sm:$0xff]
      %v3831 = vmul.f32 %v3829, %v3578
      %v3832 = vmul.f32 %v3830, %v3581
      %3835 = vrot.lane.b32.xlu0 %v3831, 98
      %v3836 = vpop.permute.xlu0 %3835
      %3837 = vrot.lane.b32.xlu0 %v3832, 98
      %v3838 = vpop.permute.xlu0 %3837
      %v3839 = vsel %vm945, %v3836, %v3838
      %3842 = vst [vmem:[#allocation5 + $0x80] sm:$0xff] %v3839
      %3843 = vst.msk [vmem:[#allocation5 + $0x88] sm:$0xff] %vm3433, %v3838
      %v3844 = vld [vmem:[%s3] sm:$0xff]
      %v3845 = vld [vmem:[%s3 + $0x8] sm:$0xff]
      %v3846 = vld [vmem:[#allocation5] sm:$0xff]
      %v3847 = vld [vmem:[#allocation5 + $0x8] sm:$0xff]
      %v3848 = vld [vmem:[#allocation5 + $0x10] sm:$0xff]
      %v3849 = vld [vmem:[#allocation5 + $0x18] sm:$0xff]
      %v3850 = vld [vmem:[#allocation5 + $0x20] sm:$0xff]
      %v3851 = vld [vmem:[#allocation5 + $0x28] sm:$0xff]
      %v3852 = vld [vmem:[#allocation5 + $0x30] sm:$0xff]
      %v3853 = vld [vmem:[#allocation5 + $0x38] sm:$0xff]
      %v3854 = vld [vmem:[#allocation5 + $0x40] sm:$0xff]
      %v3855 = vld [vmem:[#allocation5 + $0x48] sm:$0xff]
      %v3856 = vld [vmem:[#allocation5 + $0x50] sm:$0xff]
      %v3857 = vld [vmem:[#allocation5 + $0x58] sm:$0xff]
      %v3858 = vld [vmem:[#allocation5 + $0x60] sm:$0xff]
      %v3859 = vld [vmem:[#allocation5 + $0x68] sm:$0xff]
      %v3860 = vld [vmem:[#allocation5 + $0x70] sm:$0xff]
      %v3861 = vld [vmem:[#allocation5 + $0x78] sm:$0xff]
      %v3862 = vld [vmem:[#allocation5 + $0x80] sm:$0xff]
      %v3863 = vld [vmem:[#allocation5 + $0x88] sm:$0xff]
      %v3864 = vld [vmem:[%s4] sm:$0xff]
      %v3865 = vld [vmem:[%s4 + $0x8] sm:$0xff]
      %3867 = vset.pattern.permute.xlu0 0
      %3868 = vperm.xlu0 %3867, %v3864
      %v3869 = vpop.permute.xlu0 %3868
      %3872 = vset.pattern.permute.xlu0 0
      %3873 = vperm.xlu0 %3872, %v3865
      %v3874 = vpop.permute.xlu0 %3873
      %v3877 = vsel %vm1029, %v3844, 0
      %v3880 = vsel %vm1029, %v3845, 0
      %3882 = vmatprep.subr.mxu0 0.0
      %3883 = vmatpush1.msra.mxu0 0.0
      %3884 = vmatprep.subr.mxu0 0.0
      %3885 = vmatpush1.msra.mxu0 0.0
      %3886 = vmatprep.subr.mxu0 0.0
      %3887 = vmatpush1.msra.mxu0 0.0
      %3888 = vmatprep.subr.mxu0 0.0
      %3889 = vmatpush1.msra.mxu0 0.0
      %3890 = vmatprep.subr.mxu0 0.0
      %3891 = vmatpush1.msra.mxu0 0.0
      %3892 = vmatprep.subr.mxu0 0.0
      %3893 = vmatpush1.msra.mxu0 0.0
      %3894 = vmatprep.subr.mxu0 0.0
      %3895 = vmatpush1.msra.mxu0 0.0
      %3896 = vmatprep.subr.mxu0 %v3863
      %3897 = vmatpush1.msra.mxu0 %v3862
      %3898 = vmatprep.subr.mxu0 %v3861
      %3899 = vmatpush1.msra.mxu0 %v3860
      %3900 = vmatprep.subr.mxu0 %v3859
      %3901 = vmatpush1.msra.mxu0 %v3858
      %3902 = vmatprep.subr.mxu0 %v3857
      %3903 = vmatpush1.msra.mxu0 %v3856
      %3904 = vmatprep.subr.mxu0 %v3855
      %3905 = vmatpush1.msra.mxu0 %v3854
      %3906 = vmatprep.subr.mxu0 %v3853
      %3907 = vmatpush1.msra.mxu0 %v3852
      %3908 = vmatprep.subr.mxu0 %v3851
      %3909 = vmatpush1.msra.mxu0 %v3850
      %3910 = vmatprep.subr.mxu0 %v3849
      %3911 = vmatpush1.msra.mxu0 %v3848
      %3912 = vmatprep.subr.mxu0 %v3847
      %3913 = vmatpush1.msra.mxu0 %v3846
      %3914 = vmatprep.subr.mxu0 0.0
      %3915 = vmatpush2.msra.mxu0 0.0
      %3916 = vmatprep.subr.mxu0 0.0
      %3917 = vmatpush2.msra.mxu0 0.0
      %3918 = vmatprep.subr.mxu0 0.0
      %3919 = vmatpush2.msra.mxu0 0.0
      %3920 = vmatprep.subr.mxu0 0.0
      %3921 = vmatpush2.msra.mxu0 0.0
      %3922 = vmatprep.subr.mxu0 0.0
      %3923 = vmatpush2.msra.mxu0 0.0
      %3924 = vmatprep.subr.mxu0 0.0
      %3925 = vmatpush2.msra.mxu0 0.0
      %3926 = vmatprep.subr.mxu0 0.0
      %3927 = vmatpush2.msra.mxu0 0.0
      %3928 = vmatprep.subr.mxu0 0.0
      %3929 = vmatpush2.msra.mxu0 0.0
      %3930 = vmatprep.subr.mxu0 0.0
      %3931 = vmatpush2.msra.mxu0 0.0
      %3932 = vmatprep.subr.mxu0 0.0
      %3933 = vmatpush2.msra.mxu0 0.0
      %3934 = vmatprep.subr.mxu0 0.0
      %3935 = vmatpush2.msra.mxu0 0.0
      %3936 = vmatprep.subr.mxu0 0.0
      %3937 = vmatpush2.msra.mxu0 0.0
      %3938 = vmatprep.subr.mxu0 0.0
      %3939 = vmatpush2.msra.mxu0 0.0
      %3940 = vmatprep.subr.mxu0 0.0
      %3941 = vmatpush2.msra.mxu0 0.0
      %3942 = vmatprep.subr.mxu0 0.0
      %3943 = vmatpush2.msra.mxu0 0.0
      %3944 = vmatprep.subr.mxu0 0.0
      %3945 = vmatpush2.msra.mxu0 0.0
      %3946 = vmatprep.mubr.f32.mxu0 0.0
      %3947 = vmatmul.mubr.f32.gmra.mxu0 %v3877
      %v3948 = vpop.f32.mrf.mxu0
      %v3949 = vadd.f32 %v3869, %v3948
      %v3950 = vpop.f32.mrf.mxu0
      %v3951 = vadd.f32 %v3869, %v3950
      %3952 = vmatprep.mubr.f32.mxu0 0.0
      %3953 = vmatmul.mubr.f32.gmra.mxu0 %v3880
      %v3954 = vpop.f32.mrf.mxu0
      %v3955 = vadd.f32 %v3874, %v3954
      %v3956 = vpop.f32.mrf.mxu0
      %v3957 = vadd.f32 %v3874, %v3956
      %3958 = vdwg.mxu0
      %v3959 = vmax.f32 %v3949, 0.0
      %v3960 = vmax.f32 %v3951, 0.0
      %v3961 = vmax.f32 %v3955, 0.0
      %v3962 = vmax.f32 %v3957, 0.0
      %v3963 = vmul.f32 %v3959, %v3959
      %v3964 = vmul.f32 %v3960, %v3960
      %v3965 = vmul.f32 %v3961, %v3961
      %v3966 = vmul.f32 %v3962, %v3962
      %3967 = vst [vmem:[%s465 + $0x20] sm:$0xff] %v3963
      %3968 = vst.msk [vmem:[%s465 + $0x28] sm:$0xff] %vm3433, %v3964
      %3969 = vst [vmem:[%s465 + $0x30] sm:$0xff] %v3965
      %3970 = vst.msk [vmem:[%s465 + $0x38] sm:$0xff] %vm3433, %v3966
      %v3971 = vld [vmem:[#allocation4 + $0x20] sm:$0xff]
      %v3972 = vld [vmem:[#allocation4 + $0x28] sm:$0xff]
      %v3973 = vmul.f32 %v3971, %v3423
      %v3974 = vmul.f32 %v3972, %v3427
      %3975 = vst [vmem:[#allocation5] sm:$0xff] %v3973
      %3976 = vst.msk [vmem:[#allocation5 + $0x8] sm:$0xff] %vm3433, %v3974
      %v3977 = vld [vmem:[#allocation4 + $0x20] sm:$0xff]
      %v3978 = vld [vmem:[#allocation4 + $0x28] sm:$0xff]
      %3981 = vrot.lane.b32.xlu0 %v3977, 127
      %v3982 = vpop.permute.xlu0 %3981
      %3983 = vrot.lane.b32.xlu0 %v3978, 127
      %v3984 = vpop.permute.xlu0 %3983
      %v3985 = vsel %vm615, %v3982, %v3984
      %3988 = vst [vmem:[#allocation5 + $0x10] sm:$0xff] %v3985
      %3989 = vst.msk [vmem:[#allocation5 + $0x18] sm:$0xff] %vm3433, %v3984
      %v3990 = vld [vmem:[#allocation4 + $0x20] sm:$0xff]
      %v3991 = vld [vmem:[#allocation4 + $0x28] sm:$0xff]
      %v3992 = vmul.f32 %v3990, %v3460
      %v3993 = vmul.f32 %v3991, %v3463
      %3996 = vrot.lane.b32.xlu0 %v3992, 126
      %v3997 = vpop.permute.xlu0 %3996
      %3998 = vrot.lane.b32.xlu0 %v3993, 126
      %v3999 = vpop.permute.xlu0 %3998
      %v4000 = vsel %vm728, %v3997, %v3999
      %4003 = vst [vmem:[#allocation5 + $0x20] sm:$0xff] %v4000
      %4004 = vst.msk [vmem:[#allocation5 + $0x28] sm:$0xff] %vm3433, %v3999
      %v4005 = vld [vmem:[#allocation4 + $0x20] sm:$0xff]
      %v4006 = vld [vmem:[#allocation4 + $0x28] sm:$0xff]
      %v4007 = vmul.f32 %v4005, %v3482
      %v4008 = vmul.f32 %v4006, %v3486
      %4011 = vrot.lane.b32.xlu0 %v4007, 114
      %v4012 = vpop.permute.xlu0 %4011
      %4013 = vrot.lane.b32.xlu0 %v4008, 114
      %v4014 = vpop.permute.xlu0 %4013
      %v4015 = vsel %vm3497, %v4012, %v4014
      %4018 = vst [vmem:[#allocation5 + $0x30] sm:$0xff] %v4015
      %4019 = vst.msk [vmem:[#allocation5 + $0x38] sm:$0xff] %vm3433, %v4014
      %v4020 = vld [vmem:[#allocation4 + $0x20] sm:$0xff]
      %v4021 = vld [vmem:[#allocation4 + $0x28] sm:$0xff]
      %4024 = vrot.lane.b32.xlu0 %v4020, 113
      %v4025 = vpop.permute.xlu0 %4024
      %4026 = vrot.lane.b32.xlu0 %v4021, 113
      %v4027 = vpop.permute.xlu0 %4026
      %v4028 = vsel %vm3511, %v4025, %v4027
      %4031 = vst [vmem:[#allocation5 + $0x40] sm:$0xff] %v4028
      %4032 = vst.msk [vmem:[#allocation5 + $0x48] sm:$0xff] %vm3433, %v4027
      %v4033 = vld [vmem:[#allocation4 + $0x20] sm:$0xff]
      %v4034 = vld [vmem:[#allocation4 + $0x28] sm:$0xff]
      %v4035 = vmul.f32 %v4033, %v3520
      %v4036 = vmul.f32 %v4034, %v3523
      %4039 = vrot.lane.b32.xlu0 %v4035, 112
      %v4040 = vpop.permute.xlu0 %4039
      %4041 = vrot.lane.b32.xlu0 %v4036, 112
      %v4042 = vpop.permute.xlu0 %4041
      %v4043 = vsel %vm3534, %v4040, %v4042
      %4046 = vst [vmem:[#allocation5 + $0x50] sm:$0xff] %v4043
      %4047 = vst.msk [vmem:[#allocation5 + $0x58] sm:$0xff] %vm3433, %v4042
      %v4048 = vld [vmem:[#allocation4 + $0x20] sm:$0xff]
      %v4049 = vld [vmem:[#allocation4 + $0x28] sm:$0xff]
      %v4050 = vmul.f32 %v4048, %v3543
      %v4051 = vmul.f32 %v4049, %v3546
      %4054 = vrot.lane.b32.xlu0 %v4050, 100
      %v4055 = vpop.permute.xlu0 %4054
      %4056 = vrot.lane.b32.xlu0 %v4051, 100
      %v4057 = vpop.permute.xlu0 %4056
      %v4058 = vsel %vm812, %v4055, %v4057
      %4061 = vst [vmem:[#allocation5 + $0x60] sm:$0xff] %v4058
      %4062 = vst.msk [vmem:[#allocation5 + $0x68] sm:$0xff] %vm3433, %v4057
      %v4063 = vld [vmem:[#allocation4 + $0x20] sm:$0xff]
      %v4064 = vld [vmem:[#allocation4 + $0x28] sm:$0xff]
      %4067 = vrot.lane.b32.xlu0 %v4063, 99
      %v4068 = vpop.permute.xlu0 %4067
      %4069 = vrot.lane.b32.xlu0 %v4064, 99
      %v4070 = vpop.permute.xlu0 %4069
      %v4071 = vsel %vm861, %v4068, %v4070
      %4074 = vst [vmem:[#allocation5 + $0x70] sm:$0xff] %v4071
      %4075 = vst.msk [vmem:[#allocation5 + $0x78] sm:$0xff] %vm3433, %v4070
      %v4076 = vld [vmem:[#allocation4 + $0x20] sm:$0xff]
      %v4077 = vld [vmem:[#allocation4 + $0x28] sm:$0xff]
      %v4078 = vmul.f32 %v4076, %v3578
      %v4079 = vmul.f32 %v4077, %v3581
      %4082 = vrot.lane.b32.xlu0 %v4078, 98
      %v4083 = vpop.permute.xlu0 %4082
      %4084 = vrot.lane.b32.xlu0 %v4079, 98
      %v4085 = vpop.permute.xlu0 %4084
      %v4086 = vsel %vm945, %v4083, %v4085
      %4089 = vst [vmem:[#allocation5 + $0x80] sm:$0xff] %v4086
      %4090 = vst.msk [vmem:[#allocation5 + $0x88] sm:$0xff] %vm3433, %v4085
      %v4091 = vld [vmem:[%s3] sm:$0xff]
      %v4092 = vld [vmem:[%s3 + $0x8] sm:$0xff]
      %v4093 = vld [vmem:[#allocation5] sm:$0xff]
      %v4094 = vld [vmem:[#allocation5 + $0x8] sm:$0xff]
      %v4095 = vld [vmem:[#allocation5 + $0x10] sm:$0xff]
      %v4096 = vld [vmem:[#allocation5 + $0x18] sm:$0xff]
      %v4097 = vld [vmem:[#allocation5 + $0x20] sm:$0xff]
      %v4098 = vld [vmem:[#allocation5 + $0x28] sm:$0xff]
      %v4099 = vld [vmem:[#allocation5 + $0x30] sm:$0xff]
      %v4100 = vld [vmem:[#allocation5 + $0x38] sm:$0xff]
      %v4101 = vld [vmem:[#allocation5 + $0x40] sm:$0xff]
      %v4102 = vld [vmem:[#allocation5 + $0x48] sm:$0xff]
      %v4103 = vld [vmem:[#allocation5 + $0x50] sm:$0xff]
      %v4104 = vld [vmem:[#allocation5 + $0x58] sm:$0xff]
      %v4105 = vld [vmem:[#allocation5 + $0x60] sm:$0xff]
      %v4106 = vld [vmem:[#allocation5 + $0x68] sm:$0xff]
      %v4107 = vld [vmem:[#allocation5 + $0x70] sm:$0xff]
      %v4108 = vld [vmem:[#allocation5 + $0x78] sm:$0xff]
      %v4109 = vld [vmem:[#allocation5 + $0x80] sm:$0xff]
      %v4110 = vld [vmem:[#allocation5 + $0x88] sm:$0xff]
      %v4111 = vld [vmem:[%s4] sm:$0xff]
      %v4112 = vld [vmem:[%s4 + $0x8] sm:$0xff]
      %4114 = vset.pattern.permute.xlu0 0
      %4115 = vperm.xlu0 %4114, %v4111
      %v4116 = vpop.permute.xlu0 %4115
      %4119 = vset.pattern.permute.xlu0 0
      %4120 = vperm.xlu0 %4119, %v4112
      %v4121 = vpop.permute.xlu0 %4120
      %v4124 = vsel %vm1029, %v4091, 0
      %v4127 = vsel %vm1029, %v4092, 0
      %4129 = vmatprep.subr.mxu0 0.0
      %4130 = vmatpush1.msra.mxu0 0.0
      %4131 = vmatprep.subr.mxu0 0.0
      %4132 = vmatpush1.msra.mxu0 0.0
      %4133 = vmatprep.subr.mxu0 0.0
      %4134 = vmatpush1.msra.mxu0 0.0
      %4135 = vmatprep.subr.mxu0 0.0
      %4136 = vmatpush1.msra.mxu0 0.0
      %4137 = vmatprep.subr.mxu0 0.0
      %4138 = vmatpush1.msra.mxu0 0.0
      %4139 = vmatprep.subr.mxu0 0.0
      %4140 = vmatpush1.msra.mxu0 0.0
      %4141 = vmatprep.subr.mxu0 0.0
      %4142 = vmatpush1.msra.mxu0 0.0
      %4143 = vmatprep.subr.mxu0 %v4110
      %4144 = vmatpush1.msra.mxu0 %v4109
      %4145 = vmatprep.subr.mxu0 %v4108
      %4146 = vmatpush1.msra.mxu0 %v4107
      %4147 = vmatprep.subr.mxu0 %v4106
      %4148 = vmatpush1.msra.mxu0 %v4105
      %4149 = vmatprep.subr.mxu0 %v4104
      %4150 = vmatpush1.msra.mxu0 %v4103
      %4151 = vmatprep.subr.mxu0 %v4102
      %4152 = vmatpush1.msra.mxu0 %v4101
      %4153 = vmatprep.subr.mxu0 %v4100
      %4154 = vmatpush1.msra.mxu0 %v4099
      %4155 = vmatprep.subr.mxu0 %v4098
      %4156 = vmatpush1.msra.mxu0 %v4097
      %4157 = vmatprep.subr.mxu0 %v4096
      %4158 = vmatpush1.msra.mxu0 %v4095
      %4159 = vmatprep.subr.mxu0 %v4094
      %4160 = vmatpush1.msra.mxu0 %v4093
      %4161 = vmatprep.subr.mxu0 0.0
      %4162 = vmatpush2.msra.mxu0 0.0
      %4163 = vmatprep.subr.mxu0 0.0
      %4164 = vmatpush2.msra.mxu0 0.0
      %4165 = vmatprep.subr.mxu0 0.0
      %4166 = vmatpush2.msra.mxu0 0.0
      %4167 = vmatprep.subr.mxu0 0.0
      %4168 = vmatpush2.msra.mxu0 0.0
      %4169 = vmatprep.subr.mxu0 0.0
      %4170 = vmatpush2.msra.mxu0 0.0
      %4171 = vmatprep.subr.mxu0 0.0
      %4172 = vmatpush2.msra.mxu0 0.0
      %4173 = vmatprep.subr.mxu0 0.0
      %4174 = vmatpush2.msra.mxu0 0.0
      %4175 = vmatprep.subr.mxu0 0.0
      %4176 = vmatpush2.msra.mxu0 0.0
      %4177 = vmatprep.subr.mxu0 0.0
      %4178 = vmatpush2.msra.mxu0 0.0
      %4179 = vmatprep.subr.mxu0 0.0
      %4180 = vmatpush2.msra.mxu0 0.0
      %4181 = vmatprep.subr.mxu0 0.0
      %4182 = vmatpush2.msra.mxu0 0.0
      %4183 = vmatprep.subr.mxu0 0.0
      %4184 = vmatpush2.msra.mxu0 0.0
      %4185 = vmatprep.subr.mxu0 0.0
      %4186 = vmatpush2.msra.mxu0 0.0
      %4187 = vmatprep.subr.mxu0 0.0
      %4188 = vmatpush2.msra.mxu0 0.0
      %4189 = vmatprep.subr.mxu0 0.0
      %4190 = vmatpush2.msra.mxu0 0.0
      %4191 = vmatprep.subr.mxu0 0.0
      %4192 = vmatpush2.msra.mxu0 0.0
      %4193 = vmatprep.mubr.f32.mxu0 0.0
      %4194 = vmatmul.mubr.f32.gmra.mxu0 %v4124
      %v4195 = vpop.f32.mrf.mxu0
      %v4196 = vadd.f32 %v4116, %v4195
      %v4197 = vpop.f32.mrf.mxu0
      %v4198 = vadd.f32 %v4116, %v4197
      %4199 = vmatprep.mubr.f32.mxu0 0.0
      %4200 = vmatmul.mubr.f32.gmra.mxu0 %v4127
      %v4201 = vpop.f32.mrf.mxu0
      %v4202 = vadd.f32 %v4121, %v4201
      %v4203 = vpop.f32.mrf.mxu0
      %v4204 = vadd.f32 %v4121, %v4203
      %4205 = vdwg.mxu0
      %v4206 = vmax.f32 %v4196, 0.0
      %v4207 = vmax.f32 %v4198, 0.0
      %v4208 = vmax.f32 %v4202, 0.0
      %v4209 = vmax.f32 %v4204, 0.0
      %v4210 = vmul.f32 %v4206, %v4206
      %v4211 = vmul.f32 %v4207, %v4207
      %v4212 = vmul.f32 %v4208, %v4208
      %v4213 = vmul.f32 %v4209, %v4209
      %4214 = vst [vmem:[%s465 + $0x40] sm:$0xff] %v4210
      %4215 = vst.msk [vmem:[%s465 + $0x48] sm:$0xff] %vm3433, %v4211
      %4216 = vst [vmem:[%s465 + $0x50] sm:$0xff] %v4212
      %4217 = vst.msk [vmem:[%s465 + $0x58] sm:$0xff] %vm3433, %v4213
      %v4218 = vld [vmem:[#allocation4 + $0x30] sm:$0xff]
      %v4219 = vld [vmem:[#allocation4 + $0x38] sm:$0xff]
      %v4220 = vmul.f32 %v4218, %v3423
      %v4221 = vmul.f32 %v4219, %v3427
      %4222 = vst [vmem:[#allocation5] sm:$0xff] %v4220
      %4223 = vst.msk [vmem:[#allocation5 + $0x8] sm:$0xff] %vm3433, %v4221
      %v4224 = vld [vmem:[#allocation4 + $0x30] sm:$0xff]
      %v4225 = vld [vmem:[#allocation4 + $0x38] sm:$0xff]
      %4228 = vrot.lane.b32.xlu0 %v4224, 127
      %v4229 = vpop.permute.xlu0 %4228
      %4230 = vrot.lane.b32.xlu0 %v4225, 127
      %v4231 = vpop.permute.xlu0 %4230
      %v4232 = vsel %vm615, %v4229, %v4231
      %4235 = vst [vmem:[#allocation5 + $0x10] sm:$0xff] %v4232
      %4236 = vst.msk [vmem:[#allocation5 + $0x18] sm:$0xff] %vm3433, %v4231
      %v4237 = vld [vmem:[#allocation4 + $0x30] sm:$0xff]
      %v4238 = vld [vmem:[#allocation4 + $0x38] sm:$0xff]
      %v4239 = vmul.f32 %v4237, %v3460
      %v4240 = vmul.f32 %v4238, %v3463
      %4243 = vrot.lane.b32.xlu0 %v4239, 126
      %v4244 = vpop.permute.xlu0 %4243
      %4245 = vrot.lane.b32.xlu0 %v4240, 126
      %v4246 = vpop.permute.xlu0 %4245
      %v4247 = vsel %vm728, %v4244, %v4246
      %4250 = vst [vmem:[#allocation5 + $0x20] sm:$0xff] %v4247
      %4251 = vst.msk [vmem:[#allocation5 + $0x28] sm:$0xff] %vm3433, %v4246
      %v4252 = vld [vmem:[#allocation4 + $0x30] sm:$0xff]
      %v4253 = vld [vmem:[#allocation4 + $0x38] sm:$0xff]
      %v4254 = vmul.f32 %v4252, %v3482
      %v4255 = vmul.f32 %v4253, %v3486
      %4258 = vrot.lane.b32.xlu0 %v4254, 114
      %v4259 = vpop.permute.xlu0 %4258
      %4260 = vrot.lane.b32.xlu0 %v4255, 114
      %v4261 = vpop.permute.xlu0 %4260
      %v4262 = vsel %vm3497, %v4259, %v4261
      %4265 = vst [vmem:[#allocation5 + $0x30] sm:$0xff] %v4262
      %4266 = vst.msk [vmem:[#allocation5 + $0x38] sm:$0xff] %vm3433, %v4261
      %v4267 = vld [vmem:[#allocation4 + $0x30] sm:$0xff]
      %v4268 = vld [vmem:[#allocation4 + $0x38] sm:$0xff]
      %4271 = vrot.lane.b32.xlu0 %v4267, 113
      %v4272 = vpop.permute.xlu0 %4271
      %4273 = vrot.lane.b32.xlu0 %v4268, 113
      %v4274 = vpop.permute.xlu0 %4273
      %v4275 = vsel %vm3511, %v4272, %v4274
      %4278 = vst [vmem:[#allocation5 + $0x40] sm:$0xff] %v4275
      %4279 = vst.msk [vmem:[#allocation5 + $0x48] sm:$0xff] %vm3433, %v4274
      %v4280 = vld [vmem:[#allocation4 + $0x30] sm:$0xff]
      %v4281 = vld [vmem:[#allocation4 + $0x38] sm:$0xff]
      %v4282 = vmul.f32 %v4280, %v3520
      %v4283 = vmul.f32 %v4281, %v3523
      %4286 = vrot.lane.b32.xlu0 %v4282, 112
      %v4287 = vpop.permute.xlu0 %4286
      %4288 = vrot.lane.b32.xlu0 %v4283, 112
      %v4289 = vpop.permute.xlu0 %4288
      %v4290 = vsel %vm3534, %v4287, %v4289
      %4293 = vst [vmem:[#allocation5 + $0x50] sm:$0xff] %v4290
      %4294 = vst.msk [vmem:[#allocation5 + $0x58] sm:$0xff] %vm3433, %v4289
      %v4295 = vld [vmem:[#allocation4 + $0x30] sm:$0xff]
      %v4296 = vld [vmem:[#allocation4 + $0x38] sm:$0xff]
      %v4297 = vmul.f32 %v4295, %v3543
      %v4298 = vmul.f32 %v4296, %v3546
      %4301 = vrot.lane.b32.xlu0 %v4297, 100
      %v4302 = vpop.permute.xlu0 %4301
      %4303 = vrot.lane.b32.xlu0 %v4298, 100
      %v4304 = vpop.permute.xlu0 %4303
      %v4305 = vsel %vm812, %v4302, %v4304
      %4308 = vst [vmem:[#allocation5 + $0x60] sm:$0xff] %v4305
      %4309 = vst.msk [vmem:[#allocation5 + $0x68] sm:$0xff] %vm3433, %v4304
      %v4310 = vld [vmem:[#allocation4 + $0x30] sm:$0xff]
      %v4311 = vld [vmem:[#allocation4 + $0x38] sm:$0xff]
      %4314 = vrot.lane.b32.xlu0 %v4310, 99
      %v4315 = vpop.permute.xlu0 %4314
      %4316 = vrot.lane.b32.xlu0 %v4311, 99
      %v4317 = vpop.permute.xlu0 %4316
      %v4318 = vsel %vm861, %v4315, %v4317
      %4321 = vst [vmem:[#allocation5 + $0x70] sm:$0xff] %v4318
      %4322 = vst.msk [vmem:[#allocation5 + $0x78] sm:$0xff] %vm3433, %v4317
      %v4323 = vld [vmem:[#allocation4 + $0x30] sm:$0xff]
      %v4324 = vld [vmem:[#allocation4 + $0x38] sm:$0xff]
      %v4325 = vmul.f32 %v4323, %v3578
      %v4326 = vmul.f32 %v4324, %v3581
      %4329 = vrot.lane.b32.xlu0 %v4325, 98
      %v4330 = vpop.permute.xlu0 %4329
      %4331 = vrot.lane.b32.xlu0 %v4326, 98
      %v4332 = vpop.permute.xlu0 %4331
      %v4333 = vsel %vm945, %v4330, %v4332
      %4336 = vst [vmem:[#allocation5 + $0x80] sm:$0xff] %v4333
      %4337 = vst.msk [vmem:[#allocation5 + $0x88] sm:$0xff] %vm3433, %v4332
      %v4338 = vld [vmem:[%s3] sm:$0xff]
      %v4339 = vld [vmem:[%s3 + $0x8] sm:$0xff]
      %v4340 = vld [vmem:[#allocation5] sm:$0xff]
      %v4341 = vld [vmem:[#allocation5 + $0x8] sm:$0xff]
      %v4342 = vld [vmem:[#allocation5 + $0x10] sm:$0xff]
      %v4343 = vld [vmem:[#allocation5 + $0x18] sm:$0xff]
      %v4344 = vld [vmem:[#allocation5 + $0x20] sm:$0xff]
      %v4345 = vld [vmem:[#allocation5 + $0x28] sm:$0xff]
      %v4346 = vld [vmem:[#allocation5 + $0x30] sm:$0xff]
      %v4347 = vld [vmem:[#allocation5 + $0x38] sm:$0xff]
      %v4348 = vld [vmem:[#allocation5 + $0x40] sm:$0xff]
      %v4349 = vld [vmem:[#allocation5 + $0x48] sm:$0xff]
      %v4350 = vld [vmem:[#allocation5 + $0x50] sm:$0xff]
      %v4351 = vld [vmem:[#allocation5 + $0x58] sm:$0xff]
      %v4352 = vld [vmem:[#allocation5 + $0x60] sm:$0xff]
      %v4353 = vld [vmem:[#allocation5 + $0x68] sm:$0xff]
      %v4354 = vld [vmem:[#allocation5 + $0x70] sm:$0xff]
      %v4355 = vld [vmem:[#allocation5 + $0x78] sm:$0xff]
      %v4356 = vld [vmem:[#allocation5 + $0x80] sm:$0xff]
      %v4357 = vld [vmem:[#allocation5 + $0x88] sm:$0xff]
      %v4358 = vld [vmem:[%s4] sm:$0xff]
      %v4359 = vld [vmem:[%s4 + $0x8] sm:$0xff]
      %4361 = vset.pattern.permute.xlu0 0
      %4362 = vperm.xlu0 %4361, %v4358
      %v4363 = vpop.permute.xlu0 %4362
      %4366 = vset.pattern.permute.xlu0 0
      %4367 = vperm.xlu0 %4366, %v4359
      %v4368 = vpop.permute.xlu0 %4367
      %v4371 = vsel %vm1029, %v4338, 0
      %v4374 = vsel %vm1029, %v4339, 0
      %4376 = vmatprep.subr.mxu0 0.0
      %4377 = vmatpush1.msra.mxu0 0.0
      %4378 = vmatprep.subr.mxu0 0.0
      %4379 = vmatpush1.msra.mxu0 0.0
      %4380 = vmatprep.subr.mxu0 0.0
      %4381 = vmatpush1.msra.mxu0 0.0
      %4382 = vmatprep.subr.mxu0 0.0
      %4383 = vmatpush1.msra.mxu0 0.0
      %4384 = vmatprep.subr.mxu0 0.0
      %4385 = vmatpush1.msra.mxu0 0.0
      %4386 = vmatprep.subr.mxu0 0.0
      %4387 = vmatpush1.msra.mxu0 0.0
      %4388 = vmatprep.subr.mxu0 0.0
      %4389 = vmatpush1.msra.mxu0 0.0
      %4390 = vmatprep.subr.mxu0 %v4357
      %4391 = vmatpush1.msra.mxu0 %v4356
      %4392 = vmatprep.subr.mxu0 %v4355
      %4393 = vmatpush1.msra.mxu0 %v4354
      %4394 = vmatprep.subr.mxu0 %v4353
      %4395 = vmatpush1.msra.mxu0 %v4352
      %4396 = vmatprep.subr.mxu0 %v4351
      %4397 = vmatpush1.msra.mxu0 %v4350
      %4398 = vmatprep.subr.mxu0 %v4349
      %4399 = vmatpush1.msra.mxu0 %v4348
      %4400 = vmatprep.subr.mxu0 %v4347
      %4401 = vmatpush1.msra.mxu0 %v4346
      %4402 = vmatprep.subr.mxu0 %v4345
      %4403 = vmatpush1.msra.mxu0 %v4344
      %4404 = vmatprep.subr.mxu0 %v4343
      %4405 = vmatpush1.msra.mxu0 %v4342
      %4406 = vmatprep.subr.mxu0 %v4341
      %4407 = vmatpush1.msra.mxu0 %v4340
      %4408 = vmatprep.subr.mxu0 0.0
      %4409 = vmatpush2.msra.mxu0 0.0
      %4410 = vmatprep.subr.mxu0 0.0
      %4411 = vmatpush2.msra.mxu0 0.0
      %4412 = vmatprep.subr.mxu0 0.0
      %4413 = vmatpush2.msra.mxu0 0.0
      %4414 = vmatprep.subr.mxu0 0.0
      %4415 = vmatpush2.msra.mxu0 0.0
      %4416 = vmatprep.subr.mxu0 0.0
      %4417 = vmatpush2.msra.mxu0 0.0
      %4418 = vmatprep.subr.mxu0 0.0
      %4419 = vmatpush2.msra.mxu0 0.0
      %4420 = vmatprep.subr.mxu0 0.0
      %4421 = vmatpush2.msra.mxu0 0.0
      %4422 = vmatprep.subr.mxu0 0.0
      %4423 = vmatpush2.msra.mxu0 0.0
      %4424 = vmatprep.subr.mxu0 0.0
      %4425 = vmatpush2.msra.mxu0 0.0
      %4426 = vmatprep.subr.mxu0 0.0
      %4427 = vmatpush2.msra.mxu0 0.0
      %4428 = vmatprep.subr.mxu0 0.0
      %4429 = vmatpush2.msra.mxu0 0.0
      %4430 = vmatprep.subr.mxu0 0.0
      %4431 = vmatpush2.msra.mxu0 0.0
      %4432 = vmatprep.subr.mxu0 0.0
      %4433 = vmatpush2.msra.mxu0 0.0
      %4434 = vmatprep.subr.mxu0 0.0
      %4435 = vmatpush2.msra.mxu0 0.0
      %4436 = vmatprep.subr.mxu0 0.0
      %4437 = vmatpush2.msra.mxu0 0.0
      %4438 = vmatprep.subr.mxu0 0.0
      %4439 = vmatpush2.msra.mxu0 0.0
      %4440 = vmatprep.mubr.f32.mxu0 0.0
      %4441 = vmatmul.mubr.f32.gmra.mxu0 %v4371
      %v4442 = vpop.f32.mrf.mxu0
      %v4443 = vadd.f32 %v4363, %v4442
      %v4444 = vpop.f32.mrf.mxu0
      %v4445 = vadd.f32 %v4363, %v4444
      %4446 = vmatprep.mubr.f32.mxu0 0.0
      %4447 = vmatmul.mubr.f32.gmra.mxu0 %v4374
      %v4448 = vpop.f32.mrf.mxu0
      %v4449 = vadd.f32 %v4368, %v4448
      %v4450 = vpop.f32.mrf.mxu0
      %v4451 = vadd.f32 %v4368, %v4450
      %4452 = vdwg.mxu0
      %v4453 = vmax.f32 %v4443, 0.0
      %v4454 = vmax.f32 %v4445, 0.0
      %v4455 = vmax.f32 %v4449, 0.0
      %v4456 = vmax.f32 %v4451, 0.0
      %v4457 = vmul.f32 %v4453, %v4453
      %v4458 = vmul.f32 %v4454, %v4454
      %v4459 = vmul.f32 %v4455, %v4455
      %v4460 = vmul.f32 %v4456, %v4456
      %4461 = vst [vmem:[%s465 + $0x60] sm:$0xff] %v4457
      %4462 = vst.msk [vmem:[%s465 + $0x68] sm:$0xff] %vm3433, %v4458
      %4463 = vst [vmem:[%s465 + $0x70] sm:$0xff] %v4459
      %4464 = vst.msk [vmem:[%s465 + $0x78] sm:$0xff] %vm3433, %v4460
      %v4465 = vld [vmem:[#allocation4 + $0x40] sm:$0xff]
      %v4466 = vld [vmem:[#allocation4 + $0x48] sm:$0xff]
      %v4467 = vmul.f32 %v4465, %v3423
      %v4468 = vmul.f32 %v4466, %v3427
      %4469 = vst [vmem:[#allocation5] sm:$0xff] %v4467
      %4470 = vst.msk [vmem:[#allocation5 + $0x8] sm:$0xff] %vm3433, %v4468
      %v4471 = vld [vmem:[#allocation4 + $0x40] sm:$0xff]
      %v4472 = vld [vmem:[#allocation4 + $0x48] sm:$0xff]
      %4475 = vrot.lane.b32.xlu0 %v4471, 127
      %v4476 = vpop.permute.xlu0 %4475
      %4477 = vrot.lane.b32.xlu0 %v4472, 127
      %v4478 = vpop.permute.xlu0 %4477
      %v4479 = vsel %vm615, %v4476, %v4478
      %4482 = vst [vmem:[#allocation5 + $0x10] sm:$0xff] %v4479
      %4483 = vst.msk [vmem:[#allocation5 + $0x18] sm:$0xff] %vm3433, %v4478
      %v4484 = vld [vmem:[#allocation4 + $0x40] sm:$0xff]
      %v4485 = vld [vmem:[#allocation4 + $0x48] sm:$0xff]
      %v4486 = vmul.f32 %v4484, %v3460
      %v4487 = vmul.f32 %v4485, %v3463
      %4490 = vrot.lane.b32.xlu0 %v4486, 126
      %v4491 = vpop.permute.xlu0 %4490
      %4492 = vrot.lane.b32.xlu0 %v4487, 126
      %v4493 = vpop.permute.xlu0 %4492
      %v4494 = vsel %vm728, %v4491, %v4493
      %4497 = vst [vmem:[#allocation5 + $0x20] sm:$0xff] %v4494
      %4498 = vst.msk [vmem:[#allocation5 + $0x28] sm:$0xff] %vm3433, %v4493
      %v4499 = vld [vmem:[#allocation4 + $0x40] sm:$0xff]
      %v4500 = vld [vmem:[#allocation4 + $0x48] sm:$0xff]
      %v4501 = vmul.f32 %v4499, %v3482
      %v4502 = vmul.f32 %v4500, %v3486
      %4505 = vrot.lane.b32.xlu0 %v4501, 114
      %v4506 = vpop.permute.xlu0 %4505
      %4507 = vrot.lane.b32.xlu0 %v4502, 114
      %v4508 = vpop.permute.xlu0 %4507
      %v4509 = vsel %vm3497, %v4506, %v4508
      %4512 = vst [vmem:[#allocation5 + $0x30] sm:$0xff] %v4509
      %4513 = vst.msk [vmem:[#allocation5 + $0x38] sm:$0xff] %vm3433, %v4508
      %v4514 = vld [vmem:[#allocation4 + $0x40] sm:$0xff]
      %v4515 = vld [vmem:[#allocation4 + $0x48] sm:$0xff]
      %4518 = vrot.lane.b32.xlu0 %v4514, 113
      %v4519 = vpop.permute.xlu0 %4518
      %4520 = vrot.lane.b32.xlu0 %v4515, 113
      %v4521 = vpop.permute.xlu0 %4520
      %v4522 = vsel %vm3511, %v4519, %v4521
      %4525 = vst [vmem:[#allocation5 + $0x40] sm:$0xff] %v4522
      %4526 = vst.msk [vmem:[#allocation5 + $0x48] sm:$0xff] %vm3433, %v4521
      %v4527 = vld [vmem:[#allocation4 + $0x40] sm:$0xff]
      %v4528 = vld [vmem:[#allocation4 + $0x48] sm:$0xff]
      %v4529 = vmul.f32 %v4527, %v3520
      %v4530 = vmul.f32 %v4528, %v3523
      %4533 = vrot.lane.b32.xlu0 %v4529, 112
      %v4534 = vpop.permute.xlu0 %4533
      %4535 = vrot.lane.b32.xlu0 %v4530, 112
      %v4536 = vpop.permute.xlu0 %4535
      %v4537 = vsel %vm3534, %v4534, %v4536
      %4540 = vst [vmem:[#allocation5 + $0x50] sm:$0xff] %v4537
      %4541 = vst.msk [vmem:[#allocation5 + $0x58] sm:$0xff] %vm3433, %v4536
      %v4542 = vld [vmem:[#allocation4 + $0x40] sm:$0xff]
      %v4543 = vld [vmem:[#allocation4 + $0x48] sm:$0xff]
      %v4544 = vmul.f32 %v4542, %v3543
      %v4545 = vmul.f32 %v4543, %v3546
      %4548 = vrot.lane.b32.xlu0 %v4544, 100
      %v4549 = vpop.permute.xlu0 %4548
      %4550 = vrot.lane.b32.xlu0 %v4545, 100
      %v4551 = vpop.permute.xlu0 %4550
      %v4552 = vsel %vm812, %v4549, %v4551
      %4555 = vst [vmem:[#allocation5 + $0x60] sm:$0xff] %v4552
      %4556 = vst.msk [vmem:[#allocation5 + $0x68] sm:$0xff] %vm3433, %v4551
      %v4557 = vld [vmem:[#allocation4 + $0x40] sm:$0xff]
      %v4558 = vld [vmem:[#allocation4 + $0x48] sm:$0xff]
      %4561 = vrot.lane.b32.xlu0 %v4557, 99
      %v4562 = vpop.permute.xlu0 %4561
      %4563 = vrot.lane.b32.xlu0 %v4558, 99
      %v4564 = vpop.permute.xlu0 %4563
      %v4565 = vsel %vm861, %v4562, %v4564
      %4568 = vst [vmem:[#allocation5 + $0x70] sm:$0xff] %v4565
      %4569 = vst.msk [vmem:[#allocation5 + $0x78] sm:$0xff] %vm3433, %v4564
      %v4570 = vld [vmem:[#allocation4 + $0x40] sm:$0xff]
      %v4571 = vld [vmem:[#allocation4 + $0x48] sm:$0xff]
      %v4572 = vmul.f32 %v4570, %v3578
      %v4573 = vmul.f32 %v4571, %v3581
      %4576 = vrot.lane.b32.xlu0 %v4572, 98
      %v4577 = vpop.permute.xlu0 %4576
      %4578 = vrot.lane.b32.xlu0 %v4573, 98
      %v4579 = vpop.permute.xlu0 %4578
      %v4580 = vsel %vm945, %v4577, %v4579
      %4583 = vst [vmem:[#allocation5 + $0x80] sm:$0xff] %v4580
      %4584 = vst.msk [vmem:[#allocation5 + $0x88] sm:$0xff] %vm3433, %v4579
      %v4585 = vld [vmem:[%s3] sm:$0xff]
      %v4586 = vld [vmem:[%s3 + $0x8] sm:$0xff]
      %v4587 = vld [vmem:[#allocation5] sm:$0xff]
      %v4588 = vld [vmem:[#allocation5 + $0x8] sm:$0xff]
      %v4589 = vld [vmem:[#allocation5 + $0x10] sm:$0xff]
      %v4590 = vld [vmem:[#allocation5 + $0x18] sm:$0xff]
      %v4591 = vld [vmem:[#allocation5 + $0x20] sm:$0xff]
      %v4592 = vld [vmem:[#allocation5 + $0x28] sm:$0xff]
      %v4593 = vld [vmem:[#allocation5 + $0x30] sm:$0xff]
      %v4594 = vld [vmem:[#allocation5 + $0x38] sm:$0xff]
      %v4595 = vld [vmem:[#allocation5 + $0x40] sm:$0xff]
      %v4596 = vld [vmem:[#allocation5 + $0x48] sm:$0xff]
      %v4597 = vld [vmem:[#allocation5 + $0x50] sm:$0xff]
      %v4598 = vld [vmem:[#allocation5 + $0x58] sm:$0xff]
      %v4599 = vld [vmem:[#allocation5 + $0x60] sm:$0xff]
      %v4600 = vld [vmem:[#allocation5 + $0x68] sm:$0xff]
      %v4601 = vld [vmem:[#allocation5 + $0x70] sm:$0xff]
      %v4602 = vld [vmem:[#allocation5 + $0x78] sm:$0xff]
      %v4603 = vld [vmem:[#allocation5 + $0x80] sm:$0xff]
      %v4604 = vld [vmem:[#allocation5 + $0x88] sm:$0xff]
      %v4605 = vld [vmem:[%s4] sm:$0xff]
      %v4606 = vld [vmem:[%s4 + $0x8] sm:$0xff]
      %4608 = vset.pattern.permute.xlu0 0
      %4609 = vperm.xlu0 %4608, %v4605
      %v4610 = vpop.permute.xlu0 %4609
      %4613 = vset.pattern.permute.xlu0 0
      %4614 = vperm.xlu0 %4613, %v4606
      %v4615 = vpop.permute.xlu0 %4614
      %v4618 = vsel %vm1029, %v4585, 0
      %v4621 = vsel %vm1029, %v4586, 0
      %4623 = vmatprep.subr.mxu0 0.0
      %4624 = vmatpush1.msra.mxu0 0.0
      %4625 = vmatprep.subr.mxu0 0.0
      %4626 = vmatpush1.msra.mxu0 0.0
      %4627 = vmatprep.subr.mxu0 0.0
      %4628 = vmatpush1.msra.mxu0 0.0
      %4629 = vmatprep.subr.mxu0 0.0
      %4630 = vmatpush1.msra.mxu0 0.0
      %4631 = vmatprep.subr.mxu0 0.0
      %4632 = vmatpush1.msra.mxu0 0.0
      %4633 = vmatprep.subr.mxu0 0.0
      %4634 = vmatpush1.msra.mxu0 0.0
      %4635 = vmatprep.subr.mxu0 0.0
      %4636 = vmatpush1.msra.mxu0 0.0
      %4637 = vmatprep.subr.mxu0 %v4604
      %4638 = vmatpush1.msra.mxu0 %v4603
      %4639 = vmatprep.subr.mxu0 %v4602
      %4640 = vmatpush1.msra.mxu0 %v4601
      %4641 = vmatprep.subr.mxu0 %v4600
      %4642 = vmatpush1.msra.mxu0 %v4599
      %4643 = vmatprep.subr.mxu0 %v4598
      %4644 = vmatpush1.msra.mxu0 %v4597
      %4645 = vmatprep.subr.mxu0 %v4596
      %4646 = vmatpush1.msra.mxu0 %v4595
      %4647 = vmatprep.subr.mxu0 %v4594
      %4648 = vmatpush1.msra.mxu0 %v4593
      %4649 = vmatprep.subr.mxu0 %v4592
      %4650 = vmatpush1.msra.mxu0 %v4591
      %4651 = vmatprep.subr.mxu0 %v4590
      %4652 = vmatpush1.msra.mxu0 %v4589
      %4653 = vmatprep.subr.mxu0 %v4588
      %4654 = vmatpush1.msra.mxu0 %v4587
      %4655 = vmatprep.subr.mxu0 0.0
      %4656 = vmatpush2.msra.mxu0 0.0
      %4657 = vmatprep.subr.mxu0 0.0
      %4658 = vmatpush2.msra.mxu0 0.0
      %4659 = vmatprep.subr.mxu0 0.0
      %4660 = vmatpush2.msra.mxu0 0.0
      %4661 = vmatprep.subr.mxu0 0.0
      %4662 = vmatpush2.msra.mxu0 0.0
      %4663 = vmatprep.subr.mxu0 0.0
      %4664 = vmatpush2.msra.mxu0 0.0
      %4665 = vmatprep.subr.mxu0 0.0
      %4666 = vmatpush2.msra.mxu0 0.0
      %4667 = vmatprep.subr.mxu0 0.0
      %4668 = vmatpush2.msra.mxu0 0.0
      %4669 = vmatprep.subr.mxu0 0.0
      %4670 = vmatpush2.msra.mxu0 0.0
      %4671 = vmatprep.subr.mxu0 0.0
      %4672 = vmatpush2.msra.mxu0 0.0
      %4673 = vmatprep.subr.mxu0 0.0
      %4674 = vmatpush2.msra.mxu0 0.0
      %4675 = vmatprep.subr.mxu0 0.0
      %4676 = vmatpush2.msra.mxu0 0.0
      %4677 = vmatprep.subr.mxu0 0.0
      %4678 = vmatpush2.msra.mxu0 0.0
      %4679 = vmatprep.subr.mxu0 0.0
      %4680 = vmatpush2.msra.mxu0 0.0
      %4681 = vmatprep.subr.mxu0 0.0
      %4682 = vmatpush2.msra.mxu0 0.0
      %4683 = vmatprep.subr.mxu0 0.0
      %4684 = vmatpush2.msra.mxu0 0.0
      %4685 = vmatprep.subr.mxu0 0.0
      %4686 = vmatpush2.msra.mxu0 0.0
      %4687 = vmatprep.mubr.f32.mxu0 0.0
      %4688 = vmatmul.mubr.f32.gmra.mxu0 %v4618
      %v4689 = vpop.f32.mrf.mxu0
      %v4690 = vadd.f32 %v4610, %v4689
      %v4691 = vpop.f32.mrf.mxu0
      %v4692 = vadd.f32 %v4610, %v4691
      %4693 = vmatprep.mubr.f32.mxu0 0.0
      %4694 = vmatmul.mubr.f32.gmra.mxu0 %v4621
      %v4695 = vpop.f32.mrf.mxu0
      %v4696 = vadd.f32 %v4615, %v4695
      %v4697 = vpop.f32.mrf.mxu0
      %v4698 = vadd.f32 %v4615, %v4697
      %4699 = vdwg.mxu0
      %v4700 = vmax.f32 %v4690, 0.0
      %v4701 = vmax.f32 %v4692, 0.0
      %v4702 = vmax.f32 %v4696, 0.0
      %v4703 = vmax.f32 %v4698, 0.0
      %v4704 = vmul.f32 %v4700, %v4700
      %v4705 = vmul.f32 %v4701, %v4701
      %v4706 = vmul.f32 %v4702, %v4702
      %v4707 = vmul.f32 %v4703, %v4703
      %4708 = vst [vmem:[%s465 + $0x80] sm:$0xff] %v4704
      %4709 = vst.msk [vmem:[%s465 + $0x88] sm:$0xff] %vm3433, %v4705
      %4710 = vst [vmem:[%s465 + $0x90] sm:$0xff] %v4706
      %4711 = vst.msk [vmem:[%s465 + $0x98] sm:$0xff] %vm3433, %v4707
      %v4712 = vld [vmem:[#allocation4 + $0x50] sm:$0xff]
      %v4713 = vld [vmem:[#allocation4 + $0x58] sm:$0xff]
      %v4714 = vmul.f32 %v4712, %v3423
      %v4715 = vmul.f32 %v4713, %v3427
      %4716 = vst [vmem:[#allocation5] sm:$0xff] %v4714
      %4717 = vst.msk [vmem:[#allocation5 + $0x8] sm:$0xff] %vm3433, %v4715
      %v4718 = vld [vmem:[#allocation4 + $0x50] sm:$0xff]
      %v4719 = vld [vmem:[#allocation4 + $0x58] sm:$0xff]
      %4722 = vrot.lane.b32.xlu0 %v4718, 127
      %v4723 = vpop.permute.xlu0 %4722
      %4724 = vrot.lane.b32.xlu0 %v4719, 127
      %v4725 = vpop.permute.xlu0 %4724
      %v4726 = vsel %vm615, %v4723, %v4725
      %4729 = vst [vmem:[#allocation5 + $0x10] sm:$0xff] %v4726
      %4730 = vst.msk [vmem:[#allocation5 + $0x18] sm:$0xff] %vm3433, %v4725
      %v4731 = vld [vmem:[#allocation4 + $0x50] sm:$0xff]
      %v4732 = vld [vmem:[#allocation4 + $0x58] sm:$0xff]
      %v4733 = vmul.f32 %v4731, %v3460
      %v4734 = vmul.f32 %v4732, %v3463
      %4737 = vrot.lane.b32.xlu0 %v4733, 126
      %v4738 = vpop.permute.xlu0 %4737
      %4739 = vrot.lane.b32.xlu0 %v4734, 126
      %v4740 = vpop.permute.xlu0 %4739
      %v4741 = vsel %vm728, %v4738, %v4740
      %4744 = vst [vmem:[#allocation5 + $0x20] sm:$0xff] %v4741
      %4745 = vst.msk [vmem:[#allocation5 + $0x28] sm:$0xff] %vm3433, %v4740
      %v4746 = vld [vmem:[#allocation4 + $0x50] sm:$0xff]
      %v4747 = vld [vmem:[#allocation4 + $0x58] sm:$0xff]
      %v4748 = vmul.f32 %v4746, %v3482
      %v4749 = vmul.f32 %v4747, %v3486
      %4752 = vrot.lane.b32.xlu0 %v4748, 114
      %v4753 = vpop.permute.xlu0 %4752
      %4754 = vrot.lane.b32.xlu0 %v4749, 114
      %v4755 = vpop.permute.xlu0 %4754
      %v4756 = vsel %vm3497, %v4753, %v4755
      %4759 = vst [vmem:[#allocation5 + $0x30] sm:$0xff] %v4756
      %4760 = vst.msk [vmem:[#allocation5 + $0x38] sm:$0xff] %vm3433, %v4755
      %v4761 = vld [vmem:[#allocation4 + $0x50] sm:$0xff]
      %v4762 = vld [vmem:[#allocation4 + $0x58] sm:$0xff]
      %4765 = vrot.lane.b32.xlu0 %v4761, 113
      %v4766 = vpop.permute.xlu0 %4765
      %4767 = vrot.lane.b32.xlu0 %v4762, 113
      %v4768 = vpop.permute.xlu0 %4767
      %v4769 = vsel %vm3511, %v4766, %v4768
      %4772 = vst [vmem:[#allocation5 + $0x40] sm:$0xff] %v4769
      %4773 = vst.msk [vmem:[#allocation5 + $0x48] sm:$0xff] %vm3433, %v4768
      %v4774 = vld [vmem:[#allocation4 + $0x50] sm:$0xff]
      %v4775 = vld [vmem:[#allocation4 + $0x58] sm:$0xff]
      %v4776 = vmul.f32 %v4774, %v3520
      %v4777 = vmul.f32 %v4775, %v3523
      %4780 = vrot.lane.b32.xlu0 %v4776, 112
      %v4781 = vpop.permute.xlu0 %4780
      %4782 = vrot.lane.b32.xlu0 %v4777, 112
      %v4783 = vpop.permute.xlu0 %4782
      %v4784 = vsel %vm3534, %v4781, %v4783
      %4787 = vst [vmem:[#allocation5 + $0x50] sm:$0xff] %v4784
      %4788 = vst.msk [vmem:[#allocation5 + $0x58] sm:$0xff] %vm3433, %v4783
      %v4789 = vld [vmem:[#allocation4 + $0x50] sm:$0xff]
      %v4790 = vld [vmem:[#allocation4 + $0x58] sm:$0xff]
      %v4791 = vmul.f32 %v4789, %v3543
      %v4792 = vmul.f32 %v4790, %v3546
      %4795 = vrot.lane.b32.xlu0 %v4791, 100
      %v4796 = vpop.permute.xlu0 %4795
      %4797 = vrot.lane.b32.xlu0 %v4792, 100
      %v4798 = vpop.permute.xlu0 %4797
      %v4799 = vsel %vm812, %v4796, %v4798
      %4802 = vst [vmem:[#allocation5 + $0x60] sm:$0xff] %v4799
      %4803 = vst.msk [vmem:[#allocation5 + $0x68] sm:$0xff] %vm3433, %v4798
      %v4804 = vld [vmem:[#allocation4 + $0x50] sm:$0xff]
      %v4805 = vld [vmem:[#allocation4 + $0x58] sm:$0xff]
      %4808 = vrot.lane.b32.xlu0 %v4804, 99
      %v4809 = vpop.permute.xlu0 %4808
      %4810 = vrot.lane.b32.xlu0 %v4805, 99
      %v4811 = vpop.permute.xlu0 %4810
      %v4812 = vsel %vm861, %v4809, %v4811
      %4815 = vst [vmem:[#allocation5 + $0x70] sm:$0xff] %v4812
      %4816 = vst.msk [vmem:[#allocation5 + $0x78] sm:$0xff] %vm3433, %v4811
      %v4817 = vld [vmem:[#allocation4 + $0x50] sm:$0xff]
      %v4818 = vld [vmem:[#allocation4 + $0x58] sm:$0xff]
      %v4819 = vmul.f32 %v4817, %v3578
      %v4820 = vmul.f32 %v4818, %v3581
      %4823 = vrot.lane.b32.xlu0 %v4819, 98
      %v4824 = vpop.permute.xlu0 %4823
      %4825 = vrot.lane.b32.xlu0 %v4820, 98
      %v4826 = vpop.permute.xlu0 %4825
      %v4827 = vsel %vm945, %v4824, %v4826
      %4830 = vst [vmem:[#allocation5 + $0x80] sm:$0xff] %v4827
      %4831 = vst.msk [vmem:[#allocation5 + $0x88] sm:$0xff] %vm3433, %v4826
      %v4832 = vld [vmem:[%s3] sm:$0xff]
      %v4833 = vld [vmem:[%s3 + $0x8] sm:$0xff]
      %v4834 = vld [vmem:[#allocation5] sm:$0xff]
      %v4835 = vld [vmem:[#allocation5 + $0x8] sm:$0xff]
      %v4836 = vld [vmem:[#allocation5 + $0x10] sm:$0xff]
      %v4837 = vld [vmem:[#allocation5 + $0x18] sm:$0xff]
      %v4838 = vld [vmem:[#allocation5 + $0x20] sm:$0xff]
      %v4839 = vld [vmem:[#allocation5 + $0x28] sm:$0xff]
      %v4840 = vld [vmem:[#allocation5 + $0x30] sm:$0xff]
      %v4841 = vld [vmem:[#allocation5 + $0x38] sm:$0xff]
      %v4842 = vld [vmem:[#allocation5 + $0x40] sm:$0xff]
      %v4843 = vld [vmem:[#allocation5 + $0x48] sm:$0xff]
      %v4844 = vld [vmem:[#allocation5 + $0x50] sm:$0xff]
      %v4845 = vld [vmem:[#allocation5 + $0x58] sm:$0xff]
      %v4846 = vld [vmem:[#allocation5 + $0x60] sm:$0xff]
      %v4847 = vld [vmem:[#allocation5 + $0x68] sm:$0xff]
      %v4848 = vld [vmem:[#allocation5 + $0x70] sm:$0xff]
      %v4849 = vld [vmem:[#allocation5 + $0x78] sm:$0xff]
      %v4850 = vld [vmem:[#allocation5 + $0x80] sm:$0xff]
      %v4851 = vld [vmem:[#allocation5 + $0x88] sm:$0xff]
      %v4852 = vld [vmem:[%s4] sm:$0xff]
      %v4853 = vld [vmem:[%s4 + $0x8] sm:$0xff]
      %4855 = vset.pattern.permute.xlu0 0
      %4856 = vperm.xlu0 %4855, %v4852
      %v4857 = vpop.permute.xlu0 %4856
      %4860 = vset.pattern.permute.xlu0 0
      %4861 = vperm.xlu0 %4860, %v4853
      %v4862 = vpop.permute.xlu0 %4861
      %v4865 = vsel %vm1029, %v4832, 0
      %v4868 = vsel %vm1029, %v4833, 0
      %4870 = vmatprep.subr.mxu0 0.0
      %4871 = vmatpush1.msra.mxu0 0.0
      %4872 = vmatprep.subr.mxu0 0.0
      %4873 = vmatpush1.msra.mxu0 0.0
      %4874 = vmatprep.subr.mxu0 0.0
      %4875 = vmatpush1.msra.mxu0 0.0
      %4876 = vmatprep.subr.mxu0 0.0
      %4877 = vmatpush1.msra.mxu0 0.0
      %4878 = vmatprep.subr.mxu0 0.0
      %4879 = vmatpush1.msra.mxu0 0.0
      %4880 = vmatprep.subr.mxu0 0.0
      %4881 = vmatpush1.msra.mxu0 0.0
      %4882 = vmatprep.subr.mxu0 0.0
      %4883 = vmatpush1.msra.mxu0 0.0
      %4884 = vmatprep.subr.mxu0 %v4851
      %4885 = vmatpush1.msra.mxu0 %v4850
      %4886 = vmatprep.subr.mxu0 %v4849
      %4887 = vmatpush1.msra.mxu0 %v4848
      %4888 = vmatprep.subr.mxu0 %v4847
      %4889 = vmatpush1.msra.mxu0 %v4846
      %4890 = vmatprep.subr.mxu0 %v4845
      %4891 = vmatpush1.msra.mxu0 %v4844
      %4892 = vmatprep.subr.mxu0 %v4843
      %4893 = vmatpush1.msra.mxu0 %v4842
      %4894 = vmatprep.subr.mxu0 %v4841
      %4895 = vmatpush1.msra.mxu0 %v4840
      %4896 = vmatprep.subr.mxu0 %v4839
      %4897 = vmatpush1.msra.mxu0 %v4838
      %4898 = vmatprep.subr.mxu0 %v4837
      %4899 = vmatpush1.msra.mxu0 %v4836
      %4900 = vmatprep.subr.mxu0 %v4835
      %4901 = vmatpush1.msra.mxu0 %v4834
      %4902 = vmatprep.subr.mxu0 0.0
      %4903 = vmatpush2.msra.mxu0 0.0
      %4904 = vmatprep.subr.mxu0 0.0
      %4905 = vmatpush2.msra.mxu0 0.0
      %4906 = vmatprep.subr.mxu0 0.0
      %4907 = vmatpush2.msra.mxu0 0.0
      %4908 = vmatprep.subr.mxu0 0.0
      %4909 = vmatpush2.msra.mxu0 0.0
      %4910 = vmatprep.subr.mxu0 0.0
      %4911 = vmatpush2.msra.mxu0 0.0
      %4912 = vmatprep.subr.mxu0 0.0
      %4913 = vmatpush2.msra.mxu0 0.0
      %4914 = vmatprep.subr.mxu0 0.0
      %4915 = vmatpush2.msra.mxu0 0.0
      %4916 = vmatprep.subr.mxu0 0.0
      %4917 = vmatpush2.msra.mxu0 0.0
      %4918 = vmatprep.subr.mxu0 0.0
      %4919 = vmatpush2.msra.mxu0 0.0
      %4920 = vmatprep.subr.mxu0 0.0
      %4921 = vmatpush2.msra.mxu0 0.0
      %4922 = vmatprep.subr.mxu0 0.0
      %4923 = vmatpush2.msra.mxu0 0.0
      %4924 = vmatprep.subr.mxu0 0.0
      %4925 = vmatpush2.msra.mxu0 0.0
      %4926 = vmatprep.subr.mxu0 0.0
      %4927 = vmatpush2.msra.mxu0 0.0
      %4928 = vmatprep.subr.mxu0 0.0
      %4929 = vmatpush2.msra.mxu0 0.0
      %4930 = vmatprep.subr.mxu0 0.0
      %4931 = vmatpush2.msra.mxu0 0.0
      %4932 = vmatprep.subr.mxu0 0.0
      %4933 = vmatpush2.msra.mxu0 0.0
      %4934 = vmatprep.mubr.f32.mxu0 0.0
      %4935 = vmatmul.mubr.f32.gmra.mxu0 %v4865
      %v4936 = vpop.f32.mrf.mxu0
      %v4937 = vadd.f32 %v4857, %v4936
      %v4938 = vpop.f32.mrf.mxu0
      %v4939 = vadd.f32 %v4857, %v4938
      %4940 = vmatprep.mubr.f32.mxu0 0.0
      %4941 = vmatmul.mubr.f32.gmra.mxu0 %v4868
      %v4942 = vpop.f32.mrf.mxu0
      %v4943 = vadd.f32 %v4862, %v4942
      %v4944 = vpop.f32.mrf.mxu0
      %v4945 = vadd.f32 %v4862, %v4944
      %4946 = vdwg.mxu0
      %v4947 = vmax.f32 %v4937, 0.0
      %v4948 = vmax.f32 %v4939, 0.0
      %v4949 = vmax.f32 %v4943, 0.0
      %v4950 = vmax.f32 %v4945, 0.0
      %v4951 = vmul.f32 %v4947, %v4947
      %v4952 = vmul.f32 %v4948, %v4948
      %v4953 = vmul.f32 %v4949, %v4949
      %v4954 = vmul.f32 %v4950, %v4950
      %4955 = vst [vmem:[%s465 + $0xa0] sm:$0xff] %v4951
      %4956 = vst.msk [vmem:[%s465 + $0xa8] sm:$0xff] %vm3433, %v4952
      %4957 = vst [vmem:[%s465 + $0xb0] sm:$0xff] %v4953
      %4958 = vst.msk [vmem:[%s465 + $0xb8] sm:$0xff] %vm3433, %v4954
      %v4959 = vld [vmem:[#allocation4 + $0x60] sm:$0xff]
      %v4960 = vld [vmem:[#allocation4 + $0x68] sm:$0xff]
      %v4961 = vmul.f32 %v4959, %v3423
      %v4962 = vmul.f32 %v4960, %v3427
      %4963 = vst [vmem:[#allocation5] sm:$0xff] %v4961
      %4964 = vst.msk [vmem:[#allocation5 + $0x8] sm:$0xff] %vm3433, %v4962
      %v4965 = vld [vmem:[#allocation4 + $0x60] sm:$0xff]
      %v4966 = vld [vmem:[#allocation4 + $0x68] sm:$0xff]
      %4969 = vrot.lane.b32.xlu0 %v4965, 127
      %v4970 = vpop.permute.xlu0 %4969
      %4971 = vrot.lane.b32.xlu0 %v4966, 127
      %v4972 = vpop.permute.xlu0 %4971
      %v4973 = vsel %vm615, %v4970, %v4972
      %4976 = vst [vmem:[#allocation5 + $0x10] sm:$0xff] %v4973
      %4977 = vst.msk [vmem:[#allocation5 + $0x18] sm:$0xff] %vm3433, %v4972
      %v4978 = vld [vmem:[#allocation4 + $0x60] sm:$0xff]
      %v4979 = vld [vmem:[#allocation4 + $0x68] sm:$0xff]
      %v4980 = vmul.f32 %v4978, %v3460
      %v4981 = vmul.f32 %v4979, %v3463
      %4984 = vrot.lane.b32.xlu0 %v4980, 126
      %v4985 = vpop.permute.xlu0 %4984
      %4986 = vrot.lane.b32.xlu0 %v4981, 126
      %v4987 = vpop.permute.xlu0 %4986
      %v4988 = vsel %vm728, %v4985, %v4987
      %4991 = vst [vmem:[#allocation5 + $0x20] sm:$0xff] %v4988
      %4992 = vst.msk [vmem:[#allocation5 + $0x28] sm:$0xff] %vm3433, %v4987
      %v4993 = vld [vmem:[#allocation4 + $0x60] sm:$0xff]
      %v4994 = vld [vmem:[#allocation4 + $0x68] sm:$0xff]
      %v4995 = vmul.f32 %v4993, %v3482
      %v4996 = vmul.f32 %v4994, %v3486
      %4999 = vrot.lane.b32.xlu0 %v4995, 114
      %v5000 = vpop.permute.xlu0 %4999
      %5001 = vrot.lane.b32.xlu0 %v4996, 114
      %v5002 = vpop.permute.xlu0 %5001
      %v5003 = vsel %vm3497, %v5000, %v5002
      %5006 = vst [vmem:[#allocation5 + $0x30] sm:$0xff] %v5003
      %5007 = vst.msk [vmem:[#allocation5 + $0x38] sm:$0xff] %vm3433, %v5002
      %v5008 = vld [vmem:[#allocation4 + $0x60] sm:$0xff]
      %v5009 = vld [vmem:[#allocation4 + $0x68] sm:$0xff]
      %5012 = vrot.lane.b32.xlu0 %v5008, 113
      %v5013 = vpop.permute.xlu0 %5012
      %5014 = vrot.lane.b32.xlu0 %v5009, 113
      %v5015 = vpop.permute.xlu0 %5014
      %v5016 = vsel %vm3511, %v5013, %v5015
      %5019 = vst [vmem:[#allocation5 + $0x40] sm:$0xff] %v5016
      %5020 = vst.msk [vmem:[#allocation5 + $0x48] sm:$0xff] %vm3433, %v5015
      %v5021 = vld [vmem:[#allocation4 + $0x60] sm:$0xff]
      %v5022 = vld [vmem:[#allocation4 + $0x68] sm:$0xff]
      %v5023 = vmul.f32 %v5021, %v3520
      %v5024 = vmul.f32 %v5022, %v3523
      %5027 = vrot.lane.b32.xlu0 %v5023, 112
      %v5028 = vpop.permute.xlu0 %5027
      %5029 = vrot.lane.b32.xlu0 %v5024, 112
      %v5030 = vpop.permute.xlu0 %5029
      %v5031 = vsel %vm3534, %v5028, %v5030
      %5034 = vst [vmem:[#allocation5 + $0x50] sm:$0xff] %v5031
      %5035 = vst.msk [vmem:[#allocation5 + $0x58] sm:$0xff] %vm3433, %v5030
      %v5036 = vld [vmem:[#allocation4 + $0x60] sm:$0xff]
      %v5037 = vld [vmem:[#allocation4 + $0x68] sm:$0xff]
      %v5038 = vmul.f32 %v5036, %v3543
      %v5039 = vmul.f32 %v5037, %v3546
      %5042 = vrot.lane.b32.xlu0 %v5038, 100
      %v5043 = vpop.permute.xlu0 %5042
      %5044 = vrot.lane.b32.xlu0 %v5039, 100
      %v5045 = vpop.permute.xlu0 %5044
      %v5046 = vsel %vm812, %v5043, %v5045
      %5049 = vst [vmem:[#allocation5 + $0x60] sm:$0xff] %v5046
      %5050 = vst.msk [vmem:[#allocation5 + $0x68] sm:$0xff] %vm3433, %v5045
      %v5051 = vld [vmem:[#allocation4 + $0x60] sm:$0xff]
      %v5052 = vld [vmem:[#allocation4 + $0x68] sm:$0xff]
      %5055 = vrot.lane.b32.xlu0 %v5051, 99
      %v5056 = vpop.permute.xlu0 %5055
      %5057 = vrot.lane.b32.xlu0 %v5052, 99
      %v5058 = vpop.permute.xlu0 %5057
      %v5059 = vsel %vm861, %v5056, %v5058
      %5062 = vst [vmem:[#allocation5 + $0x70] sm:$0xff] %v5059
      %5063 = vst.msk [vmem:[#allocation5 + $0x78] sm:$0xff] %vm3433, %v5058
      %v5064 = vld [vmem:[#allocation4 + $0x60] sm:$0xff]
      %v5065 = vld [vmem:[#allocation4 + $0x68] sm:$0xff]
      %v5066 = vmul.f32 %v5064, %v3578
      %v5067 = vmul.f32 %v5065, %v3581
      %5070 = vrot.lane.b32.xlu0 %v5066, 98
      %v5071 = vpop.permute.xlu0 %5070
      %5072 = vrot.lane.b32.xlu0 %v5067, 98
      %v5073 = vpop.permute.xlu0 %5072
      %v5074 = vsel %vm945, %v5071, %v5073
      %5077 = vst [vmem:[#allocation5 + $0x80] sm:$0xff] %v5074
      %5078 = vst.msk [vmem:[#allocation5 + $0x88] sm:$0xff] %vm3433, %v5073
      %v5079 = vld [vmem:[%s3] sm:$0xff]
      %v5080 = vld [vmem:[%s3 + $0x8] sm:$0xff]
      %v5081 = vld [vmem:[#allocation5] sm:$0xff]
      %v5082 = vld [vmem:[#allocation5 + $0x8] sm:$0xff]
      %v5083 = vld [vmem:[#allocation5 + $0x10] sm:$0xff]
      %v5084 = vld [vmem:[#allocation5 + $0x18] sm:$0xff]
      %v5085 = vld [vmem:[#allocation5 + $0x20] sm:$0xff]
      %v5086 = vld [vmem:[#allocation5 + $0x28] sm:$0xff]
      %v5087 = vld [vmem:[#allocation5 + $0x30] sm:$0xff]
      %v5088 = vld [vmem:[#allocation5 + $0x38] sm:$0xff]
      %v5089 = vld [vmem:[#allocation5 + $0x40] sm:$0xff]
      %v5090 = vld [vmem:[#allocation5 + $0x48] sm:$0xff]
      %v5091 = vld [vmem:[#allocation5 + $0x50] sm:$0xff]
      %v5092 = vld [vmem:[#allocation5 + $0x58] sm:$0xff]
      %v5093 = vld [vmem:[#allocation5 + $0x60] sm:$0xff]
      %v5094 = vld [vmem:[#allocation5 + $0x68] sm:$0xff]
      %v5095 = vld [vmem:[#allocation5 + $0x70] sm:$0xff]
      %v5096 = vld [vmem:[#allocation5 + $0x78] sm:$0xff]
      %v5097 = vld [vmem:[#allocation5 + $0x80] sm:$0xff]
      %v5098 = vld [vmem:[#allocation5 + $0x88] sm:$0xff]
      %v5099 = vld [vmem:[%s4] sm:$0xff]
      %v5100 = vld [vmem:[%s4 + $0x8] sm:$0xff]
      %5102 = vset.pattern.permute.xlu0 0
      %5103 = vperm.xlu0 %5102, %v5099
      %v5104 = vpop.permute.xlu0 %5103
      %5107 = vset.pattern.permute.xlu0 0
      %5108 = vperm.xlu0 %5107, %v5100
      %v5109 = vpop.permute.xlu0 %5108
      %v5112 = vsel %vm1029, %v5079, 0
      %v5115 = vsel %vm1029, %v5080, 0
      %5117 = vmatprep.subr.mxu0 0.0
      %5118 = vmatpush1.msra.mxu0 0.0
      %5119 = vmatprep.subr.mxu0 0.0
      %5120 = vmatpush1.msra.mxu0 0.0
      %5121 = vmatprep.subr.mxu0 0.0
      %5122 = vmatpush1.msra.mxu0 0.0
      %5123 = vmatprep.subr.mxu0 0.0
      %5124 = vmatpush1.msra.mxu0 0.0
      %5125 = vmatprep.subr.mxu0 0.0
      %5126 = vmatpush1.msra.mxu0 0.0
      %5127 = vmatprep.subr.mxu0 0.0
      %5128 = vmatpush1.msra.mxu0 0.0
      %5129 = vmatprep.subr.mxu0 0.0
      %5130 = vmatpush1.msra.mxu0 0.0
      %5131 = vmatprep.subr.mxu0 %v5098
      %5132 = vmatpush1.msra.mxu0 %v5097
      %5133 = vmatprep.subr.mxu0 %v5096
      %5134 = vmatpush1.msra.mxu0 %v5095
      %5135 = vmatprep.subr.mxu0 %v5094
      %5136 = vmatpush1.msra.mxu0 %v5093
      %5137 = vmatprep.subr.mxu0 %v5092
      %5138 = vmatpush1.msra.mxu0 %v5091
      %5139 = vmatprep.subr.mxu0 %v5090
      %5140 = vmatpush1.msra.mxu0 %v5089
      %5141 = vmatprep.subr.mxu0 %v5088
      %5142 = vmatpush1.msra.mxu0 %v5087
      %5143 = vmatprep.subr.mxu0 %v5086
      %5144 = vmatpush1.msra.mxu0 %v5085
      %5145 = vmatprep.subr.mxu0 %v5084
      %5146 = vmatpush1.msra.mxu0 %v5083
      %5147 = vmatprep.subr.mxu0 %v5082
      %5148 = vmatpush1.msra.mxu0 %v5081
      %5149 = vmatprep.subr.mxu0 0.0
      %5150 = vmatpush2.msra.mxu0 0.0
      %5151 = vmatprep.subr.mxu0 0.0
      %5152 = vmatpush2.msra.mxu0 0.0
      %5153 = vmatprep.subr.mxu0 0.0
      %5154 = vmatpush2.msra.mxu0 0.0
      %5155 = vmatprep.subr.mxu0 0.0
      %5156 = vmatpush2.msra.mxu0 0.0
      %5157 = vmatprep.subr.mxu0 0.0
      %5158 = vmatpush2.msra.mxu0 0.0
      %5159 = vmatprep.subr.mxu0 0.0
      %5160 = vmatpush2.msra.mxu0 0.0
      %5161 = vmatprep.subr.mxu0 0.0
      %5162 = vmatpush2.msra.mxu0 0.0
      %5163 = vmatprep.subr.mxu0 0.0
      %5164 = vmatpush2.msra.mxu0 0.0
      %5165 = vmatprep.subr.mxu0 0.0
      %5166 = vmatpush2.msra.mxu0 0.0
      %5167 = vmatprep.subr.mxu0 0.0
      %5168 = vmatpush2.msra.mxu0 0.0
      %5169 = vmatprep.subr.mxu0 0.0
      %5170 = vmatpush2.msra.mxu0 0.0
      %5171 = vmatprep.subr.mxu0 0.0
      %5172 = vmatpush2.msra.mxu0 0.0
      %5173 = vmatprep.subr.mxu0 0.0
      %5174 = vmatpush2.msra.mxu0 0.0
      %5175 = vmatprep.subr.mxu0 0.0
      %5176 = vmatpush2.msra.mxu0 0.0
      %5177 = vmatprep.subr.mxu0 0.0
      %5178 = vmatpush2.msra.mxu0 0.0
      %5179 = vmatprep.subr.mxu0 0.0
      %5180 = vmatpush2.msra.mxu0 0.0
      %5181 = vmatprep.mubr.f32.mxu0 0.0
      %5182 = vmatmul.mubr.f32.gmra.mxu0 %v5112
      %v5183 = vpop.f32.mrf.mxu0
      %v5184 = vadd.f32 %v5104, %v5183
      %v5185 = vpop.f32.mrf.mxu0
      %v5186 = vadd.f32 %v5104, %v5185
      %5187 = vmatprep.mubr.f32.mxu0 0.0
      %5188 = vmatmul.mubr.f32.gmra.mxu0 %v5115
      %v5189 = vpop.f32.mrf.mxu0
      %v5190 = vadd.f32 %v5109, %v5189
      %v5191 = vpop.f32.mrf.mxu0
      %v5192 = vadd.f32 %v5109, %v5191
      %5193 = vdwg.mxu0
      %v5194 = vmax.f32 %v5184, 0.0
      %v5195 = vmax.f32 %v5186, 0.0
      %v5196 = vmax.f32 %v5190, 0.0
      %v5197 = vmax.f32 %v5192, 0.0
      %v5198 = vmul.f32 %v5194, %v5194
      %v5199 = vmul.f32 %v5195, %v5195
      %v5200 = vmul.f32 %v5196, %v5196
      %v5201 = vmul.f32 %v5197, %v5197
      %5202 = vst [vmem:[%s465 + $0xc0] sm:$0xff] %v5198
      %5203 = vst.msk [vmem:[%s465 + $0xc8] sm:$0xff] %vm3433, %v5199
      %5204 = vst [vmem:[%s465 + $0xd0] sm:$0xff] %v5200
      %5205 = vst.msk [vmem:[%s465 + $0xd8] sm:$0xff] %vm3433, %v5201
      %v5206 = vld [vmem:[#allocation4 + $0x70] sm:$0xff]
      %v5207 = vld [vmem:[#allocation4 + $0x78] sm:$0xff]
      %v5208 = vmul.f32 %v5206, %v3423
      %v5209 = vmul.f32 %v5207, %v3427
      %5210 = vst [vmem:[#allocation5] sm:$0xff] %v5208
      %5211 = vst.msk [vmem:[#allocation5 + $0x8] sm:$0xff] %vm3433, %v5209
      %v5212 = vld [vmem:[#allocation4 + $0x70] sm:$0xff]
      %v5213 = vld [vmem:[#allocation4 + $0x78] sm:$0xff]
      %5216 = vrot.lane.b32.xlu0 %v5212, 127
      %v5217 = vpop.permute.xlu0 %5216
      %5218 = vrot.lane.b32.xlu0 %v5213, 127
      %v5219 = vpop.permute.xlu0 %5218
      %v5220 = vsel %vm615, %v5217, %v5219
      %5223 = vst [vmem:[#allocation5 + $0x10] sm:$0xff] %v5220
      %5224 = vst.msk [vmem:[#allocation5 + $0x18] sm:$0xff] %vm3433, %v5219
      %v5225 = vld [vmem:[#allocation4 + $0x70] sm:$0xff]
      %v5226 = vld [vmem:[#allocation4 + $0x78] sm:$0xff]
      %v5227 = vmul.f32 %v5225, %v3460
      %v5228 = vmul.f32 %v5226, %v3463
      %5231 = vrot.lane.b32.xlu0 %v5227, 126
      %v5232 = vpop.permute.xlu0 %5231
      %5233 = vrot.lane.b32.xlu0 %v5228, 126
      %v5234 = vpop.permute.xlu0 %5233
      %v5235 = vsel %vm728, %v5232, %v5234
      %5238 = vst [vmem:[#allocation5 + $0x20] sm:$0xff] %v5235
      %5239 = vst.msk [vmem:[#allocation5 + $0x28] sm:$0xff] %vm3433, %v5234
      %v5240 = vld [vmem:[#allocation4 + $0x70] sm:$0xff]
      %v5241 = vld [vmem:[#allocation4 + $0x78] sm:$0xff]
      %v5242 = vmul.f32 %v5240, %v3482
      %v5243 = vmul.f32 %v5241, %v3486
      %5246 = vrot.lane.b32.xlu0 %v5242, 114
      %v5247 = vpop.permute.xlu0 %5246
      %5248 = vrot.lane.b32.xlu0 %v5243, 114
      %v5249 = vpop.permute.xlu0 %5248
      %v5250 = vsel %vm3497, %v5247, %v5249
      %5253 = vst [vmem:[#allocation5 + $0x30] sm:$0xff] %v5250
      %5254 = vst.msk [vmem:[#allocation5 + $0x38] sm:$0xff] %vm3433, %v5249
      %v5255 = vld [vmem:[#allocation4 + $0x70] sm:$0xff]
      %v5256 = vld [vmem:[#allocation4 + $0x78] sm:$0xff]
      %5259 = vrot.lane.b32.xlu0 %v5255, 113
      %v5260 = vpop.permute.xlu0 %5259
      %5261 = vrot.lane.b32.xlu0 %v5256, 113
      %v5262 = vpop.permute.xlu0 %5261
      %v5263 = vsel %vm3511, %v5260, %v5262
      %5266 = vst [vmem:[#allocation5 + $0x40] sm:$0xff] %v5263
      %5267 = vst.msk [vmem:[#allocation5 + $0x48] sm:$0xff] %vm3433, %v5262
      %v5268 = vld [vmem:[#allocation4 + $0x70] sm:$0xff]
      %v5269 = vld [vmem:[#allocation4 + $0x78] sm:$0xff]
      %v5270 = vmul.f32 %v5268, %v3520
      %v5271 = vmul.f32 %v5269, %v3523
      %5274 = vrot.lane.b32.xlu0 %v5270, 112
      %v5275 = vpop.permute.xlu0 %5274
      %5276 = vrot.lane.b32.xlu0 %v5271, 112
      %v5277 = vpop.permute.xlu0 %5276
      %v5278 = vsel %vm3534, %v5275, %v5277
      %5281 = vst [vmem:[#allocation5 + $0x50] sm:$0xff] %v5278
      %5282 = vst.msk [vmem:[#allocation5 + $0x58] sm:$0xff] %vm3433, %v5277
      %v5283 = vld [vmem:[#allocation4 + $0x70] sm:$0xff]
      %v5284 = vld [vmem:[#allocation4 + $0x78] sm:$0xff]
      %v5285 = vmul.f32 %v5283, %v3543
      %v5286 = vmul.f32 %v5284, %v3546
      %5289 = vrot.lane.b32.xlu0 %v5285, 100
      %v5290 = vpop.permute.xlu0 %5289
      %5291 = vrot.lane.b32.xlu0 %v5286, 100
      %v5292 = vpop.permute.xlu0 %5291
      %v5293 = vsel %vm812, %v5290, %v5292
      %5296 = vst [vmem:[#allocation5 + $0x60] sm:$0xff] %v5293
      %5297 = vst.msk [vmem:[#allocation5 + $0x68] sm:$0xff] %vm3433, %v5292
      %v5298 = vld [vmem:[#allocation4 + $0x70] sm:$0xff]
      %v5299 = vld [vmem:[#allocation4 + $0x78] sm:$0xff]
      %5302 = vrot.lane.b32.xlu0 %v5298, 99
      %v5303 = vpop.permute.xlu0 %5302
      %5304 = vrot.lane.b32.xlu0 %v5299, 99
      %v5305 = vpop.permute.xlu0 %5304
      %v5306 = vsel %vm861, %v5303, %v5305
      %5309 = vst [vmem:[#allocation5 + $0x70] sm:$0xff] %v5306
      %5310 = vst.msk [vmem:[#allocation5 + $0x78] sm:$0xff] %vm3433, %v5305
      %v5311 = vld [vmem:[#allocation4 + $0x70] sm:$0xff]
      %v5312 = vld [vmem:[#allocation4 + $0x78] sm:$0xff]
      %v5313 = vmul.f32 %v5311, %v3578
      %v5314 = vmul.f32 %v5312, %v3581
      %5317 = vrot.lane.b32.xlu0 %v5313, 98
      %v5318 = vpop.permute.xlu0 %5317
      %5319 = vrot.lane.b32.xlu0 %v5314, 98
      %v5320 = vpop.permute.xlu0 %5319
      %v5321 = vsel %vm945, %v5318, %v5320
      %5324 = vst [vmem:[#allocation5 + $0x80] sm:$0xff] %v5321
      %5325 = vst.msk [vmem:[#allocation5 + $0x88] sm:$0xff] %vm3433, %v5320
      %v5326 = vld [vmem:[%s3] sm:$0xff]
      %v5327 = vld [vmem:[%s3 + $0x8] sm:$0xff]
      %v5328 = vld [vmem:[#allocation5] sm:$0xff]
      %v5329 = vld [vmem:[#allocation5 + $0x8] sm:$0xff]
      %v5330 = vld [vmem:[#allocation5 + $0x10] sm:$0xff]
      %v5331 = vld [vmem:[#allocation5 + $0x18] sm:$0xff]
      %v5332 = vld [vmem:[#allocation5 + $0x20] sm:$0xff]
      %v5333 = vld [vmem:[#allocation5 + $0x28] sm:$0xff]
      %v5334 = vld [vmem:[#allocation5 + $0x30] sm:$0xff]
      %v5335 = vld [vmem:[#allocation5 + $0x38] sm:$0xff]
      %v5336 = vld [vmem:[#allocation5 + $0x40] sm:$0xff]
      %v5337 = vld [vmem:[#allocation5 + $0x48] sm:$0xff]
      %v5338 = vld [vmem:[#allocation5 + $0x50] sm:$0xff]
      %v5339 = vld [vmem:[#allocation5 + $0x58] sm:$0xff]
      %v5340 = vld [vmem:[#allocation5 + $0x60] sm:$0xff]
      %v5341 = vld [vmem:[#allocation5 + $0x68] sm:$0xff]
      %v5342 = vld [vmem:[#allocation5 + $0x70] sm:$0xff]
      %v5343 = vld [vmem:[#allocation5 + $0x78] sm:$0xff]
      %v5344 = vld [vmem:[#allocation5 + $0x80] sm:$0xff]
      %v5345 = vld [vmem:[#allocation5 + $0x88] sm:$0xff]
      %v5346 = vld [vmem:[%s4] sm:$0xff]
      %v5347 = vld [vmem:[%s4 + $0x8] sm:$0xff]
      %5349 = vset.pattern.permute.xlu0 0
      %5350 = vperm.xlu0 %5349, %v5346
      %v5351 = vpop.permute.xlu0 %5350
      %5354 = vset.pattern.permute.xlu0 0
      %5355 = vperm.xlu0 %5354, %v5347
      %v5356 = vpop.permute.xlu0 %5355
      %v5359 = vsel %vm1029, %v5326, 0
      %v5362 = vsel %vm1029, %v5327, 0
      %5364 = vmatprep.subr.mxu0 0.0
      %5365 = vmatpush1.msra.mxu0 0.0
      %5366 = vmatprep.subr.mxu0 0.0
      %5367 = vmatpush1.msra.mxu0 0.0
      %5368 = vmatprep.subr.mxu0 0.0
      %5369 = vmatpush1.msra.mxu0 0.0
      %5370 = vmatprep.subr.mxu0 0.0
      %5371 = vmatpush1.msra.mxu0 0.0
      %5372 = vmatprep.subr.mxu0 0.0
      %5373 = vmatpush1.msra.mxu0 0.0
      %5374 = vmatprep.subr.mxu0 0.0
      %5375 = vmatpush1.msra.mxu0 0.0
      %5376 = vmatprep.subr.mxu0 0.0
      %5377 = vmatpush1.msra.mxu0 0.0
      %5378 = vmatprep.subr.mxu0 %v5345
      %5379 = vmatpush1.msra.mxu0 %v5344
      %5380 = vmatprep.subr.mxu0 %v5343
      %5381 = vmatpush1.msra.mxu0 %v5342
      %5382 = vmatprep.subr.mxu0 %v5341
      %5383 = vmatpush1.msra.mxu0 %v5340
      %5384 = vmatprep.subr.mxu0 %v5339
      %5385 = vmatpush1.msra.mxu0 %v5338
      %5386 = vmatprep.subr.mxu0 %v5337
      %5387 = vmatpush1.msra.mxu0 %v5336
      %5388 = vmatprep.subr.mxu0 %v5335
      %5389 = vmatpush1.msra.mxu0 %v5334
      %5390 = vmatprep.subr.mxu0 %v5333
      %5391 = vmatpush1.msra.mxu0 %v5332
      %5392 = vmatprep.subr.mxu0 %v5331
      %5393 = vmatpush1.msra.mxu0 %v5330
      %5394 = vmatprep.subr.mxu0 %v5329
      %5395 = vmatpush1.msra.mxu0 %v5328
      %5396 = vmatprep.subr.mxu0 0.0
      %5397 = vmatpush2.msra.mxu0 0.0
      %5398 = vmatprep.subr.mxu0 0.0
      %5399 = vmatpush2.msra.mxu0 0.0
      %5400 = vmatprep.subr.mxu0 0.0
      %5401 = vmatpush2.msra.mxu0 0.0
      %5402 = vmatprep.subr.mxu0 0.0
      %5403 = vmatpush2.msra.mxu0 0.0
      %5404 = vmatprep.subr.mxu0 0.0
      %5405 = vmatpush2.msra.mxu0 0.0
      %5406 = vmatprep.subr.mxu0 0.0
      %5407 = vmatpush2.msra.mxu0 0.0
      %5408 = vmatprep.subr.mxu0 0.0
      %5409 = vmatpush2.msra.mxu0 0.0
      %5410 = vmatprep.subr.mxu0 0.0
      %5411 = vmatpush2.msra.mxu0 0.0
      %5412 = vmatprep.subr.mxu0 0.0
      %5413 = vmatpush2.msra.mxu0 0.0
      %5414 = vmatprep.subr.mxu0 0.0
      %5415 = vmatpush2.msra.mxu0 0.0
      %5416 = vmatprep.subr.mxu0 0.0
      %5417 = vmatpush2.msra.mxu0 0.0
      %5418 = vmatprep.subr.mxu0 0.0
      %5419 = vmatpush2.msra.mxu0 0.0
      %5420 = vmatprep.subr.mxu0 0.0
      %5421 = vmatpush2.msra.mxu0 0.0
      %5422 = vmatprep.subr.mxu0 0.0
      %5423 = vmatpush2.msra.mxu0 0.0
      %5424 = vmatprep.subr.mxu0 0.0
      %5425 = vmatpush2.msra.mxu0 0.0
      %5426 = vmatprep.subr.mxu0 0.0
      %5427 = vmatpush2.msra.mxu0 0.0
      %5428 = vmatprep.mubr.f32.mxu0 0.0
      %5429 = vmatmul.mubr.f32.gmra.mxu0 %v5359
      %v5430 = vpop.f32.mrf.mxu0
      %v5431 = vadd.f32 %v5351, %v5430
      %v5432 = vpop.f32.mrf.mxu0
      %v5433 = vadd.f32 %v5351, %v5432
      %5434 = vmatprep.mubr.f32.mxu0 0.0
      %5435 = vmatmul.mubr.f32.gmra.mxu0 %v5362
      %v5436 = vpop.f32.mrf.mxu0
      %v5437 = vadd.f32 %v5356, %v5436
      %v5438 = vpop.f32.mrf.mxu0
      %v5439 = vadd.f32 %v5356, %v5438
      %5440 = vdwg.mxu0
      %v5441 = vmax.f32 %v5431, 0.0
      %v5442 = vmax.f32 %v5433, 0.0
      %v5443 = vmax.f32 %v5437, 0.0
      %v5444 = vmax.f32 %v5439, 0.0
      %v5445 = vmul.f32 %v5441, %v5441
      %v5446 = vmul.f32 %v5442, %v5442
      %v5447 = vmul.f32 %v5443, %v5443
      %v5448 = vmul.f32 %v5444, %v5444
      %5449 = vst [vmem:[%s465 + $0xe0] sm:$0xff] %v5445
      %5450 = vst.msk [vmem:[%s465 + $0xe8] sm:$0xff] %vm3433, %v5446
      %5451 = vst [vmem:[%s465 + $0xf0] sm:$0xff] %v5447
      %5452 = vst.msk [vmem:[%s465 + $0xf8] sm:$0xff] %vm3433, %v5448
      %v5453 = vld [vmem:[%s465] sm:$0xff]
      %v5454 = vld [vmem:[%s465 + $0x8] sm:$0xff]
      %v5455 = vld [vmem:[%s465 + $0x10] sm:$0xff]
      %v5456 = vld [vmem:[%s465 + $0x18] sm:$0xff]
      %v5457 = vld [vmem:[%s465 + $0x20] sm:$0xff]
      %v5458 = vld [vmem:[%s465 + $0x28] sm:$0xff]
      %v5459 = vld [vmem:[%s465 + $0x30] sm:$0xff]
      %v5460 = vld [vmem:[%s465 + $0x38] sm:$0xff]
      %v5461 = vld [vmem:[%s465 + $0x40] sm:$0xff]
      %v5462 = vld [vmem:[%s465 + $0x48] sm:$0xff]
      %v5463 = vld [vmem:[%s465 + $0x50] sm:$0xff]
      %v5464 = vld [vmem:[%s465 + $0x58] sm:$0xff]
      %v5465 = vld [vmem:[%s465 + $0x60] sm:$0xff]
      %v5466 = vld [vmem:[%s465 + $0x68] sm:$0xff]
      %v5467 = vld [vmem:[%s465 + $0x70] sm:$0xff]
      %v5468 = vld [vmem:[%s465 + $0x78] sm:$0xff]
      %v5469 = vld [vmem:[%s465 + $0x80] sm:$0xff]
      %v5470 = vld [vmem:[%s465 + $0x88] sm:$0xff]
      %v5471 = vld [vmem:[%s465 + $0x90] sm:$0xff]
      %v5472 = vld [vmem:[%s465 + $0x98] sm:$0xff]
      %v5473 = vld [vmem:[%s465 + $0xa0] sm:$0xff]
      %v5474 = vld [vmem:[%s465 + $0xa8] sm:$0xff]
      %v5475 = vld [vmem:[%s465 + $0xb0] sm:$0xff]
      %v5476 = vld [vmem:[%s465 + $0xb8] sm:$0xff]
      %v5477 = vld [vmem:[%s465 + $0xc0] sm:$0xff]
      %v5478 = vld [vmem:[%s465 + $0xc8] sm:$0xff]
      %v5479 = vld [vmem:[%s465 + $0xd0] sm:$0xff]
      %v5480 = vld [vmem:[%s465 + $0xd8] sm:$0xff]
      %v5481 = vld [vmem:[%s465 + $0xe0] sm:$0xff]
      %v5482 = vld [vmem:[%s465 + $0xe8] sm:$0xff]
      %v5483 = vld [vmem:[%s465 + $0xf0] sm:$0xff]
      %v5484 = vld [vmem:[%s465 + $0xf8] sm:$0xff]
      %5517 = vrot.lane.b32.xlu0 %v5453, 127
      %v5518 = vpop.permute.xlu0 %5517
      %5519 = vrot.lane.b32.xlu0 %v5454, 127
      %v5520 = vpop.permute.xlu0 %5519
      %5521 = vrot.lane.b32.xlu0 %v5455, 127
      %v5522 = vpop.permute.xlu0 %5521
      %5523 = vrot.lane.b32.xlu0 %v5456, 127
      %v5524 = vpop.permute.xlu0 %5523
      %5525 = vrot.lane.b32.xlu0 %v5457, 127
      %v5526 = vpop.permute.xlu0 %5525
      %5527 = vrot.lane.b32.xlu0 %v5458, 127
      %v5528 = vpop.permute.xlu0 %5527
      %5529 = vrot.lane.b32.xlu0 %v5459, 127
      %v5530 = vpop.permute.xlu0 %5529
      %5531 = vrot.lane.b32.xlu0 %v5460, 127
      %v5532 = vpop.permute.xlu0 %5531
      %5533 = vrot.lane.b32.xlu0 %v5461, 127
      %v5534 = vpop.permute.xlu0 %5533
      %5535 = vrot.lane.b32.xlu0 %v5462, 127
      %v5536 = vpop.permute.xlu0 %5535
      %5537 = vrot.lane.b32.xlu0 %v5463, 127
      %v5538 = vpop.permute.xlu0 %5537
      %5539 = vrot.lane.b32.xlu0 %v5464, 127
      %v5540 = vpop.permute.xlu0 %5539
      %5541 = vrot.lane.b32.xlu0 %v5465, 127
      %v5542 = vpop.permute.xlu0 %5541
      %5543 = vrot.lane.b32.xlu0 %v5466, 127
      %v5544 = vpop.permute.xlu0 %5543
      %5545 = vrot.lane.b32.xlu0 %v5467, 127
      %v5546 = vpop.permute.xlu0 %5545
      %5547 = vrot.lane.b32.xlu0 %v5468, 127
      %v5548 = vpop.permute.xlu0 %5547
      %5549 = vrot.lane.b32.xlu0 %v5469, 127
      %v5550 = vpop.permute.xlu0 %5549
      %5551 = vrot.lane.b32.xlu0 %v5470, 127
      %v5552 = vpop.permute.xlu0 %5551
      %5553 = vrot.lane.b32.xlu0 %v5471, 127
      %v5554 = vpop.permute.xlu0 %5553
      %5555 = vrot.lane.b32.xlu0 %v5472, 127
      %v5556 = vpop.permute.xlu0 %5555
      %5557 = vrot.lane.b32.xlu0 %v5473, 127
      %v5558 = vpop.permute.xlu0 %5557
      %5559 = vrot.lane.b32.xlu0 %v5474, 127
      %v5560 = vpop.permute.xlu0 %5559
      %5561 = vrot.lane.b32.xlu0 %v5475, 127
      %v5562 = vpop.permute.xlu0 %5561
      %5563 = vrot.lane.b32.xlu0 %v5476, 127
      %v5564 = vpop.permute.xlu0 %5563
      %5565 = vrot.lane.b32.xlu0 %v5477, 127
      %v5566 = vpop.permute.xlu0 %5565
      %5567 = vrot.lane.b32.xlu0 %v5478, 127
      %v5568 = vpop.permute.xlu0 %5567
      %5569 = vrot.lane.b32.xlu0 %v5479, 127
      %v5570 = vpop.permute.xlu0 %5569
      %5571 = vrot.lane.b32.xlu0 %v5480, 127
      %v5572 = vpop.permute.xlu0 %5571
      %5573 = vrot.lane.b32.xlu0 %v5481, 127
      %v5574 = vpop.permute.xlu0 %5573
      %5575 = vrot.lane.b32.xlu0 %v5482, 127
      %v5576 = vpop.permute.xlu0 %5575
      %5577 = vrot.lane.b32.xlu0 %v5483, 127
      %v5578 = vpop.permute.xlu0 %5577
      %5579 = vrot.lane.b32.xlu0 %v5484, 127
      %v5580 = vpop.permute.xlu0 %5579
      %v5581 = vsel %vm615, %v5518, %v5520
      %v5582 = vsel %vm615, %v5522, %v5524
      %v5583 = vsel %vm615, %v5526, %v5528
      %v5584 = vsel %vm615, %v5530, %v5532
      %v5585 = vsel %vm615, %v5534, %v5536
      %v5586 = vsel %vm615, %v5538, %v5540
      %v5587 = vsel %vm615, %v5542, %v5544
      %v5588 = vsel %vm615, %v5546, %v5548
      %v5589 = vsel %vm615, %v5550, %v5552
      %v5590 = vsel %vm615, %v5554, %v5556
      %v5591 = vsel %vm615, %v5558, %v5560
      %v5592 = vsel %vm615, %v5562, %v5564
      %v5593 = vsel %vm615, %v5566, %v5568
      %v5594 = vsel %vm615, %v5570, %v5572
      %v5595 = vsel %vm615, %v5574, %v5576
      %v5596 = vsel %vm615, %v5578, %v5580
      %v5629 = vmax.f32 %v5453, %v5581
      %v5630 = vmax.f32 %v5454, %v5520
      %v5631 = vmax.f32 %v5455, %v5582
      %v5632 = vmax.f32 %v5456, %v5524
      %v5633 = vmax.f32 %v5457, %v5583
      %v5634 = vmax.f32 %v5458, %v5528
      %v5635 = vmax.f32 %v5459, %v5584
      %v5636 = vmax.f32 %v5460, %v5532
      %v5637 = vmax.f32 %v5461, %v5585
      %v5638 = vmax.f32 %v5462, %v5536
      %v5639 = vmax.f32 %v5463, %v5586
      %v5640 = vmax.f32 %v5464, %v5540
      %v5641 = vmax.f32 %v5465, %v5587
      %v5642 = vmax.f32 %v5466, %v5544
      %v5643 = vmax.f32 %v5467, %v5588
      %v5644 = vmax.f32 %v5468, %v5548
      %v5645 = vmax.f32 %v5469, %v5589
      %v5646 = vmax.f32 %v5470, %v5552
      %v5647 = vmax.f32 %v5471, %v5590
      %v5648 = vmax.f32 %v5472, %v5556
      %v5649 = vmax.f32 %v5473, %v5591
      %v5650 = vmax.f32 %v5474, %v5560
      %v5651 = vmax.f32 %v5475, %v5592
      %v5652 = vmax.f32 %v5476, %v5564
      %v5653 = vmax.f32 %v5477, %v5593
      %v5654 = vmax.f32 %v5478, %v5568
      %v5655 = vmax.f32 %v5479, %v5594
      %v5656 = vmax.f32 %v5480, %v5572
      %v5657 = vmax.f32 %v5481, %v5595
      %v5658 = vmax.f32 %v5482, %v5576
      %v5659 = vmax.f32 %v5483, %v5596
      %v5660 = vmax.f32 %v5484, %v5580
      %5693 = vrot.lane.b32.xlu0 %v5629, 114
      %v5694 = vpop.permute.xlu0 %5693
      %5695 = vrot.lane.b32.xlu0 %v5630, 114
      %v5696 = vpop.permute.xlu0 %5695
      %5697 = vrot.lane.b32.xlu0 %v5631, 114
      %v5698 = vpop.permute.xlu0 %5697
      %5699 = vrot.lane.b32.xlu0 %v5632, 114
      %v5700 = vpop.permute.xlu0 %5699
      %5701 = vrot.lane.b32.xlu0 %v5633, 114
      %v5702 = vpop.permute.xlu0 %5701
      %5703 = vrot.lane.b32.xlu0 %v5634, 114
      %v5704 = vpop.permute.xlu0 %5703
      %5705 = vrot.lane.b32.xlu0 %v5635, 114
      %v5706 = vpop.permute.xlu0 %5705
      %5707 = vrot.lane.b32.xlu0 %v5636, 114
      %v5708 = vpop.permute.xlu0 %5707
      %5709 = vrot.lane.b32.xlu0 %v5637, 114
      %v5710 = vpop.permute.xlu0 %5709
      %5711 = vrot.lane.b32.xlu0 %v5638, 114
      %v5712 = vpop.permute.xlu0 %5711
      %5713 = vrot.lane.b32.xlu0 %v5639, 114
      %v5714 = vpop.permute.xlu0 %5713
      %5715 = vrot.lane.b32.xlu0 %v5640, 114
      %v5716 = vpop.permute.xlu0 %5715
      %5717 = vrot.lane.b32.xlu0 %v5641, 114
      %v5718 = vpop.permute.xlu0 %5717
      %5719 = vrot.lane.b32.xlu0 %v5642, 114
      %v5720 = vpop.permute.xlu0 %5719
      %5721 = vrot.lane.b32.xlu0 %v5643, 114
      %v5722 = vpop.permute.xlu0 %5721
      %5723 = vrot.lane.b32.xlu0 %v5644, 114
      %v5724 = vpop.permute.xlu0 %5723
      %5725 = vrot.lane.b32.xlu0 %v5645, 114
      %v5726 = vpop.permute.xlu0 %5725
      %5727 = vrot.lane.b32.xlu0 %v5646, 114
      %v5728 = vpop.permute.xlu0 %5727
      %5729 = vrot.lane.b32.xlu0 %v5647, 114
      %v5730 = vpop.permute.xlu0 %5729
      %5731 = vrot.lane.b32.xlu0 %v5648, 114
      %v5732 = vpop.permute.xlu0 %5731
      %5733 = vrot.lane.b32.xlu0 %v5649, 114
      %v5734 = vpop.permute.xlu0 %5733
      %5735 = vrot.lane.b32.xlu0 %v5650, 114
      %v5736 = vpop.permute.xlu0 %5735
      %5737 = vrot.lane.b32.xlu0 %v5651, 114
      %v5738 = vpop.permute.xlu0 %5737
      %5739 = vrot.lane.b32.xlu0 %v5652, 114
      %v5740 = vpop.permute.xlu0 %5739
      %5741 = vrot.lane.b32.xlu0 %v5653, 114
      %v5742 = vpop.permute.xlu0 %5741
      %5743 = vrot.lane.b32.xlu0 %v5654, 114
      %v5744 = vpop.permute.xlu0 %5743
      %5745 = vrot.lane.b32.xlu0 %v5655, 114
      %v5746 = vpop.permute.xlu0 %5745
      %5747 = vrot.lane.b32.xlu0 %v5656, 114
      %v5748 = vpop.permute.xlu0 %5747
      %5749 = vrot.lane.b32.xlu0 %v5657, 114
      %v5750 = vpop.permute.xlu0 %5749
      %5751 = vrot.lane.b32.xlu0 %v5658, 114
      %v5752 = vpop.permute.xlu0 %5751
      %5753 = vrot.lane.b32.xlu0 %v5659, 114
      %v5754 = vpop.permute.xlu0 %5753
      %5755 = vrot.lane.b32.xlu0 %v5660, 114
      %v5756 = vpop.permute.xlu0 %5755
      %v5757 = vsel %vm3497, %v5694, %v5696
      %v5758 = vsel %vm3497, %v5698, %v5700
      %v5759 = vsel %vm3497, %v5702, %v5704
      %v5760 = vsel %vm3497, %v5706, %v5708
      %v5761 = vsel %vm3497, %v5710, %v5712
      %v5762 = vsel %vm3497, %v5714, %v5716
      %v5763 = vsel %vm3497, %v5718, %v5720
      %v5764 = vsel %vm3497, %v5722, %v5724
      %v5765 = vsel %vm3497, %v5726, %v5728
      %v5766 = vsel %vm3497, %v5730, %v5732
      %v5767 = vsel %vm3497, %v5734, %v5736
      %v5768 = vsel %vm3497, %v5738, %v5740
      %v5769 = vsel %vm3497, %v5742, %v5744
      %v5770 = vsel %vm3497, %v5746, %v5748
      %v5771 = vsel %vm3497, %v5750, %v5752
      %v5772 = vsel %vm3497, %v5754, %v5756
      %v5805 = vmax.f32 %v5629, %v5757
      %v5806 = vmax.f32 %v5630, %v5696
      %v5807 = vmax.f32 %v5631, %v5758
      %v5808 = vmax.f32 %v5632, %v5700
      %v5809 = vmax.f32 %v5633, %v5759
      %v5810 = vmax.f32 %v5634, %v5704
      %v5811 = vmax.f32 %v5635, %v5760
      %v5812 = vmax.f32 %v5636, %v5708
      %v5813 = vmax.f32 %v5637, %v5761
      %v5814 = vmax.f32 %v5638, %v5712
      %v5815 = vmax.f32 %v5639, %v5762
      %v5816 = vmax.f32 %v5640, %v5716
      %v5817 = vmax.f32 %v5641, %v5763
      %v5818 = vmax.f32 %v5642, %v5720
      %v5819 = vmax.f32 %v5643, %v5764
      %v5820 = vmax.f32 %v5644, %v5724
      %v5821 = vmax.f32 %v5645, %v5765
      %v5822 = vmax.f32 %v5646, %v5728
      %v5823 = vmax.f32 %v5647, %v5766
      %v5824 = vmax.f32 %v5648, %v5732
      %v5825 = vmax.f32 %v5649, %v5767
      %v5826 = vmax.f32 %v5650, %v5736
      %v5827 = vmax.f32 %v5651, %v5768
      %v5828 = vmax.f32 %v5652, %v5740
      %v5829 = vmax.f32 %v5653, %v5769
      %v5830 = vmax.f32 %v5654, %v5744
      %v5831 = vmax.f32 %v5655, %v5770
      %v5832 = vmax.f32 %v5656, %v5748
      %v5833 = vmax.f32 %v5657, %v5771
      %v5834 = vmax.f32 %v5658, %v5752
      %v5835 = vmax.f32 %v5659, %v5772
      %v5836 = vmax.f32 %v5660, %v5756
      %v5837 = vld [vmem:[%s6] sm:$0xff]
      %v5838 = vld [vmem:[%s6 + $0x8] sm:$0xff]
      %v5839 = vld [vmem:[%s6 + $0x10] sm:$0xff]
      %v5840 = vld [vmem:[%s6 + $0x18] sm:$0xff]
      %v5841 = vld [vmem:[%s6 + $0x20] sm:$0xff]
      %v5842 = vld [vmem:[%s6 + $0x28] sm:$0xff]
      %v5843 = vld [vmem:[%s6 + $0x30] sm:$0xff]
      %v5844 = vld [vmem:[%s6 + $0x38] sm:$0xff]
      %v5845 = vld [vmem:[%s6 + $0x40] sm:$0xff]
      %v5846 = vld [vmem:[%s6 + $0x48] sm:$0xff]
      %v5847 = vld [vmem:[%s6 + $0x50] sm:$0xff]
      %v5848 = vld [vmem:[%s6 + $0x58] sm:$0xff]
      %v5849 = vld [vmem:[%s6 + $0x60] sm:$0xff]
      %v5850 = vld [vmem:[%s6 + $0x68] sm:$0xff]
      %v5851 = vld [vmem:[%s6 + $0x70] sm:$0xff]
      %v5852 = vld [vmem:[%s6 + $0x78] sm:$0xff]
      %v5853 = vld [vmem:[%s6 + $0x80] sm:$0xff]
      %v5854 = vld [vmem:[%s6 + $0x88] sm:$0xff]
      %v5855 = vld [vmem:[%s6 + $0x90] sm:$0xff]
      %v5856 = vld [vmem:[%s6 + $0x98] sm:$0xff]
      %v5857 = vld [vmem:[%s6 + $0xa0] sm:$0xff]
      %v5858 = vld [vmem:[%s6 + $0xa8] sm:$0xff]
      %v5859 = vld [vmem:[%s6 + $0xb0] sm:$0x1f]
      %vm5860 = vcmask 433152
      %v5862 = vsel %vm5860, %v5806, 0
      %v5865 = vsel %vm5860, %v5808, 0
      %v5868 = vsel %vm5860, %v5810, 0
      %v5871 = vsel %vm5860, %v5812, 0
      %v5874 = vsel %vm5860, %v5814, 0
      %v5877 = vsel %vm5860, %v5816, 0
      %v5880 = vsel %vm5860, %v5818, 0
      %v5883 = vsel %vm5860, %v5820, 0
      %v5886 = vsel %vm5860, %v5822, 0
      %v5889 = vsel %vm5860, %v5824, 0
      %v5892 = vsel %vm5860, %v5826, 0
      %v5895 = vsel %vm5860, %v5828, 0
      %v5898 = vsel %vm5860, %v5830, 0
      %v5901 = vsel %vm5860, %v5832, 0
      %v5904 = vsel %vm5860, %v5834, 0
      %v5907 = vsel %vm5860, %v5836, 0
      %vm5909 = vcmask 1044480
      %v5911 = vsel %vm5909, %v5859, 0
      %5913 = vmatprep.subr.mxu0 0.0
      %5914 = vmatpush1.msra.mxu0 %v5852
      %5915 = vmatprep.subr.mxu0 0.0
      %5916 = vmatpush1.msra.mxu0 %v5851
      %5917 = vmatprep.subr.mxu0 0.0
      %5918 = vmatpush1.msra.mxu0 %v5850
      %5919 = vmatprep.subr.mxu0 0.0
      %5920 = vmatpush1.msra.mxu0 %v5849
      %5921 = vmatprep.subr.mxu0 0.0
      %5922 = vmatpush1.msra.mxu0 %v5848
      %5923 = vmatprep.subr.mxu0 0.0
      %5924 = vmatpush1.msra.mxu0 %v5847
      %5925 = vmatprep.subr.mxu0 0.0
      %5926 = vmatpush1.msra.mxu0 %v5846
      %5927 = vmatprep.subr.mxu0 0.0
      %5928 = vmatpush1.msra.mxu0 %v5845
      %5929 = vmatprep.subr.mxu0 0.0
      %5930 = vmatpush1.msra.mxu0 %v5844
      %5931 = vmatprep.subr.mxu0 0.0
      %5932 = vmatpush1.msra.mxu0 %v5843
      %5933 = vmatprep.subr.mxu0 0.0
      %5934 = vmatpush1.msra.mxu0 %v5842
      %5935 = vmatprep.subr.mxu0 0.0
      %5936 = vmatpush1.msra.mxu0 %v5841
      %5937 = vmatprep.subr.mxu0 0.0
      %5938 = vmatpush1.msra.mxu0 %v5840
      %5939 = vmatprep.subr.mxu0 0.0
      %5940 = vmatpush1.msra.mxu0 %v5839
      %5941 = vmatprep.subr.mxu0 0.0
      %5942 = vmatpush1.msra.mxu0 %v5838
      %5943 = vmatprep.subr.mxu0 0.0
      %5944 = vmatpush1.msra.mxu0 %v5837
      %5945 = vmatprep.subr.mxu0 0.0
      %5946 = vmatpush2.msra.mxu0 0.0
      %5947 = vmatprep.subr.mxu0 0.0
      %5948 = vmatpush2.msra.mxu0 0.0
      %5949 = vmatprep.subr.mxu0 0.0
      %5950 = vmatpush2.msra.mxu0 0.0
      %5951 = vmatprep.subr.mxu0 0.0
      %5952 = vmatpush2.msra.mxu0 0.0
      %5953 = vmatprep.subr.mxu0 0.0
      %5954 = vmatpush2.msra.mxu0 0.0
      %5955 = vmatprep.subr.mxu0 0.0
      %5956 = vmatpush2.msra.mxu0 0.0
      %5957 = vmatprep.subr.mxu0 0.0
      %5958 = vmatpush2.msra.mxu0 0.0
      %5959 = vmatprep.subr.mxu0 0.0
      %5960 = vmatpush2.msra.mxu0 0.0
      %5961 = vmatprep.subr.mxu0 0.0
      %5962 = vmatpush2.msra.mxu0 0.0
      %5963 = vmatprep.subr.mxu0 0.0
      %5964 = vmatpush2.msra.mxu0 %v5911
      %5965 = vmatprep.subr.mxu0 0.0
      %5966 = vmatpush2.msra.mxu0 %v5858
      %5967 = vmatprep.subr.mxu0 0.0
      %5968 = vmatpush2.msra.mxu0 %v5857
      %5969 = vmatprep.subr.mxu0 0.0
      %5970 = vmatpush2.msra.mxu0 %v5856
      %5971 = vmatprep.subr.mxu0 0.0
      %5972 = vmatpush2.msra.mxu0 %v5855
      %5973 = vmatprep.subr.mxu0 0.0
      %5974 = vmatpush2.msra.mxu0 %v5854
      %5975 = vmatprep.subr.mxu0 0.0
      %5976 = vmatpush2.msra.mxu0 %v5853
      %5977 = vmatprep.mubr.f32.mxu0 %v5862
      %5978 = vmatmul.mubr.f32.gmra.mxu0 %v5805
      %v5979 = vpop.f32.mrf.mxu0
      %v5980 = vadd.f32 0.0, %v5979
      %v5981 = vpop.f32.mrf.mxu0
      %5982 = vmatprep.mubr.f32.mxu0 %v5865
      %5983 = vmatmul.mubr.f32.gmra.mxu0 %v5807
      %v5984 = vpop.f32.mrf.mxu0
      %v5985 = vadd.f32 0.0, %v5984
      %v5986 = vpop.f32.mrf.mxu0
      %5987 = vmatprep.mubr.f32.mxu0 %v5868
      %5988 = vmatmul.mubr.f32.gmra.mxu0 %v5809
      %v5989 = vpop.f32.mrf.mxu0
      %v5990 = vadd.f32 0.0, %v5989
      %v5991 = vpop.f32.mrf.mxu0
      %5992 = vmatprep.mubr.f32.mxu0 %v5871
      %5993 = vmatmul.mubr.f32.gmra.mxu0 %v5811
      %v5994 = vpop.f32.mrf.mxu0
      %v5995 = vadd.f32 0.0, %v5994
      %v5996 = vpop.f32.mrf.mxu0
      %5997 = vmatprep.mubr.f32.mxu0 %v5874
      %5998 = vmatmul.mubr.f32.gmra.mxu0 %v5813
      %v5999 = vpop.f32.mrf.mxu0
      %v6000 = vadd.f32 0.0, %v5999
      %v6001 = vpop.f32.mrf.mxu0
      %6002 = vmatprep.mubr.f32.mxu0 %v5877
      %6003 = vmatmul.mubr.f32.gmra.mxu0 %v5815
      %v6004 = vpop.f32.mrf.mxu0
      %v6005 = vadd.f32 0.0, %v6004
      %v6006 = vpop.f32.mrf.mxu0
      %6007 = vmatprep.mubr.f32.mxu0 %v5880
      %6008 = vmatmul.mubr.f32.gmra.mxu0 %v5817
      %v6009 = vpop.f32.mrf.mxu0
      %v6010 = vadd.f32 0.0, %v6009
      %v6011 = vpop.f32.mrf.mxu0
      %6012 = vmatprep.mubr.f32.mxu0 %v5883
      %6013 = vmatmul.mubr.f32.gmra.mxu0 %v5819
      %v6014 = vpop.f32.mrf.mxu0
      %v6015 = vadd.f32 0.0, %v6014
      %v6016 = vpop.f32.mrf.mxu0
      %6017 = vmatprep.mubr.f32.mxu0 %v5886
      %6018 = vmatmul.mubr.f32.gmra.mxu0 %v5821
      %v6019 = vpop.f32.mrf.mxu0
      %v6020 = vadd.f32 0.0, %v6019
      %v6021 = vpop.f32.mrf.mxu0
      %6022 = vmatprep.mubr.f32.mxu0 %v5889
      %6023 = vmatmul.mubr.f32.gmra.mxu0 %v5823
      %v6024 = vpop.f32.mrf.mxu0
      %v6025 = vadd.f32 0.0, %v6024
      %v6026 = vpop.f32.mrf.mxu0
      %6027 = vmatprep.mubr.f32.mxu0 %v5892
      %6028 = vmatmul.mubr.f32.gmra.mxu0 %v5825
      %v6029 = vpop.f32.mrf.mxu0
      %v6030 = vadd.f32 0.0, %v6029
      %v6031 = vpop.f32.mrf.mxu0
      %6032 = vmatprep.mubr.f32.mxu0 %v5895
      %6033 = vmatmul.mubr.f32.gmra.mxu0 %v5827
      %v6034 = vpop.f32.mrf.mxu0
      %v6035 = vadd.f32 0.0, %v6034
      %v6036 = vpop.f32.mrf.mxu0
      %6037 = vmatprep.mubr.f32.mxu0 %v5898
      %6038 = vmatmul.mubr.f32.gmra.mxu0 %v5829
      %v6039 = vpop.f32.mrf.mxu0
      %v6040 = vadd.f32 0.0, %v6039
      %v6041 = vpop.f32.mrf.mxu0
      %6042 = vmatprep.mubr.f32.mxu0 %v5901
      %6043 = vmatmul.mubr.f32.gmra.mxu0 %v5831
      %v6044 = vpop.f32.mrf.mxu0
      %v6045 = vadd.f32 0.0, %v6044
      %v6046 = vpop.f32.mrf.mxu0
      %6047 = vmatprep.mubr.f32.mxu0 %v5904
      %6048 = vmatmul.mubr.f32.gmra.mxu0 %v5833
      %v6049 = vpop.f32.mrf.mxu0
      %v6050 = vadd.f32 0.0, %v6049
      %v6051 = vpop.f32.mrf.mxu0
      %6052 = vmatprep.mubr.f32.mxu0 %v5907
      %6053 = vmatmul.mubr.f32.gmra.mxu0 %v5835
      %v6054 = vpop.f32.mrf.mxu0
      %v6055 = vadd.f32 0.0, %v6054
      %v6056 = vpop.f32.mrf.mxu0
      %6057 = vdwg.mxu0
      %v6058 = vrsqrt.pop %v5980
      %v6059 = vmul.f32 %v5980, %v6058
      %vm6060 = vcmp.eq.f32.partialorder %v5980, inf
      %v6061 = vsel %vm6060, %v5980, %v6059
      %vm6062 = vcmp.eq.f32.partialorder %v5980, 0.0
      %v6063 = vand.u32 %v5980, 2147483648
      %v6064 = vsel %vm6062, %v6063, %v6061
      %v6065 = vrsqrt.pop %v5985
      %v6066 = vmul.f32 %v5985, %v6065
      %vm6067 = vcmp.eq.f32.partialorder %v5985, inf
      %v6068 = vsel %vm6067, %v5985, %v6066
      %vm6069 = vcmp.eq.f32.partialorder %v5985, 0.0
      %v6070 = vand.u32 %v5985, 2147483648
      %v6071 = vsel %vm6069, %v6070, %v6068
      %v6072 = vrsqrt.pop %v5990
      %v6073 = vmul.f32 %v5990, %v6072
      %vm6074 = vcmp.eq.f32.partialorder %v5990, inf
      %v6075 = vsel %vm6074, %v5990, %v6073
      %vm6076 = vcmp.eq.f32.partialorder %v5990, 0.0
      %v6077 = vand.u32 %v5990, 2147483648
      %v6078 = vsel %vm6076, %v6077, %v6075
      %v6079 = vrsqrt.pop %v5995
      %v6080 = vmul.f32 %v5995, %v6079
      %vm6081 = vcmp.eq.f32.partialorder %v5995, inf
      %v6082 = vsel %vm6081, %v5995, %v6080
      %vm6083 = vcmp.eq.f32.partialorder %v5995, 0.0
      %v6084 = vand.u32 %v5995, 2147483648
      %v6085 = vsel %vm6083, %v6084, %v6082
      %v6086 = vrsqrt.pop %v6000
      %v6087 = vmul.f32 %v6000, %v6086
      %vm6088 = vcmp.eq.f32.partialorder %v6000, inf
      %v6089 = vsel %vm6088, %v6000, %v6087
      %vm6090 = vcmp.eq.f32.partialorder %v6000, 0.0
      %v6091 = vand.u32 %v6000, 2147483648
      %v6092 = vsel %vm6090, %v6091, %v6089
      %v6093 = vrsqrt.pop %v6005
      %v6094 = vmul.f32 %v6005, %v6093
      %vm6095 = vcmp.eq.f32.partialorder %v6005, inf
      %v6096 = vsel %vm6095, %v6005, %v6094
      %vm6097 = vcmp.eq.f32.partialorder %v6005, 0.0
      %v6098 = vand.u32 %v6005, 2147483648
      %v6099 = vsel %vm6097, %v6098, %v6096
      %v6100 = vrsqrt.pop %v6010
      %v6101 = vmul.f32 %v6010, %v6100
      %vm6102 = vcmp.eq.f32.partialorder %v6010, inf
      %v6103 = vsel %vm6102, %v6010, %v6101
      %vm6104 = vcmp.eq.f32.partialorder %v6010, 0.0
      %v6105 = vand.u32 %v6010, 2147483648
      %v6106 = vsel %vm6104, %v6105, %v6103
      %v6107 = vrsqrt.pop %v6015
      %v6108 = vmul.f32 %v6015, %v6107
      %vm6109 = vcmp.eq.f32.partialorder %v6015, inf
      %v6110 = vsel %vm6109, %v6015, %v6108
      %vm6111 = vcmp.eq.f32.partialorder %v6015, 0.0
      %v6112 = vand.u32 %v6015, 2147483648
      %v6113 = vsel %vm6111, %v6112, %v6110
      %v6114 = vrsqrt.pop %v6020
      %v6115 = vmul.f32 %v6020, %v6114
      %vm6116 = vcmp.eq.f32.partialorder %v6020, inf
      %v6117 = vsel %vm6116, %v6020, %v6115
      %vm6118 = vcmp.eq.f32.partialorder %v6020, 0.0
      %v6119 = vand.u32 %v6020, 2147483648
      %v6120 = vsel %vm6118, %v6119, %v6117
      %v6121 = vrsqrt.pop %v6025
      %v6122 = vmul.f32 %v6025, %v6121
      %vm6123 = vcmp.eq.f32.partialorder %v6025, inf
      %v6124 = vsel %vm6123, %v6025, %v6122
      %vm6125 = vcmp.eq.f32.partialorder %v6025, 0.0
      %v6126 = vand.u32 %v6025, 2147483648
      %v6127 = vsel %vm6125, %v6126, %v6124
      %v6128 = vrsqrt.pop %v6030
      %v6129 = vmul.f32 %v6030, %v6128
      %vm6130 = vcmp.eq.f32.partialorder %v6030, inf
      %v6131 = vsel %vm6130, %v6030, %v6129
      %vm6132 = vcmp.eq.f32.partialorder %v6030, 0.0
      %v6133 = vand.u32 %v6030, 2147483648
      %v6134 = vsel %vm6132, %v6133, %v6131
      %v6135 = vrsqrt.pop %v6035
      %v6136 = vmul.f32 %v6035, %v6135
      %vm6137 = vcmp.eq.f32.partialorder %v6035, inf
      %v6138 = vsel %vm6137, %v6035, %v6136
      %vm6139 = vcmp.eq.f32.partialorder %v6035, 0.0
      %v6140 = vand.u32 %v6035, 2147483648
      %v6141 = vsel %vm6139, %v6140, %v6138
      %v6142 = vrsqrt.pop %v6040
      %v6143 = vmul.f32 %v6040, %v6142
      %vm6144 = vcmp.eq.f32.partialorder %v6040, inf
      %v6145 = vsel %vm6144, %v6040, %v6143
      %vm6146 = vcmp.eq.f32.partialorder %v6040, 0.0
      %v6147 = vand.u32 %v6040, 2147483648
      %v6148 = vsel %vm6146, %v6147, %v6145
      %v6149 = vrsqrt.pop %v6045
      %v6150 = vmul.f32 %v6045, %v6149
      %vm6151 = vcmp.eq.f32.partialorder %v6045, inf
      %v6152 = vsel %vm6151, %v6045, %v6150
      %vm6153 = vcmp.eq.f32.partialorder %v6045, 0.0
      %v6154 = vand.u32 %v6045, 2147483648
      %v6155 = vsel %vm6153, %v6154, %v6152
      %v6156 = vrsqrt.pop %v6050
      %v6157 = vmul.f32 %v6050, %v6156
      %vm6158 = vcmp.eq.f32.partialorder %v6050, inf
      %v6159 = vsel %vm6158, %v6050, %v6157
      %vm6160 = vcmp.eq.f32.partialorder %v6050, 0.0
      %v6161 = vand.u32 %v6050, 2147483648
      %v6162 = vsel %vm6160, %v6161, %v6159
      %v6163 = vrsqrt.pop %v6055
      %v6164 = vmul.f32 %v6055, %v6163
      %vm6165 = vcmp.eq.f32.partialorder %v6055, inf
      %v6166 = vsel %vm6165, %v6055, %v6164
      %vm6167 = vcmp.eq.f32.partialorder %v6055, 0.0
      %v6168 = vand.u32 %v6055, 2147483648
      %v6169 = vsel %vm6167, %v6168, %v6166
      %vm6170 = vcmask 400384
      %6171 = vst.msk [vmem:[%s471] sm:$0xff] %vm6170, %v6064
      %6172 = vst.msk [vmem:[%s471 + $0x8] sm:$0xff] %vm6170, %v6071
      %6173 = vst.msk [vmem:[%s471 + $0x10] sm:$0xff] %vm6170, %v6078
      %6174 = vst.msk [vmem:[%s471 + $0x18] sm:$0xff] %vm6170, %v6085
      %6175 = vst.msk [vmem:[%s471 + $0x20] sm:$0xff] %vm6170, %v6092
      %6176 = vst.msk [vmem:[%s471 + $0x28] sm:$0xff] %vm6170, %v6099
      %6177 = vst.msk [vmem:[%s471 + $0x30] sm:$0xff] %vm6170, %v6106
      %6178 = vst.msk [vmem:[%s471 + $0x38] sm:$0xff] %vm6170, %v6113
      %6179 = vst.msk [vmem:[%s471 + $0x40] sm:$0xff] %vm6170, %v6120
      %6180 = vst.msk [vmem:[%s471 + $0x48] sm:$0xff] %vm6170, %v6127
      %6181 = vst.msk [vmem:[%s471 + $0x50] sm:$0xff] %vm6170, %v6134
      %6182 = vst.msk [vmem:[%s471 + $0x58] sm:$0xff] %vm6170, %v6141
      %6183 = vst.msk [vmem:[%s471 + $0x60] sm:$0xff] %vm6170, %v6148
      %6184 = vst.msk [vmem:[%s471 + $0x68] sm:$0xff] %vm6170, %v6155
      %6185 = vst.msk [vmem:[%s471 + $0x70] sm:$0xff] %vm6170, %v6162
      %6186 = vst.msk [vmem:[%s471 + $0x78] sm:$0xff] %vm6170, %v6169
      %s6187 = smul.u32 8, %s25
      %p6188 = scmp.lt.s32.totalorder %s6187, 15
      %s6189 = scalar_select %p6188, %s6187, 15
      %s6190 = smul.addr %s6189, 7
      %s6191 = smul.addr %s6190, 8
      %s6192 = scalar_lea.vmem %s11, %s6191
      %s6193 = smul.u32 16, %s25
      %p6194 = scmp.lt.s32.totalorder %s6193, 31
      %s6195 = scalar_select %p6194, %s6193, 31
      %s6196 = smul.addr %s6195, 2
      %s6197 = smul.addr %s6196, 8
      %s6198 = scalar_lea.vmem %s12, %s6197
      %s6199 = smul.u32 16, %s25
      %p6200 = scmp.lt.s32.totalorder %s6199, 31
      %s6201 = scalar_select %p6200, %s6199, 31
      %s6202 = smul.addr %s6201, 8
      %s6203 = scalar_lea.vmem %s13, %s6202
      // Predicated region
      $region65: #{convnet_forward.2} parent=63 // pred_check
        %p6204 = pneg %p279
      $region66: #{convnet_forward.2} parent=63 // pred_check_branch
        %6206 = sbr.rel (%p6204) target = $region68
      $region67: #{convnet_forward.2} parent=63 // pred_region
        %s6207 = smul.u32 8, %s25
      $region68: #{convnet_forward.2} parent=63 // pred_fallthru
        _
      // Predicated region
      $region69: #{convnet_forward.2} parent=63 // pred_check
        %p6208 = pneg %p305
      $region70: #{convnet_forward.2} parent=63 // pred_check_branch
        %6210 = sbr.rel (%p6208) target = $region72
      $region71: #{convnet_forward.2} parent=63 // pred_region
        %s6211 = smul.u32 16, %s25
      $region72: #{convnet_forward.2} parent=63 // pred_fallthru
        _
      // Predicated region
      $region73: #{convnet_forward.2} parent=63 // pred_check
        %p6212 = pneg %p331
      $region74: #{convnet_forward.2} parent=63 // pred_check_branch
        %6214 = sbr.rel (%p6212) target = $region76
      $region75: #{convnet_forward.2} parent=63 // pred_region
        %s6215 = smul.u32 16, %s25
      $region76: #{convnet_forward.2} parent=63 // pred_fallthru
        _
    $region64: #{convnet_forward.2} parent=5 // pred_fallthru
      _
    %p6216 = scmp.le.s32.totalorder 2, %s20
    // Predicated region
    $region77: #{convnet_forward.2} parent=5 // pred_check
      %p6217 = pneg %p6216
    $region78: #{convnet_forward.2} parent=5 // pred_check_branch
      %6219 = sbr.rel (%p6217) target = $region80
    $region79: #{convnet_forward.2} parent=5 // pred_region
      %s6220 = ssub.s32 %s20, 2
      // Predicated region
      $region81: #{convnet_forward.2} parent=79 // pred_check
        %p6221 = pneg %p285
      $region82: #{convnet_forward.2} parent=79 // pred_check_branch
        %6223 = sbr.rel (%p6221) target = $region84
      $region83: #{convnet_forward.2} parent=79 // pred_region
        %s6224 = smul.u32 8, %s26
        %p6225 = scmp.lt.s32.totalorder %s6224, 15
        %s6226 = scalar_select %p6225, %s6224, 15
        %s6227 = smul.addr %s6226, 7
        %s6228 = smul.addr %s6227, 8
        %s6229 = scalar_lea.vmem %s11, %s6228
      $region84: #{convnet_forward.2} parent=79 // pred_fallthru
        _
      // Predicated region
      $region85: #{convnet_forward.2} parent=79 // pred_check
        %p6230 = pneg %p311
      $region86: #{convnet_forward.2} parent=79 // pred_check_branch
        %6232 = sbr.rel (%p6230) target = $region88
      $region87: #{convnet_forward.2} parent=79 // pred_region
        %s6233 = smul.u32 16, %s26
        %p6234 = scmp.lt.s32.totalorder %s6233, 31
        %s6235 = scalar_select %p6234, %s6233, 31
        %s6236 = smul.addr %s6235, 2
        %s6237 = smul.addr %s6236, 8
        %s6238 = scalar_lea.vmem %s12, %s6237
      $region88: #{convnet_forward.2} parent=79 // pred_fallthru
        _
      // Predicated region
      $region89: #{convnet_forward.2} parent=79 // pred_check
        %p6239 = pneg %p337
      $region90: #{convnet_forward.2} parent=79 // pred_check_branch
        %6241 = sbr.rel (%p6239) target = $region92
      $region91: #{convnet_forward.2} parent=79 // pred_region
        %s6242 = smul.u32 16, %s26
        %p6243 = scmp.lt.s32.totalorder %s6242, 31
        %s6244 = scalar_select %p6243, %s6242, 31
        %s6245 = smul.addr %s6244, 8
        %s6246 = scalar_lea.vmem %s13, %s6245
      $region92: #{convnet_forward.2} parent=79 // pred_fallthru
        _
    $region80: #{convnet_forward.2} parent=5 // pred_fallthru
      _
  $region6: #{convnet_forward.2} parent=0 // loop_footer
    %s24 = sadd.s32 1, %s20
  $region7: #{convnet_forward.2} parent=0 // loop_footer_branch
    %19 = sbr.rel target = $region3
  $region8: #{convnet_forward.2} parent=0 // loop_exit
    _

</llo_original>
